<compile_context>
chip_gen: v7x
topology: tpu7x:2x2x1
jax: 0.10.0
libtpu: 0.0.40
codegen_flags: <defaults>
</compile_context>

<pallas_src>
import math
import numpy as np
import jax
import jax.numpy as jnp
from jax import lax
from jax.experimental import pallas as pl
from jax.experimental.pallas import tpu as pltpu

HIDDEN = 200        # self.hidden_dim = 200 in the PyTorch module
HIDDEN_PAD = 256    # lane-aligned hidden dim used inside the kernel


def _gru_ac_kernel(state_ref, action_ref,
                   wi_ref, wh_ref, bi_ref, bhn_ref,
                   whead_ref, bhead_ref,
                   out_ref,
                   h_ref, gi_ref, hall_ref):
    c = pl.program_id(0)

    @pl.when(c == 0)
    def _():
        h_ref[...] = jnp.zeros_like(h_ref)

    Bp, Hp = h_ref.shape
    TB = state_ref.shape[0]          # Tc * Bp
    Tc = TB // Bp
    A = action_ref.shape[-1]
    log2pi = math.log(2.0 * math.pi)

    # ---- Hoisted input projection for the whole chunk: one large MXU call. ----
    # gi rows are [t*Bp + b]; r/z gate biases already include the hidden bias.
    gi_ref[...] = jnp.dot(state_ref[...], wi_ref[...],
                          preferred_element_type=jnp.float32) + bi_ref[...]

    # Pre-broadcast b_hn once (it sits inside the r*(...) term so it cannot be fused
    # into gi; broadcasting inside the loop would be re-emitted every iteration).
    bhn = jnp.broadcast_to(bhn_ref[...], (Bp, Hp))

    # ---- Serial GRU recurrence: only h @ Wh + gate math per step. ----
    def step(t, h):
        off = pl.multiple_of(t * Bp, Bp)
        gi = gi_ref[pl.ds(off, Bp), :]                                    # (Bp, 3Hp)
        gh = jnp.dot(h, wh_ref[...], preferred_element_type=jnp.float32)  # (Bp, 3Hp)
        # Lane-aligned gate slices (Hp is a multiple of 128).
        r = jax.nn.sigmoid(gi[:, :Hp] + gh[:, :Hp])
        z = jax.nn.sigmoid(gi[:, Hp:2 * Hp] + gh[:, Hp:2 * Hp])
        n = jnp.tanh(gi[:, 2 * Hp:] + r * (gh[:, 2 * Hp:] + bhn))
        h_new = (1.0 - z) * n + z * h
        hall_ref[pl.ds(off, Bp), :] = h_new
        return h_new

    h_ref[...] = lax.fori_loop(0, Tc, step, h_ref[...], unroll=min(Tc, 8))

    # ---- Vectorized epilogue: one fused head matmul + distribution math. ----
    head = jnp.dot(hall_ref[...], whead_ref[...],
                   preferred_element_type=jnp.float32) + bhead_ref[...]   # (TB, 2A+1)
    head3 = head.reshape(Tc, Bp, 2 * A + 1)          # leading-dim split (cheap)
    act3 = action_ref[...].reshape(Tc, Bp, A)        # leading-dim split (cheap)

    mean = head3[..., :A]
    var = jax.nn.softplus(head3[..., A:2 * A])
    log_var = jnp.log(var)
    diff = act3 - mean
    quad = jnp.sum(diff * diff * pl.reciprocal(var, approx=False), axis=-1)  # (Tc, Bp)
    logdet = jnp.sum(log_var, axis=-1)                                        # (Tc, Bp)
    val = jnp.sum(head3[..., 2 * A:], axis=-1)                                # (Tc, Bp)
    logp = -0.5 * (quad + logdet + A * log2pi)
    ent = 0.5 * A * (1.0 + log2pi) + 0.5 * logdet

    # Lane-dense writeback: one (Bp, Tc) tile per quantity (time on the lane axis),
    # stored at sublane-aligned row offsets of the fused output block.
    out_ref[pl.ds(0, Bp), :] = logp.T
    out_ref[pl.ds(Bp, Bp), :] = val.T
    out_ref[pl.ds(2 * Bp, Bp), :] = ent.T


def gru_ac_evaluate(state, action, params, *, t_chunk=256):
    """Pallas implementation of GruAC.evaluate(state, action)."""
    T, B, S = state.shape
    A = action.shape[-1]
    H = HIDDEN
    Hp = HIDDEN_PAD
    K = 2 * A + 1
    f32 = jnp.float32

    # --- Pad batch to a sublane multiple. ---
    Bp = max(8, -(-B // 8) * 8)

    # --- Time chunking: single chunk at toy sizes; Tc a multiple of 128 otherwise so
    #     the lane-dense output block stays (8,128)-legal. Cap Tc so the per-chunk
    #     gi/h_all scratches stay under ~24 MiB (fits v7x's 64 MiB VMEM). ---
    if T <= t_chunk:
        Tc = T
    else:
        bytes_per_row = 4 * (3 * Hp + Hp)            # gi + h_all per (t, b) row
        tc_cap = max(128, ((24 << 20) // (Bp * bytes_per_row)) // 128 * 128)
        Tc = min(-(-t_chunk // 128) * 128, tc_cap)
    nc = -(-T // Tc)
    Tp = nc * Tc
    # NOTE: padded timesteps (Tp > T) run through the recurrence at the END of the
    # last chunk; this is safe only because h is not returned and their outputs are
    # sliced away below.

    # --- Pad + flatten inputs to 2D (row = t*Bp + b). ---
    def prep(x, feat):
        x = jnp.pad(x.astype(f32), ((0, Tp - T), (0, Bp - B), (0, 0)))
        return x.reshape(Tp * Bp, feat)

    state2d = prep(state, S)
    action2d = prep(action, A)

    # --- Fuse + lane-pad parameters (cheap one-time XLA ops). Pad weights/biases are
    #     zero, so the padded hidden lanes stay exactly 0 through the recurrence. ---
    def pad_c(w):   # pad gate columns H -> Hp
        return jnp.pad(w.astype(f32), ((0, 0), (0, Hp - w.shape[1])))

    def pad_rc(w):  # pad hidden-to-hidden block (H, H) -> (Hp, Hp)
        return jnp.pad(w.astype(f32), ((0, Hp - w.shape[0]), (0, Hp - w.shape[1])))

    wi = jnp.concatenate([pad_c(params["wir"]), pad_c(params["wiz"]),
                          pad_c(params["win"])], axis=1)                     # (S, 3Hp)
    wh = jnp.concatenate([pad_rc(params["whr"]), pad_rc(params["whz"]),
                          pad_rc(params["whn"])], axis=1)                    # (Hp, 3Hp)
    bi = jnp.concatenate([pad_c(params["bir"] + params["bhr"]),
                          pad_c(params["biz"] + params["bhz"]),
                          pad_c(params["bin"])], axis=1)                     # (1, 3Hp)
    bhn = pad_c(params["bhn"])                                               # (1, Hp)
    w_head = jnp.concatenate([params["wmean"], params["wvar"],
                              params["wcrit"]], axis=1).astype(f32)          # (H, K)
    w_head = jnp.pad(w_head, ((0, Hp - H), (0, 0)))                          # (Hp, K)
    b_head = jnp.concatenate([params["bmean"], params["bvar"],
                              params["bcrit"]], axis=1).astype(f32)          # (1, K)

    const2 = lambda shape: pl.BlockSpec(shape, lambda c: (0, 0))
    in_specs = [
        pl.BlockSpec((Tc * Bp, S), lambda c: (c, 0)),    # state chunk (2D, no pad waste)
        pl.BlockSpec((Tc * Bp, A), lambda c: (c, 0)),    # action chunk
        const2((S, 3 * Hp)),                             # fused input-gate weights
        const2((Hp, 3 * Hp)),                            # fused hidden-gate weights
        const2((1, 3 * Hp)),                             # fused gate biases
        const2((1, Hp)),                                 # b_hn
        const2((Hp, K)),                                 # fused head weights
        const2((1, K)),                                  # fused head biases
    ]
    out_specs = pl.BlockSpec((3 * Bp, Tc), lambda c: (0, c))   # lane-dense fused output

    out = pl.pallas_call(
        _gru_ac_kernel,
        out_shape=jax.ShapeDtypeStruct((3 * Bp, Tp), jnp.float32),
        grid_spec=pltpu.PrefetchScalarGridSpec(
            num_scalar_prefetch=0,
            grid=(nc,),
            in_specs=in_specs,
            out_specs=out_specs,
            scratch_shapes=[
                pltpu.VMEM((Bp, Hp), jnp.float32),            # h carried across chunks
                pltpu.VMEM((Tc * Bp, 3 * Hp), jnp.float32),   # hoisted input projection
                pltpu.VMEM((Tc * Bp, Hp), jnp.float32),       # all hidden states of chunk
            ],
        ),
        compiler_params=pltpu.CompilerParams(
            dimension_semantics=("arbitrary",),     # recurrence: chunks are sequential
            vmem_limit_bytes=48 * 1024 * 1024,
        ),
    )(state2d, action2d, wi, wh, bi, bhn, w_head, b_head)

    out3 = out.reshape(3, Bp, Tp)
    logp = out3[0, :B, :T].T      # (T, B)
    val = out3[1, :B, :T].T
    ent = out3[2, :B, :T].T
    return logp, val, ent


def reference_evaluate(state, action, p):
    """Pure-JAX reference (mirrors torch semantics) for verification."""
    T, B, S = state.shape
    A = action.shape[-1]
    H = HIDDEN
    log2pi = math.log(2.0 * math.pi)

    def step(h, xs):
        x, a = xs
        r = jax.nn.sigmoid(x @ p["wir"] + p["bir"] + h @ p["whr"] + p["bhr"])
        z = jax.nn.sigmoid(x @ p["wiz"] + p["biz"] + h @ p["whz"] + p["bhz"])
        n = jnp.tanh(x @ p["win"] + p["bin"] + r * (h @ p["whn"] + p["bhn"]))
        h_new = (1.0 - z) * n + z * h
        mean = h_new @ p["wmean"] + p["bmean"]
        var = jax.nn.softplus(h_new @ p["wvar"] + p["bvar"])
        log_var = jnp.log(var)
        diff = a - mean
        quad = jnp.sum(diff * diff / var, axis=-1)
        logdet = jnp.sum(log_var, axis=-1)
        logp = -0.5 * (quad + logdet + A * log2pi)
        ent = 0.5 * A * (1.0 + log2pi) + 0.5 * logdet
        val = (h_new @ p["wcrit"] + p["bcrit"])[:, 0]
        return h_new, (logp, val, ent)

    h0 = jnp.zeros((B, H), jnp.float32)
    _, (logp, val, ent) = lax.scan(step, h0, (state, action))
    return logp, val, ent


def make_params(key, state_dim, action_dim):
    H = HIDDEN
    k_gru = 1.0 / math.sqrt(H)
    keys = jax.random.split(key, 20)
    u = lambda k, shape, scale: jax.random.uniform(k, shape, jnp.float32, -scale, scale)
    return {
        "wir": u(keys[0], (state_dim, H), k_gru),
        "wiz": u(keys[1], (state_dim, H), k_gru),
        "win": u(keys[2], (state_dim, H), k_gru),
        "whr": u(keys[3], (H, H), k_gru),
        "whz": u(keys[4], (H, H), k_gru),
        "whn": u(keys[5], (H, H), k_gru),
        "bir": u(keys[6], (1, H), k_gru),
        "biz": u(keys[7], (1, H), k_gru),
        "bin": u(keys[8], (1, H), k_gru),
        "bhr": u(keys[9], (1, H), k_gru),
        "bhz": u(keys[10], (1, H), k_gru),
        "bhn": u(keys[11], (1, H), k_gru),
        "wmean": u(keys[12], (H, action_dim), k_gru),
        "bmean": u(keys[13], (1, action_dim), k_gru),
        "wvar": u(keys[14], (H, action_dim), k_gru),
        "bvar": u(keys[15], (1, action_dim), k_gru),
        "wcrit": u(keys[16], (H, 1), k_gru),
        "bcrit": u(keys[17], (1, 1), k_gru),
    }


if __name__ == "__main__":
    T, B = 8, 4           # seq_len, batch_size
    STATE_DIM = 16
    ACTION_DIM = 6

    key = jax.random.PRNGKey(0)
    k_p, k_s, k_a = jax.random.split(key, 3)
    params = make_params(k_p, STATE_DIM, ACTION_DIM)
    state = jax.random.normal(k_s, (T, B, STATE_DIM), jnp.float32)
    action = jax.random.normal(k_a, (T, B, ACTION_DIM), jnp.float32)

    logp, val, ent = jax.block_until_ready(gru_ac_evaluate(state, action, params))
    logp_r, val_r, ent_r = jax.block_until_ready(reference_evaluate(state, action, params))

    assert logp.shape == (T, B) and val.shape == (T, B) and ent.shape == (T, B)
    np.testing.assert_allclose(np.asarray(logp), np.asarray(logp_r), rtol=1e-4, atol=1e-4)
    np.testing.assert_allclose(np.asarray(val), np.asarray(val_r), rtol=1e-4, atol=1e-4)
    np.testing.assert_allclose(np.asarray(ent), np.asarray(ent_r), rtol=1e-4, atol=1e-4)

    print("KERNEL_OK")
</pallas_src>

<mosaic_0001>
module attributes {stable_mosaic.version = 11 : i64} {
  func.func @_gru_ac_kernel(%arg0: i32, %arg1: memref<64x16xf32, #tpu.memory_space<vmem>>, %arg2: memref<64x6xf32, #tpu.memory_space<vmem>>, %arg3: memref<16x768xf32, #tpu.memory_space<vmem>>, %arg4: memref<256x768xf32, #tpu.memory_space<vmem>>, %arg5: memref<1x768xf32, #tpu.memory_space<vmem>>, %arg6: memref<1x256xf32, #tpu.memory_space<vmem>>, %arg7: memref<256x13xf32, #tpu.memory_space<vmem>>, %arg8: memref<1x13xf32, #tpu.memory_space<vmem>>, %arg9: memref<24x8xf32, #tpu.memory_space<vmem>>, %arg10: memref<8x256xf32, #tpu.memory_space<vmem>>, %arg11: memref<64x768xf32, #tpu.memory_space<vmem>>, %arg12: memref<64x256xf32, #tpu.memory_space<vmem>>) attributes {dimension_semantics = [#tpu.dimension_semantics<arbitrary>], iteration_bounds = array<i64: 1>, scalar_prefetch = 0 : i64, scratch_operands = 3 : i64, tpu.core_type = #tpu.core_type<tc>, window_params = [{transform_indices = @transform_0, window_bounds = array<i64: 64, 16>}, {transform_indices = @transform_1, window_bounds = array<i64: 64, 6>}, {pipeline_mode = #tpu.pipeline_mode<synchronous>, transform_indices = @transform_2, window_bounds = array<i64: 16, 768>}, {pipeline_mode = #tpu.pipeline_mode<synchronous>, transform_indices = @transform_3, window_bounds = array<i64: 256, 768>}, {pipeline_mode = #tpu.pipeline_mode<synchronous>, transform_indices = @transform_4, window_bounds = array<i64: 1, 768>}, {pipeline_mode = #tpu.pipeline_mode<synchronous>, transform_indices = @transform_5, window_bounds = array<i64: 1, 256>}, {pipeline_mode = #tpu.pipeline_mode<synchronous>, transform_indices = @transform_6, window_bounds = array<i64: 256, 13>}, {pipeline_mode = #tpu.pipeline_mode<synchronous>, transform_indices = @transform_7, window_bounds = array<i64: 1, 13>}, {transform_indices = @transform_8, window_bounds = array<i64: 24, 8>}]} {
    %c0_i32 = arith.constant 0 : i32
    %0 = arith.cmpi eq, %arg0, %c0_i32 : i32
    %1 = arith.extui %0 : i1 to i32
    %c0_i32_0 = arith.constant 0 : i32
    %2 = arith.cmpi ne, %1, %c0_i32_0 : i32
    scf.if %2 {
      %cst_109 = arith.constant 0.000000e+00 : f32
      %344 = vector.broadcast %cst_109 : f32 to vector<8x256xf32>
      %c0_110 = arith.constant 0 : index
      %c0_111 = arith.constant 0 : index
      %345 = vector.load %arg10[%c0_110, %c0_111] : memref<8x256xf32, #tpu.memory_space<vmem>>, vector<8x256xf32>
      tpu.vector_store %arg10[%c0_110, %c0_111], %344 {strides = array<i32>} : memref<8x256xf32, #tpu.memory_space<vmem>>, vector<8x256xf32>,
    } else {
    }
    %c0 = arith.constant 0 : index
    %c0_1 = arith.constant 0 : index
    %3 = vector.load %arg1[%c0, %c0_1] : memref<64x16xf32, #tpu.memory_space<vmem>>, vector<64x16xf32>
    %c0_2 = arith.constant 0 : index
    %c0_3 = arith.constant 0 : index
    %4 = vector.load %arg3[%c0_2, %c0_3] : memref<16x768xf32, #tpu.memory_space<vmem>>, vector<16x768xf32>
    %cst = arith.constant dense<0.000000e+00> : vector<64x768xf32>
    %5 = tpu.matmul %3, %4, %cst {dimension_numbers = #tpu.dot_dimension_numbers<[1], [0], [0], [1], [0, 0, 1, 1], [], []>} : vector<64x16xf32>, vector<16x768xf32>, vector<64x768xf32> -> vector<64x768xf32>
    %c0_4 = arith.constant 0 : index
    %c0_5 = arith.constant 0 : index
    %6 = vector.load %arg5[%c0_4, %c0_5] : memref<1x768xf32, #tpu.memory_space<vmem>>, vector<1x768xf32>
    %7 = vector.broadcast %6 : vector<1x768xf32> to vector<64x768xf32>
    %8 = arith.addf %5, %7 : vector<64x768xf32>
    %c0_6 = arith.constant 0 : index
    %c0_7 = arith.constant 0 : index
    %9 = vector.load %arg11[%c0_6, %c0_7] : memref<64x768xf32, #tpu.memory_space<vmem>>, vector<64x768xf32>
    tpu.vector_store %arg11[%c0_6, %c0_7], %8 {strides = array<i32>} : memref<64x768xf32, #tpu.memory_space<vmem>>, vector<64x768xf32>,
    %c0_8 = arith.constant 0 : index
    %c0_9 = arith.constant 0 : index
    %10 = vector.load %arg6[%c0_8, %c0_9] : memref<1x256xf32, #tpu.memory_space<vmem>>, vector<1x256xf32>
    %11 = vector.shape_cast %10 : vector<1x256xf32> to vector<1x256xf32>
    %12 = vector.broadcast %11 : vector<1x256xf32> to vector<8x256xf32>
    %c0_10 = arith.constant 0 : index
    %c0_11 = arith.constant 0 : index
    %13 = vector.load %arg10[%c0_10, %c0_11] : memref<8x256xf32, #tpu.memory_space<vmem>>, vector<8x256xf32>
    %c0_i32_12 = arith.constant 0 : i32
    %c8_i32 = arith.constant 8 : i32
    %14 = arith.muli %c0_i32_12, %c8_i32 : i32
    %15 = tpu.assume_multiple %14, 8 : i32
    %16 = arith.index_cast %15 : i32 to index
    %c0_13 = arith.constant 0 : index
    %17 = vector.load %arg11[%16, %c0_13] : memref<64x768xf32, #tpu.memory_space<vmem>>, vector<8x768xf32>
    %c0_14 = arith.constant 0 : index
    %c0_15 = arith.constant 0 : index
    %18 = vector.load %arg4[%c0_14, %c0_15] : memref<256x768xf32, #tpu.memory_space<vmem>>, vector<256x768xf32>
    %cst_16 = arith.constant dense<0.000000e+00> : vector<8x768xf32>
    %19 = tpu.matmul %13, %18, %cst_16 {dimension_numbers = #tpu.dot_dimension_numbers<[1], [0], [0], [1], [0, 0, 1, 1], [], []>} : vector<8x256xf32>, vector<256x768xf32>, vector<8x768xf32> -> vector<8x768xf32>
    %20 = vector.extract_strided_slice %17 {offsets = [0, 0], sizes = [8, 256], strides = [1, 1]} : vector<8x768xf32> to vector<8x256xf32>
    %21 = vector.extract_strided_slice %19 {offsets = [0, 0], sizes = [8, 256], strides = [1, 1]} : vector<8x768xf32> to vector<8x256xf32>
    %22 = arith.addf %20, %21 : vector<8x256xf32>
    %23 = arith.negf %22 : vector<8x256xf32>
    %24 = math.exp %23 : vector<8x256xf32>
    %cst_17 = arith.constant 1.000000e+00 : f32
    %25 = vector.broadcast %cst_17 : f32 to vector<8x256xf32>
    %26 = arith.addf %25, %24 : vector<8x256xf32>
    %27 = arith.divf %25, %26 : vector<8x256xf32>
    %28 = vector.extract_strided_slice %17 {offsets = [0, 256], sizes = [8, 256], strides = [1, 1]} : vector<8x768xf32> to vector<8x256xf32>
    %29 = vector.extract_strided_slice %19 {offsets = [0, 256], sizes = [8, 256], strides = [1, 1]} : vector<8x768xf32> to vector<8x256xf32>
    %30 = arith.addf %28, %29 : vector<8x256xf32>
    %31 = arith.negf %30 : vector<8x256xf32>
    %32 = math.exp %31 : vector<8x256xf32>
    %cst_18 = arith.constant 1.000000e+00 : f32
    %33 = vector.broadcast %cst_18 : f32 to vector<8x256xf32>
    %34 = arith.addf %33, %32 : vector<8x256xf32>
    %35 = arith.divf %33, %34 : vector<8x256xf32>
    %36 = vector.extract_strided_slice %17 {offsets = [0, 512], sizes = [8, 256], strides = [1, 1]} : vector<8x768xf32> to vector<8x256xf32>
    %37 = vector.extract_strided_slice %19 {offsets = [0, 512], sizes = [8, 256], strides = [1, 1]} : vector<8x768xf32> to vector<8x256xf32>
    %38 = arith.addf %37, %12 : vector<8x256xf32>
    %39 = arith.mulf %27, %38 : vector<8x256xf32>
    %40 = arith.addf %36, %39 : vector<8x256xf32>
    %41 = math.tanh %40 : vector<8x256xf32>
    %cst_19 = arith.constant 1.000000e+00 : f32
    %42 = vector.broadcast %cst_19 : f32 to vector<8x256xf32>
    %43 = arith.subf %42, %35 : vector<8x256xf32>
    %44 = arith.mulf %43, %41 : vector<8x256xf32>
    %45 = arith.mulf %35, %13 : vector<8x256xf32>
    %46 = arith.addf %44, %45 : vector<8x256xf32>
    %47 = arith.index_cast %15 : i32 to index
    %c0_20 = arith.constant 0 : index
    %48 = vector.load %arg12[%47, %c0_20] : memref<64x256xf32, #tpu.memory_space<vmem>>, vector<8x256xf32>
    tpu.vector_store %arg12[%47, %c0_20], %46 {strides = array<i32>} : memref<64x256xf32, #tpu.memory_space<vmem>>, vector<8x256xf32>,
    %c1_i32 = arith.constant 1 : i32
    %c8_i32_21 = arith.constant 8 : i32
    %49 = arith.muli %c1_i32, %c8_i32_21 : i32
    %50 = tpu.assume_multiple %49, 8 : i32
    %51 = arith.index_cast %50 : i32 to index
    %c0_22 = arith.constant 0 : index
    %52 = vector.load %arg11[%51, %c0_22] : memref<64x768xf32, #tpu.memory_space<vmem>>, vector<8x768xf32>
    %c0_23 = arith.constant 0 : index
    %c0_24 = arith.constant 0 : index
    %53 = vector.load %arg4[%c0_23, %c0_24] : memref<256x768xf32, #tpu.memory_space<vmem>>, vector<256x768xf32>
    %cst_25 = arith.constant dense<0.000000e+00> : vector<8x768xf32>
    %54 = tpu.matmul %46, %53, %cst_25 {dimension_numbers = #tpu.dot_dimension_numbers<[1], [0], [0], [1], [0, 0, 1, 1], [], []>} : vector<8x256xf32>, vector<256x768xf32>, vector<8x768xf32> -> vector<8x768xf32>
    %55 = vector.extract_strided_slice %52 {offsets = [0, 0], sizes = [8, 256], strides = [1, 1]} : vector<8x768xf32> to vector<8x256xf32>
    %56 = vector.extract_strided_slice %54 {offsets = [0, 0], sizes = [8, 256], strides = [1, 1]} : vector<8x768xf32> to vector<8x256xf32>
    %57 = arith.addf %55, %56 : vector<8x256xf32>
    %58 = arith.negf %57 : vector<8x256xf32>
    %59 = math.exp %58 : vector<8x256xf32>
    %cst_26 = arith.constant 1.000000e+00 : f32
    %60 = vector.broadcast %cst_26 : f32 to vector<8x256xf32>
    %61 = arith.addf %60, %59 : vector<8x256xf32>
    %62 = arith.divf %60, %61 : vector<8x256xf32>
    %63 = vector.extract_strided_slice %52 {offsets = [0, 256], sizes = [8, 256], strides = [1, 1]} : vector<8x768xf32> to vector<8x256xf32>
    %64 = vector.extract_strided_slice %54 {offsets = [0, 256], sizes = [8, 256], strides = [1, 1]} : vector<8x768xf32> to vector<8x256xf32>
    %65 = arith.addf %63, %64 : vector<8x256xf32>
    %66 = arith.negf %65 : vector<8x256xf32>
    %67 = math.exp %66 : vector<8x256xf32>
    %cst_27 = arith.constant 1.000000e+00 : f32
    %68 = vector.broadcast %cst_27 : f32 to vector<8x256xf32>
    %69 = arith.addf %68, %67 : vector<8x256xf32>
    %70 = arith.divf %68, %69 : vector<8x256xf32>
    %71 = vector.extract_strided_slice %52 {offsets = [0, 512], sizes = [8, 256], strides = [1, 1]} : vector<8x768xf32> to vector<8x256xf32>
    %72 = vector.extract_strided_slice %54 {offsets = [0, 512], sizes = [8, 256], strides = [1, 1]} : vector<8x768xf32> to vector<8x256xf32>
    %73 = arith.addf %72, %12 : vector<8x256xf32>
    %74 = arith.mulf %62, %73 : vector<8x256xf32>
    %75 = arith.addf %71, %74 : vector<8x256xf32>
    %76 = math.tanh %75 : vector<8x256xf32>
    %cst_28 = arith.constant 1.000000e+00 : f32
    %77 = vector.broadcast %cst_28 : f32 to vector<8x256xf32>
    %78 = arith.subf %77, %70 : vector<8x256xf32>
    %79 = arith.mulf %78, %76 : vector<8x256xf32>
    %80 = arith.mulf %70, %46 : vector<8x256xf32>
    %81 = arith.addf %79, %80 : vector<8x256xf32>
    %82 = arith.index_cast %50 : i32 to index
    %c0_29 = arith.constant 0 : index
    %83 = vector.load %arg12[%82, %c0_29] : memref<64x256xf32, #tpu.memory_space<vmem>>, vector<8x256xf32>
    tpu.vector_store %arg12[%82, %c0_29], %81 {strides = array<i32>} : memref<64x256xf32, #tpu.memory_space<vmem>>, vector<8x256xf32>,
    %c2_i32 = arith.constant 2 : i32
    %c8_i32_30 = arith.constant 8 : i32
    %84 = arith.muli %c2_i32, %c8_i32_30 : i32
    %85 = tpu.assume_multiple %84, 8 : i32
    %86 = arith.index_cast %85 : i32 to index
    %c0_31 = arith.constant 0 : index
    %87 = vector.load %arg11[%86, %c0_31] : memref<64x768xf32, #tpu.memory_space<vmem>>, vector<8x768xf32>
    %c0_32 = arith.constant 0 : index
    %c0_33 = arith.constant 0 : index
    %88 = vector.load %arg4[%c0_32, %c0_33] : memref<256x768xf32, #tpu.memory_space<vmem>>, vector<256x768xf32>
    %cst_34 = arith.constant dense<0.000000e+00> : vector<8x768xf32>
    %89 = tpu.matmul %81, %88, %cst_34 {dimension_numbers = #tpu.dot_dimension_numbers<[1], [0], [0], [1], [0, 0, 1, 1], [], []>} : vector<8x256xf32>, vector<256x768xf32>, vector<8x768xf32> -> vector<8x768xf32>
    %90 = vector.extract_strided_slice %87 {offsets = [0, 0], sizes = [8, 256], strides = [1, 1]} : vector<8x768xf32> to vector<8x256xf32>
    %91 = vector.extract_strided_slice %89 {offsets = [0, 0], sizes = [8, 256], strides = [1, 1]} : vector<8x768xf32> to vector<8x256xf32>
    %92 = arith.addf %90, %91 : vector<8x256xf32>
    %93 = arith.negf %92 : vector<8x256xf32>
    %94 = math.exp %93 : vector<8x256xf32>
    %cst_35 = arith.constant 1.000000e+00 : f32
    %95 = vector.broadcast %cst_35 : f32 to vector<8x256xf32>
    %96 = arith.addf %95, %94 : vector<8x256xf32>
    %97 = arith.divf %95, %96 : vector<8x256xf32>
    %98 = vector.extract_strided_slice %87 {offsets = [0, 256], sizes = [8, 256], strides = [1, 1]} : vector<8x768xf32> to vector<8x256xf32>
    %99 = vector.extract_strided_slice %89 {offsets = [0, 256], sizes = [8, 256], strides = [1, 1]} : vector<8x768xf32> to vector<8x256xf32>
    %100 = arith.addf %98, %99 : vector<8x256xf32>
    %101 = arith.negf %100 : vector<8x256xf32>
    %102 = math.exp %101 : vector<8x256xf32>
    %cst_36 = arith.constant 1.000000e+00 : f32
    %103 = vector.broadcast %cst_36 : f32 to vector<8x256xf32>
    %104 = arith.addf %103, %102 : vector<8x256xf32>
    %105 = arith.divf %103, %104 : vector<8x256xf32>
    %106 = vector.extract_strided_slice %87 {offsets = [0, 512], sizes = [8, 256], strides = [1, 1]} : vector<8x768xf32> to vector<8x256xf32>
    %107 = vector.extract_strided_slice %89 {offsets = [0, 512], sizes = [8, 256], strides = [1, 1]} : vector<8x768xf32> to vector<8x256xf32>
    %108 = arith.addf %107, %12 : vector<8x256xf32>
    %109 = arith.mulf %97, %108 : vector<8x256xf32>
    %110 = arith.addf %106, %109 : vector<8x256xf32>
    %111 = math.tanh %110 : vector<8x256xf32>
    %cst_37 = arith.constant 1.000000e+00 : f32
    %112 = vector.broadcast %cst_37 : f32 to vector<8x256xf32>
    %113 = arith.subf %112, %105 : vector<8x256xf32>
    %114 = arith.mulf %113, %111 : vector<8x256xf32>
    %115 = arith.mulf %105, %81 : vector<8x256xf32>
    %116 = arith.addf %114, %115 : vector<8x256xf32>
    %117 = arith.index_cast %85 : i32 to index
    %c0_38 = arith.constant 0 : index
    %118 = vector.load %arg12[%117, %c0_38] : memref<64x256xf32, #tpu.memory_space<vmem>>, vector<8x256xf32>
    tpu.vector_store %arg12[%117, %c0_38], %116 {strides = array<i32>} : memref<64x256xf32, #tpu.memory_space<vmem>>, vector<8x256xf32>,
    %c3_i32 = arith.constant 3 : i32
    %c8_i32_39 = arith.constant 8 : i32
    %119 = arith.muli %c3_i32, %c8_i32_39 : i32
    %120 = tpu.assume_multiple %119, 8 : i32
    %121 = arith.index_cast %120 : i32 to index
    %c0_40 = arith.constant 0 : index
    %122 = vector.load %arg11[%121, %c0_40] : memref<64x768xf32, #tpu.memory_space<vmem>>, vector<8x768xf32>
    %c0_41 = arith.constant 0 : index
    %c0_42 = arith.constant 0 : index
    %123 = vector.load %arg4[%c0_41, %c0_42] : memref<256x768xf32, #tpu.memory_space<vmem>>, vector<256x768xf32>
    %cst_43 = arith.constant dense<0.000000e+00> : vector<8x768xf32>
    %124 = tpu.matmul %116, %123, %cst_43 {dimension_numbers = #tpu.dot_dimension_numbers<[1], [0], [0], [1], [0, 0, 1, 1], [], []>} : vector<8x256xf32>, vector<256x768xf32>, vector<8x768xf32> -> vector<8x768xf32>
    %125 = vector.extract_strided_slice %122 {offsets = [0, 0], sizes = [8, 256], strides = [1, 1]} : vector<8x768xf32> to vector<8x256xf32>
    %126 = vector.extract_strided_slice %124 {offsets = [0, 0], sizes = [8, 256], strides = [1, 1]} : vector<8x768xf32> to vector<8x256xf32>
    %127 = arith.addf %125, %126 : vector<8x256xf32>
    %128 = arith.negf %127 : vector<8x256xf32>
    %129 = math.exp %128 : vector<8x256xf32>
    %cst_44 = arith.constant 1.000000e+00 : f32
    %130 = vector.broadcast %cst_44 : f32 to vector<8x256xf32>
    %131 = arith.addf %130, %129 : vector<8x256xf32>
    %132 = arith.divf %130, %131 : vector<8x256xf32>
    %133 = vector.extract_strided_slice %122 {offsets = [0, 256], sizes = [8, 256], strides = [1, 1]} : vector<8x768xf32> to vector<8x256xf32>
    %134 = vector.extract_strided_slice %124 {offsets = [0, 256], sizes = [8, 256], strides = [1, 1]} : vector<8x768xf32> to vector<8x256xf32>
    %135 = arith.addf %133, %134 : vector<8x256xf32>
    %136 = arith.negf %135 : vector<8x256xf32>
    %137 = math.exp %136 : vector<8x256xf32>
    %cst_45 = arith.constant 1.000000e+00 : f32
    %138 = vector.broadcast %cst_45 : f32 to vector<8x256xf32>
    %139 = arith.addf %138, %137 : vector<8x256xf32>
    %140 = arith.divf %138, %139 : vector<8x256xf32>
    %141 = vector.extract_strided_slice %122 {offsets = [0, 512], sizes = [8, 256], strides = [1, 1]} : vector<8x768xf32> to vector<8x256xf32>
    %142 = vector.extract_strided_slice %124 {offsets = [0, 512], sizes = [8, 256], strides = [1, 1]} : vector<8x768xf32> to vector<8x256xf32>
    %143 = arith.addf %142, %12 : vector<8x256xf32>
    %144 = arith.mulf %132, %143 : vector<8x256xf32>
    %145 = arith.addf %141, %144 : vector<8x256xf32>
    %146 = math.tanh %145 : vector<8x256xf32>
    %cst_46 = arith.constant 1.000000e+00 : f32
    %147 = vector.broadcast %cst_46 : f32 to vector<8x256xf32>
    %148 = arith.subf %147, %140 : vector<8x256xf32>
    %149 = arith.mulf %148, %146 : vector<8x256xf32>
    %150 = arith.mulf %140, %116 : vector<8x256xf32>
    %151 = arith.addf %149, %150 : vector<8x256xf32>
    %152 = arith.index_cast %120 : i32 to index
    %c0_47 = arith.constant 0 : index
    %153 = vector.load %arg12[%152, %c0_47] : memref<64x256xf32, #tpu.memory_space<vmem>>, vector<8x256xf32>
    tpu.vector_store %arg12[%152, %c0_47], %151 {strides = array<i32>} : memref<64x256xf32, #tpu.memory_space<vmem>>, vector<8x256xf32>,
    %c4_i32 = arith.constant 4 : i32
    %c8_i32_48 = arith.constant 8 : i32
    %154 = arith.muli %c4_i32, %c8_i32_48 : i32
    %155 = tpu.assume_multiple %154, 8 : i32
    %156 = arith.index_cast %155 : i32 to index
    %c0_49 = arith.constant 0 : index
    %157 = vector.load %arg11[%156, %c0_49] : memref<64x768xf32, #tpu.memory_space<vmem>>, vector<8x768xf32>
    %c0_50 = arith.constant 0 : index
    %c0_51 = arith.constant 0 : index
    %158 = vector.load %arg4[%c0_50, %c0_51] : memref<256x768xf32, #tpu.memory_space<vmem>>, vector<256x768xf32>
    %cst_52 = arith.constant dense<0.000000e+00> : vector<8x768xf32>
    %159 = tpu.matmul %151, %158, %cst_52 {dimension_numbers = #tpu.dot_dimension_numbers<[1], [0], [0], [1], [0, 0, 1, 1], [], []>} : vector<8x256xf32>, vector<256x768xf32>, vector<8x768xf32> -> vector<8x768xf32>
    %160 = vector.extract_strided_slice %157 {offsets = [0, 0], sizes = [8, 256], strides = [1, 1]} : vector<8x768xf32> to vector<8x256xf32>
    %161 = vector.extract_strided_slice %159 {offsets = [0, 0], sizes = [8, 256], strides = [1, 1]} : vector<8x768xf32> to vector<8x256xf32>
    %162 = arith.addf %160, %161 : vector<8x256xf32>
    %163 = arith.negf %162 : vector<8x256xf32>
    %164 = math.exp %163 : vector<8x256xf32>
    %cst_53 = arith.constant 1.000000e+00 : f32
    %165 = vector.broadcast %cst_53 : f32 to vector<8x256xf32>
    %166 = arith.addf %165, %164 : vector<8x256xf32>
    %167 = arith.divf %165, %166 : vector<8x256xf32>
    %168 = vector.extract_strided_slice %157 {offsets = [0, 256], sizes = [8, 256], strides = [1, 1]} : vector<8x768xf32> to vector<8x256xf32>
    %169 = vector.extract_strided_slice %159 {offsets = [0, 256], sizes = [8, 256], strides = [1, 1]} : vector<8x768xf32> to vector<8x256xf32>
    %170 = arith.addf %168, %169 : vector<8x256xf32>
    %171 = arith.negf %170 : vector<8x256xf32>
    %172 = math.exp %171 : vector<8x256xf32>
    %cst_54 = arith.constant 1.000000e+00 : f32
    %173 = vector.broadcast %cst_54 : f32 to vector<8x256xf32>
    %174 = arith.addf %173, %172 : vector<8x256xf32>
    %175 = arith.divf %173, %174 : vector<8x256xf32>
    %176 = vector.extract_strided_slice %157 {offsets = [0, 512], sizes = [8, 256], strides = [1, 1]} : vector<8x768xf32> to vector<8x256xf32>
    %177 = vector.extract_strided_slice %159 {offsets = [0, 512], sizes = [8, 256], strides = [1, 1]} : vector<8x768xf32> to vector<8x256xf32>
    %178 = arith.addf %177, %12 : vector<8x256xf32>
    %179 = arith.mulf %167, %178 : vector<8x256xf32>
    %180 = arith.addf %176, %179 : vector<8x256xf32>
    %181 = math.tanh %180 : vector<8x256xf32>
    %cst_55 = arith.constant 1.000000e+00 : f32
    %182 = vector.broadcast %cst_55 : f32 to vector<8x256xf32>
    %183 = arith.subf %182, %175 : vector<8x256xf32>
    %184 = arith.mulf %183, %181 : vector<8x256xf32>
    %185 = arith.mulf %175, %151 : vector<8x256xf32>
    %186 = arith.addf %184, %185 : vector<8x256xf32>
    %187 = arith.index_cast %155 : i32 to index
    %c0_56 = arith.constant 0 : index
    %188 = vector.load %arg12[%187, %c0_56] : memref<64x256xf32, #tpu.memory_space<vmem>>, vector<8x256xf32>
    tpu.vector_store %arg12[%187, %c0_56], %186 {strides = array<i32>} : memref<64x256xf32, #tpu.memory_space<vmem>>, vector<8x256xf32>,
    %c5_i32 = arith.constant 5 : i32
    %c8_i32_57 = arith.constant 8 : i32
    %189 = arith.muli %c5_i32, %c8_i32_57 : i32
    %190 = tpu.assume_multiple %189, 8 : i32
    %191 = arith.index_cast %190 : i32 to index
    %c0_58 = arith.constant 0 : index
    %192 = vector.load %arg11[%191, %c0_58] : memref<64x768xf32, #tpu.memory_space<vmem>>, vector<8x768xf32>
    %c0_59 = arith.constant 0 : index
    %c0_60 = arith.constant 0 : index
    %193 = vector.load %arg4[%c0_59, %c0_60] : memref<256x768xf32, #tpu.memory_space<vmem>>, vector<256x768xf32>
    %cst_61 = arith.constant dense<0.000000e+00> : vector<8x768xf32>
    %194 = tpu.matmul %186, %193, %cst_61 {dimension_numbers = #tpu.dot_dimension_numbers<[1], [0], [0], [1], [0, 0, 1, 1], [], []>} : vector<8x256xf32>, vector<256x768xf32>, vector<8x768xf32> -> vector<8x768xf32>
    %195 = vector.extract_strided_slice %192 {offsets = [0, 0], sizes = [8, 256], strides = [1, 1]} : vector<8x768xf32> to vector<8x256xf32>
    %196 = vector.extract_strided_slice %194 {offsets = [0, 0], sizes = [8, 256], strides = [1, 1]} : vector<8x768xf32> to vector<8x256xf32>
    %197 = arith.addf %195, %196 : vector<8x256xf32>
    %198 = arith.negf %197 : vector<8x256xf32>
    %199 = math.exp %198 : vector<8x256xf32>
    %cst_62 = arith.constant 1.000000e+00 : f32
    %200 = vector.broadcast %cst_62 : f32 to vector<8x256xf32>
    %201 = arith.addf %200, %199 : vector<8x256xf32>
    %202 = arith.divf %200, %201 : vector<8x256xf32>
    %203 = vector.extract_strided_slice %192 {offsets = [0, 256], sizes = [8, 256], strides = [1, 1]} : vector<8x768xf32> to vector<8x256xf32>
    %204 = vector.extract_strided_slice %194 {offsets = [0, 256], sizes = [8, 256], strides = [1, 1]} : vector<8x768xf32> to vector<8x256xf32>
    %205 = arith.addf %203, %204 : vector<8x256xf32>
    %206 = arith.negf %205 : vector<8x256xf32>
    %207 = math.exp %206 : vector<8x256xf32>
    %cst_63 = arith.constant 1.000000e+00 : f32
    %208 = vector.broadcast %cst_63 : f32 to vector<8x256xf32>
    %209 = arith.addf %208, %207 : vector<8x256xf32>
    %210 = arith.divf %208, %209 : vector<8x256xf32>
    %211 = vector.extract_strided_slice %192 {offsets = [0, 512], sizes = [8, 256], strides = [1, 1]} : vector<8x768xf32> to vector<8x256xf32>
    %212 = vector.extract_strided_slice %194 {offsets = [0, 512], sizes = [8, 256], strides = [1, 1]} : vector<8x768xf32> to vector<8x256xf32>
    %213 = arith.addf %212, %12 : vector<8x256xf32>
    %214 = arith.mulf %202, %213 : vector<8x256xf32>
    %215 = arith.addf %211, %214 : vector<8x256xf32>
    %216 = math.tanh %215 : vector<8x256xf32>
    %cst_64 = arith.constant 1.000000e+00 : f32
    %217 = vector.broadcast %cst_64 : f32 to vector<8x256xf32>
    %218 = arith.subf %217, %210 : vector<8x256xf32>
    %219 = arith.mulf %218, %216 : vector<8x256xf32>
    %220 = arith.mulf %210, %186 : vector<8x256xf32>
    %221 = arith.addf %219, %220 : vector<8x256xf32>
    %222 = arith.index_cast %190 : i32 to index
    %c0_65 = arith.constant 0 : index
    %223 = vector.load %arg12[%222, %c0_65] : memref<64x256xf32, #tpu.memory_space<vmem>>, vector<8x256xf32>
    tpu.vector_store %arg12[%222, %c0_65], %221 {strides = array<i32>} : memref<64x256xf32, #tpu.memory_space<vmem>>, vector<8x256xf32>,
    %c6_i32 = arith.constant 6 : i32
    %c8_i32_66 = arith.constant 8 : i32
    %224 = arith.muli %c6_i32, %c8_i32_66 : i32
    %225 = tpu.assume_multiple %224, 8 : i32
    %226 = arith.index_cast %225 : i32 to index
    %c0_67 = arith.constant 0 : index
    %227 = vector.load %arg11[%226, %c0_67] : memref<64x768xf32, #tpu.memory_space<vmem>>, vector<8x768xf32>
    %c0_68 = arith.constant 0 : index
    %c0_69 = arith.constant 0 : index
    %228 = vector.load %arg4[%c0_68, %c0_69] : memref<256x768xf32, #tpu.memory_space<vmem>>, vector<256x768xf32>
    %cst_70 = arith.constant dense<0.000000e+00> : vector<8x768xf32>
    %229 = tpu.matmul %221, %228, %cst_70 {dimension_numbers = #tpu.dot_dimension_numbers<[1], [0], [0], [1], [0, 0, 1, 1], [], []>} : vector<8x256xf32>, vector<256x768xf32>, vector<8x768xf32> -> vector<8x768xf32>
    %230 = vector.extract_strided_slice %227 {offsets = [0, 0], sizes = [8, 256], strides = [1, 1]} : vector<8x768xf32> to vector<8x256xf32>
    %231 = vector.extract_strided_slice %229 {offsets = [0, 0], sizes = [8, 256], strides = [1, 1]} : vector<8x768xf32> to vector<8x256xf32>
    %232 = arith.addf %230, %231 : vector<8x256xf32>
    %233 = arith.negf %232 : vector<8x256xf32>
    %234 = math.exp %233 : vector<8x256xf32>
    %cst_71 = arith.constant 1.000000e+00 : f32
    %235 = vector.broadcast %cst_71 : f32 to vector<8x256xf32>
    %236 = arith.addf %235, %234 : vector<8x256xf32>
    %237 = arith.divf %235, %236 : vector<8x256xf32>
    %238 = vector.extract_strided_slice %227 {offsets = [0, 256], sizes = [8, 256], strides = [1, 1]} : vector<8x768xf32> to vector<8x256xf32>
    %239 = vector.extract_strided_slice %229 {offsets = [0, 256], sizes = [8, 256], strides = [1, 1]} : vector<8x768xf32> to vector<8x256xf32>
    %240 = arith.addf %238, %239 : vector<8x256xf32>
    %241 = arith.negf %240 : vector<8x256xf32>
    %242 = math.exp %241 : vector<8x256xf32>
    %cst_72 = arith.constant 1.000000e+00 : f32
    %243 = vector.broadcast %cst_72 : f32 to vector<8x256xf32>
    %244 = arith.addf %243, %242 : vector<8x256xf32>
    %245 = arith.divf %243, %244 : vector<8x256xf32>
    %246 = vector.extract_strided_slice %227 {offsets = [0, 512], sizes = [8, 256], strides = [1, 1]} : vector<8x768xf32> to vector<8x256xf32>
    %247 = vector.extract_strided_slice %229 {offsets = [0, 512], sizes = [8, 256], strides = [1, 1]} : vector<8x768xf32> to vector<8x256xf32>
    %248 = arith.addf %247, %12 : vector<8x256xf32>
    %249 = arith.mulf %237, %248 : vector<8x256xf32>
    %250 = arith.addf %246, %249 : vector<8x256xf32>
    %251 = math.tanh %250 : vector<8x256xf32>
    %cst_73 = arith.constant 1.000000e+00 : f32
    %252 = vector.broadcast %cst_73 : f32 to vector<8x256xf32>
    %253 = arith.subf %252, %245 : vector<8x256xf32>
    %254 = arith.mulf %253, %251 : vector<8x256xf32>
    %255 = arith.mulf %245, %221 : vector<8x256xf32>
    %256 = arith.addf %254, %255 : vector<8x256xf32>
    %257 = arith.index_cast %225 : i32 to index
    %c0_74 = arith.constant 0 : index
    %258 = vector.load %arg12[%257, %c0_74] : memref<64x256xf32, #tpu.memory_space<vmem>>, vector<8x256xf32>
    tpu.vector_store %arg12[%257, %c0_74], %256 {strides = array<i32>} : memref<64x256xf32, #tpu.memory_space<vmem>>, vector<8x256xf32>,
    %c7_i32 = arith.constant 7 : i32
    %c8_i32_75 = arith.constant 8 : i32
    %259 = arith.muli %c7_i32, %c8_i32_75 : i32
    %260 = tpu.assume_multiple %259, 8 : i32
    %261 = arith.index_cast %260 : i32 to index
    %c0_76 = arith.constant 0 : index
    %262 = vector.load %arg11[%261, %c0_76] : memref<64x768xf32, #tpu.memory_space<vmem>>, vector<8x768xf32>
    %c0_77 = arith.constant 0 : index
    %c0_78 = arith.constant 0 : index
    %263 = vector.load %arg4[%c0_77, %c0_78] : memref<256x768xf32, #tpu.memory_space<vmem>>, vector<256x768xf32>
    %cst_79 = arith.constant dense<0.000000e+00> : vector<8x768xf32>
    %264 = tpu.matmul %256, %263, %cst_79 {dimension_numbers = #tpu.dot_dimension_numbers<[1], [0], [0], [1], [0, 0, 1, 1], [], []>} : vector<8x256xf32>, vector<256x768xf32>, vector<8x768xf32> -> vector<8x768xf32>
    %265 = vector.extract_strided_slice %262 {offsets = [0, 0], sizes = [8, 256], strides = [1, 1]} : vector<8x768xf32> to vector<8x256xf32>
    %266 = vector.extract_strided_slice %264 {offsets = [0, 0], sizes = [8, 256], strides = [1, 1]} : vector<8x768xf32> to vector<8x256xf32>
    %267 = arith.addf %265, %266 : vector<8x256xf32>
    %268 = arith.negf %267 : vector<8x256xf32>
    %269 = math.exp %268 : vector<8x256xf32>
    %cst_80 = arith.constant 1.000000e+00 : f32
    %270 = vector.broadcast %cst_80 : f32 to vector<8x256xf32>
    %271 = arith.addf %270, %269 : vector<8x256xf32>
    %272 = arith.divf %270, %271 : vector<8x256xf32>
    %273 = vector.extract_strided_slice %262 {offsets = [0, 256], sizes = [8, 256], strides = [1, 1]} : vector<8x768xf32> to vector<8x256xf32>
    %274 = vector.extract_strided_slice %264 {offsets = [0, 256], sizes = [8, 256], strides = [1, 1]} : vector<8x768xf32> to vector<8x256xf32>
    %275 = arith.addf %273, %274 : vector<8x256xf32>
    %276 = arith.negf %275 : vector<8x256xf32>
    %277 = math.exp %276 : vector<8x256xf32>
    %cst_81 = arith.constant 1.000000e+00 : f32
    %278 = vector.broadcast %cst_81 : f32 to vector<8x256xf32>
    %279 = arith.addf %278, %277 : vector<8x256xf32>
    %280 = arith.divf %278, %279 : vector<8x256xf32>
    %281 = vector.extract_strided_slice %262 {offsets = [0, 512], sizes = [8, 256], strides = [1, 1]} : vector<8x768xf32> to vector<8x256xf32>
    %282 = vector.extract_strided_slice %264 {offsets = [0, 512], sizes = [8, 256], strides = [1, 1]} : vector<8x768xf32> to vector<8x256xf32>
    %283 = arith.addf %282, %12 : vector<8x256xf32>
    %284 = arith.mulf %272, %283 : vector<8x256xf32>
    %285 = arith.addf %281, %284 : vector<8x256xf32>
    %286 = math.tanh %285 : vector<8x256xf32>
    %cst_82 = arith.constant 1.000000e+00 : f32
    %287 = vector.broadcast %cst_82 : f32 to vector<8x256xf32>
    %288 = arith.subf %287, %280 : vector<8x256xf32>
    %289 = arith.mulf %288, %286 : vector<8x256xf32>
    %290 = arith.mulf %280, %256 : vector<8x256xf32>
    %291 = arith.addf %289, %290 : vector<8x256xf32>
    %292 = arith.index_cast %260 : i32 to index
    %c0_83 = arith.constant 0 : index
    %293 = vector.load %arg12[%292, %c0_83] : memref<64x256xf32, #tpu.memory_space<vmem>>, vector<8x256xf32>
    tpu.vector_store %arg12[%292, %c0_83], %291 {strides = array<i32>} : memref<64x256xf32, #tpu.memory_space<vmem>>, vector<8x256xf32>,
    %c8_i32_84 = arith.constant 8 : i32
    %c0_85 = arith.constant 0 : index
    %c0_86 = arith.constant 0 : index
    %294 = vector.load %arg10[%c0_85, %c0_86] : memref<8x256xf32, #tpu.memory_space<vmem>>, vector<8x256xf32>
    tpu.vector_store %arg10[%c0_85, %c0_86], %291 {strides = array<i32>} : memref<8x256xf32, #tpu.memory_space<vmem>>, vector<8x256xf32>,
    %c0_87 = arith.constant 0 : index
    %c0_88 = arith.constant 0 : index
    %295 = vector.load %arg12[%c0_87, %c0_88] : memref<64x256xf32, #tpu.memory_space<vmem>>, vector<64x256xf32>
    %c0_89 = arith.constant 0 : index
    %c0_90 = arith.constant 0 : index
    %296 = vector.load %arg7[%c0_89, %c0_90] : memref<256x13xf32, #tpu.memory_space<vmem>>, vector<256x13xf32>
    %cst_91 = arith.constant dense<0.000000e+00> : vector<64x13xf32>
    %297 = tpu.matmul %295, %296, %cst_91 {dimension_numbers = #tpu.dot_dimension_numbers<[1], [0], [0], [1], [0, 0, 1, 1], [], []>} : vector<64x256xf32>, vector<256x13xf32>, vector<64x13xf32> -> vector<64x13xf32>
    %c0_92 = arith.constant 0 : index
    %c0_93 = arith.constant 0 : index
    %298 = vector.load %arg8[%c0_92, %c0_93] : memref<1x13xf32, #tpu.memory_space<vmem>>, vector<1x13xf32>
    %299 = vector.broadcast %298 : vector<1x13xf32> to vector<64x13xf32>
    %300 = arith.addf %297, %299 : vector<64x13xf32>
    %301 = vector.shape_cast %300 : vector<64x13xf32> to vector<8x8x13xf32>
    %c0_94 = arith.constant 0 : index
    %c0_95 = arith.constant 0 : index
    %302 = vector.load %arg2[%c0_94, %c0_95] : memref<64x6xf32, #tpu.memory_space<vmem>>, vector<64x6xf32>
    %303 = vector.shape_cast %302 : vector<64x6xf32> to vector<8x8x6xf32>
    %304 = vector.extract_strided_slice %301 {offsets = [0, 0, 0], sizes = [8, 8, 6], strides = [1, 1, 1]} : vector<8x8x13xf32> to vector<8x8x6xf32>
    %305 = vector.extract_strided_slice %301 {offsets = [0, 0, 6], sizes = [8, 8, 6], strides = [1, 1, 1]} : vector<8x8x13xf32> to vector<8x8x6xf32>
    %cst_96 = arith.constant 0.000000e+00 : f32
    %306 = vector.broadcast %cst_96 : f32 to vector<8x8x6xf32>
    %307 = arith.maximumf %305, %306 : vector<8x8x6xf32>
    %308 = vector.broadcast %cst_96 : f32 to vector<8x8x6xf32>
    %309 = arith.subf %305, %308 : vector<8x8x6xf32>
    %310 = arith.cmpf one, %309, %309 : vector<8x8x6xf32>
    %311 = vector.broadcast %cst_96 : f32 to vector<8x8x6xf32>
    %312 = arith.addf %305, %311 : vector<8x8x6xf32>
    %313 = math.absf %309 : vector<8x8x6xf32>
    %cst_97 = arith.constant 0.000000e+00 : f32
    %314 = vector.broadcast %cst_97 : f32 to vector<8x8x6xf32>
    %315 = arith.subf %314, %313 : vector<8x8x6xf32>
    %316 = math.exp %315 : vector<8x8x6xf32>
    %317 = math.log1p %316 : vector<8x8x6xf32>
    %318 = arith.addf %307, %317 : vector<8x8x6xf32>
    %319 = arith.select %310, %312, %318 : vector<8x8x6xi1>, vector<8x8x6xf32>
    %320 = math.log %319 : vector<8x8x6xf32>
    %321 = arith.subf %303, %304 : vector<8x8x6xf32>
    %322 = arith.mulf %321, %321 : vector<8x8x6xf32>
    %323 = tpu.reciprocal %319 : vector<8x8x6xf32> -> vector<8x8x6xf32>
    %324 = arith.mulf %322, %323 : vector<8x8x6xf32>
    %cst_98 = arith.constant dense<0.000000e+00> : vector<8x8xf32>
    %325 = vector.multi_reduction <add>, %324, %cst_98 [2] : vector<8x8x6xf32> to vector<8x8xf32>
    %cst_99 = arith.constant dense<0.000000e+00> : vector<8x8xf32>
    %326 = vector.multi_reduction <add>, %320, %cst_99 [2] : vector<8x8x6xf32> to vector<8x8xf32>
    %327 = vector.extract_strided_slice %301 {offsets = [0, 0, 12], sizes = [8, 8, 1], strides = [1, 1, 1]} : vector<8x8x13xf32> to vector<8x8x1xf32>
    %cst_100 = arith.constant dense<0.000000e+00> : vector<8x8xf32>
    %328 = vector.multi_reduction <add>, %327, %cst_100 [2] : vector<8x8x1xf32> to vector<8x8xf32>
    %329 = arith.addf %325, %326 : vector<8x8xf32>
    %cst_101 = arith.constant 11.0272627 : f32
    %330 = vector.broadcast %cst_101 : f32 to vector<8x8xf32>
    %331 = arith.addf %329, %330 : vector<8x8xf32>
    %cst_102 = arith.constant -5.000000e-01 : f32
    %332 = vector.broadcast %cst_102 : f32 to vector<8x8xf32>
    %333 = arith.mulf %332, %331 : vector<8x8xf32>
    %cst_103 = arith.constant 5.000000e-01 : f32
    %334 = vector.broadcast %cst_103 : f32 to vector<8x8xf32>
    %335 = arith.mulf %334, %326 : vector<8x8xf32>
    %cst_104 = arith.constant 8.51363086 : f32
    %336 = vector.broadcast %cst_104 : f32 to vector<8x8xf32>
    %337 = arith.addf %336, %335 : vector<8x8xf32>
    %338 = tpu.transpose %333, [1, 0] : vector<8x8xf32> -> vector<8x8xf32>
    %c0_105 = arith.constant 0 : index
    %c0_106 = arith.constant 0 : index
    %339 = vector.load %arg9[%c0_105, %c0_106] : memref<24x8xf32, #tpu.memory_space<vmem>>, vector<8x8xf32>
    tpu.vector_store %arg9[%c0_105, %c0_106], %338 {strides = array<i32>} : memref<24x8xf32, #tpu.memory_space<vmem>>, vector<8x8xf32>,
    %340 = tpu.transpose %328, [1, 0] : vector<8x8xf32> -> vector<8x8xf32>
    %c8 = arith.constant 8 : index
    %c0_107 = arith.constant 0 : index
    %341 = vector.load %arg9[%c8, %c0_107] : memref<24x8xf32, #tpu.memory_space<vmem>>, vector<8x8xf32>
    tpu.vector_store %arg9[%c8, %c0_107], %340 {strides = array<i32>} : memref<24x8xf32, #tpu.memory_space<vmem>>, vector<8x8xf32>,
    %342 = tpu.transpose %337, [1, 0] : vector<8x8xf32> -> vector<8x8xf32>
    %c16 = arith.constant 16 : index
    %c0_108 = arith.constant 0 : index
    %343 = vector.load %arg9[%c16, %c0_108] : memref<24x8xf32, #tpu.memory_space<vmem>>, vector<8x8xf32>
    tpu.vector_store %arg9[%c16, %c0_108], %342 {strides = array<i32>} : memref<24x8xf32, #tpu.memory_space<vmem>>, vector<8x8xf32>,
    return
  }
  func.func @transform_0(%arg0: i32) -> (i32, i32) {
    %c0_i32 = arith.constant 0 : i32
    %c0_i32_0 = arith.constant 0 : i32
    return %arg0, %c0_i32 : i32, i32
  }
  func.func @transform_1(%arg0: i32) -> (i32, i32) {
    %c0_i32 = arith.constant 0 : i32
    %c0_i32_0 = arith.constant 0 : i32
    return %arg0, %c0_i32 : i32, i32
  }
  func.func @transform_2(%arg0: i32) -> (i32, i32) {
    %c0_i32 = arith.constant 0 : i32
    %c0_i32_0 = arith.constant 0 : i32
    %c0_i32_1 = arith.constant 0 : i32
    return %c0_i32, %c0_i32_0 : i32, i32
  }
  func.func @transform_3(%arg0: i32) -> (i32, i32) {
    %c0_i32 = arith.constant 0 : i32
    %c0_i32_0 = arith.constant 0 : i32
    %c0_i32_1 = arith.constant 0 : i32
    return %c0_i32, %c0_i32_0 : i32, i32
  }
  func.func @transform_4(%arg0: i32) -> (i32, i32) {
    %c0_i32 = arith.constant 0 : i32
    %c0_i32_0 = arith.constant 0 : i32
    %c0_i32_1 = arith.constant 0 : i32
    return %c0_i32, %c0_i32_0 : i32, i32
  }
  func.func @transform_5(%arg0: i32) -> (i32, i32) {
    %c0_i32 = arith.constant 0 : i32
    %c0_i32_0 = arith.constant 0 : i32
    %c0_i32_1 = arith.constant 0 : i32
    return %c0_i32, %c0_i32_0 : i32, i32
  }
  func.func @transform_6(%arg0: i32) -> (i32, i32) {
    %c0_i32 = arith.constant 0 : i32
    %c0_i32_0 = arith.constant 0 : i32
    %c0_i32_1 = arith.constant 0 : i32
    return %c0_i32, %c0_i32_0 : i32, i32
  }
  func.func @transform_7(%arg0: i32) -> (i32, i32) {
    %c0_i32 = arith.constant 0 : i32
    %c0_i32_0 = arith.constant 0 : i32
    %c0_i32_1 = arith.constant 0 : i32
    return %c0_i32, %c0_i32_0 : i32, i32
  }
  func.func @transform_8(%arg0: i32) -> (i32, i32) {
    %c0_i32 = arith.constant 0 : i32
    %c0_i32_0 = arith.constant 0 : i32
    return %c0_i32, %arg0 : i32, i32
  }
}

</mosaic_0001>

<llo_original>
// kernel: tpu_custom_call.1
$region0: #{tpu_custom_call.1}
  #allocation0 [shape = 'u32[]', space=smem, size = 0x4, offset = 0x4, fixed_abs, tag = 'smem constant byte address 0x4 - core index']
  #allocation1 [shape = 'u32[144,128]{1,0:T(1,128)}', space=vmem, size = 0x12000, scoped, tag = 'internal scratch']
  #allocation2 [shape = 'f32[8,256]{1,0:T(8,128)}', space=vmem, size = 0x2000, scoped, tag = 'scratch operand']
  #allocation3 [shape = 'f32[64,768]{1,0:T(8,128)}', space=vmem, size = 0x30000, scoped, tag = 'scratch operand']
  #allocation4 [shape = 'f32[64,256]{1,0:T(8,128)}', space=vmem, size = 0x10000, scoped, tag = 'scratch operand']
  %s0 = inlined_call_operand.vmem [shape: f32[64,16], index: 0, kind: input, shape index: {}]
  %s1 = inlined_call_operand.vmem [shape: f32[64,6], index: 1, kind: input, shape index: {}]
  %s2 = inlined_call_operand.vmem [shape: f32[16,768], index: 2, kind: input, shape index: {}]
  %s3 = inlined_call_operand.hbm [shape: f32[256,768], index: 3, kind: input, shape index: {}]
  %s4 = inlined_call_operand.vmem [shape: f32[1,768], index: 4, kind: input, shape index: {}]
  %s5 = inlined_call_operand.vmem [shape: f32[1,256], index: 5, kind: input, shape index: {}]
  %s6 = inlined_call_operand.vmem [shape: f32[256,13], index: 6, kind: input, shape index: {}]
  %s7 = inlined_call_operand.vmem [shape: f32[1,13], index: 7, kind: input, shape index: {}]
  %s8 = inlined_call_operand.vmem [shape: f32[24,8], index: 8, kind: output, shape index: {}]
  %s9 = sld [smem:[#allocation0]]
  $region50: #{tpu_custom_call.1} parent=0
    _
  %s11 = ssub.s32 1, %s9
  %s12 = scalar_select 0, %s11, %s9
  $region1: #{tpu_custom_call.1} parent=0
    #allocation5 [shape = 'u8[786432]{0}', space=vmem, size = 0xc0000, scoped, tag = 'input window, operand 3, single buffered']
    #allocation6 [shape = 's32[1]{0}', space=sflag, size = 0x4, scoped, tag = 'scoped memory for tpu_custom_call.1']
    %13 = vsyncpa [#allocation6], 0
    // Predicated region
    $region2: #{tpu_custom_call.1} parent=1 // pred_check
      _
    $region3: #{tpu_custom_call.1} parent=1 // pred_check_branch
      %15 = sbr.rel (0) target = $region5
    $region4: #{tpu_custom_call.1} parent=1 // pred_region
      _
    $region5: #{tpu_custom_call.1} parent=1 // pred_fallthru
      _
    // Predicated region
    $region6: #{tpu_custom_call.1} parent=1 // pred_check
      _
    $region7: #{tpu_custom_call.1} parent=1 // pred_check_branch
      %17 = sbr.rel (0) target = $region9
    $region8: #{tpu_custom_call.1} parent=1 // pred_region
      _
    $region9: #{tpu_custom_call.1} parent=1 // pred_fallthru
      _
    // Predicated region
    $region10: #{tpu_custom_call.1} parent=1 // pred_check
      _
    $region11: #{tpu_custom_call.1} parent=1 // pred_check_branch
      %19 = sbr.rel (0) target = $region13
    $region12: #{tpu_custom_call.1} parent=1 // pred_region
      _
    $region13: #{tpu_custom_call.1} parent=1 // pred_fallthru
      _
    // Predicated region
    $region14: #{tpu_custom_call.1} parent=1 // pred_check
      _
    $region15: #{tpu_custom_call.1} parent=1 // pred_check_branch
      %21 = sbr.rel (0) target = $region17
    $region16: #{tpu_custom_call.1} parent=1 // pred_region
      %s23 = ssub.s32 24576, 24576
      %24 = vsyncadd [#allocation6], %s23
      %s25 = sshll.u32 [#allocation5], 4
      %s26 = int_to_ptr.vmem [resolvable:$true] %s25
      %31 = dma.hbm_to_vmem [thread:$0]  %s3, 24576, %s26, [#allocation6], 768, 768, 48
    $region17: #{tpu_custom_call.1} parent=1 // pred_fallthru
      _
    // Predicated region
    $region18: #{tpu_custom_call.1} parent=1 // pred_check
      _
    $region19: #{tpu_custom_call.1} parent=1 // pred_check_branch
      %33 = sbr.rel (0) target = $region21
    $region20: #{tpu_custom_call.1} parent=1 // pred_region
      _
    $region21: #{tpu_custom_call.1} parent=1 // pred_fallthru
      _
    // Predicated region
    $region22: #{tpu_custom_call.1} parent=1 // pred_check
      _
    $region23: #{tpu_custom_call.1} parent=1 // pred_check_branch
      %35 = sbr.rel (0) target = $region25
    $region24: #{tpu_custom_call.1} parent=1 // pred_region
      _
    $region25: #{tpu_custom_call.1} parent=1 // pred_fallthru
      _
    // Predicated region
    $region26: #{tpu_custom_call.1} parent=1 // pred_check
      _
    $region27: #{tpu_custom_call.1} parent=1 // pred_check_branch
      %37 = sbr.rel (0) target = $region29
    $region28: #{tpu_custom_call.1} parent=1 // pred_region
      _
    $region29: #{tpu_custom_call.1} parent=1 // pred_fallthru
      _
    // Predicated region
    $region30: #{tpu_custom_call.1} parent=1 // pred_check
      _
    $region31: #{tpu_custom_call.1} parent=1 // pred_check_branch
      %39 = sbr.rel (0) target = $region33
    $region32: #{tpu_custom_call.1} parent=1 // pred_region
      _
    $region33: #{tpu_custom_call.1} parent=1 // pred_fallthru
      _
    // Predicated region
    $region34: #{tpu_custom_call.1} parent=1 // pred_check
      _
    $region35: #{tpu_custom_call.1} parent=1 // pred_check_branch
      %41 = sbr.rel (0) target = $region37
    $region36: #{tpu_custom_call.1} parent=1 // pred_region
      %42 = dma.done [#allocation6], 24576
    $region37: #{tpu_custom_call.1} parent=1 // pred_fallthru
      _
    %p43 = scmp.eq.s32.totalorder 0, 0
    // Predicated region
    $region38: #{tpu_custom_call.1} parent=1 // pred_check
      %p44 = pneg %p43
    $region39: #{tpu_custom_call.1} parent=1 // pred_check_branch
      %46 = sbr.rel (%p44) target = $region41
    $region40: #{tpu_custom_call.1} parent=1 // pred_region
      %47 = vst [vmem:[#allocation2] sm:$0xff] 0.0
      %48 = vst [vmem:[#allocation2 + $0x8] sm:$0xff] 0.0
    $region41: #{tpu_custom_call.1} parent=1 // pred_fallthru
      _
    %v49 = vld [vmem:[%s0] sm:$0xff]
    %v50 = vld [vmem:[%s0 + $0x8] sm:$0xff]
    %v51 = vld [vmem:[%s0 + $0x10] sm:$0xff]
    %v52 = vld [vmem:[%s0 + $0x18] sm:$0xff]
    %v53 = vld [vmem:[%s0 + $0x20] sm:$0xff]
    %v54 = vld [vmem:[%s0 + $0x28] sm:$0xff]
    %v55 = vld [vmem:[%s0 + $0x30] sm:$0xff]
    %v56 = vld [vmem:[%s0 + $0x38] sm:$0xff]
    %v57 = vld [vmem:[%s2] sm:$0xff]
    %v58 = vld [vmem:[%s2 + $0x8] sm:$0xff]
    %v59 = vld [vmem:[%s2 + $0x10] sm:$0xff]
    %v60 = vld [vmem:[%s2 + $0x18] sm:$0xff]
    %v61 = vld [vmem:[%s2 + $0x20] sm:$0xff]
    %v62 = vld [vmem:[%s2 + $0x28] sm:$0xff]
    %v63 = vld [vmem:[%s2 + $0x30] sm:$0xff]
    %v64 = vld [vmem:[%s2 + $0x38] sm:$0xff]
    %v65 = vld [vmem:[%s2 + $0x40] sm:$0xff]
    %v66 = vld [vmem:[%s2 + $0x48] sm:$0xff]
    %v67 = vld [vmem:[%s2 + $0x50] sm:$0xff]
    %v68 = vld [vmem:[%s2 + $0x58] sm:$0xff]
    %v69 = vld [vmem:[%s4] sm:$0x3f]
    %v71 = vlaneseq
    %v72 = vshrl.u32 %v71, 7
    %v73 = vsub.s32 0, %v72
    %v74 = vrot.slane %v69, %v73
    %v75 = vlaneseq
    %v76 = vshrl.u32 %v75, 7
    %v77 = vsub.s32 1, %v76
    %v78 = vrot.slane %v69, %v77
    %v79 = vlaneseq
    %v80 = vshrl.u32 %v79, 7
    %v81 = vsub.s32 2, %v80
    %v82 = vrot.slane %v69, %v81
    %v83 = vlaneseq
    %v84 = vshrl.u32 %v83, 7
    %v85 = vsub.s32 3, %v84
    %v86 = vrot.slane %v69, %v85
    %v87 = vlaneseq
    %v88 = vshrl.u32 %v87, 7
    %v89 = vsub.s32 4, %v88
    %v90 = vrot.slane %v69, %v89
    %v91 = vlaneseq
    %v92 = vshrl.u32 %v91, 7
    %v93 = vsub.s32 5, %v92
    %v94 = vrot.slane %v69, %v93
    %vm101 = vcmask 130048
    %v103 = vsel %vm101, %v49, 0
    %v106 = vsel %vm101, %v50, 0
    %v109 = vsel %vm101, %v51, 0
    %v112 = vsel %vm101, %v52, 0
    %v115 = vsel %vm101, %v53, 0
    %v118 = vsel %vm101, %v54, 0
    %v121 = vsel %vm101, %v55, 0
    %v124 = vsel %vm101, %v56, 0
    %126 = vmatprep.subr.mxu0 %v58
    %127 = vmatpush1.msra.mxu0 %v57
    %128 = vmatprep.subr.mxu0 %v64
    %129 = vmatpush1.msra.mxu0 %v63
    %130 = vmatprep.subr.mxu0 0.0
    %131 = vmatpush1.msra.mxu0 0.0
    %132 = vmatprep.subr.mxu0 0.0
    %133 = vmatpush1.msra.mxu0 0.0
    %134 = vmatprep.subr.mxu0 0.0
    %135 = vmatpush1.msra.mxu0 0.0
    %136 = vmatprep.subr.mxu0 0.0
    %137 = vmatpush1.msra.mxu0 0.0
    %138 = vmatprep.subr.mxu0 0.0
    %139 = vmatpush1.msra.mxu0 0.0
    %140 = vmatprep.subr.mxu0 0.0
    %141 = vmatpush1.msra.mxu0 0.0
    %142 = vmatprep.subr.mxu0 0.0
    %143 = vmatpush1.msra.mxu0 0.0
    %144 = vmatprep.subr.mxu0 0.0
    %145 = vmatpush1.msra.mxu0 0.0
    %146 = vmatprep.subr.mxu0 0.0
    %147 = vmatpush1.msra.mxu0 0.0
    %148 = vmatprep.subr.mxu0 0.0
    %149 = vmatpush1.msra.mxu0 0.0
    %150 = vmatprep.subr.mxu0 0.0
    %151 = vmatpush1.msra.mxu0 0.0
    %152 = vmatprep.subr.mxu0 0.0
    %153 = vmatpush1.msra.mxu0 0.0
    %154 = vmatprep.subr.mxu0 0.0
    %155 = vmatpush1.msra.mxu0 0.0
    %156 = vmatprep.subr.mxu0 0.0
    %157 = vmatpush1.msra.mxu0 0.0
    %158 = vmatprep.subr.mxu0 0.0
    %159 = vmatpush1.msra.mxu0 0.0
    %160 = vmatprep.subr.mxu0 0.0
    %161 = vmatpush1.msra.mxu0 0.0
    %162 = vmatprep.subr.mxu0 0.0
    %163 = vmatpush1.msra.mxu0 0.0
    %164 = vmatprep.subr.mxu0 0.0
    %165 = vmatpush1.msra.mxu0 0.0
    %166 = vmatprep.subr.mxu0 0.0
    %167 = vmatpush1.msra.mxu0 0.0
    %168 = vmatprep.subr.mxu0 0.0
    %169 = vmatpush1.msra.mxu0 0.0
    %170 = vmatprep.subr.mxu0 0.0
    %171 = vmatpush1.msra.mxu0 0.0
    %172 = vmatprep.subr.mxu0 0.0
    %173 = vmatpush1.msra.mxu0 0.0
    %174 = vmatprep.subr.mxu0 0.0
    %175 = vmatpush1.msra.mxu0 0.0
    %176 = vmatprep.subr.mxu0 0.0
    %177 = vmatpush1.msra.mxu0 0.0
    %178 = vmatprep.subr.mxu0 0.0
    %179 = vmatpush1.msra.mxu0 0.0
    %180 = vmatprep.subr.mxu0 0.0
    %181 = vmatpush1.msra.mxu0 0.0
    %182 = vmatprep.subr.mxu0 0.0
    %183 = vmatpush1.msra.mxu0 0.0
    %184 = vmatprep.subr.mxu0 0.0
    %185 = vmatpush1.msra.mxu0 0.0
    %186 = vmatprep.subr.mxu0 0.0
    %187 = vmatpush1.msra.mxu0 0.0
    %188 = vmatprep.subr.mxu0 0.0
    %189 = vmatpush1.msra.mxu0 0.0
    %190 = vmatprep.mubr.f32.mxu0 0.0
    %191 = vmatmul.mubr.f32.gmra.mrb[0].mxu0 %v103
    %v192 = vpop.f32.mrb[0].mxu0
    %v193 = vadd.f32 %v74, %v192
    %v194 = vpop.f32.mrb[0].mxu0
    %v195 = vadd.f32 %v78, %v194
    %196 = vmatprep.mubr.f32.mxu0 0.0
    %197 = vmatmul.mubr.f32.gmra.mrb[0].mxu0 %v106
    %v198 = vpop.f32.mrb[0].mxu0
    %v199 = vadd.f32 %v74, %v198
    %v200 = vpop.f32.mrb[0].mxu0
    %v201 = vadd.f32 %v78, %v200
    %202 = vmatprep.mubr.f32.mxu0 0.0
    %203 = vmatmul.mubr.f32.gmra.mrb[0].mxu0 %v109
    %v204 = vpop.f32.mrb[0].mxu0
    %v205 = vadd.f32 %v74, %v204
    %v206 = vpop.f32.mrb[0].mxu0
    %v207 = vadd.f32 %v78, %v206
    %208 = vmatprep.mubr.f32.mxu0 0.0
    %209 = vmatmul.mubr.f32.gmra.mrb[0].mxu0 %v112
    %v210 = vpop.f32.mrb[0].mxu0
    %v211 = vadd.f32 %v74, %v210
    %v212 = vpop.f32.mrb[0].mxu0
    %v213 = vadd.f32 %v78, %v212
    %214 = vmatprep.mubr.f32.mxu0 0.0
    %215 = vmatmul.mubr.f32.gmra.mrb[0].mxu0 %v115
    %v216 = vpop.f32.mrb[0].mxu0
    %v217 = vadd.f32 %v74, %v216
    %v218 = vpop.f32.mrb[0].mxu0
    %v219 = vadd.f32 %v78, %v218
    %220 = vmatprep.mubr.f32.mxu0 0.0
    %221 = vmatmul.mubr.f32.gmra.mrb[0].mxu0 %v118
    %v222 = vpop.f32.mrb[0].mxu0
    %v223 = vadd.f32 %v74, %v222
    %v224 = vpop.f32.mrb[0].mxu0
    %v225 = vadd.f32 %v78, %v224
    %226 = vmatprep.mubr.f32.mxu0 0.0
    %227 = vmatmul.mubr.f32.gmra.mrb[0].mxu0 %v121
    %v228 = vpop.f32.mrb[0].mxu0
    %v229 = vadd.f32 %v74, %v228
    %v230 = vpop.f32.mrb[0].mxu0
    %v231 = vadd.f32 %v78, %v230
    %232 = vmatprep.mubr.f32.mxu0 0.0
    %233 = vmatmul.mubr.f32.gmra.mrb[0].mxu0 %v124
    %v234 = vpop.f32.mrb[0].mxu0
    %v235 = vadd.f32 %v74, %v234
    %v236 = vpop.f32.mrb[0].mxu0
    %v237 = vadd.f32 %v78, %v236
    %238 = vdwg.mxu0
    %239 = vmatprep.subr.mxu0 %v60
    %240 = vmatpush1.msra.mxu0 %v59
    %241 = vmatprep.subr.mxu0 %v66
    %242 = vmatpush1.msra.mxu0 %v65
    %243 = vmatprep.subr.mxu0 0.0
    %244 = vmatpush1.msra.mxu0 0.0
    %245 = vmatprep.subr.mxu0 0.0
    %246 = vmatpush1.msra.mxu0 0.0
    %247 = vmatprep.subr.mxu0 0.0
    %248 = vmatpush1.msra.mxu0 0.0
    %249 = vmatprep.subr.mxu0 0.0
    %250 = vmatpush1.msra.mxu0 0.0
    %251 = vmatprep.subr.mxu0 0.0
    %252 = vmatpush1.msra.mxu0 0.0
    %253 = vmatprep.subr.mxu0 0.0
    %254 = vmatpush1.msra.mxu0 0.0
    %255 = vmatprep.subr.mxu0 0.0
    %256 = vmatpush1.msra.mxu0 0.0
    %257 = vmatprep.subr.mxu0 0.0
    %258 = vmatpush1.msra.mxu0 0.0
    %259 = vmatprep.subr.mxu0 0.0
    %260 = vmatpush1.msra.mxu0 0.0
    %261 = vmatprep.subr.mxu0 0.0
    %262 = vmatpush1.msra.mxu0 0.0
    %263 = vmatprep.subr.mxu0 0.0
    %264 = vmatpush1.msra.mxu0 0.0
    %265 = vmatprep.subr.mxu0 0.0
    %266 = vmatpush1.msra.mxu0 0.0
    %267 = vmatprep.subr.mxu0 0.0
    %268 = vmatpush1.msra.mxu0 0.0
    %269 = vmatprep.subr.mxu0 0.0
    %270 = vmatpush1.msra.mxu0 0.0
    %271 = vmatprep.subr.mxu0 0.0
    %272 = vmatpush1.msra.mxu0 0.0
    %273 = vmatprep.subr.mxu0 0.0
    %274 = vmatpush1.msra.mxu0 0.0
    %275 = vmatprep.subr.mxu0 0.0
    %276 = vmatpush1.msra.mxu0 0.0
    %277 = vmatprep.subr.mxu0 0.0
    %278 = vmatpush1.msra.mxu0 0.0
    %279 = vmatprep.subr.mxu0 0.0
    %280 = vmatpush1.msra.mxu0 0.0
    %281 = vmatprep.subr.mxu0 0.0
    %282 = vmatpush1.msra.mxu0 0.0
    %283 = vmatprep.subr.mxu0 0.0
    %284 = vmatpush1.msra.mxu0 0.0
    %285 = vmatprep.subr.mxu0 0.0
    %286 = vmatpush1.msra.mxu0 0.0
    %287 = vmatprep.subr.mxu0 0.0
    %288 = vmatpush1.msra.mxu0 0.0
    %289 = vmatprep.subr.mxu0 0.0
    %290 = vmatpush1.msra.mxu0 0.0
    %291 = vmatprep.subr.mxu0 0.0
    %292 = vmatpush1.msra.mxu0 0.0
    %293 = vmatprep.subr.mxu0 0.0
    %294 = vmatpush1.msra.mxu0 0.0
    %295 = vmatprep.subr.mxu0 0.0
    %296 = vmatpush1.msra.mxu0 0.0
    %297 = vmatprep.subr.mxu0 0.0
    %298 = vmatpush1.msra.mxu0 0.0
    %299 = vmatprep.subr.mxu0 0.0
    %300 = vmatpush1.msra.mxu0 0.0
    %301 = vmatprep.subr.mxu0 0.0
    %302 = vmatpush1.msra.mxu0 0.0
    %303 = vmatprep.mubr.f32.mxu0 0.0
    %304 = vmatmul.mubr.f32.gmra.mrb[0].mxu0 %v103
    %v305 = vpop.f32.mrb[0].mxu0
    %v306 = vadd.f32 %v82, %v305
    %v307 = vpop.f32.mrb[0].mxu0
    %v308 = vadd.f32 %v86, %v307
    %309 = vmatprep.mubr.f32.mxu0 0.0
    %310 = vmatmul.mubr.f32.gmra.mrb[0].mxu0 %v106
    %v311 = vpop.f32.mrb[0].mxu0
    %v312 = vadd.f32 %v82, %v311
    %v313 = vpop.f32.mrb[0].mxu0
    %v314 = vadd.f32 %v86, %v313
    %315 = vmatprep.mubr.f32.mxu0 0.0
    %316 = vmatmul.mubr.f32.gmra.mrb[0].mxu0 %v109
    %v317 = vpop.f32.mrb[0].mxu0
    %v318 = vadd.f32 %v82, %v317
    %v319 = vpop.f32.mrb[0].mxu0
    %v320 = vadd.f32 %v86, %v319
    %321 = vmatprep.mubr.f32.mxu0 0.0
    %322 = vmatmul.mubr.f32.gmra.mrb[0].mxu0 %v112
    %v323 = vpop.f32.mrb[0].mxu0
    %v324 = vadd.f32 %v82, %v323
    %v325 = vpop.f32.mrb[0].mxu0
    %v326 = vadd.f32 %v86, %v325
    %327 = vmatprep.mubr.f32.mxu0 0.0
    %328 = vmatmul.mubr.f32.gmra.mrb[0].mxu0 %v115
    %v329 = vpop.f32.mrb[0].mxu0
    %v330 = vadd.f32 %v82, %v329
    %v331 = vpop.f32.mrb[0].mxu0
    %v332 = vadd.f32 %v86, %v331
    %333 = vmatprep.mubr.f32.mxu0 0.0
    %334 = vmatmul.mubr.f32.gmra.mrb[0].mxu0 %v118
    %v335 = vpop.f32.mrb[0].mxu0
    %v336 = vadd.f32 %v82, %v335
    %v337 = vpop.f32.mrb[0].mxu0
    %v338 = vadd.f32 %v86, %v337
    %339 = vmatprep.mubr.f32.mxu0 0.0
    %340 = vmatmul.mubr.f32.gmra.mrb[0].mxu0 %v121
    %v341 = vpop.f32.mrb[0].mxu0
    %v342 = vadd.f32 %v82, %v341
    %v343 = vpop.f32.mrb[0].mxu0
    %v344 = vadd.f32 %v86, %v343
    %345 = vmatprep.mubr.f32.mxu0 0.0
    %346 = vmatmul.mubr.f32.gmra.mrb[0].mxu0 %v124
    %v347 = vpop.f32.mrb[0].mxu0
    %v348 = vadd.f32 %v82, %v347
    %v349 = vpop.f32.mrb[0].mxu0
    %v350 = vadd.f32 %v86, %v349
    %351 = vdwg.mxu0
    %352 = vmatprep.subr.mxu0 %v62
    %353 = vmatpush1.msra.mxu0 %v61
    %354 = vmatprep.subr.mxu0 %v68
    %355 = vmatpush1.msra.mxu0 %v67
    %356 = vmatprep.subr.mxu0 0.0
    %357 = vmatpush1.msra.mxu0 0.0
    %358 = vmatprep.subr.mxu0 0.0
    %359 = vmatpush1.msra.mxu0 0.0
    %360 = vmatprep.subr.mxu0 0.0
    %361 = vmatpush1.msra.mxu0 0.0
    %362 = vmatprep.subr.mxu0 0.0
    %363 = vmatpush1.msra.mxu0 0.0
    %364 = vmatprep.subr.mxu0 0.0
    %365 = vmatpush1.msra.mxu0 0.0
    %366 = vmatprep.subr.mxu0 0.0
    %367 = vmatpush1.msra.mxu0 0.0
    %368 = vmatprep.subr.mxu0 0.0
    %369 = vmatpush1.msra.mxu0 0.0
    %370 = vmatprep.subr.mxu0 0.0
    %371 = vmatpush1.msra.mxu0 0.0
    %372 = vmatprep.subr.mxu0 0.0
    %373 = vmatpush1.msra.mxu0 0.0
    %374 = vmatprep.subr.mxu0 0.0
    %375 = vmatpush1.msra.mxu0 0.0
    %376 = vmatprep.subr.mxu0 0.0
    %377 = vmatpush1.msra.mxu0 0.0
    %378 = vmatprep.subr.mxu0 0.0
    %379 = vmatpush1.msra.mxu0 0.0
    %380 = vmatprep.subr.mxu0 0.0
    %381 = vmatpush1.msra.mxu0 0.0
    %382 = vmatprep.subr.mxu0 0.0
    %383 = vmatpush1.msra.mxu0 0.0
    %384 = vmatprep.subr.mxu0 0.0
    %385 = vmatpush1.msra.mxu0 0.0
    %386 = vmatprep.subr.mxu0 0.0
    %387 = vmatpush1.msra.mxu0 0.0
    %388 = vmatprep.subr.mxu0 0.0
    %389 = vmatpush1.msra.mxu0 0.0
    %390 = vmatprep.subr.mxu0 0.0
    %391 = vmatpush1.msra.mxu0 0.0
    %392 = vmatprep.subr.mxu0 0.0
    %393 = vmatpush1.msra.mxu0 0.0
    %394 = vmatprep.subr.mxu0 0.0
    %395 = vmatpush1.msra.mxu0 0.0
    %396 = vmatprep.subr.mxu0 0.0
    %397 = vmatpush1.msra.mxu0 0.0
    %398 = vmatprep.subr.mxu0 0.0
    %399 = vmatpush1.msra.mxu0 0.0
    %400 = vmatprep.subr.mxu0 0.0
    %401 = vmatpush1.msra.mxu0 0.0
    %402 = vmatprep.subr.mxu0 0.0
    %403 = vmatpush1.msra.mxu0 0.0
    %404 = vmatprep.subr.mxu0 0.0
    %405 = vmatpush1.msra.mxu0 0.0
    %406 = vmatprep.subr.mxu0 0.0
    %407 = vmatpush1.msra.mxu0 0.0
    %408 = vmatprep.subr.mxu0 0.0
    %409 = vmatpush1.msra.mxu0 0.0
    %410 = vmatprep.subr.mxu0 0.0
    %411 = vmatpush1.msra.mxu0 0.0
    %412 = vmatprep.subr.mxu0 0.0
    %413 = vmatpush1.msra.mxu0 0.0
    %414 = vmatprep.subr.mxu0 0.0
    %415 = vmatpush1.msra.mxu0 0.0
    %416 = vmatprep.mubr.f32.mxu0 0.0
    %417 = vmatmul.mubr.f32.gmra.mrb[0].mxu0 %v103
    %v418 = vpop.f32.mrb[0].mxu0
    %v419 = vadd.f32 %v90, %v418
    %v420 = vpop.f32.mrb[0].mxu0
    %v421 = vadd.f32 %v94, %v420
    %422 = vmatprep.mubr.f32.mxu0 0.0
    %423 = vmatmul.mubr.f32.gmra.mrb[0].mxu0 %v106
    %v424 = vpop.f32.mrb[0].mxu0
    %v425 = vadd.f32 %v90, %v424
    %v426 = vpop.f32.mrb[0].mxu0
    %v427 = vadd.f32 %v94, %v426
    %428 = vmatprep.mubr.f32.mxu0 0.0
    %429 = vmatmul.mubr.f32.gmra.mrb[0].mxu0 %v109
    %v430 = vpop.f32.mrb[0].mxu0
    %v431 = vadd.f32 %v90, %v430
    %v432 = vpop.f32.mrb[0].mxu0
    %v433 = vadd.f32 %v94, %v432
    %434 = vmatprep.mubr.f32.mxu0 0.0
    %435 = vmatmul.mubr.f32.gmra.mrb[0].mxu0 %v112
    %v436 = vpop.f32.mrb[0].mxu0
    %v437 = vadd.f32 %v90, %v436
    %v438 = vpop.f32.mrb[0].mxu0
    %v439 = vadd.f32 %v94, %v438
    %440 = vmatprep.mubr.f32.mxu0 0.0
    %441 = vmatmul.mubr.f32.gmra.mrb[0].mxu0 %v115
    %v442 = vpop.f32.mrb[0].mxu0
    %v443 = vadd.f32 %v90, %v442
    %v444 = vpop.f32.mrb[0].mxu0
    %v445 = vadd.f32 %v94, %v444
    %446 = vmatprep.mubr.f32.mxu0 0.0
    %447 = vmatmul.mubr.f32.gmra.mrb[0].mxu0 %v118
    %v448 = vpop.f32.mrb[0].mxu0
    %v449 = vadd.f32 %v90, %v448
    %v450 = vpop.f32.mrb[0].mxu0
    %v451 = vadd.f32 %v94, %v450
    %452 = vmatprep.mubr.f32.mxu0 0.0
    %453 = vmatmul.mubr.f32.gmra.mrb[0].mxu0 %v121
    %v454 = vpop.f32.mrb[0].mxu0
    %v455 = vadd.f32 %v90, %v454
    %v456 = vpop.f32.mrb[0].mxu0
    %v457 = vadd.f32 %v94, %v456
    %458 = vmatprep.mubr.f32.mxu0 0.0
    %459 = vmatmul.mubr.f32.gmra.mrb[0].mxu0 %v124
    %v460 = vpop.f32.mrb[0].mxu0
    %v461 = vadd.f32 %v90, %v460
    %v462 = vpop.f32.mrb[0].mxu0
    %v463 = vadd.f32 %v94, %v462
    %464 = vdwg.mxu0
    %465 = vst [vmem:[#allocation3] sm:$0xff] %v193
    %466 = vst [vmem:[#allocation3 + $0x8] sm:$0xff] %v195
    %467 = vst [vmem:[#allocation3 + $0x10] sm:$0xff] %v306
    %468 = vst [vmem:[#allocation3 + $0x18] sm:$0xff] %v308
    %469 = vst [vmem:[#allocation3 + $0x20] sm:$0xff] %v419
    %470 = vst [vmem:[#allocation3 + $0x28] sm:$0xff] %v421
    %471 = vst [vmem:[#allocation3 + $0x30] sm:$0xff] %v199
    %472 = vst [vmem:[#allocation3 + $0x38] sm:$0xff] %v201
    %473 = vst [vmem:[#allocation3 + $0x40] sm:$0xff] %v312
    %474 = vst [vmem:[#allocation3 + $0x48] sm:$0xff] %v314
    %475 = vst [vmem:[#allocation3 + $0x50] sm:$0xff] %v425
    %476 = vst [vmem:[#allocation3 + $0x58] sm:$0xff] %v427
    %477 = vst [vmem:[#allocation3 + $0x60] sm:$0xff] %v205
    %478 = vst [vmem:[#allocation3 + $0x68] sm:$0xff] %v207
    %479 = vst [vmem:[#allocation3 + $0x70] sm:$0xff] %v318
    %480 = vst [vmem:[#allocation3 + $0x78] sm:$0xff] %v320
    %481 = vst [vmem:[#allocation3 + $0x80] sm:$0xff] %v431
    %482 = vst [vmem:[#allocation3 + $0x88] sm:$0xff] %v433
    %483 = vst [vmem:[#allocation3 + $0x90] sm:$0xff] %v211
    %484 = vst [vmem:[#allocation3 + $0x98] sm:$0xff] %v213
    %485 = vst [vmem:[#allocation3 + $0xa0] sm:$0xff] %v324
    %486 = vst [vmem:[#allocation3 + $0xa8] sm:$0xff] %v326
    %487 = vst [vmem:[#allocation3 + $0xb0] sm:$0xff] %v437
    %488 = vst [vmem:[#allocation3 + $0xb8] sm:$0xff] %v439
    %489 = vst [vmem:[#allocation3 + $0xc0] sm:$0xff] %v217
    %490 = vst [vmem:[#allocation3 + $0xc8] sm:$0xff] %v219
    %491 = vst [vmem:[#allocation3 + $0xd0] sm:$0xff] %v330
    %492 = vst [vmem:[#allocation3 + $0xd8] sm:$0xff] %v332
    %493 = vst [vmem:[#allocation3 + $0xe0] sm:$0xff] %v443
    %494 = vst [vmem:[#allocation3 + $0xe8] sm:$0xff] %v445
    %495 = vst [vmem:[#allocation3 + $0xf0] sm:$0xff] %v223
    %496 = vst [vmem:[#allocation3 + $0xf8] sm:$0xff] %v225
    %497 = vst [vmem:[#allocation3 + $0x100] sm:$0xff] %v336
    %498 = vst [vmem:[#allocation3 + $0x108] sm:$0xff] %v338
    %499 = vst [vmem:[#allocation3 + $0x110] sm:$0xff] %v449
    %500 = vst [vmem:[#allocation3 + $0x118] sm:$0xff] %v451
    %501 = vst [vmem:[#allocation3 + $0x120] sm:$0xff] %v229
    %502 = vst [vmem:[#allocation3 + $0x128] sm:$0xff] %v231
    %503 = vst [vmem:[#allocation3 + $0x130] sm:$0xff] %v342
    %504 = vst [vmem:[#allocation3 + $0x138] sm:$0xff] %v344
    %505 = vst [vmem:[#allocation3 + $0x140] sm:$0xff] %v455
    %506 = vst [vmem:[#allocation3 + $0x148] sm:$0xff] %v457
    %507 = vst [vmem:[#allocation3 + $0x150] sm:$0xff] %v235
    %508 = vst [vmem:[#allocation3 + $0x158] sm:$0xff] %v237
    %509 = vst [vmem:[#allocation3 + $0x160] sm:$0xff] %v348
    %510 = vst [vmem:[#allocation3 + $0x168] sm:$0xff] %v350
    %511 = vst [vmem:[#allocation3 + $0x170] sm:$0xff] %v461
    %512 = vst [vmem:[#allocation3 + $0x178] sm:$0xff] %v463
    %v513 = vld [vmem:[%s5] sm:$0x3]
    %v515 = vlaneseq
    %v516 = vshrl.u32 %v515, 7
    %v517 = vsub.s32 0, %v516
    %v518 = vrot.slane %v513, %v517
    %v519 = vlaneseq
    %v520 = vshrl.u32 %v519, 7
    %v521 = vsub.s32 1, %v520
    %v522 = vrot.slane %v513, %v521
    %v525 = vld [vmem:[#allocation2] sm:$0xff]
    %v526 = vld [vmem:[#allocation2 + $0x8] sm:$0xff]
    %s527 = smul.u32 0, 6
    %s528 = smul.addr %s527, 8
    %s529 = scalar_lea.vmem [#allocation3], %s528
    %v530 = vld [vmem:[%s529] sm:$0xff]
    %v531 = vld [vmem:[%s529 + $0x8] sm:$0xff]
    %v532 = vld [vmem:[%s529 + $0x10] sm:$0xff]
    %v533 = vld [vmem:[%s529 + $0x18] sm:$0xff]
    %v534 = vld [vmem:[%s529 + $0x20] sm:$0xff]
    %v535 = vld [vmem:[%s529 + $0x28] sm:$0xff]
    %v536 = vld [vmem:[#allocation5] sm:$0xff]
    %v537 = vld [vmem:[#allocation5 + $0x8] sm:$0xff]
    %v538 = vld [vmem:[#allocation5 + $0x10] sm:$0xff]
    %v539 = vld [vmem:[#allocation5 + $0x18] sm:$0xff]
    %v540 = vld [vmem:[#allocation5 + $0x20] sm:$0xff]
    %v541 = vld [vmem:[#allocation5 + $0x28] sm:$0xff]
    %v542 = vld [vmem:[#allocation5 + $0x30] sm:$0xff]
    %v543 = vld [vmem:[#allocation5 + $0x38] sm:$0xff]
    %v544 = vld [vmem:[#allocation5 + $0x40] sm:$0xff]
    %v545 = vld [vmem:[#allocation5 + $0x48] sm:$0xff]
    %v546 = vld [vmem:[#allocation5 + $0x50] sm:$0xff]
    %v547 = vld [vmem:[#allocation5 + $0x58] sm:$0xff]
    %v548 = vld [vmem:[#allocation5 + $0x60] sm:$0xff]
    %v549 = vld [vmem:[#allocation5 + $0x68] sm:$0xff]
    %v550 = vld [vmem:[#allocation5 + $0x70] sm:$0xff]
    %v551 = vld [vmem:[#allocation5 + $0x78] sm:$0xff]
    %v552 = vld [vmem:[#allocation5 + $0x80] sm:$0xff]
    %v553 = vld [vmem:[#allocation5 + $0x88] sm:$0xff]
    %v554 = vld [vmem:[#allocation5 + $0x90] sm:$0xff]
    %v555 = vld [vmem:[#allocation5 + $0x98] sm:$0xff]
    %v556 = vld [vmem:[#allocation5 + $0xa0] sm:$0xff]
    %v557 = vld [vmem:[#allocation5 + $0xa8] sm:$0xff]
    %v558 = vld [vmem:[#allocation5 + $0xb0] sm:$0xff]
    %v559 = vld [vmem:[#allocation5 + $0xb8] sm:$0xff]
    %v560 = vld [vmem:[#allocation5 + $0xc0] sm:$0xff]
    %v561 = vld [vmem:[#allocation5 + $0xc8] sm:$0xff]
    %v562 = vld [vmem:[#allocation5 + $0xd0] sm:$0xff]
    %v563 = vld [vmem:[#allocation5 + $0xd8] sm:$0xff]
    %v564 = vld [vmem:[#allocation5 + $0xe0] sm:$0xff]
    %v565 = vld [vmem:[#allocation5 + $0xe8] sm:$0xff]
    %v566 = vld [vmem:[#allocation5 + $0xf0] sm:$0xff]
    %v567 = vld [vmem:[#allocation5 + $0xf8] sm:$0xff]
    %v568 = vld [vmem:[#allocation5 + $0x100] sm:$0xff]
    %v569 = vld [vmem:[#allocation5 + $0x108] sm:$0xff]
    %v570 = vld [vmem:[#allocation5 + $0x110] sm:$0xff]
    %v571 = vld [vmem:[#allocation5 + $0x118] sm:$0xff]
    %v572 = vld [vmem:[#allocation5 + $0x120] sm:$0xff]
    %v573 = vld [vmem:[#allocation5 + $0x128] sm:$0xff]
    %v574 = vld [vmem:[#allocation5 + $0x130] sm:$0xff]
    %v575 = vld [vmem:[#allocation5 + $0x138] sm:$0xff]
    %v576 = vld [vmem:[#allocation5 + $0x140] sm:$0xff]
    %v577 = vld [vmem:[#allocation5 + $0x148] sm:$0xff]
    %v578 = vld [vmem:[#allocation5 + $0x150] sm:$0xff]
    %v579 = vld [vmem:[#allocation5 + $0x158] sm:$0xff]
    %v580 = vld [vmem:[#allocation5 + $0x160] sm:$0xff]
    %v581 = vld [vmem:[#allocation5 + $0x168] sm:$0xff]
    %v582 = vld [vmem:[#allocation5 + $0x170] sm:$0xff]
    %v583 = vld [vmem:[#allocation5 + $0x178] sm:$0xff]
    %v584 = vld [vmem:[#allocation5 + $0x180] sm:$0xff]
    %v585 = vld [vmem:[#allocation5 + $0x188] sm:$0xff]
    %v586 = vld [vmem:[#allocation5 + $0x190] sm:$0xff]
    %v587 = vld [vmem:[#allocation5 + $0x198] sm:$0xff]
    %v588 = vld [vmem:[#allocation5 + $0x1a0] sm:$0xff]
    %v589 = vld [vmem:[#allocation5 + $0x1a8] sm:$0xff]
    %v590 = vld [vmem:[#allocation5 + $0x1b0] sm:$0xff]
    %v591 = vld [vmem:[#allocation5 + $0x1b8] sm:$0xff]
    %v592 = vld [vmem:[#allocation5 + $0x1c0] sm:$0xff]
    %v593 = vld [vmem:[#allocation5 + $0x1c8] sm:$0xff]
    %v594 = vld [vmem:[#allocation5 + $0x1d0] sm:$0xff]
    %v595 = vld [vmem:[#allocation5 + $0x1d8] sm:$0xff]
    %v596 = vld [vmem:[#allocation5 + $0x1e0] sm:$0xff]
    %v597 = vld [vmem:[#allocation5 + $0x1e8] sm:$0xff]
    %v598 = vld [vmem:[#allocation5 + $0x1f0] sm:$0xff]
    %v599 = vld [vmem:[#allocation5 + $0x1f8] sm:$0xff]
    %v600 = vld [vmem:[#allocation5 + $0x200] sm:$0xff]
    %v601 = vld [vmem:[#allocation5 + $0x208] sm:$0xff]
    %v602 = vld [vmem:[#allocation5 + $0x210] sm:$0xff]
    %v603 = vld [vmem:[#allocation5 + $0x218] sm:$0xff]
    %v604 = vld [vmem:[#allocation5 + $0x220] sm:$0xff]
    %v605 = vld [vmem:[#allocation5 + $0x228] sm:$0xff]
    %v606 = vld [vmem:[#allocation5 + $0x230] sm:$0xff]
    %v607 = vld [vmem:[#allocation5 + $0x238] sm:$0xff]
    %v608 = vld [vmem:[#allocation5 + $0x240] sm:$0xff]
    %v609 = vld [vmem:[#allocation5 + $0x248] sm:$0xff]
    %v610 = vld [vmem:[#allocation5 + $0x250] sm:$0xff]
    %v611 = vld [vmem:[#allocation5 + $0x258] sm:$0xff]
    %v612 = vld [vmem:[#allocation5 + $0x260] sm:$0xff]
    %v613 = vld [vmem:[#allocation5 + $0x268] sm:$0xff]
    %v614 = vld [vmem:[#allocation5 + $0x270] sm:$0xff]
    %v615 = vld [vmem:[#allocation5 + $0x278] sm:$0xff]
    %v616 = vld [vmem:[#allocation5 + $0x280] sm:$0xff]
    %v617 = vld [vmem:[#allocation5 + $0x288] sm:$0xff]
    %v618 = vld [vmem:[#allocation5 + $0x290] sm:$0xff]
    %v619 = vld [vmem:[#allocation5 + $0x298] sm:$0xff]
    %v620 = vld [vmem:[#allocation5 + $0x2a0] sm:$0xff]
    %v621 = vld [vmem:[#allocation5 + $0x2a8] sm:$0xff]
    %v622 = vld [vmem:[#allocation5 + $0x2b0] sm:$0xff]
    %v623 = vld [vmem:[#allocation5 + $0x2b8] sm:$0xff]
    %v624 = vld [vmem:[#allocation5 + $0x2c0] sm:$0xff]
    %v625 = vld [vmem:[#allocation5 + $0x2c8] sm:$0xff]
    %v626 = vld [vmem:[#allocation5 + $0x2d0] sm:$0xff]
    %v627 = vld [vmem:[#allocation5 + $0x2d8] sm:$0xff]
    %v628 = vld [vmem:[#allocation5 + $0x2e0] sm:$0xff]
    %v629 = vld [vmem:[#allocation5 + $0x2e8] sm:$0xff]
    %v630 = vld [vmem:[#allocation5 + $0x2f0] sm:$0xff]
    %v631 = vld [vmem:[#allocation5 + $0x2f8] sm:$0xff]
    %v632 = vld [vmem:[#allocation5 + $0x300] sm:$0xff]
    %v633 = vld [vmem:[#allocation5 + $0x308] sm:$0xff]
    %v634 = vld [vmem:[#allocation5 + $0x310] sm:$0xff]
    %v635 = vld [vmem:[#allocation5 + $0x318] sm:$0xff]
    %v636 = vld [vmem:[#allocation5 + $0x320] sm:$0xff]
    %v637 = vld [vmem:[#allocation5 + $0x328] sm:$0xff]
    %v638 = vld [vmem:[#allocation5 + $0x330] sm:$0xff]
    %v639 = vld [vmem:[#allocation5 + $0x338] sm:$0xff]
    %v640 = vld [vmem:[#allocation5 + $0x340] sm:$0xff]
    %v641 = vld [vmem:[#allocation5 + $0x348] sm:$0xff]
    %v642 = vld [vmem:[#allocation5 + $0x350] sm:$0xff]
    %v643 = vld [vmem:[#allocation5 + $0x358] sm:$0xff]
    %v644 = vld [vmem:[#allocation5 + $0x360] sm:$0xff]
    %v645 = vld [vmem:[#allocation5 + $0x368] sm:$0xff]
    %v646 = vld [vmem:[#allocation5 + $0x370] sm:$0xff]
    %v647 = vld [vmem:[#allocation5 + $0x378] sm:$0xff]
    %v648 = vld [vmem:[#allocation5 + $0x380] sm:$0xff]
    %v649 = vld [vmem:[#allocation5 + $0x388] sm:$0xff]
    %v650 = vld [vmem:[#allocation5 + $0x390] sm:$0xff]
    %v651 = vld [vmem:[#allocation5 + $0x398] sm:$0xff]
    %v652 = vld [vmem:[#allocation5 + $0x3a0] sm:$0xff]
    %v653 = vld [vmem:[#allocation5 + $0x3a8] sm:$0xff]
    %v654 = vld [vmem:[#allocation5 + $0x3b0] sm:$0xff]
    %v655 = vld [vmem:[#allocation5 + $0x3b8] sm:$0xff]
    %v656 = vld [vmem:[#allocation5 + $0x3c0] sm:$0xff]
    %v657 = vld [vmem:[#allocation5 + $0x3c8] sm:$0xff]
    %v658 = vld [vmem:[#allocation5 + $0x3d0] sm:$0xff]
    %v659 = vld [vmem:[#allocation5 + $0x3d8] sm:$0xff]
    %v660 = vld [vmem:[#allocation5 + $0x3e0] sm:$0xff]
    %v661 = vld [vmem:[#allocation5 + $0x3e8] sm:$0xff]
    %v662 = vld [vmem:[#allocation5 + $0x3f0] sm:$0xff]
    %v663 = vld [vmem:[#allocation5 + $0x3f8] sm:$0xff]
    %v664 = vld [vmem:[#allocation5 + $0x400] sm:$0xff]
    %v665 = vld [vmem:[#allocation5 + $0x408] sm:$0xff]
    %v666 = vld [vmem:[#allocation5 + $0x410] sm:$0xff]
    %v667 = vld [vmem:[#allocation5 + $0x418] sm:$0xff]
    %v668 = vld [vmem:[#allocation5 + $0x420] sm:$0xff]
    %v669 = vld [vmem:[#allocation5 + $0x428] sm:$0xff]
    %v670 = vld [vmem:[#allocation5 + $0x430] sm:$0xff]
    %v671 = vld [vmem:[#allocation5 + $0x438] sm:$0xff]
    %v672 = vld [vmem:[#allocation5 + $0x440] sm:$0xff]
    %v673 = vld [vmem:[#allocation5 + $0x448] sm:$0xff]
    %v674 = vld [vmem:[#allocation5 + $0x450] sm:$0xff]
    %v675 = vld [vmem:[#allocation5 + $0x458] sm:$0xff]
    %v676 = vld [vmem:[#allocation5 + $0x460] sm:$0xff]
    %v677 = vld [vmem:[#allocation5 + $0x468] sm:$0xff]
    %v678 = vld [vmem:[#allocation5 + $0x470] sm:$0xff]
    %v679 = vld [vmem:[#allocation5 + $0x478] sm:$0xff]
    %v680 = vld [vmem:[#allocation5 + $0x480] sm:$0xff]
    %v681 = vld [vmem:[#allocation5 + $0x488] sm:$0xff]
    %v682 = vld [vmem:[#allocation5 + $0x490] sm:$0xff]
    %v683 = vld [vmem:[#allocation5 + $0x498] sm:$0xff]
    %v684 = vld [vmem:[#allocation5 + $0x4a0] sm:$0xff]
    %v685 = vld [vmem:[#allocation5 + $0x4a8] sm:$0xff]
    %v686 = vld [vmem:[#allocation5 + $0x4b0] sm:$0xff]
    %v687 = vld [vmem:[#allocation5 + $0x4b8] sm:$0xff]
    %v688 = vld [vmem:[#allocation5 + $0x4c0] sm:$0xff]
    %v689 = vld [vmem:[#allocation5 + $0x4c8] sm:$0xff]
    %v690 = vld [vmem:[#allocation5 + $0x4d0] sm:$0xff]
    %v691 = vld [vmem:[#allocation5 + $0x4d8] sm:$0xff]
    %v692 = vld [vmem:[#allocation5 + $0x4e0] sm:$0xff]
    %v693 = vld [vmem:[#allocation5 + $0x4e8] sm:$0xff]
    %v694 = vld [vmem:[#allocation5 + $0x4f0] sm:$0xff]
    %v695 = vld [vmem:[#allocation5 + $0x4f8] sm:$0xff]
    %v696 = vld [vmem:[#allocation5 + $0x500] sm:$0xff]
    %v697 = vld [vmem:[#allocation5 + $0x508] sm:$0xff]
    %v698 = vld [vmem:[#allocation5 + $0x510] sm:$0xff]
    %v699 = vld [vmem:[#allocation5 + $0x518] sm:$0xff]
    %v700 = vld [vmem:[#allocation5 + $0x520] sm:$0xff]
    %v701 = vld [vmem:[#allocation5 + $0x528] sm:$0xff]
    %v702 = vld [vmem:[#allocation5 + $0x530] sm:$0xff]
    %v703 = vld [vmem:[#allocation5 + $0x538] sm:$0xff]
    %v704 = vld [vmem:[#allocation5 + $0x540] sm:$0xff]
    %v705 = vld [vmem:[#allocation5 + $0x548] sm:$0xff]
    %v706 = vld [vmem:[#allocation5 + $0x550] sm:$0xff]
    %v707 = vld [vmem:[#allocation5 + $0x558] sm:$0xff]
    %v708 = vld [vmem:[#allocation5 + $0x560] sm:$0xff]
    %v709 = vld [vmem:[#allocation5 + $0x568] sm:$0xff]
    %v710 = vld [vmem:[#allocation5 + $0x570] sm:$0xff]
    %v711 = vld [vmem:[#allocation5 + $0x578] sm:$0xff]
    %v712 = vld [vmem:[#allocation5 + $0x580] sm:$0xff]
    %v713 = vld [vmem:[#allocation5 + $0x588] sm:$0xff]
    %v714 = vld [vmem:[#allocation5 + $0x590] sm:$0xff]
    %v715 = vld [vmem:[#allocation5 + $0x598] sm:$0xff]
    %v716 = vld [vmem:[#allocation5 + $0x5a0] sm:$0xff]
    %v717 = vld [vmem:[#allocation5 + $0x5a8] sm:$0xff]
    %v718 = vld [vmem:[#allocation5 + $0x5b0] sm:$0xff]
    %v719 = vld [vmem:[#allocation5 + $0x5b8] sm:$0xff]
    %v720 = vld [vmem:[#allocation5 + $0x5c0] sm:$0xff]
    %v721 = vld [vmem:[#allocation5 + $0x5c8] sm:$0xff]
    %v722 = vld [vmem:[#allocation5 + $0x5d0] sm:$0xff]
    %v723 = vld [vmem:[#allocation5 + $0x5d8] sm:$0xff]
    %v724 = vld [vmem:[#allocation5 + $0x5e0] sm:$0xff]
    %v725 = vld [vmem:[#allocation5 + $0x5e8] sm:$0xff]
    %v726 = vld [vmem:[#allocation5 + $0x5f0] sm:$0xff]
    %v727 = vld [vmem:[#allocation5 + $0x5f8] sm:$0xff]
    %728 = vmatprep.subr.mxu0 %v537
    %729 = vmatpush1.msra.mxu0 %v536
    %730 = vmatprep.subr.mxu0 %v543
    %731 = vmatpush1.msra.mxu0 %v542
    %732 = vmatprep.subr.mxu0 %v549
    %733 = vmatpush1.msra.mxu0 %v548
    %734 = vmatprep.subr.mxu0 %v555
    %735 = vmatpush1.msra.mxu0 %v554
    %736 = vmatprep.subr.mxu0 %v561
    %737 = vmatpush1.msra.mxu0 %v560
    %738 = vmatprep.subr.mxu0 %v567
    %739 = vmatpush1.msra.mxu0 %v566
    %740 = vmatprep.subr.mxu0 %v573
    %741 = vmatpush1.msra.mxu0 %v572
    %742 = vmatprep.subr.mxu0 %v579
    %743 = vmatpush1.msra.mxu0 %v578
    %744 = vmatprep.subr.mxu0 %v585
    %745 = vmatpush1.msra.mxu0 %v584
    %746 = vmatprep.subr.mxu0 %v591
    %747 = vmatpush1.msra.mxu0 %v590
    %748 = vmatprep.subr.mxu0 %v597
    %749 = vmatpush1.msra.mxu0 %v596
    %750 = vmatprep.subr.mxu0 %v603
    %751 = vmatpush1.msra.mxu0 %v602
    %752 = vmatprep.subr.mxu0 %v609
    %753 = vmatpush1.msra.mxu0 %v608
    %754 = vmatprep.subr.mxu0 %v615
    %755 = vmatpush1.msra.mxu0 %v614
    %756 = vmatprep.subr.mxu0 %v621
    %757 = vmatpush1.msra.mxu0 %v620
    %758 = vmatprep.subr.mxu0 %v627
    %759 = vmatpush1.msra.mxu0 %v626
    %760 = vmatprep.subr.mxu0 %v633
    %761 = vmatpush1.msra.mxu0 %v632
    %762 = vmatprep.subr.mxu0 %v639
    %763 = vmatpush1.msra.mxu0 %v638
    %764 = vmatprep.subr.mxu0 %v645
    %765 = vmatpush1.msra.mxu0 %v644
    %766 = vmatprep.subr.mxu0 %v651
    %767 = vmatpush1.msra.mxu0 %v650
    %768 = vmatprep.subr.mxu0 %v657
    %769 = vmatpush1.msra.mxu0 %v656
    %770 = vmatprep.subr.mxu0 %v663
    %771 = vmatpush1.msra.mxu0 %v662
    %772 = vmatprep.subr.mxu0 %v669
    %773 = vmatpush1.msra.mxu0 %v668
    %774 = vmatprep.subr.mxu0 %v675
    %775 = vmatpush1.msra.mxu0 %v674
    %776 = vmatprep.subr.mxu0 %v681
    %777 = vmatpush1.msra.mxu0 %v680
    %778 = vmatprep.subr.mxu0 %v687
    %779 = vmatpush1.msra.mxu0 %v686
    %780 = vmatprep.subr.mxu0 %v693
    %781 = vmatpush1.msra.mxu0 %v692
    %782 = vmatprep.subr.mxu0 %v699
    %783 = vmatpush1.msra.mxu0 %v698
    %784 = vmatprep.subr.mxu0 %v705
    %785 = vmatpush1.msra.mxu0 %v704
    %786 = vmatprep.subr.mxu0 %v711
    %787 = vmatpush1.msra.mxu0 %v710
    %788 = vmatprep.subr.mxu0 %v717
    %789 = vmatpush1.msra.mxu0 %v716
    %790 = vmatprep.subr.mxu0 %v723
    %791 = vmatpush1.msra.mxu0 %v722
    %792 = vmatprep.mubr.f32.mxu0 %v526
    %793 = vmatmul.mubr.f32.gmra.mrb[0].mxu0 %v525
    %v794 = vpop.f32.mrb[0].mxu0
    %v795 = vadd.f32 0.0, %v794
    %v796 = vpop.f32.mrb[0].mxu0
    %v797 = vadd.f32 0.0, %v796
    %798 = vdwg.mxu0
    %799 = vmatprep.subr.mxu0 %v539
    %800 = vmatpush1.msra.mxu0 %v538
    %801 = vmatprep.subr.mxu0 %v545
    %802 = vmatpush1.msra.mxu0 %v544
    %803 = vmatprep.subr.mxu0 %v551
    %804 = vmatpush1.msra.mxu0 %v550
    %805 = vmatprep.subr.mxu0 %v557
    %806 = vmatpush1.msra.mxu0 %v556
    %807 = vmatprep.subr.mxu0 %v563
    %808 = vmatpush1.msra.mxu0 %v562
    %809 = vmatprep.subr.mxu0 %v569
    %810 = vmatpush1.msra.mxu0 %v568
    %811 = vmatprep.subr.mxu0 %v575
    %812 = vmatpush1.msra.mxu0 %v574
    %813 = vmatprep.subr.mxu0 %v581
    %814 = vmatpush1.msra.mxu0 %v580
    %815 = vmatprep.subr.mxu0 %v587
    %816 = vmatpush1.msra.mxu0 %v586
    %817 = vmatprep.subr.mxu0 %v593
    %818 = vmatpush1.msra.mxu0 %v592
    %819 = vmatprep.subr.mxu0 %v599
    %820 = vmatpush1.msra.mxu0 %v598
    %821 = vmatprep.subr.mxu0 %v605
    %822 = vmatpush1.msra.mxu0 %v604
    %823 = vmatprep.subr.mxu0 %v611
    %824 = vmatpush1.msra.mxu0 %v610
    %825 = vmatprep.subr.mxu0 %v617
    %826 = vmatpush1.msra.mxu0 %v616
    %827 = vmatprep.subr.mxu0 %v623
    %828 = vmatpush1.msra.mxu0 %v622
    %829 = vmatprep.subr.mxu0 %v629
    %830 = vmatpush1.msra.mxu0 %v628
    %831 = vmatprep.subr.mxu0 %v635
    %832 = vmatpush1.msra.mxu0 %v634
    %833 = vmatprep.subr.mxu0 %v641
    %834 = vmatpush1.msra.mxu0 %v640
    %835 = vmatprep.subr.mxu0 %v647
    %836 = vmatpush1.msra.mxu0 %v646
    %837 = vmatprep.subr.mxu0 %v653
    %838 = vmatpush1.msra.mxu0 %v652
    %839 = vmatprep.subr.mxu0 %v659
    %840 = vmatpush1.msra.mxu0 %v658
    %841 = vmatprep.subr.mxu0 %v665
    %842 = vmatpush1.msra.mxu0 %v664
    %843 = vmatprep.subr.mxu0 %v671
    %844 = vmatpush1.msra.mxu0 %v670
    %845 = vmatprep.subr.mxu0 %v677
    %846 = vmatpush1.msra.mxu0 %v676
    %847 = vmatprep.subr.mxu0 %v683
    %848 = vmatpush1.msra.mxu0 %v682
    %849 = vmatprep.subr.mxu0 %v689
    %850 = vmatpush1.msra.mxu0 %v688
    %851 = vmatprep.subr.mxu0 %v695
    %852 = vmatpush1.msra.mxu0 %v694
    %853 = vmatprep.subr.mxu0 %v701
    %854 = vmatpush1.msra.mxu0 %v700
    %855 = vmatprep.subr.mxu0 %v707
    %856 = vmatpush1.msra.mxu0 %v706
    %857 = vmatprep.subr.mxu0 %v713
    %858 = vmatpush1.msra.mxu0 %v712
    %859 = vmatprep.subr.mxu0 %v719
    %860 = vmatpush1.msra.mxu0 %v718
    %861 = vmatprep.subr.mxu0 %v725
    %862 = vmatpush1.msra.mxu0 %v724
    %863 = vmatprep.mubr.f32.mxu0 %v526
    %864 = vmatmul.mubr.f32.gmra.mrb[0].mxu0 %v525
    %v865 = vpop.f32.mrb[0].mxu0
    %v866 = vadd.f32 0.0, %v865
    %v867 = vpop.f32.mrb[0].mxu0
    %v868 = vadd.f32 0.0, %v867
    %869 = vdwg.mxu0
    %870 = vmatprep.subr.mxu0 %v541
    %871 = vmatpush1.msra.mxu0 %v540
    %872 = vmatprep.subr.mxu0 %v547
    %873 = vmatpush1.msra.mxu0 %v546
    %874 = vmatprep.subr.mxu0 %v553
    %875 = vmatpush1.msra.mxu0 %v552
    %876 = vmatprep.subr.mxu0 %v559
    %877 = vmatpush1.msra.mxu0 %v558
    %878 = vmatprep.subr.mxu0 %v565
    %879 = vmatpush1.msra.mxu0 %v564
    %880 = vmatprep.subr.mxu0 %v571
    %881 = vmatpush1.msra.mxu0 %v570
    %882 = vmatprep.subr.mxu0 %v577
    %883 = vmatpush1.msra.mxu0 %v576
    %884 = vmatprep.subr.mxu0 %v583
    %885 = vmatpush1.msra.mxu0 %v582
    %886 = vmatprep.subr.mxu0 %v589
    %887 = vmatpush1.msra.mxu0 %v588
    %888 = vmatprep.subr.mxu0 %v595
    %889 = vmatpush1.msra.mxu0 %v594
    %890 = vmatprep.subr.mxu0 %v601
    %891 = vmatpush1.msra.mxu0 %v600
    %892 = vmatprep.subr.mxu0 %v607
    %893 = vmatpush1.msra.mxu0 %v606
    %894 = vmatprep.subr.mxu0 %v613
    %895 = vmatpush1.msra.mxu0 %v612
    %896 = vmatprep.subr.mxu0 %v619
    %897 = vmatpush1.msra.mxu0 %v618
    %898 = vmatprep.subr.mxu0 %v625
    %899 = vmatpush1.msra.mxu0 %v624
    %900 = vmatprep.subr.mxu0 %v631
    %901 = vmatpush1.msra.mxu0 %v630
    %902 = vmatprep.subr.mxu0 %v637
    %903 = vmatpush1.msra.mxu0 %v636
    %904 = vmatprep.subr.mxu0 %v643
    %905 = vmatpush1.msra.mxu0 %v642
    %906 = vmatprep.subr.mxu0 %v649
    %907 = vmatpush1.msra.mxu0 %v648
    %908 = vmatprep.subr.mxu0 %v655
    %909 = vmatpush1.msra.mxu0 %v654
    %910 = vmatprep.subr.mxu0 %v661
    %911 = vmatpush1.msra.mxu0 %v660
    %912 = vmatprep.subr.mxu0 %v667
    %913 = vmatpush1.msra.mxu0 %v666
    %914 = vmatprep.subr.mxu0 %v673
    %915 = vmatpush1.msra.mxu0 %v672
    %916 = vmatprep.subr.mxu0 %v679
    %917 = vmatpush1.msra.mxu0 %v678
    %918 = vmatprep.subr.mxu0 %v685
    %919 = vmatpush1.msra.mxu0 %v684
    %920 = vmatprep.subr.mxu0 %v691
    %921 = vmatpush1.msra.mxu0 %v690
    %922 = vmatprep.subr.mxu0 %v697
    %923 = vmatpush1.msra.mxu0 %v696
    %924 = vmatprep.subr.mxu0 %v703
    %925 = vmatpush1.msra.mxu0 %v702
    %926 = vmatprep.subr.mxu0 %v709
    %927 = vmatpush1.msra.mxu0 %v708
    %928 = vmatprep.subr.mxu0 %v715
    %929 = vmatpush1.msra.mxu0 %v714
    %930 = vmatprep.subr.mxu0 %v721
    %931 = vmatpush1.msra.mxu0 %v720
    %932 = vmatprep.subr.mxu0 %v727
    %933 = vmatpush1.msra.mxu0 %v726
    %934 = vmatprep.mubr.f32.mxu0 %v526
    %935 = vmatmul.mubr.f32.gmra.mrb[0].mxu0 %v525
    %v936 = vpop.f32.mrb[0].mxu0
    %v937 = vadd.f32 0.0, %v936
    %v938 = vpop.f32.mrb[0].mxu0
    %v939 = vadd.f32 0.0, %v938
    %940 = vdwg.mxu0
    %v941 = vadd.f32 %v530, %v795
    %v942 = vadd.f32 %v531, %v797
    %v943 = vxor.u32 %v941, 2147483648
    %v944 = vxor.u32 %v942, 2147483648
    %v945 = vmul.f32 %v943, 1.442695
    %v946 = vpow.pop %v945
    %v947 = vmul.f32 %v944, 1.442695
    %v948 = vpow.pop %v947
    %v949 = vadd.f32 %v946, 1.0
    %v950 = vadd.f32 %v948, 1.0
    %v951 = vrcp.pop %v949
    %v952 = vmul.f32 1.0, %v951
    %v953 = vrcp.pop %v950
    %v954 = vmul.f32 1.0, %v953
    %v955 = vadd.f32 %v532, %v866
    %v956 = vadd.f32 %v533, %v868
    %v957 = vxor.u32 %v955, 2147483648
    %v958 = vxor.u32 %v956, 2147483648
    %v959 = vmul.f32 %v957, 1.442695
    %v960 = vpow.pop %v959
    %v961 = vmul.f32 %v958, 1.442695
    %v962 = vpow.pop %v961
    %v963 = vadd.f32 %v960, 1.0
    %v964 = vadd.f32 %v962, 1.0
    %v965 = vrcp.pop %v963
    %v966 = vmul.f32 1.0, %v965
    %v967 = vrcp.pop %v964
    %v968 = vmul.f32 1.0, %v967
    %v969 = vadd.f32 %v937, %v518
    %v970 = vadd.f32 %v939, %v522
    %v971 = vmul.f32 %v952, %v969
    %v972 = vmul.f32 %v954, %v970
    %v973 = vadd.f32 %v534, %v971
    %v974 = vadd.f32 %v535, %v972
    %v975 = vtanh.pop %v973
    %v976 = vtanh.pop %v974
    %v977 = vsub.f32 1.0, %v966
    %v978 = vsub.f32 1.0, %v968
    %v979 = vmul.f32 %v977, %v975
    %v980 = vmul.f32 %v978, %v976
    %v981 = vmul.f32 %v966, %v525
    %v982 = vmul.f32 %v968, %v526
    %v983 = vadd.f32 %v979, %v981
    %v984 = vadd.f32 %v980, %v982
    %s985 = smul.u32 0, 2
    %s986 = smul.addr %s985, 8
    %s987 = scalar_lea.vmem [#allocation4], %s986
    %988 = vst [vmem:[%s987] sm:$0xff] %v983
    %989 = vst [vmem:[%s987 + $0x8] sm:$0xff] %v984
    %s990 = smul.u32 1, 6
    %s991 = smul.addr %s990, 8
    %s992 = scalar_lea.vmem [#allocation3], %s991
    %v993 = vld [vmem:[%s992] sm:$0xff]
    %v994 = vld [vmem:[%s992 + $0x8] sm:$0xff]
    %v995 = vld [vmem:[%s992 + $0x10] sm:$0xff]
    %v996 = vld [vmem:[%s992 + $0x18] sm:$0xff]
    %v997 = vld [vmem:[%s992 + $0x20] sm:$0xff]
    %v998 = vld [vmem:[%s992 + $0x28] sm:$0xff]
    %v999 = vld [vmem:[#allocation5] sm:$0xff]
    %v1000 = vld [vmem:[#allocation5 + $0x8] sm:$0xff]
    %v1001 = vld [vmem:[#allocation5 + $0x10] sm:$0xff]
    %v1002 = vld [vmem:[#allocation5 + $0x18] sm:$0xff]
    %v1003 = vld [vmem:[#allocation5 + $0x20] sm:$0xff]
    %v1004 = vld [vmem:[#allocation5 + $0x28] sm:$0xff]
    %v1005 = vld [vmem:[#allocation5 + $0x30] sm:$0xff]
    %v1006 = vld [vmem:[#allocation5 + $0x38] sm:$0xff]
    %v1007 = vld [vmem:[#allocation5 + $0x40] sm:$0xff]
    %v1008 = vld [vmem:[#allocation5 + $0x48] sm:$0xff]
    %v1009 = vld [vmem:[#allocation5 + $0x50] sm:$0xff]
    %v1010 = vld [vmem:[#allocation5 + $0x58] sm:$0xff]
    %v1011 = vld [vmem:[#allocation5 + $0x60] sm:$0xff]
    %v1012 = vld [vmem:[#allocation5 + $0x68] sm:$0xff]
    %v1013 = vld [vmem:[#allocation5 + $0x70] sm:$0xff]
    %v1014 = vld [vmem:[#allocation5 + $0x78] sm:$0xff]
    %v1015 = vld [vmem:[#allocation5 + $0x80] sm:$0xff]
    %v1016 = vld [vmem:[#allocation5 + $0x88] sm:$0xff]
    %v1017 = vld [vmem:[#allocation5 + $0x90] sm:$0xff]
    %v1018 = vld [vmem:[#allocation5 + $0x98] sm:$0xff]
    %v1019 = vld [vmem:[#allocation5 + $0xa0] sm:$0xff]
    %v1020 = vld [vmem:[#allocation5 + $0xa8] sm:$0xff]
    %v1021 = vld [vmem:[#allocation5 + $0xb0] sm:$0xff]
    %v1022 = vld [vmem:[#allocation5 + $0xb8] sm:$0xff]
    %v1023 = vld [vmem:[#allocation5 + $0xc0] sm:$0xff]
    %v1024 = vld [vmem:[#allocation5 + $0xc8] sm:$0xff]
    %v1025 = vld [vmem:[#allocation5 + $0xd0] sm:$0xff]
    %v1026 = vld [vmem:[#allocation5 + $0xd8] sm:$0xff]
    %v1027 = vld [vmem:[#allocation5 + $0xe0] sm:$0xff]
    %v1028 = vld [vmem:[#allocation5 + $0xe8] sm:$0xff]
    %v1029 = vld [vmem:[#allocation5 + $0xf0] sm:$0xff]
    %v1030 = vld [vmem:[#allocation5 + $0xf8] sm:$0xff]
    %v1031 = vld [vmem:[#allocation5 + $0x100] sm:$0xff]
    %v1032 = vld [vmem:[#allocation5 + $0x108] sm:$0xff]
    %v1033 = vld [vmem:[#allocation5 + $0x110] sm:$0xff]
    %v1034 = vld [vmem:[#allocation5 + $0x118] sm:$0xff]
    %v1035 = vld [vmem:[#allocation5 + $0x120] sm:$0xff]
    %v1036 = vld [vmem:[#allocation5 + $0x128] sm:$0xff]
    %v1037 = vld [vmem:[#allocation5 + $0x130] sm:$0xff]
    %v1038 = vld [vmem:[#allocation5 + $0x138] sm:$0xff]
    %v1039 = vld [vmem:[#allocation5 + $0x140] sm:$0xff]
    %v1040 = vld [vmem:[#allocation5 + $0x148] sm:$0xff]
    %v1041 = vld [vmem:[#allocation5 + $0x150] sm:$0xff]
    %v1042 = vld [vmem:[#allocation5 + $0x158] sm:$0xff]
    %v1043 = vld [vmem:[#allocation5 + $0x160] sm:$0xff]
    %v1044 = vld [vmem:[#allocation5 + $0x168] sm:$0xff]
    %v1045 = vld [vmem:[#allocation5 + $0x170] sm:$0xff]
    %v1046 = vld [vmem:[#allocation5 + $0x178] sm:$0xff]
    %v1047 = vld [vmem:[#allocation5 + $0x180] sm:$0xff]
    %v1048 = vld [vmem:[#allocation5 + $0x188] sm:$0xff]
    %v1049 = vld [vmem:[#allocation5 + $0x190] sm:$0xff]
    %v1050 = vld [vmem:[#allocation5 + $0x198] sm:$0xff]
    %v1051 = vld [vmem:[#allocation5 + $0x1a0] sm:$0xff]
    %v1052 = vld [vmem:[#allocation5 + $0x1a8] sm:$0xff]
    %v1053 = vld [vmem:[#allocation5 + $0x1b0] sm:$0xff]
    %v1054 = vld [vmem:[#allocation5 + $0x1b8] sm:$0xff]
    %v1055 = vld [vmem:[#allocation5 + $0x1c0] sm:$0xff]
    %v1056 = vld [vmem:[#allocation5 + $0x1c8] sm:$0xff]
    %v1057 = vld [vmem:[#allocation5 + $0x1d0] sm:$0xff]
    %v1058 = vld [vmem:[#allocation5 + $0x1d8] sm:$0xff]
    %v1059 = vld [vmem:[#allocation5 + $0x1e0] sm:$0xff]
    %v1060 = vld [vmem:[#allocation5 + $0x1e8] sm:$0xff]
    %v1061 = vld [vmem:[#allocation5 + $0x1f0] sm:$0xff]
    %v1062 = vld [vmem:[#allocation5 + $0x1f8] sm:$0xff]
    %v1063 = vld [vmem:[#allocation5 + $0x200] sm:$0xff]
    %v1064 = vld [vmem:[#allocation5 + $0x208] sm:$0xff]
    %v1065 = vld [vmem:[#allocation5 + $0x210] sm:$0xff]
    %v1066 = vld [vmem:[#allocation5 + $0x218] sm:$0xff]
    %v1067 = vld [vmem:[#allocation5 + $0x220] sm:$0xff]
    %v1068 = vld [vmem:[#allocation5 + $0x228] sm:$0xff]
    %v1069 = vld [vmem:[#allocation5 + $0x230] sm:$0xff]
    %v1070 = vld [vmem:[#allocation5 + $0x238] sm:$0xff]
    %v1071 = vld [vmem:[#allocation5 + $0x240] sm:$0xff]
    %v1072 = vld [vmem:[#allocation5 + $0x248] sm:$0xff]
    %v1073 = vld [vmem:[#allocation5 + $0x250] sm:$0xff]
    %v1074 = vld [vmem:[#allocation5 + $0x258] sm:$0xff]
    %v1075 = vld [vmem:[#allocation5 + $0x260] sm:$0xff]
    %v1076 = vld [vmem:[#allocation5 + $0x268] sm:$0xff]
    %v1077 = vld [vmem:[#allocation5 + $0x270] sm:$0xff]
    %v1078 = vld [vmem:[#allocation5 + $0x278] sm:$0xff]
    %v1079 = vld [vmem:[#allocation5 + $0x280] sm:$0xff]
    %v1080 = vld [vmem:[#allocation5 + $0x288] sm:$0xff]
    %v1081 = vld [vmem:[#allocation5 + $0x290] sm:$0xff]
    %v1082 = vld [vmem:[#allocation5 + $0x298] sm:$0xff]
    %v1083 = vld [vmem:[#allocation5 + $0x2a0] sm:$0xff]
    %v1084 = vld [vmem:[#allocation5 + $0x2a8] sm:$0xff]
    %v1085 = vld [vmem:[#allocation5 + $0x2b0] sm:$0xff]
    %v1086 = vld [vmem:[#allocation5 + $0x2b8] sm:$0xff]
    %v1087 = vld [vmem:[#allocation5 + $0x2c0] sm:$0xff]
    %v1088 = vld [vmem:[#allocation5 + $0x2c8] sm:$0xff]
    %v1089 = vld [vmem:[#allocation5 + $0x2d0] sm:$0xff]
    %v1090 = vld [vmem:[#allocation5 + $0x2d8] sm:$0xff]
    %v1091 = vld [vmem:[#allocation5 + $0x2e0] sm:$0xff]
    %v1092 = vld [vmem:[#allocation5 + $0x2e8] sm:$0xff]
    %v1093 = vld [vmem:[#allocation5 + $0x2f0] sm:$0xff]
    %v1094 = vld [vmem:[#allocation5 + $0x2f8] sm:$0xff]
    %v1095 = vld [vmem:[#allocation5 + $0x300] sm:$0xff]
    %v1096 = vld [vmem:[#allocation5 + $0x308] sm:$0xff]
    %v1097 = vld [vmem:[#allocation5 + $0x310] sm:$0xff]
    %v1098 = vld [vmem:[#allocation5 + $0x318] sm:$0xff]
    %v1099 = vld [vmem:[#allocation5 + $0x320] sm:$0xff]
    %v1100 = vld [vmem:[#allocation5 + $0x328] sm:$0xff]
    %v1101 = vld [vmem:[#allocation5 + $0x330] sm:$0xff]
    %v1102 = vld [vmem:[#allocation5 + $0x338] sm:$0xff]
    %v1103 = vld [vmem:[#allocation5 + $0x340] sm:$0xff]
    %v1104 = vld [vmem:[#allocation5 + $0x348] sm:$0xff]
    %v1105 = vld [vmem:[#allocation5 + $0x350] sm:$0xff]
    %v1106 = vld [vmem:[#allocation5 + $0x358] sm:$0xff]
    %v1107 = vld [vmem:[#allocation5 + $0x360] sm:$0xff]
    %v1108 = vld [vmem:[#allocation5 + $0x368] sm:$0xff]
    %v1109 = vld [vmem:[#allocation5 + $0x370] sm:$0xff]
    %v1110 = vld [vmem:[#allocation5 + $0x378] sm:$0xff]
    %v1111 = vld [vmem:[#allocation5 + $0x380] sm:$0xff]
    %v1112 = vld [vmem:[#allocation5 + $0x388] sm:$0xff]
    %v1113 = vld [vmem:[#allocation5 + $0x390] sm:$0xff]
    %v1114 = vld [vmem:[#allocation5 + $0x398] sm:$0xff]
    %v1115 = vld [vmem:[#allocation5 + $0x3a0] sm:$0xff]
    %v1116 = vld [vmem:[#allocation5 + $0x3a8] sm:$0xff]
    %v1117 = vld [vmem:[#allocation5 + $0x3b0] sm:$0xff]
    %v1118 = vld [vmem:[#allocation5 + $0x3b8] sm:$0xff]
    %v1119 = vld [vmem:[#allocation5 + $0x3c0] sm:$0xff]
    %v1120 = vld [vmem:[#allocation5 + $0x3c8] sm:$0xff]
    %v1121 = vld [vmem:[#allocation5 + $0x3d0] sm:$0xff]
    %v1122 = vld [vmem:[#allocation5 + $0x3d8] sm:$0xff]
    %v1123 = vld [vmem:[#allocation5 + $0x3e0] sm:$0xff]
    %v1124 = vld [vmem:[#allocation5 + $0x3e8] sm:$0xff]
    %v1125 = vld [vmem:[#allocation5 + $0x3f0] sm:$0xff]
    %v1126 = vld [vmem:[#allocation5 + $0x3f8] sm:$0xff]
    %v1127 = vld [vmem:[#allocation5 + $0x400] sm:$0xff]
    %v1128 = vld [vmem:[#allocation5 + $0x408] sm:$0xff]
    %v1129 = vld [vmem:[#allocation5 + $0x410] sm:$0xff]
    %v1130 = vld [vmem:[#allocation5 + $0x418] sm:$0xff]
    %v1131 = vld [vmem:[#allocation5 + $0x420] sm:$0xff]
    %v1132 = vld [vmem:[#allocation5 + $0x428] sm:$0xff]
    %v1133 = vld [vmem:[#allocation5 + $0x430] sm:$0xff]
    %v1134 = vld [vmem:[#allocation5 + $0x438] sm:$0xff]
    %v1135 = vld [vmem:[#allocation5 + $0x440] sm:$0xff]
    %v1136 = vld [vmem:[#allocation5 + $0x448] sm:$0xff]
    %v1137 = vld [vmem:[#allocation5 + $0x450] sm:$0xff]
    %v1138 = vld [vmem:[#allocation5 + $0x458] sm:$0xff]
    %v1139 = vld [vmem:[#allocation5 + $0x460] sm:$0xff]
    %v1140 = vld [vmem:[#allocation5 + $0x468] sm:$0xff]
    %v1141 = vld [vmem:[#allocation5 + $0x470] sm:$0xff]
    %v1142 = vld [vmem:[#allocation5 + $0x478] sm:$0xff]
    %v1143 = vld [vmem:[#allocation5 + $0x480] sm:$0xff]
    %v1144 = vld [vmem:[#allocation5 + $0x488] sm:$0xff]
    %v1145 = vld [vmem:[#allocation5 + $0x490] sm:$0xff]
    %v1146 = vld [vmem:[#allocation5 + $0x498] sm:$0xff]
    %v1147 = vld [vmem:[#allocation5 + $0x4a0] sm:$0xff]
    %v1148 = vld [vmem:[#allocation5 + $0x4a8] sm:$0xff]
    %v1149 = vld [vmem:[#allocation5 + $0x4b0] sm:$0xff]
    %v1150 = vld [vmem:[#allocation5 + $0x4b8] sm:$0xff]
    %v1151 = vld [vmem:[#allocation5 + $0x4c0] sm:$0xff]
    %v1152 = vld [vmem:[#allocation5 + $0x4c8] sm:$0xff]
    %v1153 = vld [vmem:[#allocation5 + $0x4d0] sm:$0xff]
    %v1154 = vld [vmem:[#allocation5 + $0x4d8] sm:$0xff]
    %v1155 = vld [vmem:[#allocation5 + $0x4e0] sm:$0xff]
    %v1156 = vld [vmem:[#allocation5 + $0x4e8] sm:$0xff]
    %v1157 = vld [vmem:[#allocation5 + $0x4f0] sm:$0xff]
    %v1158 = vld [vmem:[#allocation5 + $0x4f8] sm:$0xff]
    %v1159 = vld [vmem:[#allocation5 + $0x500] sm:$0xff]
    %v1160 = vld [vmem:[#allocation5 + $0x508] sm:$0xff]
    %v1161 = vld [vmem:[#allocation5 + $0x510] sm:$0xff]
    %v1162 = vld [vmem:[#allocation5 + $0x518] sm:$0xff]
    %v1163 = vld [vmem:[#allocation5 + $0x520] sm:$0xff]
    %v1164 = vld [vmem:[#allocation5 + $0x528] sm:$0xff]
    %v1165 = vld [vmem:[#allocation5 + $0x530] sm:$0xff]
    %v1166 = vld [vmem:[#allocation5 + $0x538] sm:$0xff]
    %v1167 = vld [vmem:[#allocation5 + $0x540] sm:$0xff]
    %v1168 = vld [vmem:[#allocation5 + $0x548] sm:$0xff]
    %v1169 = vld [vmem:[#allocation5 + $0x550] sm:$0xff]
    %v1170 = vld [vmem:[#allocation5 + $0x558] sm:$0xff]
    %v1171 = vld [vmem:[#allocation5 + $0x560] sm:$0xff]
    %v1172 = vld [vmem:[#allocation5 + $0x568] sm:$0xff]
    %v1173 = vld [vmem:[#allocation5 + $0x570] sm:$0xff]
    %v1174 = vld [vmem:[#allocation5 + $0x578] sm:$0xff]
    %v1175 = vld [vmem:[#allocation5 + $0x580] sm:$0xff]
    %v1176 = vld [vmem:[#allocation5 + $0x588] sm:$0xff]
    %v1177 = vld [vmem:[#allocation5 + $0x590] sm:$0xff]
    %v1178 = vld [vmem:[#allocation5 + $0x598] sm:$0xff]
    %v1179 = vld [vmem:[#allocation5 + $0x5a0] sm:$0xff]
    %v1180 = vld [vmem:[#allocation5 + $0x5a8] sm:$0xff]
    %v1181 = vld [vmem:[#allocation5 + $0x5b0] sm:$0xff]
    %v1182 = vld [vmem:[#allocation5 + $0x5b8] sm:$0xff]
    %v1183 = vld [vmem:[#allocation5 + $0x5c0] sm:$0xff]
    %v1184 = vld [vmem:[#allocation5 + $0x5c8] sm:$0xff]
    %v1185 = vld [vmem:[#allocation5 + $0x5d0] sm:$0xff]
    %v1186 = vld [vmem:[#allocation5 + $0x5d8] sm:$0xff]
    %v1187 = vld [vmem:[#allocation5 + $0x5e0] sm:$0xff]
    %v1188 = vld [vmem:[#allocation5 + $0x5e8] sm:$0xff]
    %v1189 = vld [vmem:[#allocation5 + $0x5f0] sm:$0xff]
    %v1190 = vld [vmem:[#allocation5 + $0x5f8] sm:$0xff]
    %1191 = vmatprep.subr.mxu0 %v1000
    %1192 = vmatpush1.msra.mxu0 %v999
    %1193 = vmatprep.subr.mxu0 %v1006
    %1194 = vmatpush1.msra.mxu0 %v1005
    %1195 = vmatprep.subr.mxu0 %v1012
    %1196 = vmatpush1.msra.mxu0 %v1011
    %1197 = vmatprep.subr.mxu0 %v1018
    %1198 = vmatpush1.msra.mxu0 %v1017
    %1199 = vmatprep.subr.mxu0 %v1024
    %1200 = vmatpush1.msra.mxu0 %v1023
    %1201 = vmatprep.subr.mxu0 %v1030
    %1202 = vmatpush1.msra.mxu0 %v1029
    %1203 = vmatprep.subr.mxu0 %v1036
    %1204 = vmatpush1.msra.mxu0 %v1035
    %1205 = vmatprep.subr.mxu0 %v1042
    %1206 = vmatpush1.msra.mxu0 %v1041
    %1207 = vmatprep.subr.mxu0 %v1048
    %1208 = vmatpush1.msra.mxu0 %v1047
    %1209 = vmatprep.subr.mxu0 %v1054
    %1210 = vmatpush1.msra.mxu0 %v1053
    %1211 = vmatprep.subr.mxu0 %v1060
    %1212 = vmatpush1.msra.mxu0 %v1059
    %1213 = vmatprep.subr.mxu0 %v1066
    %1214 = vmatpush1.msra.mxu0 %v1065
    %1215 = vmatprep.subr.mxu0 %v1072
    %1216 = vmatpush1.msra.mxu0 %v1071
    %1217 = vmatprep.subr.mxu0 %v1078
    %1218 = vmatpush1.msra.mxu0 %v1077
    %1219 = vmatprep.subr.mxu0 %v1084
    %1220 = vmatpush1.msra.mxu0 %v1083
    %1221 = vmatprep.subr.mxu0 %v1090
    %1222 = vmatpush1.msra.mxu0 %v1089
    %1223 = vmatprep.subr.mxu0 %v1096
    %1224 = vmatpush1.msra.mxu0 %v1095
    %1225 = vmatprep.subr.mxu0 %v1102
    %1226 = vmatpush1.msra.mxu0 %v1101
    %1227 = vmatprep.subr.mxu0 %v1108
    %1228 = vmatpush1.msra.mxu0 %v1107
    %1229 = vmatprep.subr.mxu0 %v1114
    %1230 = vmatpush1.msra.mxu0 %v1113
    %1231 = vmatprep.subr.mxu0 %v1120
    %1232 = vmatpush1.msra.mxu0 %v1119
    %1233 = vmatprep.subr.mxu0 %v1126
    %1234 = vmatpush1.msra.mxu0 %v1125
    %1235 = vmatprep.subr.mxu0 %v1132
    %1236 = vmatpush1.msra.mxu0 %v1131
    %1237 = vmatprep.subr.mxu0 %v1138
    %1238 = vmatpush1.msra.mxu0 %v1137
    %1239 = vmatprep.subr.mxu0 %v1144
    %1240 = vmatpush1.msra.mxu0 %v1143
    %1241 = vmatprep.subr.mxu0 %v1150
    %1242 = vmatpush1.msra.mxu0 %v1149
    %1243 = vmatprep.subr.mxu0 %v1156
    %1244 = vmatpush1.msra.mxu0 %v1155
    %1245 = vmatprep.subr.mxu0 %v1162
    %1246 = vmatpush1.msra.mxu0 %v1161
    %1247 = vmatprep.subr.mxu0 %v1168
    %1248 = vmatpush1.msra.mxu0 %v1167
    %1249 = vmatprep.subr.mxu0 %v1174
    %1250 = vmatpush1.msra.mxu0 %v1173
    %1251 = vmatprep.subr.mxu0 %v1180
    %1252 = vmatpush1.msra.mxu0 %v1179
    %1253 = vmatprep.subr.mxu0 %v1186
    %1254 = vmatpush1.msra.mxu0 %v1185
    %1255 = vmatprep.mubr.f32.mxu0 %v984
    %1256 = vmatmul.mubr.f32.gmra.mrb[0].mxu0 %v983
    %v1257 = vpop.f32.mrb[0].mxu0
    %v1258 = vadd.f32 0.0, %v1257
    %v1259 = vpop.f32.mrb[0].mxu0
    %v1260 = vadd.f32 0.0, %v1259
    %1261 = vdwg.mxu0
    %1262 = vmatprep.subr.mxu0 %v1002
    %1263 = vmatpush1.msra.mxu0 %v1001
    %1264 = vmatprep.subr.mxu0 %v1008
    %1265 = vmatpush1.msra.mxu0 %v1007
    %1266 = vmatprep.subr.mxu0 %v1014
    %1267 = vmatpush1.msra.mxu0 %v1013
    %1268 = vmatprep.subr.mxu0 %v1020
    %1269 = vmatpush1.msra.mxu0 %v1019
    %1270 = vmatprep.subr.mxu0 %v1026
    %1271 = vmatpush1.msra.mxu0 %v1025
    %1272 = vmatprep.subr.mxu0 %v1032
    %1273 = vmatpush1.msra.mxu0 %v1031
    %1274 = vmatprep.subr.mxu0 %v1038
    %1275 = vmatpush1.msra.mxu0 %v1037
    %1276 = vmatprep.subr.mxu0 %v1044
    %1277 = vmatpush1.msra.mxu0 %v1043
    %1278 = vmatprep.subr.mxu0 %v1050
    %1279 = vmatpush1.msra.mxu0 %v1049
    %1280 = vmatprep.subr.mxu0 %v1056
    %1281 = vmatpush1.msra.mxu0 %v1055
    %1282 = vmatprep.subr.mxu0 %v1062
    %1283 = vmatpush1.msra.mxu0 %v1061
    %1284 = vmatprep.subr.mxu0 %v1068
    %1285 = vmatpush1.msra.mxu0 %v1067
    %1286 = vmatprep.subr.mxu0 %v1074
    %1287 = vmatpush1.msra.mxu0 %v1073
    %1288 = vmatprep.subr.mxu0 %v1080
    %1289 = vmatpush1.msra.mxu0 %v1079
    %1290 = vmatprep.subr.mxu0 %v1086
    %1291 = vmatpush1.msra.mxu0 %v1085
    %1292 = vmatprep.subr.mxu0 %v1092
    %1293 = vmatpush1.msra.mxu0 %v1091
    %1294 = vmatprep.subr.mxu0 %v1098
    %1295 = vmatpush1.msra.mxu0 %v1097
    %1296 = vmatprep.subr.mxu0 %v1104
    %1297 = vmatpush1.msra.mxu0 %v1103
    %1298 = vmatprep.subr.mxu0 %v1110
    %1299 = vmatpush1.msra.mxu0 %v1109
    %1300 = vmatprep.subr.mxu0 %v1116
    %1301 = vmatpush1.msra.mxu0 %v1115
    %1302 = vmatprep.subr.mxu0 %v1122
    %1303 = vmatpush1.msra.mxu0 %v1121
    %1304 = vmatprep.subr.mxu0 %v1128
    %1305 = vmatpush1.msra.mxu0 %v1127
    %1306 = vmatprep.subr.mxu0 %v1134
    %1307 = vmatpush1.msra.mxu0 %v1133
    %1308 = vmatprep.subr.mxu0 %v1140
    %1309 = vmatpush1.msra.mxu0 %v1139
    %1310 = vmatprep.subr.mxu0 %v1146
    %1311 = vmatpush1.msra.mxu0 %v1145
    %1312 = vmatprep.subr.mxu0 %v1152
    %1313 = vmatpush1.msra.mxu0 %v1151
    %1314 = vmatprep.subr.mxu0 %v1158
    %1315 = vmatpush1.msra.mxu0 %v1157
    %1316 = vmatprep.subr.mxu0 %v1164
    %1317 = vmatpush1.msra.mxu0 %v1163
    %1318 = vmatprep.subr.mxu0 %v1170
    %1319 = vmatpush1.msra.mxu0 %v1169
    %1320 = vmatprep.subr.mxu0 %v1176
    %1321 = vmatpush1.msra.mxu0 %v1175
    %1322 = vmatprep.subr.mxu0 %v1182
    %1323 = vmatpush1.msra.mxu0 %v1181
    %1324 = vmatprep.subr.mxu0 %v1188
    %1325 = vmatpush1.msra.mxu0 %v1187
    %1326 = vmatprep.mubr.f32.mxu0 %v984
    %1327 = vmatmul.mubr.f32.gmra.mrb[0].mxu0 %v983
    %v1328 = vpop.f32.mrb[0].mxu0
    %v1329 = vadd.f32 0.0, %v1328
    %v1330 = vpop.f32.mrb[0].mxu0
    %v1331 = vadd.f32 0.0, %v1330
    %1332 = vdwg.mxu0
    %1333 = vmatprep.subr.mxu0 %v1004
    %1334 = vmatpush1.msra.mxu0 %v1003
    %1335 = vmatprep.subr.mxu0 %v1010
    %1336 = vmatpush1.msra.mxu0 %v1009
    %1337 = vmatprep.subr.mxu0 %v1016
    %1338 = vmatpush1.msra.mxu0 %v1015
    %1339 = vmatprep.subr.mxu0 %v1022
    %1340 = vmatpush1.msra.mxu0 %v1021
    %1341 = vmatprep.subr.mxu0 %v1028
    %1342 = vmatpush1.msra.mxu0 %v1027
    %1343 = vmatprep.subr.mxu0 %v1034
    %1344 = vmatpush1.msra.mxu0 %v1033
    %1345 = vmatprep.subr.mxu0 %v1040
    %1346 = vmatpush1.msra.mxu0 %v1039
    %1347 = vmatprep.subr.mxu0 %v1046
    %1348 = vmatpush1.msra.mxu0 %v1045
    %1349 = vmatprep.subr.mxu0 %v1052
    %1350 = vmatpush1.msra.mxu0 %v1051
    %1351 = vmatprep.subr.mxu0 %v1058
    %1352 = vmatpush1.msra.mxu0 %v1057
    %1353 = vmatprep.subr.mxu0 %v1064
    %1354 = vmatpush1.msra.mxu0 %v1063
    %1355 = vmatprep.subr.mxu0 %v1070
    %1356 = vmatpush1.msra.mxu0 %v1069
    %1357 = vmatprep.subr.mxu0 %v1076
    %1358 = vmatpush1.msra.mxu0 %v1075
    %1359 = vmatprep.subr.mxu0 %v1082
    %1360 = vmatpush1.msra.mxu0 %v1081
    %1361 = vmatprep.subr.mxu0 %v1088
    %1362 = vmatpush1.msra.mxu0 %v1087
    %1363 = vmatprep.subr.mxu0 %v1094
    %1364 = vmatpush1.msra.mxu0 %v1093
    %1365 = vmatprep.subr.mxu0 %v1100
    %1366 = vmatpush1.msra.mxu0 %v1099
    %1367 = vmatprep.subr.mxu0 %v1106
    %1368 = vmatpush1.msra.mxu0 %v1105
    %1369 = vmatprep.subr.mxu0 %v1112
    %1370 = vmatpush1.msra.mxu0 %v1111
    %1371 = vmatprep.subr.mxu0 %v1118
    %1372 = vmatpush1.msra.mxu0 %v1117
    %1373 = vmatprep.subr.mxu0 %v1124
    %1374 = vmatpush1.msra.mxu0 %v1123
    %1375 = vmatprep.subr.mxu0 %v1130
    %1376 = vmatpush1.msra.mxu0 %v1129
    %1377 = vmatprep.subr.mxu0 %v1136
    %1378 = vmatpush1.msra.mxu0 %v1135
    %1379 = vmatprep.subr.mxu0 %v1142
    %1380 = vmatpush1.msra.mxu0 %v1141
    %1381 = vmatprep.subr.mxu0 %v1148
    %1382 = vmatpush1.msra.mxu0 %v1147
    %1383 = vmatprep.subr.mxu0 %v1154
    %1384 = vmatpush1.msra.mxu0 %v1153
    %1385 = vmatprep.subr.mxu0 %v1160
    %1386 = vmatpush1.msra.mxu0 %v1159
    %1387 = vmatprep.subr.mxu0 %v1166
    %1388 = vmatpush1.msra.mxu0 %v1165
    %1389 = vmatprep.subr.mxu0 %v1172
    %1390 = vmatpush1.msra.mxu0 %v1171
    %1391 = vmatprep.subr.mxu0 %v1178
    %1392 = vmatpush1.msra.mxu0 %v1177
    %1393 = vmatprep.subr.mxu0 %v1184
    %1394 = vmatpush1.msra.mxu0 %v1183
    %1395 = vmatprep.subr.mxu0 %v1190
    %1396 = vmatpush1.msra.mxu0 %v1189
    %1397 = vmatprep.mubr.f32.mxu0 %v984
    %1398 = vmatmul.mubr.f32.gmra.mrb[0].mxu0 %v983
    %v1399 = vpop.f32.mrb[0].mxu0
    %v1400 = vadd.f32 0.0, %v1399
    %v1401 = vpop.f32.mrb[0].mxu0
    %v1402 = vadd.f32 0.0, %v1401
    %1403 = vdwg.mxu0
    %v1404 = vadd.f32 %v993, %v1258
    %v1405 = vadd.f32 %v994, %v1260
    %v1406 = vxor.u32 %v1404, 2147483648
    %v1407 = vxor.u32 %v1405, 2147483648
    %v1408 = vmul.f32 %v1406, 1.442695
    %v1409 = vpow.pop %v1408
    %v1410 = vmul.f32 %v1407, 1.442695
    %v1411 = vpow.pop %v1410
    %v1412 = vadd.f32 %v1409, 1.0
    %v1413 = vadd.f32 %v1411, 1.0
    %v1414 = vrcp.pop %v1412
    %v1415 = vmul.f32 1.0, %v1414
    %v1416 = vrcp.pop %v1413
    %v1417 = vmul.f32 1.0, %v1416
    %v1418 = vadd.f32 %v995, %v1329
    %v1419 = vadd.f32 %v996, %v1331
    %v1420 = vxor.u32 %v1418, 2147483648
    %v1421 = vxor.u32 %v1419, 2147483648
    %v1422 = vmul.f32 %v1420, 1.442695
    %v1423 = vpow.pop %v1422
    %v1424 = vmul.f32 %v1421, 1.442695
    %v1425 = vpow.pop %v1424
    %v1426 = vadd.f32 %v1423, 1.0
    %v1427 = vadd.f32 %v1425, 1.0
    %v1428 = vrcp.pop %v1426
    %v1429 = vmul.f32 1.0, %v1428
    %v1430 = vrcp.pop %v1427
    %v1431 = vmul.f32 1.0, %v1430
    %v1432 = vadd.f32 %v1400, %v518
    %v1433 = vadd.f32 %v1402, %v522
    %v1434 = vmul.f32 %v1415, %v1432
    %v1435 = vmul.f32 %v1417, %v1433
    %v1436 = vadd.f32 %v997, %v1434
    %v1437 = vadd.f32 %v998, %v1435
    %v1438 = vtanh.pop %v1436
    %v1439 = vtanh.pop %v1437
    %v1440 = vsub.f32 1.0, %v1429
    %v1441 = vsub.f32 1.0, %v1431
    %v1442 = vmul.f32 %v1440, %v1438
    %v1443 = vmul.f32 %v1441, %v1439
    %v1444 = vmul.f32 %v1429, %v983
    %v1445 = vmul.f32 %v1431, %v984
    %v1446 = vadd.f32 %v1442, %v1444
    %v1447 = vadd.f32 %v1443, %v1445
    %s1448 = smul.u32 1, 2
    %s1449 = smul.addr %s1448, 8
    %s1450 = scalar_lea.vmem [#allocation4], %s1449
    %1451 = vst [vmem:[%s1450] sm:$0xff] %v1446
    %1452 = vst [vmem:[%s1450 + $0x8] sm:$0xff] %v1447
    %s1453 = smul.u32 2, 6
    %s1454 = smul.addr %s1453, 8
    %s1455 = scalar_lea.vmem [#allocation3], %s1454
    %v1456 = vld [vmem:[%s1455] sm:$0xff]
    %v1457 = vld [vmem:[%s1455 + $0x8] sm:$0xff]
    %v1458 = vld [vmem:[%s1455 + $0x10] sm:$0xff]
    %v1459 = vld [vmem:[%s1455 + $0x18] sm:$0xff]
    %v1460 = vld [vmem:[%s1455 + $0x20] sm:$0xff]
    %v1461 = vld [vmem:[%s1455 + $0x28] sm:$0xff]
    %v1462 = vld [vmem:[#allocation5] sm:$0xff]
    %v1463 = vld [vmem:[#allocation5 + $0x8] sm:$0xff]
    %v1464 = vld [vmem:[#allocation5 + $0x10] sm:$0xff]
    %v1465 = vld [vmem:[#allocation5 + $0x18] sm:$0xff]
    %v1466 = vld [vmem:[#allocation5 + $0x20] sm:$0xff]
    %v1467 = vld [vmem:[#allocation5 + $0x28] sm:$0xff]
    %v1468 = vld [vmem:[#allocation5 + $0x30] sm:$0xff]
    %v1469 = vld [vmem:[#allocation5 + $0x38] sm:$0xff]
    %v1470 = vld [vmem:[#allocation5 + $0x40] sm:$0xff]
    %v1471 = vld [vmem:[#allocation5 + $0x48] sm:$0xff]
    %v1472 = vld [vmem:[#allocation5 + $0x50] sm:$0xff]
    %v1473 = vld [vmem:[#allocation5 + $0x58] sm:$0xff]
    %v1474 = vld [vmem:[#allocation5 + $0x60] sm:$0xff]
    %v1475 = vld [vmem:[#allocation5 + $0x68] sm:$0xff]
    %v1476 = vld [vmem:[#allocation5 + $0x70] sm:$0xff]
    %v1477 = vld [vmem:[#allocation5 + $0x78] sm:$0xff]
    %v1478 = vld [vmem:[#allocation5 + $0x80] sm:$0xff]
    %v1479 = vld [vmem:[#allocation5 + $0x88] sm:$0xff]
    %v1480 = vld [vmem:[#allocation5 + $0x90] sm:$0xff]
    %v1481 = vld [vmem:[#allocation5 + $0x98] sm:$0xff]
    %v1482 = vld [vmem:[#allocation5 + $0xa0] sm:$0xff]
    %v1483 = vld [vmem:[#allocation5 + $0xa8] sm:$0xff]
    %v1484 = vld [vmem:[#allocation5 + $0xb0] sm:$0xff]
    %v1485 = vld [vmem:[#allocation5 + $0xb8] sm:$0xff]
    %v1486 = vld [vmem:[#allocation5 + $0xc0] sm:$0xff]
    %v1487 = vld [vmem:[#allocation5 + $0xc8] sm:$0xff]
    %v1488 = vld [vmem:[#allocation5 + $0xd0] sm:$0xff]
    %v1489 = vld [vmem:[#allocation5 + $0xd8] sm:$0xff]
    %v1490 = vld [vmem:[#allocation5 + $0xe0] sm:$0xff]
    %v1491 = vld [vmem:[#allocation5 + $0xe8] sm:$0xff]
    %v1492 = vld [vmem:[#allocation5 + $0xf0] sm:$0xff]
    %v1493 = vld [vmem:[#allocation5 + $0xf8] sm:$0xff]
    %v1494 = vld [vmem:[#allocation5 + $0x100] sm:$0xff]
    %v1495 = vld [vmem:[#allocation5 + $0x108] sm:$0xff]
    %v1496 = vld [vmem:[#allocation5 + $0x110] sm:$0xff]
    %v1497 = vld [vmem:[#allocation5 + $0x118] sm:$0xff]
    %v1498 = vld [vmem:[#allocation5 + $0x120] sm:$0xff]
    %v1499 = vld [vmem:[#allocation5 + $0x128] sm:$0xff]
    %v1500 = vld [vmem:[#allocation5 + $0x130] sm:$0xff]
    %v1501 = vld [vmem:[#allocation5 + $0x138] sm:$0xff]
    %v1502 = vld [vmem:[#allocation5 + $0x140] sm:$0xff]
    %v1503 = vld [vmem:[#allocation5 + $0x148] sm:$0xff]
    %v1504 = vld [vmem:[#allocation5 + $0x150] sm:$0xff]
    %v1505 = vld [vmem:[#allocation5 + $0x158] sm:$0xff]
    %v1506 = vld [vmem:[#allocation5 + $0x160] sm:$0xff]
    %v1507 = vld [vmem:[#allocation5 + $0x168] sm:$0xff]
    %v1508 = vld [vmem:[#allocation5 + $0x170] sm:$0xff]
    %v1509 = vld [vmem:[#allocation5 + $0x178] sm:$0xff]
    %v1510 = vld [vmem:[#allocation5 + $0x180] sm:$0xff]
    %v1511 = vld [vmem:[#allocation5 + $0x188] sm:$0xff]
    %v1512 = vld [vmem:[#allocation5 + $0x190] sm:$0xff]
    %v1513 = vld [vmem:[#allocation5 + $0x198] sm:$0xff]
    %v1514 = vld [vmem:[#allocation5 + $0x1a0] sm:$0xff]
    %v1515 = vld [vmem:[#allocation5 + $0x1a8] sm:$0xff]
    %v1516 = vld [vmem:[#allocation5 + $0x1b0] sm:$0xff]
    %v1517 = vld [vmem:[#allocation5 + $0x1b8] sm:$0xff]
    %v1518 = vld [vmem:[#allocation5 + $0x1c0] sm:$0xff]
    %v1519 = vld [vmem:[#allocation5 + $0x1c8] sm:$0xff]
    %v1520 = vld [vmem:[#allocation5 + $0x1d0] sm:$0xff]
    %v1521 = vld [vmem:[#allocation5 + $0x1d8] sm:$0xff]
    %v1522 = vld [vmem:[#allocation5 + $0x1e0] sm:$0xff]
    %v1523 = vld [vmem:[#allocation5 + $0x1e8] sm:$0xff]
    %v1524 = vld [vmem:[#allocation5 + $0x1f0] sm:$0xff]
    %v1525 = vld [vmem:[#allocation5 + $0x1f8] sm:$0xff]
    %v1526 = vld [vmem:[#allocation5 + $0x200] sm:$0xff]
    %v1527 = vld [vmem:[#allocation5 + $0x208] sm:$0xff]
    %v1528 = vld [vmem:[#allocation5 + $0x210] sm:$0xff]
    %v1529 = vld [vmem:[#allocation5 + $0x218] sm:$0xff]
    %v1530 = vld [vmem:[#allocation5 + $0x220] sm:$0xff]
    %v1531 = vld [vmem:[#allocation5 + $0x228] sm:$0xff]
    %v1532 = vld [vmem:[#allocation5 + $0x230] sm:$0xff]
    %v1533 = vld [vmem:[#allocation5 + $0x238] sm:$0xff]
    %v1534 = vld [vmem:[#allocation5 + $0x240] sm:$0xff]
    %v1535 = vld [vmem:[#allocation5 + $0x248] sm:$0xff]
    %v1536 = vld [vmem:[#allocation5 + $0x250] sm:$0xff]
    %v1537 = vld [vmem:[#allocation5 + $0x258] sm:$0xff]
    %v1538 = vld [vmem:[#allocation5 + $0x260] sm:$0xff]
    %v1539 = vld [vmem:[#allocation5 + $0x268] sm:$0xff]
    %v1540 = vld [vmem:[#allocation5 + $0x270] sm:$0xff]
    %v1541 = vld [vmem:[#allocation5 + $0x278] sm:$0xff]
    %v1542 = vld [vmem:[#allocation5 + $0x280] sm:$0xff]
    %v1543 = vld [vmem:[#allocation5 + $0x288] sm:$0xff]
    %v1544 = vld [vmem:[#allocation5 + $0x290] sm:$0xff]
    %v1545 = vld [vmem:[#allocation5 + $0x298] sm:$0xff]
    %v1546 = vld [vmem:[#allocation5 + $0x2a0] sm:$0xff]
    %v1547 = vld [vmem:[#allocation5 + $0x2a8] sm:$0xff]
    %v1548 = vld [vmem:[#allocation5 + $0x2b0] sm:$0xff]
    %v1549 = vld [vmem:[#allocation5 + $0x2b8] sm:$0xff]
    %v1550 = vld [vmem:[#allocation5 + $0x2c0] sm:$0xff]
    %v1551 = vld [vmem:[#allocation5 + $0x2c8] sm:$0xff]
    %v1552 = vld [vmem:[#allocation5 + $0x2d0] sm:$0xff]
    %v1553 = vld [vmem:[#allocation5 + $0x2d8] sm:$0xff]
    %v1554 = vld [vmem:[#allocation5 + $0x2e0] sm:$0xff]
    %v1555 = vld [vmem:[#allocation5 + $0x2e8] sm:$0xff]
    %v1556 = vld [vmem:[#allocation5 + $0x2f0] sm:$0xff]
    %v1557 = vld [vmem:[#allocation5 + $0x2f8] sm:$0xff]
    %v1558 = vld [vmem:[#allocation5 + $0x300] sm:$0xff]
    %v1559 = vld [vmem:[#allocation5 + $0x308] sm:$0xff]
    %v1560 = vld [vmem:[#allocation5 + $0x310] sm:$0xff]
    %v1561 = vld [vmem:[#allocation5 + $0x318] sm:$0xff]
    %v1562 = vld [vmem:[#allocation5 + $0x320] sm:$0xff]
    %v1563 = vld [vmem:[#allocation5 + $0x328] sm:$0xff]
    %v1564 = vld [vmem:[#allocation5 + $0x330] sm:$0xff]
    %v1565 = vld [vmem:[#allocation5 + $0x338] sm:$0xff]
    %v1566 = vld [vmem:[#allocation5 + $0x340] sm:$0xff]
    %v1567 = vld [vmem:[#allocation5 + $0x348] sm:$0xff]
    %v1568 = vld [vmem:[#allocation5 + $0x350] sm:$0xff]
    %v1569 = vld [vmem:[#allocation5 + $0x358] sm:$0xff]
    %v1570 = vld [vmem:[#allocation5 + $0x360] sm:$0xff]
    %v1571 = vld [vmem:[#allocation5 + $0x368] sm:$0xff]
    %v1572 = vld [vmem:[#allocation5 + $0x370] sm:$0xff]
    %v1573 = vld [vmem:[#allocation5 + $0x378] sm:$0xff]
    %v1574 = vld [vmem:[#allocation5 + $0x380] sm:$0xff]
    %v1575 = vld [vmem:[#allocation5 + $0x388] sm:$0xff]
    %v1576 = vld [vmem:[#allocation5 + $0x390] sm:$0xff]
    %v1577 = vld [vmem:[#allocation5 + $0x398] sm:$0xff]
    %v1578 = vld [vmem:[#allocation5 + $0x3a0] sm:$0xff]
    %v1579 = vld [vmem:[#allocation5 + $0x3a8] sm:$0xff]
    %v1580 = vld [vmem:[#allocation5 + $0x3b0] sm:$0xff]
    %v1581 = vld [vmem:[#allocation5 + $0x3b8] sm:$0xff]
    %v1582 = vld [vmem:[#allocation5 + $0x3c0] sm:$0xff]
    %v1583 = vld [vmem:[#allocation5 + $0x3c8] sm:$0xff]
    %v1584 = vld [vmem:[#allocation5 + $0x3d0] sm:$0xff]
    %v1585 = vld [vmem:[#allocation5 + $0x3d8] sm:$0xff]
    %v1586 = vld [vmem:[#allocation5 + $0x3e0] sm:$0xff]
    %v1587 = vld [vmem:[#allocation5 + $0x3e8] sm:$0xff]
    %v1588 = vld [vmem:[#allocation5 + $0x3f0] sm:$0xff]
    %v1589 = vld [vmem:[#allocation5 + $0x3f8] sm:$0xff]
    %v1590 = vld [vmem:[#allocation5 + $0x400] sm:$0xff]
    %v1591 = vld [vmem:[#allocation5 + $0x408] sm:$0xff]
    %v1592 = vld [vmem:[#allocation5 + $0x410] sm:$0xff]
    %v1593 = vld [vmem:[#allocation5 + $0x418] sm:$0xff]
    %v1594 = vld [vmem:[#allocation5 + $0x420] sm:$0xff]
    %v1595 = vld [vmem:[#allocation5 + $0x428] sm:$0xff]
    %v1596 = vld [vmem:[#allocation5 + $0x430] sm:$0xff]
    %v1597 = vld [vmem:[#allocation5 + $0x438] sm:$0xff]
    %v1598 = vld [vmem:[#allocation5 + $0x440] sm:$0xff]
    %v1599 = vld [vmem:[#allocation5 + $0x448] sm:$0xff]
    %v1600 = vld [vmem:[#allocation5 + $0x450] sm:$0xff]
    %v1601 = vld [vmem:[#allocation5 + $0x458] sm:$0xff]
    %v1602 = vld [vmem:[#allocation5 + $0x460] sm:$0xff]
    %v1603 = vld [vmem:[#allocation5 + $0x468] sm:$0xff]
    %v1604 = vld [vmem:[#allocation5 + $0x470] sm:$0xff]
    %v1605 = vld [vmem:[#allocation5 + $0x478] sm:$0xff]
    %v1606 = vld [vmem:[#allocation5 + $0x480] sm:$0xff]
    %v1607 = vld [vmem:[#allocation5 + $0x488] sm:$0xff]
    %v1608 = vld [vmem:[#allocation5 + $0x490] sm:$0xff]
    %v1609 = vld [vmem:[#allocation5 + $0x498] sm:$0xff]
    %v1610 = vld [vmem:[#allocation5 + $0x4a0] sm:$0xff]
    %v1611 = vld [vmem:[#allocation5 + $0x4a8] sm:$0xff]
    %v1612 = vld [vmem:[#allocation5 + $0x4b0] sm:$0xff]
    %v1613 = vld [vmem:[#allocation5 + $0x4b8] sm:$0xff]
    %v1614 = vld [vmem:[#allocation5 + $0x4c0] sm:$0xff]
    %v1615 = vld [vmem:[#allocation5 + $0x4c8] sm:$0xff]
    %v1616 = vld [vmem:[#allocation5 + $0x4d0] sm:$0xff]
    %v1617 = vld [vmem:[#allocation5 + $0x4d8] sm:$0xff]
    %v1618 = vld [vmem:[#allocation5 + $0x4e0] sm:$0xff]
    %v1619 = vld [vmem:[#allocation5 + $0x4e8] sm:$0xff]
    %v1620 = vld [vmem:[#allocation5 + $0x4f0] sm:$0xff]
    %v1621 = vld [vmem:[#allocation5 + $0x4f8] sm:$0xff]
    %v1622 = vld [vmem:[#allocation5 + $0x500] sm:$0xff]
    %v1623 = vld [vmem:[#allocation5 + $0x508] sm:$0xff]
    %v1624 = vld [vmem:[#allocation5 + $0x510] sm:$0xff]
    %v1625 = vld [vmem:[#allocation5 + $0x518] sm:$0xff]
    %v1626 = vld [vmem:[#allocation5 + $0x520] sm:$0xff]
    %v1627 = vld [vmem:[#allocation5 + $0x528] sm:$0xff]
    %v1628 = vld [vmem:[#allocation5 + $0x530] sm:$0xff]
    %v1629 = vld [vmem:[#allocation5 + $0x538] sm:$0xff]
    %v1630 = vld [vmem:[#allocation5 + $0x540] sm:$0xff]
    %v1631 = vld [vmem:[#allocation5 + $0x548] sm:$0xff]
    %v1632 = vld [vmem:[#allocation5 + $0x550] sm:$0xff]
    %v1633 = vld [vmem:[#allocation5 + $0x558] sm:$0xff]
    %v1634 = vld [vmem:[#allocation5 + $0x560] sm:$0xff]
    %v1635 = vld [vmem:[#allocation5 + $0x568] sm:$0xff]
    %v1636 = vld [vmem:[#allocation5 + $0x570] sm:$0xff]
    %v1637 = vld [vmem:[#allocation5 + $0x578] sm:$0xff]
    %v1638 = vld [vmem:[#allocation5 + $0x580] sm:$0xff]
    %v1639 = vld [vmem:[#allocation5 + $0x588] sm:$0xff]
    %v1640 = vld [vmem:[#allocation5 + $0x590] sm:$0xff]
    %v1641 = vld [vmem:[#allocation5 + $0x598] sm:$0xff]
    %v1642 = vld [vmem:[#allocation5 + $0x5a0] sm:$0xff]
    %v1643 = vld [vmem:[#allocation5 + $0x5a8] sm:$0xff]
    %v1644 = vld [vmem:[#allocation5 + $0x5b0] sm:$0xff]
    %v1645 = vld [vmem:[#allocation5 + $0x5b8] sm:$0xff]
    %v1646 = vld [vmem:[#allocation5 + $0x5c0] sm:$0xff]
    %v1647 = vld [vmem:[#allocation5 + $0x5c8] sm:$0xff]
    %v1648 = vld [vmem:[#allocation5 + $0x5d0] sm:$0xff]
    %v1649 = vld [vmem:[#allocation5 + $0x5d8] sm:$0xff]
    %v1650 = vld [vmem:[#allocation5 + $0x5e0] sm:$0xff]
    %v1651 = vld [vmem:[#allocation5 + $0x5e8] sm:$0xff]
    %v1652 = vld [vmem:[#allocation5 + $0x5f0] sm:$0xff]
    %v1653 = vld [vmem:[#allocation5 + $0x5f8] sm:$0xff]
    %1654 = vmatprep.subr.mxu0 %v1463
    %1655 = vmatpush1.msra.mxu0 %v1462
    %1656 = vmatprep.subr.mxu0 %v1469
    %1657 = vmatpush1.msra.mxu0 %v1468
    %1658 = vmatprep.subr.mxu0 %v1475
    %1659 = vmatpush1.msra.mxu0 %v1474
    %1660 = vmatprep.subr.mxu0 %v1481
    %1661 = vmatpush1.msra.mxu0 %v1480
    %1662 = vmatprep.subr.mxu0 %v1487
    %1663 = vmatpush1.msra.mxu0 %v1486
    %1664 = vmatprep.subr.mxu0 %v1493
    %1665 = vmatpush1.msra.mxu0 %v1492
    %1666 = vmatprep.subr.mxu0 %v1499
    %1667 = vmatpush1.msra.mxu0 %v1498
    %1668 = vmatprep.subr.mxu0 %v1505
    %1669 = vmatpush1.msra.mxu0 %v1504
    %1670 = vmatprep.subr.mxu0 %v1511
    %1671 = vmatpush1.msra.mxu0 %v1510
    %1672 = vmatprep.subr.mxu0 %v1517
    %1673 = vmatpush1.msra.mxu0 %v1516
    %1674 = vmatprep.subr.mxu0 %v1523
    %1675 = vmatpush1.msra.mxu0 %v1522
    %1676 = vmatprep.subr.mxu0 %v1529
    %1677 = vmatpush1.msra.mxu0 %v1528
    %1678 = vmatprep.subr.mxu0 %v1535
    %1679 = vmatpush1.msra.mxu0 %v1534
    %1680 = vmatprep.subr.mxu0 %v1541
    %1681 = vmatpush1.msra.mxu0 %v1540
    %1682 = vmatprep.subr.mxu0 %v1547
    %1683 = vmatpush1.msra.mxu0 %v1546
    %1684 = vmatprep.subr.mxu0 %v1553
    %1685 = vmatpush1.msra.mxu0 %v1552
    %1686 = vmatprep.subr.mxu0 %v1559
    %1687 = vmatpush1.msra.mxu0 %v1558
    %1688 = vmatprep.subr.mxu0 %v1565
    %1689 = vmatpush1.msra.mxu0 %v1564
    %1690 = vmatprep.subr.mxu0 %v1571
    %1691 = vmatpush1.msra.mxu0 %v1570
    %1692 = vmatprep.subr.mxu0 %v1577
    %1693 = vmatpush1.msra.mxu0 %v1576
    %1694 = vmatprep.subr.mxu0 %v1583
    %1695 = vmatpush1.msra.mxu0 %v1582
    %1696 = vmatprep.subr.mxu0 %v1589
    %1697 = vmatpush1.msra.mxu0 %v1588
    %1698 = vmatprep.subr.mxu0 %v1595
    %1699 = vmatpush1.msra.mxu0 %v1594
    %1700 = vmatprep.subr.mxu0 %v1601
    %1701 = vmatpush1.msra.mxu0 %v1600
    %1702 = vmatprep.subr.mxu0 %v1607
    %1703 = vmatpush1.msra.mxu0 %v1606
    %1704 = vmatprep.subr.mxu0 %v1613
    %1705 = vmatpush1.msra.mxu0 %v1612
    %1706 = vmatprep.subr.mxu0 %v1619
    %1707 = vmatpush1.msra.mxu0 %v1618
    %1708 = vmatprep.subr.mxu0 %v1625
    %1709 = vmatpush1.msra.mxu0 %v1624
    %1710 = vmatprep.subr.mxu0 %v1631
    %1711 = vmatpush1.msra.mxu0 %v1630
    %1712 = vmatprep.subr.mxu0 %v1637
    %1713 = vmatpush1.msra.mxu0 %v1636
    %1714 = vmatprep.subr.mxu0 %v1643
    %1715 = vmatpush1.msra.mxu0 %v1642
    %1716 = vmatprep.subr.mxu0 %v1649
    %1717 = vmatpush1.msra.mxu0 %v1648
    %1718 = vmatprep.mubr.f32.mxu0 %v1447
    %1719 = vmatmul.mubr.f32.gmra.mrb[0].mxu0 %v1446
    %v1720 = vpop.f32.mrb[0].mxu0
    %v1721 = vadd.f32 0.0, %v1720
    %v1722 = vpop.f32.mrb[0].mxu0
    %v1723 = vadd.f32 0.0, %v1722
    %1724 = vdwg.mxu0
    %1725 = vmatprep.subr.mxu0 %v1465
    %1726 = vmatpush1.msra.mxu0 %v1464
    %1727 = vmatprep.subr.mxu0 %v1471
    %1728 = vmatpush1.msra.mxu0 %v1470
    %1729 = vmatprep.subr.mxu0 %v1477
    %1730 = vmatpush1.msra.mxu0 %v1476
    %1731 = vmatprep.subr.mxu0 %v1483
    %1732 = vmatpush1.msra.mxu0 %v1482
    %1733 = vmatprep.subr.mxu0 %v1489
    %1734 = vmatpush1.msra.mxu0 %v1488
    %1735 = vmatprep.subr.mxu0 %v1495
    %1736 = vmatpush1.msra.mxu0 %v1494
    %1737 = vmatprep.subr.mxu0 %v1501
    %1738 = vmatpush1.msra.mxu0 %v1500
    %1739 = vmatprep.subr.mxu0 %v1507
    %1740 = vmatpush1.msra.mxu0 %v1506
    %1741 = vmatprep.subr.mxu0 %v1513
    %1742 = vmatpush1.msra.mxu0 %v1512
    %1743 = vmatprep.subr.mxu0 %v1519
    %1744 = vmatpush1.msra.mxu0 %v1518
    %1745 = vmatprep.subr.mxu0 %v1525
    %1746 = vmatpush1.msra.mxu0 %v1524
    %1747 = vmatprep.subr.mxu0 %v1531
    %1748 = vmatpush1.msra.mxu0 %v1530
    %1749 = vmatprep.subr.mxu0 %v1537
    %1750 = vmatpush1.msra.mxu0 %v1536
    %1751 = vmatprep.subr.mxu0 %v1543
    %1752 = vmatpush1.msra.mxu0 %v1542
    %1753 = vmatprep.subr.mxu0 %v1549
    %1754 = vmatpush1.msra.mxu0 %v1548
    %1755 = vmatprep.subr.mxu0 %v1555
    %1756 = vmatpush1.msra.mxu0 %v1554
    %1757 = vmatprep.subr.mxu0 %v1561
    %1758 = vmatpush1.msra.mxu0 %v1560
    %1759 = vmatprep.subr.mxu0 %v1567
    %1760 = vmatpush1.msra.mxu0 %v1566
    %1761 = vmatprep.subr.mxu0 %v1573
    %1762 = vmatpush1.msra.mxu0 %v1572
    %1763 = vmatprep.subr.mxu0 %v1579
    %1764 = vmatpush1.msra.mxu0 %v1578
    %1765 = vmatprep.subr.mxu0 %v1585
    %1766 = vmatpush1.msra.mxu0 %v1584
    %1767 = vmatprep.subr.mxu0 %v1591
    %1768 = vmatpush1.msra.mxu0 %v1590
    %1769 = vmatprep.subr.mxu0 %v1597
    %1770 = vmatpush1.msra.mxu0 %v1596
    %1771 = vmatprep.subr.mxu0 %v1603
    %1772 = vmatpush1.msra.mxu0 %v1602
    %1773 = vmatprep.subr.mxu0 %v1609
    %1774 = vmatpush1.msra.mxu0 %v1608
    %1775 = vmatprep.subr.mxu0 %v1615
    %1776 = vmatpush1.msra.mxu0 %v1614
    %1777 = vmatprep.subr.mxu0 %v1621
    %1778 = vmatpush1.msra.mxu0 %v1620
    %1779 = vmatprep.subr.mxu0 %v1627
    %1780 = vmatpush1.msra.mxu0 %v1626
    %1781 = vmatprep.subr.mxu0 %v1633
    %1782 = vmatpush1.msra.mxu0 %v1632
    %1783 = vmatprep.subr.mxu0 %v1639
    %1784 = vmatpush1.msra.mxu0 %v1638
    %1785 = vmatprep.subr.mxu0 %v1645
    %1786 = vmatpush1.msra.mxu0 %v1644
    %1787 = vmatprep.subr.mxu0 %v1651
    %1788 = vmatpush1.msra.mxu0 %v1650
    %1789 = vmatprep.mubr.f32.mxu0 %v1447
    %1790 = vmatmul.mubr.f32.gmra.mrb[0].mxu0 %v1446
    %v1791 = vpop.f32.mrb[0].mxu0
    %v1792 = vadd.f32 0.0, %v1791
    %v1793 = vpop.f32.mrb[0].mxu0
    %v1794 = vadd.f32 0.0, %v1793
    %1795 = vdwg.mxu0
    %1796 = vmatprep.subr.mxu0 %v1467
    %1797 = vmatpush1.msra.mxu0 %v1466
    %1798 = vmatprep.subr.mxu0 %v1473
    %1799 = vmatpush1.msra.mxu0 %v1472
    %1800 = vmatprep.subr.mxu0 %v1479
    %1801 = vmatpush1.msra.mxu0 %v1478
    %1802 = vmatprep.subr.mxu0 %v1485
    %1803 = vmatpush1.msra.mxu0 %v1484
    %1804 = vmatprep.subr.mxu0 %v1491
    %1805 = vmatpush1.msra.mxu0 %v1490
    %1806 = vmatprep.subr.mxu0 %v1497
    %1807 = vmatpush1.msra.mxu0 %v1496
    %1808 = vmatprep.subr.mxu0 %v1503
    %1809 = vmatpush1.msra.mxu0 %v1502
    %1810 = vmatprep.subr.mxu0 %v1509
    %1811 = vmatpush1.msra.mxu0 %v1508
    %1812 = vmatprep.subr.mxu0 %v1515
    %1813 = vmatpush1.msra.mxu0 %v1514
    %1814 = vmatprep.subr.mxu0 %v1521
    %1815 = vmatpush1.msra.mxu0 %v1520
    %1816 = vmatprep.subr.mxu0 %v1527
    %1817 = vmatpush1.msra.mxu0 %v1526
    %1818 = vmatprep.subr.mxu0 %v1533
    %1819 = vmatpush1.msra.mxu0 %v1532
    %1820 = vmatprep.subr.mxu0 %v1539
    %1821 = vmatpush1.msra.mxu0 %v1538
    %1822 = vmatprep.subr.mxu0 %v1545
    %1823 = vmatpush1.msra.mxu0 %v1544
    %1824 = vmatprep.subr.mxu0 %v1551
    %1825 = vmatpush1.msra.mxu0 %v1550
    %1826 = vmatprep.subr.mxu0 %v1557
    %1827 = vmatpush1.msra.mxu0 %v1556
    %1828 = vmatprep.subr.mxu0 %v1563
    %1829 = vmatpush1.msra.mxu0 %v1562
    %1830 = vmatprep.subr.mxu0 %v1569
    %1831 = vmatpush1.msra.mxu0 %v1568
    %1832 = vmatprep.subr.mxu0 %v1575
    %1833 = vmatpush1.msra.mxu0 %v1574
    %1834 = vmatprep.subr.mxu0 %v1581
    %1835 = vmatpush1.msra.mxu0 %v1580
    %1836 = vmatprep.subr.mxu0 %v1587
    %1837 = vmatpush1.msra.mxu0 %v1586
    %1838 = vmatprep.subr.mxu0 %v1593
    %1839 = vmatpush1.msra.mxu0 %v1592
    %1840 = vmatprep.subr.mxu0 %v1599
    %1841 = vmatpush1.msra.mxu0 %v1598
    %1842 = vmatprep.subr.mxu0 %v1605
    %1843 = vmatpush1.msra.mxu0 %v1604
    %1844 = vmatprep.subr.mxu0 %v1611
    %1845 = vmatpush1.msra.mxu0 %v1610
    %1846 = vmatprep.subr.mxu0 %v1617
    %1847 = vmatpush1.msra.mxu0 %v1616
    %1848 = vmatprep.subr.mxu0 %v1623
    %1849 = vmatpush1.msra.mxu0 %v1622
    %1850 = vmatprep.subr.mxu0 %v1629
    %1851 = vmatpush1.msra.mxu0 %v1628
    %1852 = vmatprep.subr.mxu0 %v1635
    %1853 = vmatpush1.msra.mxu0 %v1634
    %1854 = vmatprep.subr.mxu0 %v1641
    %1855 = vmatpush1.msra.mxu0 %v1640
    %1856 = vmatprep.subr.mxu0 %v1647
    %1857 = vmatpush1.msra.mxu0 %v1646
    %1858 = vmatprep.subr.mxu0 %v1653
    %1859 = vmatpush1.msra.mxu0 %v1652
    %1860 = vmatprep.mubr.f32.mxu0 %v1447
    %1861 = vmatmul.mubr.f32.gmra.mrb[0].mxu0 %v1446
    %v1862 = vpop.f32.mrb[0].mxu0
    %v1863 = vadd.f32 0.0, %v1862
    %v1864 = vpop.f32.mrb[0].mxu0
    %v1865 = vadd.f32 0.0, %v1864
    %1866 = vdwg.mxu0
    %v1867 = vadd.f32 %v1456, %v1721
    %v1868 = vadd.f32 %v1457, %v1723
    %v1869 = vxor.u32 %v1867, 2147483648
    %v1870 = vxor.u32 %v1868, 2147483648
    %v1871 = vmul.f32 %v1869, 1.442695
    %v1872 = vpow.pop %v1871
    %v1873 = vmul.f32 %v1870, 1.442695
    %v1874 = vpow.pop %v1873
    %v1875 = vadd.f32 %v1872, 1.0
    %v1876 = vadd.f32 %v1874, 1.0
    %v1877 = vrcp.pop %v1875
    %v1878 = vmul.f32 1.0, %v1877
    %v1879 = vrcp.pop %v1876
    %v1880 = vmul.f32 1.0, %v1879
    %v1881 = vadd.f32 %v1458, %v1792
    %v1882 = vadd.f32 %v1459, %v1794
    %v1883 = vxor.u32 %v1881, 2147483648
    %v1884 = vxor.u32 %v1882, 2147483648
    %v1885 = vmul.f32 %v1883, 1.442695
    %v1886 = vpow.pop %v1885
    %v1887 = vmul.f32 %v1884, 1.442695
    %v1888 = vpow.pop %v1887
    %v1889 = vadd.f32 %v1886, 1.0
    %v1890 = vadd.f32 %v1888, 1.0
    %v1891 = vrcp.pop %v1889
    %v1892 = vmul.f32 1.0, %v1891
    %v1893 = vrcp.pop %v1890
    %v1894 = vmul.f32 1.0, %v1893
    %v1895 = vadd.f32 %v1863, %v518
    %v1896 = vadd.f32 %v1865, %v522
    %v1897 = vmul.f32 %v1878, %v1895
    %v1898 = vmul.f32 %v1880, %v1896
    %v1899 = vadd.f32 %v1460, %v1897
    %v1900 = vadd.f32 %v1461, %v1898
    %v1901 = vtanh.pop %v1899
    %v1902 = vtanh.pop %v1900
    %v1903 = vsub.f32 1.0, %v1892
    %v1904 = vsub.f32 1.0, %v1894
    %v1905 = vmul.f32 %v1903, %v1901
    %v1906 = vmul.f32 %v1904, %v1902
    %v1907 = vmul.f32 %v1892, %v1446
    %v1908 = vmul.f32 %v1894, %v1447
    %v1909 = vadd.f32 %v1905, %v1907
    %v1910 = vadd.f32 %v1906, %v1908
    %s1911 = smul.u32 2, 2
    %s1912 = smul.addr %s1911, 8
    %s1913 = scalar_lea.vmem [#allocation4], %s1912
    %1914 = vst [vmem:[%s1913] sm:$0xff] %v1909
    %1915 = vst [vmem:[%s1913 + $0x8] sm:$0xff] %v1910
    %s1916 = smul.u32 3, 6
    %s1917 = smul.addr %s1916, 8
    %s1918 = scalar_lea.vmem [#allocation3], %s1917
    %v1919 = vld [vmem:[%s1918] sm:$0xff]
    %v1920 = vld [vmem:[%s1918 + $0x8] sm:$0xff]
    %v1921 = vld [vmem:[%s1918 + $0x10] sm:$0xff]
    %v1922 = vld [vmem:[%s1918 + $0x18] sm:$0xff]
    %v1923 = vld [vmem:[%s1918 + $0x20] sm:$0xff]
    %v1924 = vld [vmem:[%s1918 + $0x28] sm:$0xff]
    %v1925 = vld [vmem:[#allocation5] sm:$0xff]
    %v1926 = vld [vmem:[#allocation5 + $0x8] sm:$0xff]
    %v1927 = vld [vmem:[#allocation5 + $0x10] sm:$0xff]
    %v1928 = vld [vmem:[#allocation5 + $0x18] sm:$0xff]
    %v1929 = vld [vmem:[#allocation5 + $0x20] sm:$0xff]
    %v1930 = vld [vmem:[#allocation5 + $0x28] sm:$0xff]
    %v1931 = vld [vmem:[#allocation5 + $0x30] sm:$0xff]
    %v1932 = vld [vmem:[#allocation5 + $0x38] sm:$0xff]
    %v1933 = vld [vmem:[#allocation5 + $0x40] sm:$0xff]
    %v1934 = vld [vmem:[#allocation5 + $0x48] sm:$0xff]
    %v1935 = vld [vmem:[#allocation5 + $0x50] sm:$0xff]
    %v1936 = vld [vmem:[#allocation5 + $0x58] sm:$0xff]
    %v1937 = vld [vmem:[#allocation5 + $0x60] sm:$0xff]
    %v1938 = vld [vmem:[#allocation5 + $0x68] sm:$0xff]
    %v1939 = vld [vmem:[#allocation5 + $0x70] sm:$0xff]
    %v1940 = vld [vmem:[#allocation5 + $0x78] sm:$0xff]
    %v1941 = vld [vmem:[#allocation5 + $0x80] sm:$0xff]
    %v1942 = vld [vmem:[#allocation5 + $0x88] sm:$0xff]
    %v1943 = vld [vmem:[#allocation5 + $0x90] sm:$0xff]
    %v1944 = vld [vmem:[#allocation5 + $0x98] sm:$0xff]
    %v1945 = vld [vmem:[#allocation5 + $0xa0] sm:$0xff]
    %v1946 = vld [vmem:[#allocation5 + $0xa8] sm:$0xff]
    %v1947 = vld [vmem:[#allocation5 + $0xb0] sm:$0xff]
    %v1948 = vld [vmem:[#allocation5 + $0xb8] sm:$0xff]
    %v1949 = vld [vmem:[#allocation5 + $0xc0] sm:$0xff]
    %v1950 = vld [vmem:[#allocation5 + $0xc8] sm:$0xff]
    %v1951 = vld [vmem:[#allocation5 + $0xd0] sm:$0xff]
    %v1952 = vld [vmem:[#allocation5 + $0xd8] sm:$0xff]
    %v1953 = vld [vmem:[#allocation5 + $0xe0] sm:$0xff]
    %v1954 = vld [vmem:[#allocation5 + $0xe8] sm:$0xff]
    %v1955 = vld [vmem:[#allocation5 + $0xf0] sm:$0xff]
    %v1956 = vld [vmem:[#allocation5 + $0xf8] sm:$0xff]
    %v1957 = vld [vmem:[#allocation5 + $0x100] sm:$0xff]
    %v1958 = vld [vmem:[#allocation5 + $0x108] sm:$0xff]
    %v1959 = vld [vmem:[#allocation5 + $0x110] sm:$0xff]
    %v1960 = vld [vmem:[#allocation5 + $0x118] sm:$0xff]
    %v1961 = vld [vmem:[#allocation5 + $0x120] sm:$0xff]
    %v1962 = vld [vmem:[#allocation5 + $0x128] sm:$0xff]
    %v1963 = vld [vmem:[#allocation5 + $0x130] sm:$0xff]
    %v1964 = vld [vmem:[#allocation5 + $0x138] sm:$0xff]
    %v1965 = vld [vmem:[#allocation5 + $0x140] sm:$0xff]
    %v1966 = vld [vmem:[#allocation5 + $0x148] sm:$0xff]
    %v1967 = vld [vmem:[#allocation5 + $0x150] sm:$0xff]
    %v1968 = vld [vmem:[#allocation5 + $0x158] sm:$0xff]
    %v1969 = vld [vmem:[#allocation5 + $0x160] sm:$0xff]
    %v1970 = vld [vmem:[#allocation5 + $0x168] sm:$0xff]
    %v1971 = vld [vmem:[#allocation5 + $0x170] sm:$0xff]
    %v1972 = vld [vmem:[#allocation5 + $0x178] sm:$0xff]
    %v1973 = vld [vmem:[#allocation5 + $0x180] sm:$0xff]
    %v1974 = vld [vmem:[#allocation5 + $0x188] sm:$0xff]
    %v1975 = vld [vmem:[#allocation5 + $0x190] sm:$0xff]
    %v1976 = vld [vmem:[#allocation5 + $0x198] sm:$0xff]
    %v1977 = vld [vmem:[#allocation5 + $0x1a0] sm:$0xff]
    %v1978 = vld [vmem:[#allocation5 + $0x1a8] sm:$0xff]
    %v1979 = vld [vmem:[#allocation5 + $0x1b0] sm:$0xff]
    %v1980 = vld [vmem:[#allocation5 + $0x1b8] sm:$0xff]
    %v1981 = vld [vmem:[#allocation5 + $0x1c0] sm:$0xff]
    %v1982 = vld [vmem:[#allocation5 + $0x1c8] sm:$0xff]
    %v1983 = vld [vmem:[#allocation5 + $0x1d0] sm:$0xff]
    %v1984 = vld [vmem:[#allocation5 + $0x1d8] sm:$0xff]
    %v1985 = vld [vmem:[#allocation5 + $0x1e0] sm:$0xff]
    %v1986 = vld [vmem:[#allocation5 + $0x1e8] sm:$0xff]
    %v1987 = vld [vmem:[#allocation5 + $0x1f0] sm:$0xff]
    %v1988 = vld [vmem:[#allocation5 + $0x1f8] sm:$0xff]
    %v1989 = vld [vmem:[#allocation5 + $0x200] sm:$0xff]
    %v1990 = vld [vmem:[#allocation5 + $0x208] sm:$0xff]
    %v1991 = vld [vmem:[#allocation5 + $0x210] sm:$0xff]
    %v1992 = vld [vmem:[#allocation5 + $0x218] sm:$0xff]
    %v1993 = vld [vmem:[#allocation5 + $0x220] sm:$0xff]
    %v1994 = vld [vmem:[#allocation5 + $0x228] sm:$0xff]
    %v1995 = vld [vmem:[#allocation5 + $0x230] sm:$0xff]
    %v1996 = vld [vmem:[#allocation5 + $0x238] sm:$0xff]
    %v1997 = vld [vmem:[#allocation5 + $0x240] sm:$0xff]
    %v1998 = vld [vmem:[#allocation5 + $0x248] sm:$0xff]
    %v1999 = vld [vmem:[#allocation5 + $0x250] sm:$0xff]
    %v2000 = vld [vmem:[#allocation5 + $0x258] sm:$0xff]
    %v2001 = vld [vmem:[#allocation5 + $0x260] sm:$0xff]
    %v2002 = vld [vmem:[#allocation5 + $0x268] sm:$0xff]
    %v2003 = vld [vmem:[#allocation5 + $0x270] sm:$0xff]
    %v2004 = vld [vmem:[#allocation5 + $0x278] sm:$0xff]
    %v2005 = vld [vmem:[#allocation5 + $0x280] sm:$0xff]
    %v2006 = vld [vmem:[#allocation5 + $0x288] sm:$0xff]
    %v2007 = vld [vmem:[#allocation5 + $0x290] sm:$0xff]
    %v2008 = vld [vmem:[#allocation5 + $0x298] sm:$0xff]
    %v2009 = vld [vmem:[#allocation5 + $0x2a0] sm:$0xff]
    %v2010 = vld [vmem:[#allocation5 + $0x2a8] sm:$0xff]
    %v2011 = vld [vmem:[#allocation5 + $0x2b0] sm:$0xff]
    %v2012 = vld [vmem:[#allocation5 + $0x2b8] sm:$0xff]
    %v2013 = vld [vmem:[#allocation5 + $0x2c0] sm:$0xff]
    %v2014 = vld [vmem:[#allocation5 + $0x2c8] sm:$0xff]
    %v2015 = vld [vmem:[#allocation5 + $0x2d0] sm:$0xff]
    %v2016 = vld [vmem:[#allocation5 + $0x2d8] sm:$0xff]
    %v2017 = vld [vmem:[#allocation5 + $0x2e0] sm:$0xff]
    %v2018 = vld [vmem:[#allocation5 + $0x2e8] sm:$0xff]
    %v2019 = vld [vmem:[#allocation5 + $0x2f0] sm:$0xff]
    %v2020 = vld [vmem:[#allocation5 + $0x2f8] sm:$0xff]
    %v2021 = vld [vmem:[#allocation5 + $0x300] sm:$0xff]
    %v2022 = vld [vmem:[#allocation5 + $0x308] sm:$0xff]
    %v2023 = vld [vmem:[#allocation5 + $0x310] sm:$0xff]
    %v2024 = vld [vmem:[#allocation5 + $0x318] sm:$0xff]
    %v2025 = vld [vmem:[#allocation5 + $0x320] sm:$0xff]
    %v2026 = vld [vmem:[#allocation5 + $0x328] sm:$0xff]
    %v2027 = vld [vmem:[#allocation5 + $0x330] sm:$0xff]
    %v2028 = vld [vmem:[#allocation5 + $0x338] sm:$0xff]
    %v2029 = vld [vmem:[#allocation5 + $0x340] sm:$0xff]
    %v2030 = vld [vmem:[#allocation5 + $0x348] sm:$0xff]
    %v2031 = vld [vmem:[#allocation5 + $0x350] sm:$0xff]
    %v2032 = vld [vmem:[#allocation5 + $0x358] sm:$0xff]
    %v2033 = vld [vmem:[#allocation5 + $0x360] sm:$0xff]
    %v2034 = vld [vmem:[#allocation5 + $0x368] sm:$0xff]
    %v2035 = vld [vmem:[#allocation5 + $0x370] sm:$0xff]
    %v2036 = vld [vmem:[#allocation5 + $0x378] sm:$0xff]
    %v2037 = vld [vmem:[#allocation5 + $0x380] sm:$0xff]
    %v2038 = vld [vmem:[#allocation5 + $0x388] sm:$0xff]
    %v2039 = vld [vmem:[#allocation5 + $0x390] sm:$0xff]
    %v2040 = vld [vmem:[#allocation5 + $0x398] sm:$0xff]
    %v2041 = vld [vmem:[#allocation5 + $0x3a0] sm:$0xff]
    %v2042 = vld [vmem:[#allocation5 + $0x3a8] sm:$0xff]
    %v2043 = vld [vmem:[#allocation5 + $0x3b0] sm:$0xff]
    %v2044 = vld [vmem:[#allocation5 + $0x3b8] sm:$0xff]
    %v2045 = vld [vmem:[#allocation5 + $0x3c0] sm:$0xff]
    %v2046 = vld [vmem:[#allocation5 + $0x3c8] sm:$0xff]
    %v2047 = vld [vmem:[#allocation5 + $0x3d0] sm:$0xff]
    %v2048 = vld [vmem:[#allocation5 + $0x3d8] sm:$0xff]
    %v2049 = vld [vmem:[#allocation5 + $0x3e0] sm:$0xff]
    %v2050 = vld [vmem:[#allocation5 + $0x3e8] sm:$0xff]
    %v2051 = vld [vmem:[#allocation5 + $0x3f0] sm:$0xff]
    %v2052 = vld [vmem:[#allocation5 + $0x3f8] sm:$0xff]
    %v2053 = vld [vmem:[#allocation5 + $0x400] sm:$0xff]
    %v2054 = vld [vmem:[#allocation5 + $0x408] sm:$0xff]
    %v2055 = vld [vmem:[#allocation5 + $0x410] sm:$0xff]
    %v2056 = vld [vmem:[#allocation5 + $0x418] sm:$0xff]
    %v2057 = vld [vmem:[#allocation5 + $0x420] sm:$0xff]
    %v2058 = vld [vmem:[#allocation5 + $0x428] sm:$0xff]
    %v2059 = vld [vmem:[#allocation5 + $0x430] sm:$0xff]
    %v2060 = vld [vmem:[#allocation5 + $0x438] sm:$0xff]
    %v2061 = vld [vmem:[#allocation5 + $0x440] sm:$0xff]
    %v2062 = vld [vmem:[#allocation5 + $0x448] sm:$0xff]
    %v2063 = vld [vmem:[#allocation5 + $0x450] sm:$0xff]
    %v2064 = vld [vmem:[#allocation5 + $0x458] sm:$0xff]
    %v2065 = vld [vmem:[#allocation5 + $0x460] sm:$0xff]
    %v2066 = vld [vmem:[#allocation5 + $0x468] sm:$0xff]
    %v2067 = vld [vmem:[#allocation5 + $0x470] sm:$0xff]
    %v2068 = vld [vmem:[#allocation5 + $0x478] sm:$0xff]
    %v2069 = vld [vmem:[#allocation5 + $0x480] sm:$0xff]
    %v2070 = vld [vmem:[#allocation5 + $0x488] sm:$0xff]
    %v2071 = vld [vmem:[#allocation5 + $0x490] sm:$0xff]
    %v2072 = vld [vmem:[#allocation5 + $0x498] sm:$0xff]
    %v2073 = vld [vmem:[#allocation5 + $0x4a0] sm:$0xff]
    %v2074 = vld [vmem:[#allocation5 + $0x4a8] sm:$0xff]
    %v2075 = vld [vmem:[#allocation5 + $0x4b0] sm:$0xff]
    %v2076 = vld [vmem:[#allocation5 + $0x4b8] sm:$0xff]
    %v2077 = vld [vmem:[#allocation5 + $0x4c0] sm:$0xff]
    %v2078 = vld [vmem:[#allocation5 + $0x4c8] sm:$0xff]
    %v2079 = vld [vmem:[#allocation5 + $0x4d0] sm:$0xff]
    %v2080 = vld [vmem:[#allocation5 + $0x4d8] sm:$0xff]
    %v2081 = vld [vmem:[#allocation5 + $0x4e0] sm:$0xff]
    %v2082 = vld [vmem:[#allocation5 + $0x4e8] sm:$0xff]
    %v2083 = vld [vmem:[#allocation5 + $0x4f0] sm:$0xff]
    %v2084 = vld [vmem:[#allocation5 + $0x4f8] sm:$0xff]
    %v2085 = vld [vmem:[#allocation5 + $0x500] sm:$0xff]
    %v2086 = vld [vmem:[#allocation5 + $0x508] sm:$0xff]
    %v2087 = vld [vmem:[#allocation5 + $0x510] sm:$0xff]
    %v2088 = vld [vmem:[#allocation5 + $0x518] sm:$0xff]
    %v2089 = vld [vmem:[#allocation5 + $0x520] sm:$0xff]
    %v2090 = vld [vmem:[#allocation5 + $0x528] sm:$0xff]
    %v2091 = vld [vmem:[#allocation5 + $0x530] sm:$0xff]
    %v2092 = vld [vmem:[#allocation5 + $0x538] sm:$0xff]
    %v2093 = vld [vmem:[#allocation5 + $0x540] sm:$0xff]
    %v2094 = vld [vmem:[#allocation5 + $0x548] sm:$0xff]
    %v2095 = vld [vmem:[#allocation5 + $0x550] sm:$0xff]
    %v2096 = vld [vmem:[#allocation5 + $0x558] sm:$0xff]
    %v2097 = vld [vmem:[#allocation5 + $0x560] sm:$0xff]
    %v2098 = vld [vmem:[#allocation5 + $0x568] sm:$0xff]
    %v2099 = vld [vmem:[#allocation5 + $0x570] sm:$0xff]
    %v2100 = vld [vmem:[#allocation5 + $0x578] sm:$0xff]
    %v2101 = vld [vmem:[#allocation5 + $0x580] sm:$0xff]
    %v2102 = vld [vmem:[#allocation5 + $0x588] sm:$0xff]
    %v2103 = vld [vmem:[#allocation5 + $0x590] sm:$0xff]
    %v2104 = vld [vmem:[#allocation5 + $0x598] sm:$0xff]
    %v2105 = vld [vmem:[#allocation5 + $0x5a0] sm:$0xff]
    %v2106 = vld [vmem:[#allocation5 + $0x5a8] sm:$0xff]
    %v2107 = vld [vmem:[#allocation5 + $0x5b0] sm:$0xff]
    %v2108 = vld [vmem:[#allocation5 + $0x5b8] sm:$0xff]
    %v2109 = vld [vmem:[#allocation5 + $0x5c0] sm:$0xff]
    %v2110 = vld [vmem:[#allocation5 + $0x5c8] sm:$0xff]
    %v2111 = vld [vmem:[#allocation5 + $0x5d0] sm:$0xff]
    %v2112 = vld [vmem:[#allocation5 + $0x5d8] sm:$0xff]
    %v2113 = vld [vmem:[#allocation5 + $0x5e0] sm:$0xff]
    %v2114 = vld [vmem:[#allocation5 + $0x5e8] sm:$0xff]
    %v2115 = vld [vmem:[#allocation5 + $0x5f0] sm:$0xff]
    %v2116 = vld [vmem:[#allocation5 + $0x5f8] sm:$0xff]
    %2117 = vmatprep.subr.mxu0 %v1926
    %2118 = vmatpush1.msra.mxu0 %v1925
    %2119 = vmatprep.subr.mxu0 %v1932
    %2120 = vmatpush1.msra.mxu0 %v1931
    %2121 = vmatprep.subr.mxu0 %v1938
    %2122 = vmatpush1.msra.mxu0 %v1937
    %2123 = vmatprep.subr.mxu0 %v1944
    %2124 = vmatpush1.msra.mxu0 %v1943
    %2125 = vmatprep.subr.mxu0 %v1950
    %2126 = vmatpush1.msra.mxu0 %v1949
    %2127 = vmatprep.subr.mxu0 %v1956
    %2128 = vmatpush1.msra.mxu0 %v1955
    %2129 = vmatprep.subr.mxu0 %v1962
    %2130 = vmatpush1.msra.mxu0 %v1961
    %2131 = vmatprep.subr.mxu0 %v1968
    %2132 = vmatpush1.msra.mxu0 %v1967
    %2133 = vmatprep.subr.mxu0 %v1974
    %2134 = vmatpush1.msra.mxu0 %v1973
    %2135 = vmatprep.subr.mxu0 %v1980
    %2136 = vmatpush1.msra.mxu0 %v1979
    %2137 = vmatprep.subr.mxu0 %v1986
    %2138 = vmatpush1.msra.mxu0 %v1985
    %2139 = vmatprep.subr.mxu0 %v1992
    %2140 = vmatpush1.msra.mxu0 %v1991
    %2141 = vmatprep.subr.mxu0 %v1998
    %2142 = vmatpush1.msra.mxu0 %v1997
    %2143 = vmatprep.subr.mxu0 %v2004
    %2144 = vmatpush1.msra.mxu0 %v2003
    %2145 = vmatprep.subr.mxu0 %v2010
    %2146 = vmatpush1.msra.mxu0 %v2009
    %2147 = vmatprep.subr.mxu0 %v2016
    %2148 = vmatpush1.msra.mxu0 %v2015
    %2149 = vmatprep.subr.mxu0 %v2022
    %2150 = vmatpush1.msra.mxu0 %v2021
    %2151 = vmatprep.subr.mxu0 %v2028
    %2152 = vmatpush1.msra.mxu0 %v2027
    %2153 = vmatprep.subr.mxu0 %v2034
    %2154 = vmatpush1.msra.mxu0 %v2033
    %2155 = vmatprep.subr.mxu0 %v2040
    %2156 = vmatpush1.msra.mxu0 %v2039
    %2157 = vmatprep.subr.mxu0 %v2046
    %2158 = vmatpush1.msra.mxu0 %v2045
    %2159 = vmatprep.subr.mxu0 %v2052
    %2160 = vmatpush1.msra.mxu0 %v2051
    %2161 = vmatprep.subr.mxu0 %v2058
    %2162 = vmatpush1.msra.mxu0 %v2057
    %2163 = vmatprep.subr.mxu0 %v2064
    %2164 = vmatpush1.msra.mxu0 %v2063
    %2165 = vmatprep.subr.mxu0 %v2070
    %2166 = vmatpush1.msra.mxu0 %v2069
    %2167 = vmatprep.subr.mxu0 %v2076
    %2168 = vmatpush1.msra.mxu0 %v2075
    %2169 = vmatprep.subr.mxu0 %v2082
    %2170 = vmatpush1.msra.mxu0 %v2081
    %2171 = vmatprep.subr.mxu0 %v2088
    %2172 = vmatpush1.msra.mxu0 %v2087
    %2173 = vmatprep.subr.mxu0 %v2094
    %2174 = vmatpush1.msra.mxu0 %v2093
    %2175 = vmatprep.subr.mxu0 %v2100
    %2176 = vmatpush1.msra.mxu0 %v2099
    %2177 = vmatprep.subr.mxu0 %v2106
    %2178 = vmatpush1.msra.mxu0 %v2105
    %2179 = vmatprep.subr.mxu0 %v2112
    %2180 = vmatpush1.msra.mxu0 %v2111
    %2181 = vmatprep.mubr.f32.mxu0 %v1910
    %2182 = vmatmul.mubr.f32.gmra.mrb[0].mxu0 %v1909
    %v2183 = vpop.f32.mrb[0].mxu0
    %v2184 = vadd.f32 0.0, %v2183
    %v2185 = vpop.f32.mrb[0].mxu0
    %v2186 = vadd.f32 0.0, %v2185
    %2187 = vdwg.mxu0
    %2188 = vmatprep.subr.mxu0 %v1928
    %2189 = vmatpush1.msra.mxu0 %v1927
    %2190 = vmatprep.subr.mxu0 %v1934
    %2191 = vmatpush1.msra.mxu0 %v1933
    %2192 = vmatprep.subr.mxu0 %v1940
    %2193 = vmatpush1.msra.mxu0 %v1939
    %2194 = vmatprep.subr.mxu0 %v1946
    %2195 = vmatpush1.msra.mxu0 %v1945
    %2196 = vmatprep.subr.mxu0 %v1952
    %2197 = vmatpush1.msra.mxu0 %v1951
    %2198 = vmatprep.subr.mxu0 %v1958
    %2199 = vmatpush1.msra.mxu0 %v1957
    %2200 = vmatprep.subr.mxu0 %v1964
    %2201 = vmatpush1.msra.mxu0 %v1963
    %2202 = vmatprep.subr.mxu0 %v1970
    %2203 = vmatpush1.msra.mxu0 %v1969
    %2204 = vmatprep.subr.mxu0 %v1976
    %2205 = vmatpush1.msra.mxu0 %v1975
    %2206 = vmatprep.subr.mxu0 %v1982
    %2207 = vmatpush1.msra.mxu0 %v1981
    %2208 = vmatprep.subr.mxu0 %v1988
    %2209 = vmatpush1.msra.mxu0 %v1987
    %2210 = vmatprep.subr.mxu0 %v1994
    %2211 = vmatpush1.msra.mxu0 %v1993
    %2212 = vmatprep.subr.mxu0 %v2000
    %2213 = vmatpush1.msra.mxu0 %v1999
    %2214 = vmatprep.subr.mxu0 %v2006
    %2215 = vmatpush1.msra.mxu0 %v2005
    %2216 = vmatprep.subr.mxu0 %v2012
    %2217 = vmatpush1.msra.mxu0 %v2011
    %2218 = vmatprep.subr.mxu0 %v2018
    %2219 = vmatpush1.msra.mxu0 %v2017
    %2220 = vmatprep.subr.mxu0 %v2024
    %2221 = vmatpush1.msra.mxu0 %v2023
    %2222 = vmatprep.subr.mxu0 %v2030
    %2223 = vmatpush1.msra.mxu0 %v2029
    %2224 = vmatprep.subr.mxu0 %v2036
    %2225 = vmatpush1.msra.mxu0 %v2035
    %2226 = vmatprep.subr.mxu0 %v2042
    %2227 = vmatpush1.msra.mxu0 %v2041
    %2228 = vmatprep.subr.mxu0 %v2048
    %2229 = vmatpush1.msra.mxu0 %v2047
    %2230 = vmatprep.subr.mxu0 %v2054
    %2231 = vmatpush1.msra.mxu0 %v2053
    %2232 = vmatprep.subr.mxu0 %v2060
    %2233 = vmatpush1.msra.mxu0 %v2059
    %2234 = vmatprep.subr.mxu0 %v2066
    %2235 = vmatpush1.msra.mxu0 %v2065
    %2236 = vmatprep.subr.mxu0 %v2072
    %2237 = vmatpush1.msra.mxu0 %v2071
    %2238 = vmatprep.subr.mxu0 %v2078
    %2239 = vmatpush1.msra.mxu0 %v2077
    %2240 = vmatprep.subr.mxu0 %v2084
    %2241 = vmatpush1.msra.mxu0 %v2083
    %2242 = vmatprep.subr.mxu0 %v2090
    %2243 = vmatpush1.msra.mxu0 %v2089
    %2244 = vmatprep.subr.mxu0 %v2096
    %2245 = vmatpush1.msra.mxu0 %v2095
    %2246 = vmatprep.subr.mxu0 %v2102
    %2247 = vmatpush1.msra.mxu0 %v2101
    %2248 = vmatprep.subr.mxu0 %v2108
    %2249 = vmatpush1.msra.mxu0 %v2107
    %2250 = vmatprep.subr.mxu0 %v2114
    %2251 = vmatpush1.msra.mxu0 %v2113
    %2252 = vmatprep.mubr.f32.mxu0 %v1910
    %2253 = vmatmul.mubr.f32.gmra.mrb[0].mxu0 %v1909
    %v2254 = vpop.f32.mrb[0].mxu0
    %v2255 = vadd.f32 0.0, %v2254
    %v2256 = vpop.f32.mrb[0].mxu0
    %v2257 = vadd.f32 0.0, %v2256
    %2258 = vdwg.mxu0
    %2259 = vmatprep.subr.mxu0 %v1930
    %2260 = vmatpush1.msra.mxu0 %v1929
    %2261 = vmatprep.subr.mxu0 %v1936
    %2262 = vmatpush1.msra.mxu0 %v1935
    %2263 = vmatprep.subr.mxu0 %v1942
    %2264 = vmatpush1.msra.mxu0 %v1941
    %2265 = vmatprep.subr.mxu0 %v1948
    %2266 = vmatpush1.msra.mxu0 %v1947
    %2267 = vmatprep.subr.mxu0 %v1954
    %2268 = vmatpush1.msra.mxu0 %v1953
    %2269 = vmatprep.subr.mxu0 %v1960
    %2270 = vmatpush1.msra.mxu0 %v1959
    %2271 = vmatprep.subr.mxu0 %v1966
    %2272 = vmatpush1.msra.mxu0 %v1965
    %2273 = vmatprep.subr.mxu0 %v1972
    %2274 = vmatpush1.msra.mxu0 %v1971
    %2275 = vmatprep.subr.mxu0 %v1978
    %2276 = vmatpush1.msra.mxu0 %v1977
    %2277 = vmatprep.subr.mxu0 %v1984
    %2278 = vmatpush1.msra.mxu0 %v1983
    %2279 = vmatprep.subr.mxu0 %v1990
    %2280 = vmatpush1.msra.mxu0 %v1989
    %2281 = vmatprep.subr.mxu0 %v1996
    %2282 = vmatpush1.msra.mxu0 %v1995
    %2283 = vmatprep.subr.mxu0 %v2002
    %2284 = vmatpush1.msra.mxu0 %v2001
    %2285 = vmatprep.subr.mxu0 %v2008
    %2286 = vmatpush1.msra.mxu0 %v2007
    %2287 = vmatprep.subr.mxu0 %v2014
    %2288 = vmatpush1.msra.mxu0 %v2013
    %2289 = vmatprep.subr.mxu0 %v2020
    %2290 = vmatpush1.msra.mxu0 %v2019
    %2291 = vmatprep.subr.mxu0 %v2026
    %2292 = vmatpush1.msra.mxu0 %v2025
    %2293 = vmatprep.subr.mxu0 %v2032
    %2294 = vmatpush1.msra.mxu0 %v2031
    %2295 = vmatprep.subr.mxu0 %v2038
    %2296 = vmatpush1.msra.mxu0 %v2037
    %2297 = vmatprep.subr.mxu0 %v2044
    %2298 = vmatpush1.msra.mxu0 %v2043
    %2299 = vmatprep.subr.mxu0 %v2050
    %2300 = vmatpush1.msra.mxu0 %v2049
    %2301 = vmatprep.subr.mxu0 %v2056
    %2302 = vmatpush1.msra.mxu0 %v2055
    %2303 = vmatprep.subr.mxu0 %v2062
    %2304 = vmatpush1.msra.mxu0 %v2061
    %2305 = vmatprep.subr.mxu0 %v2068
    %2306 = vmatpush1.msra.mxu0 %v2067
    %2307 = vmatprep.subr.mxu0 %v2074
    %2308 = vmatpush1.msra.mxu0 %v2073
    %2309 = vmatprep.subr.mxu0 %v2080
    %2310 = vmatpush1.msra.mxu0 %v2079
    %2311 = vmatprep.subr.mxu0 %v2086
    %2312 = vmatpush1.msra.mxu0 %v2085
    %2313 = vmatprep.subr.mxu0 %v2092
    %2314 = vmatpush1.msra.mxu0 %v2091
    %2315 = vmatprep.subr.mxu0 %v2098
    %2316 = vmatpush1.msra.mxu0 %v2097
    %2317 = vmatprep.subr.mxu0 %v2104
    %2318 = vmatpush1.msra.mxu0 %v2103
    %2319 = vmatprep.subr.mxu0 %v2110
    %2320 = vmatpush1.msra.mxu0 %v2109
    %2321 = vmatprep.subr.mxu0 %v2116
    %2322 = vmatpush1.msra.mxu0 %v2115
    %2323 = vmatprep.mubr.f32.mxu0 %v1910
    %2324 = vmatmul.mubr.f32.gmra.mrb[0].mxu0 %v1909
    %v2325 = vpop.f32.mrb[0].mxu0
    %v2326 = vadd.f32 0.0, %v2325
    %v2327 = vpop.f32.mrb[0].mxu0
    %v2328 = vadd.f32 0.0, %v2327
    %2329 = vdwg.mxu0
    %v2330 = vadd.f32 %v1919, %v2184
    %v2331 = vadd.f32 %v1920, %v2186
    %v2332 = vxor.u32 %v2330, 2147483648
    %v2333 = vxor.u32 %v2331, 2147483648
    %v2334 = vmul.f32 %v2332, 1.442695
    %v2335 = vpow.pop %v2334
    %v2336 = vmul.f32 %v2333, 1.442695
    %v2337 = vpow.pop %v2336
    %v2338 = vadd.f32 %v2335, 1.0
    %v2339 = vadd.f32 %v2337, 1.0
    %v2340 = vrcp.pop %v2338
    %v2341 = vmul.f32 1.0, %v2340
    %v2342 = vrcp.pop %v2339
    %v2343 = vmul.f32 1.0, %v2342
    %v2344 = vadd.f32 %v1921, %v2255
    %v2345 = vadd.f32 %v1922, %v2257
    %v2346 = vxor.u32 %v2344, 2147483648
    %v2347 = vxor.u32 %v2345, 2147483648
    %v2348 = vmul.f32 %v2346, 1.442695
    %v2349 = vpow.pop %v2348
    %v2350 = vmul.f32 %v2347, 1.442695
    %v2351 = vpow.pop %v2350
    %v2352 = vadd.f32 %v2349, 1.0
    %v2353 = vadd.f32 %v2351, 1.0
    %v2354 = vrcp.pop %v2352
    %v2355 = vmul.f32 1.0, %v2354
    %v2356 = vrcp.pop %v2353
    %v2357 = vmul.f32 1.0, %v2356
    %v2358 = vadd.f32 %v2326, %v518
    %v2359 = vadd.f32 %v2328, %v522
    %v2360 = vmul.f32 %v2341, %v2358
    %v2361 = vmul.f32 %v2343, %v2359
    %v2362 = vadd.f32 %v1923, %v2360
    %v2363 = vadd.f32 %v1924, %v2361
    %v2364 = vtanh.pop %v2362
    %v2365 = vtanh.pop %v2363
    %v2366 = vsub.f32 1.0, %v2355
    %v2367 = vsub.f32 1.0, %v2357
    %v2368 = vmul.f32 %v2366, %v2364
    %v2369 = vmul.f32 %v2367, %v2365
    %v2370 = vmul.f32 %v2355, %v1909
    %v2371 = vmul.f32 %v2357, %v1910
    %v2372 = vadd.f32 %v2368, %v2370
    %v2373 = vadd.f32 %v2369, %v2371
    %s2374 = smul.u32 3, 2
    %s2375 = smul.addr %s2374, 8
    %s2376 = scalar_lea.vmem [#allocation4], %s2375
    %2377 = vst [vmem:[%s2376] sm:$0xff] %v2372
    %2378 = vst [vmem:[%s2376 + $0x8] sm:$0xff] %v2373
    %s2379 = smul.u32 4, 6
    %s2380 = smul.addr %s2379, 8
    %s2381 = scalar_lea.vmem [#allocation3], %s2380
    %v2382 = vld [vmem:[%s2381] sm:$0xff]
    %v2383 = vld [vmem:[%s2381 + $0x8] sm:$0xff]
    %v2384 = vld [vmem:[%s2381 + $0x10] sm:$0xff]
    %v2385 = vld [vmem:[%s2381 + $0x18] sm:$0xff]
    %v2386 = vld [vmem:[%s2381 + $0x20] sm:$0xff]
    %v2387 = vld [vmem:[%s2381 + $0x28] sm:$0xff]
    %v2388 = vld [vmem:[#allocation5] sm:$0xff]
    %v2389 = vld [vmem:[#allocation5 + $0x8] sm:$0xff]
    %v2390 = vld [vmem:[#allocation5 + $0x10] sm:$0xff]
    %v2391 = vld [vmem:[#allocation5 + $0x18] sm:$0xff]
    %v2392 = vld [vmem:[#allocation5 + $0x20] sm:$0xff]
    %v2393 = vld [vmem:[#allocation5 + $0x28] sm:$0xff]
    %v2394 = vld [vmem:[#allocation5 + $0x30] sm:$0xff]
    %v2395 = vld [vmem:[#allocation5 + $0x38] sm:$0xff]
    %v2396 = vld [vmem:[#allocation5 + $0x40] sm:$0xff]
    %v2397 = vld [vmem:[#allocation5 + $0x48] sm:$0xff]
    %v2398 = vld [vmem:[#allocation5 + $0x50] sm:$0xff]
    %v2399 = vld [vmem:[#allocation5 + $0x58] sm:$0xff]
    %v2400 = vld [vmem:[#allocation5 + $0x60] sm:$0xff]
    %v2401 = vld [vmem:[#allocation5 + $0x68] sm:$0xff]
    %v2402 = vld [vmem:[#allocation5 + $0x70] sm:$0xff]
    %v2403 = vld [vmem:[#allocation5 + $0x78] sm:$0xff]
    %v2404 = vld [vmem:[#allocation5 + $0x80] sm:$0xff]
    %v2405 = vld [vmem:[#allocation5 + $0x88] sm:$0xff]
    %v2406 = vld [vmem:[#allocation5 + $0x90] sm:$0xff]
    %v2407 = vld [vmem:[#allocation5 + $0x98] sm:$0xff]
    %v2408 = vld [vmem:[#allocation5 + $0xa0] sm:$0xff]
    %v2409 = vld [vmem:[#allocation5 + $0xa8] sm:$0xff]
    %v2410 = vld [vmem:[#allocation5 + $0xb0] sm:$0xff]
    %v2411 = vld [vmem:[#allocation5 + $0xb8] sm:$0xff]
    %v2412 = vld [vmem:[#allocation5 + $0xc0] sm:$0xff]
    %v2413 = vld [vmem:[#allocation5 + $0xc8] sm:$0xff]
    %v2414 = vld [vmem:[#allocation5 + $0xd0] sm:$0xff]
    %v2415 = vld [vmem:[#allocation5 + $0xd8] sm:$0xff]
    %v2416 = vld [vmem:[#allocation5 + $0xe0] sm:$0xff]
    %v2417 = vld [vmem:[#allocation5 + $0xe8] sm:$0xff]
    %v2418 = vld [vmem:[#allocation5 + $0xf0] sm:$0xff]
    %v2419 = vld [vmem:[#allocation5 + $0xf8] sm:$0xff]
    %v2420 = vld [vmem:[#allocation5 + $0x100] sm:$0xff]
    %v2421 = vld [vmem:[#allocation5 + $0x108] sm:$0xff]
    %v2422 = vld [vmem:[#allocation5 + $0x110] sm:$0xff]
    %v2423 = vld [vmem:[#allocation5 + $0x118] sm:$0xff]
    %v2424 = vld [vmem:[#allocation5 + $0x120] sm:$0xff]
    %v2425 = vld [vmem:[#allocation5 + $0x128] sm:$0xff]
    %v2426 = vld [vmem:[#allocation5 + $0x130] sm:$0xff]
    %v2427 = vld [vmem:[#allocation5 + $0x138] sm:$0xff]
    %v2428 = vld [vmem:[#allocation5 + $0x140] sm:$0xff]
    %v2429 = vld [vmem:[#allocation5 + $0x148] sm:$0xff]
    %v2430 = vld [vmem:[#allocation5 + $0x150] sm:$0xff]
    %v2431 = vld [vmem:[#allocation5 + $0x158] sm:$0xff]
    %v2432 = vld [vmem:[#allocation5 + $0x160] sm:$0xff]
    %v2433 = vld [vmem:[#allocation5 + $0x168] sm:$0xff]
    %v2434 = vld [vmem:[#allocation5 + $0x170] sm:$0xff]
    %v2435 = vld [vmem:[#allocation5 + $0x178] sm:$0xff]
    %v2436 = vld [vmem:[#allocation5 + $0x180] sm:$0xff]
    %v2437 = vld [vmem:[#allocation5 + $0x188] sm:$0xff]
    %v2438 = vld [vmem:[#allocation5 + $0x190] sm:$0xff]
    %v2439 = vld [vmem:[#allocation5 + $0x198] sm:$0xff]
    %v2440 = vld [vmem:[#allocation5 + $0x1a0] sm:$0xff]
    %v2441 = vld [vmem:[#allocation5 + $0x1a8] sm:$0xff]
    %v2442 = vld [vmem:[#allocation5 + $0x1b0] sm:$0xff]
    %v2443 = vld [vmem:[#allocation5 + $0x1b8] sm:$0xff]
    %v2444 = vld [vmem:[#allocation5 + $0x1c0] sm:$0xff]
    %v2445 = vld [vmem:[#allocation5 + $0x1c8] sm:$0xff]
    %v2446 = vld [vmem:[#allocation5 + $0x1d0] sm:$0xff]
    %v2447 = vld [vmem:[#allocation5 + $0x1d8] sm:$0xff]
    %v2448 = vld [vmem:[#allocation5 + $0x1e0] sm:$0xff]
    %v2449 = vld [vmem:[#allocation5 + $0x1e8] sm:$0xff]
    %v2450 = vld [vmem:[#allocation5 + $0x1f0] sm:$0xff]
    %v2451 = vld [vmem:[#allocation5 + $0x1f8] sm:$0xff]
    %v2452 = vld [vmem:[#allocation5 + $0x200] sm:$0xff]
    %v2453 = vld [vmem:[#allocation5 + $0x208] sm:$0xff]
    %v2454 = vld [vmem:[#allocation5 + $0x210] sm:$0xff]
    %v2455 = vld [vmem:[#allocation5 + $0x218] sm:$0xff]
    %v2456 = vld [vmem:[#allocation5 + $0x220] sm:$0xff]
    %v2457 = vld [vmem:[#allocation5 + $0x228] sm:$0xff]
    %v2458 = vld [vmem:[#allocation5 + $0x230] sm:$0xff]
    %v2459 = vld [vmem:[#allocation5 + $0x238] sm:$0xff]
    %v2460 = vld [vmem:[#allocation5 + $0x240] sm:$0xff]
    %v2461 = vld [vmem:[#allocation5 + $0x248] sm:$0xff]
    %v2462 = vld [vmem:[#allocation5 + $0x250] sm:$0xff]
    %v2463 = vld [vmem:[#allocation5 + $0x258] sm:$0xff]
    %v2464 = vld [vmem:[#allocation5 + $0x260] sm:$0xff]
    %v2465 = vld [vmem:[#allocation5 + $0x268] sm:$0xff]
    %v2466 = vld [vmem:[#allocation5 + $0x270] sm:$0xff]
    %v2467 = vld [vmem:[#allocation5 + $0x278] sm:$0xff]
    %v2468 = vld [vmem:[#allocation5 + $0x280] sm:$0xff]
    %v2469 = vld [vmem:[#allocation5 + $0x288] sm:$0xff]
    %v2470 = vld [vmem:[#allocation5 + $0x290] sm:$0xff]
    %v2471 = vld [vmem:[#allocation5 + $0x298] sm:$0xff]
    %v2472 = vld [vmem:[#allocation5 + $0x2a0] sm:$0xff]
    %v2473 = vld [vmem:[#allocation5 + $0x2a8] sm:$0xff]
    %v2474 = vld [vmem:[#allocation5 + $0x2b0] sm:$0xff]
    %v2475 = vld [vmem:[#allocation5 + $0x2b8] sm:$0xff]
    %v2476 = vld [vmem:[#allocation5 + $0x2c0] sm:$0xff]
    %v2477 = vld [vmem:[#allocation5 + $0x2c8] sm:$0xff]
    %v2478 = vld [vmem:[#allocation5 + $0x2d0] sm:$0xff]
    %v2479 = vld [vmem:[#allocation5 + $0x2d8] sm:$0xff]
    %v2480 = vld [vmem:[#allocation5 + $0x2e0] sm:$0xff]
    %v2481 = vld [vmem:[#allocation5 + $0x2e8] sm:$0xff]
    %v2482 = vld [vmem:[#allocation5 + $0x2f0] sm:$0xff]
    %v2483 = vld [vmem:[#allocation5 + $0x2f8] sm:$0xff]
    %v2484 = vld [vmem:[#allocation5 + $0x300] sm:$0xff]
    %v2485 = vld [vmem:[#allocation5 + $0x308] sm:$0xff]
    %v2486 = vld [vmem:[#allocation5 + $0x310] sm:$0xff]
    %v2487 = vld [vmem:[#allocation5 + $0x318] sm:$0xff]
    %v2488 = vld [vmem:[#allocation5 + $0x320] sm:$0xff]
    %v2489 = vld [vmem:[#allocation5 + $0x328] sm:$0xff]
    %v2490 = vld [vmem:[#allocation5 + $0x330] sm:$0xff]
    %v2491 = vld [vmem:[#allocation5 + $0x338] sm:$0xff]
    %v2492 = vld [vmem:[#allocation5 + $0x340] sm:$0xff]
    %v2493 = vld [vmem:[#allocation5 + $0x348] sm:$0xff]
    %v2494 = vld [vmem:[#allocation5 + $0x350] sm:$0xff]
    %v2495 = vld [vmem:[#allocation5 + $0x358] sm:$0xff]
    %v2496 = vld [vmem:[#allocation5 + $0x360] sm:$0xff]
    %v2497 = vld [vmem:[#allocation5 + $0x368] sm:$0xff]
    %v2498 = vld [vmem:[#allocation5 + $0x370] sm:$0xff]
    %v2499 = vld [vmem:[#allocation5 + $0x378] sm:$0xff]
    %v2500 = vld [vmem:[#allocation5 + $0x380] sm:$0xff]
    %v2501 = vld [vmem:[#allocation5 + $0x388] sm:$0xff]
    %v2502 = vld [vmem:[#allocation5 + $0x390] sm:$0xff]
    %v2503 = vld [vmem:[#allocation5 + $0x398] sm:$0xff]
    %v2504 = vld [vmem:[#allocation5 + $0x3a0] sm:$0xff]
    %v2505 = vld [vmem:[#allocation5 + $0x3a8] sm:$0xff]
    %v2506 = vld [vmem:[#allocation5 + $0x3b0] sm:$0xff]
    %v2507 = vld [vmem:[#allocation5 + $0x3b8] sm:$0xff]
    %v2508 = vld [vmem:[#allocation5 + $0x3c0] sm:$0xff]
    %v2509 = vld [vmem:[#allocation5 + $0x3c8] sm:$0xff]
    %v2510 = vld [vmem:[#allocation5 + $0x3d0] sm:$0xff]
    %v2511 = vld [vmem:[#allocation5 + $0x3d8] sm:$0xff]
    %v2512 = vld [vmem:[#allocation5 + $0x3e0] sm:$0xff]
    %v2513 = vld [vmem:[#allocation5 + $0x3e8] sm:$0xff]
    %v2514 = vld [vmem:[#allocation5 + $0x3f0] sm:$0xff]
    %v2515 = vld [vmem:[#allocation5 + $0x3f8] sm:$0xff]
    %v2516 = vld [vmem:[#allocation5 + $0x400] sm:$0xff]
    %v2517 = vld [vmem:[#allocation5 + $0x408] sm:$0xff]
    %v2518 = vld [vmem:[#allocation5 + $0x410] sm:$0xff]
    %v2519 = vld [vmem:[#allocation5 + $0x418] sm:$0xff]
    %v2520 = vld [vmem:[#allocation5 + $0x420] sm:$0xff]
    %v2521 = vld [vmem:[#allocation5 + $0x428] sm:$0xff]
    %v2522 = vld [vmem:[#allocation5 + $0x430] sm:$0xff]
    %v2523 = vld [vmem:[#allocation5 + $0x438] sm:$0xff]
    %v2524 = vld [vmem:[#allocation5 + $0x440] sm:$0xff]
    %v2525 = vld [vmem:[#allocation5 + $0x448] sm:$0xff]
    %v2526 = vld [vmem:[#allocation5 + $0x450] sm:$0xff]
    %v2527 = vld [vmem:[#allocation5 + $0x458] sm:$0xff]
    %v2528 = vld [vmem:[#allocation5 + $0x460] sm:$0xff]
    %v2529 = vld [vmem:[#allocation5 + $0x468] sm:$0xff]
    %v2530 = vld [vmem:[#allocation5 + $0x470] sm:$0xff]
    %v2531 = vld [vmem:[#allocation5 + $0x478] sm:$0xff]
    %v2532 = vld [vmem:[#allocation5 + $0x480] sm:$0xff]
    %v2533 = vld [vmem:[#allocation5 + $0x488] sm:$0xff]
    %v2534 = vld [vmem:[#allocation5 + $0x490] sm:$0xff]
    %v2535 = vld [vmem:[#allocation5 + $0x498] sm:$0xff]
    %v2536 = vld [vmem:[#allocation5 + $0x4a0] sm:$0xff]
    %v2537 = vld [vmem:[#allocation5 + $0x4a8] sm:$0xff]
    %v2538 = vld [vmem:[#allocation5 + $0x4b0] sm:$0xff]
    %v2539 = vld [vmem:[#allocation5 + $0x4b8] sm:$0xff]
    %v2540 = vld [vmem:[#allocation5 + $0x4c0] sm:$0xff]
    %v2541 = vld [vmem:[#allocation5 + $0x4c8] sm:$0xff]
    %v2542 = vld [vmem:[#allocation5 + $0x4d0] sm:$0xff]
    %v2543 = vld [vmem:[#allocation5 + $0x4d8] sm:$0xff]
    %v2544 = vld [vmem:[#allocation5 + $0x4e0] sm:$0xff]
    %v2545 = vld [vmem:[#allocation5 + $0x4e8] sm:$0xff]
    %v2546 = vld [vmem:[#allocation5 + $0x4f0] sm:$0xff]
    %v2547 = vld [vmem:[#allocation5 + $0x4f8] sm:$0xff]
    %v2548 = vld [vmem:[#allocation5 + $0x500] sm:$0xff]
    %v2549 = vld [vmem:[#allocation5 + $0x508] sm:$0xff]
    %v2550 = vld [vmem:[#allocation5 + $0x510] sm:$0xff]
    %v2551 = vld [vmem:[#allocation5 + $0x518] sm:$0xff]
    %v2552 = vld [vmem:[#allocation5 + $0x520] sm:$0xff]
    %v2553 = vld [vmem:[#allocation5 + $0x528] sm:$0xff]
    %v2554 = vld [vmem:[#allocation5 + $0x530] sm:$0xff]
    %v2555 = vld [vmem:[#allocation5 + $0x538] sm:$0xff]
    %v2556 = vld [vmem:[#allocation5 + $0x540] sm:$0xff]
    %v2557 = vld [vmem:[#allocation5 + $0x548] sm:$0xff]
    %v2558 = vld [vmem:[#allocation5 + $0x550] sm:$0xff]
    %v2559 = vld [vmem:[#allocation5 + $0x558] sm:$0xff]
    %v2560 = vld [vmem:[#allocation5 + $0x560] sm:$0xff]
    %v2561 = vld [vmem:[#allocation5 + $0x568] sm:$0xff]
    %v2562 = vld [vmem:[#allocation5 + $0x570] sm:$0xff]
    %v2563 = vld [vmem:[#allocation5 + $0x578] sm:$0xff]
    %v2564 = vld [vmem:[#allocation5 + $0x580] sm:$0xff]
    %v2565 = vld [vmem:[#allocation5 + $0x588] sm:$0xff]
    %v2566 = vld [vmem:[#allocation5 + $0x590] sm:$0xff]
    %v2567 = vld [vmem:[#allocation5 + $0x598] sm:$0xff]
    %v2568 = vld [vmem:[#allocation5 + $0x5a0] sm:$0xff]
    %v2569 = vld [vmem:[#allocation5 + $0x5a8] sm:$0xff]
    %v2570 = vld [vmem:[#allocation5 + $0x5b0] sm:$0xff]
    %v2571 = vld [vmem:[#allocation5 + $0x5b8] sm:$0xff]
    %v2572 = vld [vmem:[#allocation5 + $0x5c0] sm:$0xff]
    %v2573 = vld [vmem:[#allocation5 + $0x5c8] sm:$0xff]
    %v2574 = vld [vmem:[#allocation5 + $0x5d0] sm:$0xff]
    %v2575 = vld [vmem:[#allocation5 + $0x5d8] sm:$0xff]
    %v2576 = vld [vmem:[#allocation5 + $0x5e0] sm:$0xff]
    %v2577 = vld [vmem:[#allocation5 + $0x5e8] sm:$0xff]
    %v2578 = vld [vmem:[#allocation5 + $0x5f0] sm:$0xff]
    %v2579 = vld [vmem:[#allocation5 + $0x5f8] sm:$0xff]
    %2580 = vmatprep.subr.mxu0 %v2389
    %2581 = vmatpush1.msra.mxu0 %v2388
    %2582 = vmatprep.subr.mxu0 %v2395
    %2583 = vmatpush1.msra.mxu0 %v2394
    %2584 = vmatprep.subr.mxu0 %v2401
    %2585 = vmatpush1.msra.mxu0 %v2400
    %2586 = vmatprep.subr.mxu0 %v2407
    %2587 = vmatpush1.msra.mxu0 %v2406
    %2588 = vmatprep.subr.mxu0 %v2413
    %2589 = vmatpush1.msra.mxu0 %v2412
    %2590 = vmatprep.subr.mxu0 %v2419
    %2591 = vmatpush1.msra.mxu0 %v2418
    %2592 = vmatprep.subr.mxu0 %v2425
    %2593 = vmatpush1.msra.mxu0 %v2424
    %2594 = vmatprep.subr.mxu0 %v2431
    %2595 = vmatpush1.msra.mxu0 %v2430
    %2596 = vmatprep.subr.mxu0 %v2437
    %2597 = vmatpush1.msra.mxu0 %v2436
    %2598 = vmatprep.subr.mxu0 %v2443
    %2599 = vmatpush1.msra.mxu0 %v2442
    %2600 = vmatprep.subr.mxu0 %v2449
    %2601 = vmatpush1.msra.mxu0 %v2448
    %2602 = vmatprep.subr.mxu0 %v2455
    %2603 = vmatpush1.msra.mxu0 %v2454
    %2604 = vmatprep.subr.mxu0 %v2461
    %2605 = vmatpush1.msra.mxu0 %v2460
    %2606 = vmatprep.subr.mxu0 %v2467
    %2607 = vmatpush1.msra.mxu0 %v2466
    %2608 = vmatprep.subr.mxu0 %v2473
    %2609 = vmatpush1.msra.mxu0 %v2472
    %2610 = vmatprep.subr.mxu0 %v2479
    %2611 = vmatpush1.msra.mxu0 %v2478
    %2612 = vmatprep.subr.mxu0 %v2485
    %2613 = vmatpush1.msra.mxu0 %v2484
    %2614 = vmatprep.subr.mxu0 %v2491
    %2615 = vmatpush1.msra.mxu0 %v2490
    %2616 = vmatprep.subr.mxu0 %v2497
    %2617 = vmatpush1.msra.mxu0 %v2496
    %2618 = vmatprep.subr.mxu0 %v2503
    %2619 = vmatpush1.msra.mxu0 %v2502
    %2620 = vmatprep.subr.mxu0 %v2509
    %2621 = vmatpush1.msra.mxu0 %v2508
    %2622 = vmatprep.subr.mxu0 %v2515
    %2623 = vmatpush1.msra.mxu0 %v2514
    %2624 = vmatprep.subr.mxu0 %v2521
    %2625 = vmatpush1.msra.mxu0 %v2520
    %2626 = vmatprep.subr.mxu0 %v2527
    %2627 = vmatpush1.msra.mxu0 %v2526
    %2628 = vmatprep.subr.mxu0 %v2533
    %2629 = vmatpush1.msra.mxu0 %v2532
    %2630 = vmatprep.subr.mxu0 %v2539
    %2631 = vmatpush1.msra.mxu0 %v2538
    %2632 = vmatprep.subr.mxu0 %v2545
    %2633 = vmatpush1.msra.mxu0 %v2544
    %2634 = vmatprep.subr.mxu0 %v2551
    %2635 = vmatpush1.msra.mxu0 %v2550
    %2636 = vmatprep.subr.mxu0 %v2557
    %2637 = vmatpush1.msra.mxu0 %v2556
    %2638 = vmatprep.subr.mxu0 %v2563
    %2639 = vmatpush1.msra.mxu0 %v2562
    %2640 = vmatprep.subr.mxu0 %v2569
    %2641 = vmatpush1.msra.mxu0 %v2568
    %2642 = vmatprep.subr.mxu0 %v2575
    %2643 = vmatpush1.msra.mxu0 %v2574
    %2644 = vmatprep.mubr.f32.mxu0 %v2373
    %2645 = vmatmul.mubr.f32.gmra.mrb[0].mxu0 %v2372
    %v2646 = vpop.f32.mrb[0].mxu0
    %v2647 = vadd.f32 0.0, %v2646
    %v2648 = vpop.f32.mrb[0].mxu0
    %v2649 = vadd.f32 0.0, %v2648
    %2650 = vdwg.mxu0
    %2651 = vmatprep.subr.mxu0 %v2391
    %2652 = vmatpush1.msra.mxu0 %v2390
    %2653 = vmatprep.subr.mxu0 %v2397
    %2654 = vmatpush1.msra.mxu0 %v2396
    %2655 = vmatprep.subr.mxu0 %v2403
    %2656 = vmatpush1.msra.mxu0 %v2402
    %2657 = vmatprep.subr.mxu0 %v2409
    %2658 = vmatpush1.msra.mxu0 %v2408
    %2659 = vmatprep.subr.mxu0 %v2415
    %2660 = vmatpush1.msra.mxu0 %v2414
    %2661 = vmatprep.subr.mxu0 %v2421
    %2662 = vmatpush1.msra.mxu0 %v2420
    %2663 = vmatprep.subr.mxu0 %v2427
    %2664 = vmatpush1.msra.mxu0 %v2426
    %2665 = vmatprep.subr.mxu0 %v2433
    %2666 = vmatpush1.msra.mxu0 %v2432
    %2667 = vmatprep.subr.mxu0 %v2439
    %2668 = vmatpush1.msra.mxu0 %v2438
    %2669 = vmatprep.subr.mxu0 %v2445
    %2670 = vmatpush1.msra.mxu0 %v2444
    %2671 = vmatprep.subr.mxu0 %v2451
    %2672 = vmatpush1.msra.mxu0 %v2450
    %2673 = vmatprep.subr.mxu0 %v2457
    %2674 = vmatpush1.msra.mxu0 %v2456
    %2675 = vmatprep.subr.mxu0 %v2463
    %2676 = vmatpush1.msra.mxu0 %v2462
    %2677 = vmatprep.subr.mxu0 %v2469
    %2678 = vmatpush1.msra.mxu0 %v2468
    %2679 = vmatprep.subr.mxu0 %v2475
    %2680 = vmatpush1.msra.mxu0 %v2474
    %2681 = vmatprep.subr.mxu0 %v2481
    %2682 = vmatpush1.msra.mxu0 %v2480
    %2683 = vmatprep.subr.mxu0 %v2487
    %2684 = vmatpush1.msra.mxu0 %v2486
    %2685 = vmatprep.subr.mxu0 %v2493
    %2686 = vmatpush1.msra.mxu0 %v2492
    %2687 = vmatprep.subr.mxu0 %v2499
    %2688 = vmatpush1.msra.mxu0 %v2498
    %2689 = vmatprep.subr.mxu0 %v2505
    %2690 = vmatpush1.msra.mxu0 %v2504
    %2691 = vmatprep.subr.mxu0 %v2511
    %2692 = vmatpush1.msra.mxu0 %v2510
    %2693 = vmatprep.subr.mxu0 %v2517
    %2694 = vmatpush1.msra.mxu0 %v2516
    %2695 = vmatprep.subr.mxu0 %v2523
    %2696 = vmatpush1.msra.mxu0 %v2522
    %2697 = vmatprep.subr.mxu0 %v2529
    %2698 = vmatpush1.msra.mxu0 %v2528
    %2699 = vmatprep.subr.mxu0 %v2535
    %2700 = vmatpush1.msra.mxu0 %v2534
    %2701 = vmatprep.subr.mxu0 %v2541
    %2702 = vmatpush1.msra.mxu0 %v2540
    %2703 = vmatprep.subr.mxu0 %v2547
    %2704 = vmatpush1.msra.mxu0 %v2546
    %2705 = vmatprep.subr.mxu0 %v2553
    %2706 = vmatpush1.msra.mxu0 %v2552
    %2707 = vmatprep.subr.mxu0 %v2559
    %2708 = vmatpush1.msra.mxu0 %v2558
    %2709 = vmatprep.subr.mxu0 %v2565
    %2710 = vmatpush1.msra.mxu0 %v2564
    %2711 = vmatprep.subr.mxu0 %v2571
    %2712 = vmatpush1.msra.mxu0 %v2570
    %2713 = vmatprep.subr.mxu0 %v2577
    %2714 = vmatpush1.msra.mxu0 %v2576
    %2715 = vmatprep.mubr.f32.mxu0 %v2373
    %2716 = vmatmul.mubr.f32.gmra.mrb[0].mxu0 %v2372
    %v2717 = vpop.f32.mrb[0].mxu0
    %v2718 = vadd.f32 0.0, %v2717
    %v2719 = vpop.f32.mrb[0].mxu0
    %v2720 = vadd.f32 0.0, %v2719
    %2721 = vdwg.mxu0
    %2722 = vmatprep.subr.mxu0 %v2393
    %2723 = vmatpush1.msra.mxu0 %v2392
    %2724 = vmatprep.subr.mxu0 %v2399
    %2725 = vmatpush1.msra.mxu0 %v2398
    %2726 = vmatprep.subr.mxu0 %v2405
    %2727 = vmatpush1.msra.mxu0 %v2404
    %2728 = vmatprep.subr.mxu0 %v2411
    %2729 = vmatpush1.msra.mxu0 %v2410
    %2730 = vmatprep.subr.mxu0 %v2417
    %2731 = vmatpush1.msra.mxu0 %v2416
    %2732 = vmatprep.subr.mxu0 %v2423
    %2733 = vmatpush1.msra.mxu0 %v2422
    %2734 = vmatprep.subr.mxu0 %v2429
    %2735 = vmatpush1.msra.mxu0 %v2428
    %2736 = vmatprep.subr.mxu0 %v2435
    %2737 = vmatpush1.msra.mxu0 %v2434
    %2738 = vmatprep.subr.mxu0 %v2441
    %2739 = vmatpush1.msra.mxu0 %v2440
    %2740 = vmatprep.subr.mxu0 %v2447
    %2741 = vmatpush1.msra.mxu0 %v2446
    %2742 = vmatprep.subr.mxu0 %v2453
    %2743 = vmatpush1.msra.mxu0 %v2452
    %2744 = vmatprep.subr.mxu0 %v2459
    %2745 = vmatpush1.msra.mxu0 %v2458
    %2746 = vmatprep.subr.mxu0 %v2465
    %2747 = vmatpush1.msra.mxu0 %v2464
    %2748 = vmatprep.subr.mxu0 %v2471
    %2749 = vmatpush1.msra.mxu0 %v2470
    %2750 = vmatprep.subr.mxu0 %v2477
    %2751 = vmatpush1.msra.mxu0 %v2476
    %2752 = vmatprep.subr.mxu0 %v2483
    %2753 = vmatpush1.msra.mxu0 %v2482
    %2754 = vmatprep.subr.mxu0 %v2489
    %2755 = vmatpush1.msra.mxu0 %v2488
    %2756 = vmatprep.subr.mxu0 %v2495
    %2757 = vmatpush1.msra.mxu0 %v2494
    %2758 = vmatprep.subr.mxu0 %v2501
    %2759 = vmatpush1.msra.mxu0 %v2500
    %2760 = vmatprep.subr.mxu0 %v2507
    %2761 = vmatpush1.msra.mxu0 %v2506
    %2762 = vmatprep.subr.mxu0 %v2513
    %2763 = vmatpush1.msra.mxu0 %v2512
    %2764 = vmatprep.subr.mxu0 %v2519
    %2765 = vmatpush1.msra.mxu0 %v2518
    %2766 = vmatprep.subr.mxu0 %v2525
    %2767 = vmatpush1.msra.mxu0 %v2524
    %2768 = vmatprep.subr.mxu0 %v2531
    %2769 = vmatpush1.msra.mxu0 %v2530
    %2770 = vmatprep.subr.mxu0 %v2537
    %2771 = vmatpush1.msra.mxu0 %v2536
    %2772 = vmatprep.subr.mxu0 %v2543
    %2773 = vmatpush1.msra.mxu0 %v2542
    %2774 = vmatprep.subr.mxu0 %v2549
    %2775 = vmatpush1.msra.mxu0 %v2548
    %2776 = vmatprep.subr.mxu0 %v2555
    %2777 = vmatpush1.msra.mxu0 %v2554
    %2778 = vmatprep.subr.mxu0 %v2561
    %2779 = vmatpush1.msra.mxu0 %v2560
    %2780 = vmatprep.subr.mxu0 %v2567
    %2781 = vmatpush1.msra.mxu0 %v2566
    %2782 = vmatprep.subr.mxu0 %v2573
    %2783 = vmatpush1.msra.mxu0 %v2572
    %2784 = vmatprep.subr.mxu0 %v2579
    %2785 = vmatpush1.msra.mxu0 %v2578
    %2786 = vmatprep.mubr.f32.mxu0 %v2373
    %2787 = vmatmul.mubr.f32.gmra.mrb[0].mxu0 %v2372
    %v2788 = vpop.f32.mrb[0].mxu0
    %v2789 = vadd.f32 0.0, %v2788
    %v2790 = vpop.f32.mrb[0].mxu0
    %v2791 = vadd.f32 0.0, %v2790
    %2792 = vdwg.mxu0
    %v2793 = vadd.f32 %v2382, %v2647
    %v2794 = vadd.f32 %v2383, %v2649
    %v2795 = vxor.u32 %v2793, 2147483648
    %v2796 = vxor.u32 %v2794, 2147483648
    %v2797 = vmul.f32 %v2795, 1.442695
    %v2798 = vpow.pop %v2797
    %v2799 = vmul.f32 %v2796, 1.442695
    %v2800 = vpow.pop %v2799
    %v2801 = vadd.f32 %v2798, 1.0
    %v2802 = vadd.f32 %v2800, 1.0
    %v2803 = vrcp.pop %v2801
    %v2804 = vmul.f32 1.0, %v2803
    %v2805 = vrcp.pop %v2802
    %v2806 = vmul.f32 1.0, %v2805
    %v2807 = vadd.f32 %v2384, %v2718
    %v2808 = vadd.f32 %v2385, %v2720
    %v2809 = vxor.u32 %v2807, 2147483648
    %v2810 = vxor.u32 %v2808, 2147483648
    %v2811 = vmul.f32 %v2809, 1.442695
    %v2812 = vpow.pop %v2811
    %v2813 = vmul.f32 %v2810, 1.442695
    %v2814 = vpow.pop %v2813
    %v2815 = vadd.f32 %v2812, 1.0
    %v2816 = vadd.f32 %v2814, 1.0
    %v2817 = vrcp.pop %v2815
    %v2818 = vmul.f32 1.0, %v2817
    %v2819 = vrcp.pop %v2816
    %v2820 = vmul.f32 1.0, %v2819
    %v2821 = vadd.f32 %v2789, %v518
    %v2822 = vadd.f32 %v2791, %v522
    %v2823 = vmul.f32 %v2804, %v2821
    %v2824 = vmul.f32 %v2806, %v2822
    %v2825 = vadd.f32 %v2386, %v2823
    %v2826 = vadd.f32 %v2387, %v2824
    %v2827 = vtanh.pop %v2825
    %v2828 = vtanh.pop %v2826
    %v2829 = vsub.f32 1.0, %v2818
    %v2830 = vsub.f32 1.0, %v2820
    %v2831 = vmul.f32 %v2829, %v2827
    %v2832 = vmul.f32 %v2830, %v2828
    %v2833 = vmul.f32 %v2818, %v2372
    %v2834 = vmul.f32 %v2820, %v2373
    %v2835 = vadd.f32 %v2831, %v2833
    %v2836 = vadd.f32 %v2832, %v2834
    %s2837 = smul.u32 4, 2
    %s2838 = smul.addr %s2837, 8
    %s2839 = scalar_lea.vmem [#allocation4], %s2838
    %2840 = vst [vmem:[%s2839] sm:$0xff] %v2835
    %2841 = vst [vmem:[%s2839 + $0x8] sm:$0xff] %v2836
    %s2842 = smul.u32 5, 6
    %s2843 = smul.addr %s2842, 8
    %s2844 = scalar_lea.vmem [#allocation3], %s2843
    %v2845 = vld [vmem:[%s2844] sm:$0xff]
    %v2846 = vld [vmem:[%s2844 + $0x8] sm:$0xff]
    %v2847 = vld [vmem:[%s2844 + $0x10] sm:$0xff]
    %v2848 = vld [vmem:[%s2844 + $0x18] sm:$0xff]
    %v2849 = vld [vmem:[%s2844 + $0x20] sm:$0xff]
    %v2850 = vld [vmem:[%s2844 + $0x28] sm:$0xff]
    %v2851 = vld [vmem:[#allocation5] sm:$0xff]
    %v2852 = vld [vmem:[#allocation5 + $0x8] sm:$0xff]
    %v2853 = vld [vmem:[#allocation5 + $0x10] sm:$0xff]
    %v2854 = vld [vmem:[#allocation5 + $0x18] sm:$0xff]
    %v2855 = vld [vmem:[#allocation5 + $0x20] sm:$0xff]
    %v2856 = vld [vmem:[#allocation5 + $0x28] sm:$0xff]
    %v2857 = vld [vmem:[#allocation5 + $0x30] sm:$0xff]
    %v2858 = vld [vmem:[#allocation5 + $0x38] sm:$0xff]
    %v2859 = vld [vmem:[#allocation5 + $0x40] sm:$0xff]
    %v2860 = vld [vmem:[#allocation5 + $0x48] sm:$0xff]
    %v2861 = vld [vmem:[#allocation5 + $0x50] sm:$0xff]
    %v2862 = vld [vmem:[#allocation5 + $0x58] sm:$0xff]
    %v2863 = vld [vmem:[#allocation5 + $0x60] sm:$0xff]
    %v2864 = vld [vmem:[#allocation5 + $0x68] sm:$0xff]
    %v2865 = vld [vmem:[#allocation5 + $0x70] sm:$0xff]
    %v2866 = vld [vmem:[#allocation5 + $0x78] sm:$0xff]
    %v2867 = vld [vmem:[#allocation5 + $0x80] sm:$0xff]
    %v2868 = vld [vmem:[#allocation5 + $0x88] sm:$0xff]
    %v2869 = vld [vmem:[#allocation5 + $0x90] sm:$0xff]
    %v2870 = vld [vmem:[#allocation5 + $0x98] sm:$0xff]
    %v2871 = vld [vmem:[#allocation5 + $0xa0] sm:$0xff]
    %v2872 = vld [vmem:[#allocation5 + $0xa8] sm:$0xff]
    %v2873 = vld [vmem:[#allocation5 + $0xb0] sm:$0xff]
    %v2874 = vld [vmem:[#allocation5 + $0xb8] sm:$0xff]
    %v2875 = vld [vmem:[#allocation5 + $0xc0] sm:$0xff]
    %v2876 = vld [vmem:[#allocation5 + $0xc8] sm:$0xff]
    %v2877 = vld [vmem:[#allocation5 + $0xd0] sm:$0xff]
    %v2878 = vld [vmem:[#allocation5 + $0xd8] sm:$0xff]
    %v2879 = vld [vmem:[#allocation5 + $0xe0] sm:$0xff]
    %v2880 = vld [vmem:[#allocation5 + $0xe8] sm:$0xff]
    %v2881 = vld [vmem:[#allocation5 + $0xf0] sm:$0xff]
    %v2882 = vld [vmem:[#allocation5 + $0xf8] sm:$0xff]
    %v2883 = vld [vmem:[#allocation5 + $0x100] sm:$0xff]
    %v2884 = vld [vmem:[#allocation5 + $0x108] sm:$0xff]
    %v2885 = vld [vmem:[#allocation5 + $0x110] sm:$0xff]
    %v2886 = vld [vmem:[#allocation5 + $0x118] sm:$0xff]
    %v2887 = vld [vmem:[#allocation5 + $0x120] sm:$0xff]
    %v2888 = vld [vmem:[#allocation5 + $0x128] sm:$0xff]
    %v2889 = vld [vmem:[#allocation5 + $0x130] sm:$0xff]
    %v2890 = vld [vmem:[#allocation5 + $0x138] sm:$0xff]
    %v2891 = vld [vmem:[#allocation5 + $0x140] sm:$0xff]
    %v2892 = vld [vmem:[#allocation5 + $0x148] sm:$0xff]
    %v2893 = vld [vmem:[#allocation5 + $0x150] sm:$0xff]
    %v2894 = vld [vmem:[#allocation5 + $0x158] sm:$0xff]
    %v2895 = vld [vmem:[#allocation5 + $0x160] sm:$0xff]
    %v2896 = vld [vmem:[#allocation5 + $0x168] sm:$0xff]
    %v2897 = vld [vmem:[#allocation5 + $0x170] sm:$0xff]
    %v2898 = vld [vmem:[#allocation5 + $0x178] sm:$0xff]
    %v2899 = vld [vmem:[#allocation5 + $0x180] sm:$0xff]
    %v2900 = vld [vmem:[#allocation5 + $0x188] sm:$0xff]
    %v2901 = vld [vmem:[#allocation5 + $0x190] sm:$0xff]
    %v2902 = vld [vmem:[#allocation5 + $0x198] sm:$0xff]
    %v2903 = vld [vmem:[#allocation5 + $0x1a0] sm:$0xff]
    %v2904 = vld [vmem:[#allocation5 + $0x1a8] sm:$0xff]
    %v2905 = vld [vmem:[#allocation5 + $0x1b0] sm:$0xff]
    %v2906 = vld [vmem:[#allocation5 + $0x1b8] sm:$0xff]
    %v2907 = vld [vmem:[#allocation5 + $0x1c0] sm:$0xff]
    %v2908 = vld [vmem:[#allocation5 + $0x1c8] sm:$0xff]
    %v2909 = vld [vmem:[#allocation5 + $0x1d0] sm:$0xff]
    %v2910 = vld [vmem:[#allocation5 + $0x1d8] sm:$0xff]
    %v2911 = vld [vmem:[#allocation5 + $0x1e0] sm:$0xff]
    %v2912 = vld [vmem:[#allocation5 + $0x1e8] sm:$0xff]
    %v2913 = vld [vmem:[#allocation5 + $0x1f0] sm:$0xff]
    %v2914 = vld [vmem:[#allocation5 + $0x1f8] sm:$0xff]
    %v2915 = vld [vmem:[#allocation5 + $0x200] sm:$0xff]
    %v2916 = vld [vmem:[#allocation5 + $0x208] sm:$0xff]
    %v2917 = vld [vmem:[#allocation5 + $0x210] sm:$0xff]
    %v2918 = vld [vmem:[#allocation5 + $0x218] sm:$0xff]
    %v2919 = vld [vmem:[#allocation5 + $0x220] sm:$0xff]
    %v2920 = vld [vmem:[#allocation5 + $0x228] sm:$0xff]
    %v2921 = vld [vmem:[#allocation5 + $0x230] sm:$0xff]
    %v2922 = vld [vmem:[#allocation5 + $0x238] sm:$0xff]
    %v2923 = vld [vmem:[#allocation5 + $0x240] sm:$0xff]
    %v2924 = vld [vmem:[#allocation5 + $0x248] sm:$0xff]
    %v2925 = vld [vmem:[#allocation5 + $0x250] sm:$0xff]
    %v2926 = vld [vmem:[#allocation5 + $0x258] sm:$0xff]
    %v2927 = vld [vmem:[#allocation5 + $0x260] sm:$0xff]
    %v2928 = vld [vmem:[#allocation5 + $0x268] sm:$0xff]
    %v2929 = vld [vmem:[#allocation5 + $0x270] sm:$0xff]
    %v2930 = vld [vmem:[#allocation5 + $0x278] sm:$0xff]
    %v2931 = vld [vmem:[#allocation5 + $0x280] sm:$0xff]
    %v2932 = vld [vmem:[#allocation5 + $0x288] sm:$0xff]
    %v2933 = vld [vmem:[#allocation5 + $0x290] sm:$0xff]
    %v2934 = vld [vmem:[#allocation5 + $0x298] sm:$0xff]
    %v2935 = vld [vmem:[#allocation5 + $0x2a0] sm:$0xff]
    %v2936 = vld [vmem:[#allocation5 + $0x2a8] sm:$0xff]
    %v2937 = vld [vmem:[#allocation5 + $0x2b0] sm:$0xff]
    %v2938 = vld [vmem:[#allocation5 + $0x2b8] sm:$0xff]
    %v2939 = vld [vmem:[#allocation5 + $0x2c0] sm:$0xff]
    %v2940 = vld [vmem:[#allocation5 + $0x2c8] sm:$0xff]
    %v2941 = vld [vmem:[#allocation5 + $0x2d0] sm:$0xff]
    %v2942 = vld [vmem:[#allocation5 + $0x2d8] sm:$0xff]
    %v2943 = vld [vmem:[#allocation5 + $0x2e0] sm:$0xff]
    %v2944 = vld [vmem:[#allocation5 + $0x2e8] sm:$0xff]
    %v2945 = vld [vmem:[#allocation5 + $0x2f0] sm:$0xff]
    %v2946 = vld [vmem:[#allocation5 + $0x2f8] sm:$0xff]
    %v2947 = vld [vmem:[#allocation5 + $0x300] sm:$0xff]
    %v2948 = vld [vmem:[#allocation5 + $0x308] sm:$0xff]
    %v2949 = vld [vmem:[#allocation5 + $0x310] sm:$0xff]
    %v2950 = vld [vmem:[#allocation5 + $0x318] sm:$0xff]
    %v2951 = vld [vmem:[#allocation5 + $0x320] sm:$0xff]
    %v2952 = vld [vmem:[#allocation5 + $0x328] sm:$0xff]
    %v2953 = vld [vmem:[#allocation5 + $0x330] sm:$0xff]
    %v2954 = vld [vmem:[#allocation5 + $0x338] sm:$0xff]
    %v2955 = vld [vmem:[#allocation5 + $0x340] sm:$0xff]
    %v2956 = vld [vmem:[#allocation5 + $0x348] sm:$0xff]
    %v2957 = vld [vmem:[#allocation5 + $0x350] sm:$0xff]
    %v2958 = vld [vmem:[#allocation5 + $0x358] sm:$0xff]
    %v2959 = vld [vmem:[#allocation5 + $0x360] sm:$0xff]
    %v2960 = vld [vmem:[#allocation5 + $0x368] sm:$0xff]
    %v2961 = vld [vmem:[#allocation5 + $0x370] sm:$0xff]
    %v2962 = vld [vmem:[#allocation5 + $0x378] sm:$0xff]
    %v2963 = vld [vmem:[#allocation5 + $0x380] sm:$0xff]
    %v2964 = vld [vmem:[#allocation5 + $0x388] sm:$0xff]
    %v2965 = vld [vmem:[#allocation5 + $0x390] sm:$0xff]
    %v2966 = vld [vmem:[#allocation5 + $0x398] sm:$0xff]
    %v2967 = vld [vmem:[#allocation5 + $0x3a0] sm:$0xff]
    %v2968 = vld [vmem:[#allocation5 + $0x3a8] sm:$0xff]
    %v2969 = vld [vmem:[#allocation5 + $0x3b0] sm:$0xff]
    %v2970 = vld [vmem:[#allocation5 + $0x3b8] sm:$0xff]
    %v2971 = vld [vmem:[#allocation5 + $0x3c0] sm:$0xff]
    %v2972 = vld [vmem:[#allocation5 + $0x3c8] sm:$0xff]
    %v2973 = vld [vmem:[#allocation5 + $0x3d0] sm:$0xff]
    %v2974 = vld [vmem:[#allocation5 + $0x3d8] sm:$0xff]
    %v2975 = vld [vmem:[#allocation5 + $0x3e0] sm:$0xff]
    %v2976 = vld [vmem:[#allocation5 + $0x3e8] sm:$0xff]
    %v2977 = vld [vmem:[#allocation5 + $0x3f0] sm:$0xff]
    %v2978 = vld [vmem:[#allocation5 + $0x3f8] sm:$0xff]
    %v2979 = vld [vmem:[#allocation5 + $0x400] sm:$0xff]
    %v2980 = vld [vmem:[#allocation5 + $0x408] sm:$0xff]
    %v2981 = vld [vmem:[#allocation5 + $0x410] sm:$0xff]
    %v2982 = vld [vmem:[#allocation5 + $0x418] sm:$0xff]
    %v2983 = vld [vmem:[#allocation5 + $0x420] sm:$0xff]
    %v2984 = vld [vmem:[#allocation5 + $0x428] sm:$0xff]
    %v2985 = vld [vmem:[#allocation5 + $0x430] sm:$0xff]
    %v2986 = vld [vmem:[#allocation5 + $0x438] sm:$0xff]
    %v2987 = vld [vmem:[#allocation5 + $0x440] sm:$0xff]
    %v2988 = vld [vmem:[#allocation5 + $0x448] sm:$0xff]
    %v2989 = vld [vmem:[#allocation5 + $0x450] sm:$0xff]
    %v2990 = vld [vmem:[#allocation5 + $0x458] sm:$0xff]
    %v2991 = vld [vmem:[#allocation5 + $0x460] sm:$0xff]
    %v2992 = vld [vmem:[#allocation5 + $0x468] sm:$0xff]
    %v2993 = vld [vmem:[#allocation5 + $0x470] sm:$0xff]
    %v2994 = vld [vmem:[#allocation5 + $0x478] sm:$0xff]
    %v2995 = vld [vmem:[#allocation5 + $0x480] sm:$0xff]
    %v2996 = vld [vmem:[#allocation5 + $0x488] sm:$0xff]
    %v2997 = vld [vmem:[#allocation5 + $0x490] sm:$0xff]
    %v2998 = vld [vmem:[#allocation5 + $0x498] sm:$0xff]
    %v2999 = vld [vmem:[#allocation5 + $0x4a0] sm:$0xff]
    %v3000 = vld [vmem:[#allocation5 + $0x4a8] sm:$0xff]
    %v3001 = vld [vmem:[#allocation5 + $0x4b0] sm:$0xff]
    %v3002 = vld [vmem:[#allocation5 + $0x4b8] sm:$0xff]
    %v3003 = vld [vmem:[#allocation5 + $0x4c0] sm:$0xff]
    %v3004 = vld [vmem:[#allocation5 + $0x4c8] sm:$0xff]
    %v3005 = vld [vmem:[#allocation5 + $0x4d0] sm:$0xff]
    %v3006 = vld [vmem:[#allocation5 + $0x4d8] sm:$0xff]
    %v3007 = vld [vmem:[#allocation5 + $0x4e0] sm:$0xff]
    %v3008 = vld [vmem:[#allocation5 + $0x4e8] sm:$0xff]
    %v3009 = vld [vmem:[#allocation5 + $0x4f0] sm:$0xff]
    %v3010 = vld [vmem:[#allocation5 + $0x4f8] sm:$0xff]
    %v3011 = vld [vmem:[#allocation5 + $0x500] sm:$0xff]
    %v3012 = vld [vmem:[#allocation5 + $0x508] sm:$0xff]
    %v3013 = vld [vmem:[#allocation5 + $0x510] sm:$0xff]
    %v3014 = vld [vmem:[#allocation5 + $0x518] sm:$0xff]
    %v3015 = vld [vmem:[#allocation5 + $0x520] sm:$0xff]
    %v3016 = vld [vmem:[#allocation5 + $0x528] sm:$0xff]
    %v3017 = vld [vmem:[#allocation5 + $0x530] sm:$0xff]
    %v3018 = vld [vmem:[#allocation5 + $0x538] sm:$0xff]
    %v3019 = vld [vmem:[#allocation5 + $0x540] sm:$0xff]
    %v3020 = vld [vmem:[#allocation5 + $0x548] sm:$0xff]
    %v3021 = vld [vmem:[#allocation5 + $0x550] sm:$0xff]
    %v3022 = vld [vmem:[#allocation5 + $0x558] sm:$0xff]
    %v3023 = vld [vmem:[#allocation5 + $0x560] sm:$0xff]
    %v3024 = vld [vmem:[#allocation5 + $0x568] sm:$0xff]
    %v3025 = vld [vmem:[#allocation5 + $0x570] sm:$0xff]
    %v3026 = vld [vmem:[#allocation5 + $0x578] sm:$0xff]
    %v3027 = vld [vmem:[#allocation5 + $0x580] sm:$0xff]
    %v3028 = vld [vmem:[#allocation5 + $0x588] sm:$0xff]
    %v3029 = vld [vmem:[#allocation5 + $0x590] sm:$0xff]
    %v3030 = vld [vmem:[#allocation5 + $0x598] sm:$0xff]
    %v3031 = vld [vmem:[#allocation5 + $0x5a0] sm:$0xff]
    %v3032 = vld [vmem:[#allocation5 + $0x5a8] sm:$0xff]
    %v3033 = vld [vmem:[#allocation5 + $0x5b0] sm:$0xff]
    %v3034 = vld [vmem:[#allocation5 + $0x5b8] sm:$0xff]
    %v3035 = vld [vmem:[#allocation5 + $0x5c0] sm:$0xff]
    %v3036 = vld [vmem:[#allocation5 + $0x5c8] sm:$0xff]
    %v3037 = vld [vmem:[#allocation5 + $0x5d0] sm:$0xff]
    %v3038 = vld [vmem:[#allocation5 + $0x5d8] sm:$0xff]
    %v3039 = vld [vmem:[#allocation5 + $0x5e0] sm:$0xff]
    %v3040 = vld [vmem:[#allocation5 + $0x5e8] sm:$0xff]
    %v3041 = vld [vmem:[#allocation5 + $0x5f0] sm:$0xff]
    %v3042 = vld [vmem:[#allocation5 + $0x5f8] sm:$0xff]
    %3043 = vmatprep.subr.mxu0 %v2852
    %3044 = vmatpush1.msra.mxu0 %v2851
    %3045 = vmatprep.subr.mxu0 %v2858
    %3046 = vmatpush1.msra.mxu0 %v2857
    %3047 = vmatprep.subr.mxu0 %v2864
    %3048 = vmatpush1.msra.mxu0 %v2863
    %3049 = vmatprep.subr.mxu0 %v2870
    %3050 = vmatpush1.msra.mxu0 %v2869
    %3051 = vmatprep.subr.mxu0 %v2876
    %3052 = vmatpush1.msra.mxu0 %v2875
    %3053 = vmatprep.subr.mxu0 %v2882
    %3054 = vmatpush1.msra.mxu0 %v2881
    %3055 = vmatprep.subr.mxu0 %v2888
    %3056 = vmatpush1.msra.mxu0 %v2887
    %3057 = vmatprep.subr.mxu0 %v2894
    %3058 = vmatpush1.msra.mxu0 %v2893
    %3059 = vmatprep.subr.mxu0 %v2900
    %3060 = vmatpush1.msra.mxu0 %v2899
    %3061 = vmatprep.subr.mxu0 %v2906
    %3062 = vmatpush1.msra.mxu0 %v2905
    %3063 = vmatprep.subr.mxu0 %v2912
    %3064 = vmatpush1.msra.mxu0 %v2911
    %3065 = vmatprep.subr.mxu0 %v2918
    %3066 = vmatpush1.msra.mxu0 %v2917
    %3067 = vmatprep.subr.mxu0 %v2924
    %3068 = vmatpush1.msra.mxu0 %v2923
    %3069 = vmatprep.subr.mxu0 %v2930
    %3070 = vmatpush1.msra.mxu0 %v2929
    %3071 = vmatprep.subr.mxu0 %v2936
    %3072 = vmatpush1.msra.mxu0 %v2935
    %3073 = vmatprep.subr.mxu0 %v2942
    %3074 = vmatpush1.msra.mxu0 %v2941
    %3075 = vmatprep.subr.mxu0 %v2948
    %3076 = vmatpush1.msra.mxu0 %v2947
    %3077 = vmatprep.subr.mxu0 %v2954
    %3078 = vmatpush1.msra.mxu0 %v2953
    %3079 = vmatprep.subr.mxu0 %v2960
    %3080 = vmatpush1.msra.mxu0 %v2959
    %3081 = vmatprep.subr.mxu0 %v2966
    %3082 = vmatpush1.msra.mxu0 %v2965
    %3083 = vmatprep.subr.mxu0 %v2972
    %3084 = vmatpush1.msra.mxu0 %v2971
    %3085 = vmatprep.subr.mxu0 %v2978
    %3086 = vmatpush1.msra.mxu0 %v2977
    %3087 = vmatprep.subr.mxu0 %v2984
    %3088 = vmatpush1.msra.mxu0 %v2983
    %3089 = vmatprep.subr.mxu0 %v2990
    %3090 = vmatpush1.msra.mxu0 %v2989
    %3091 = vmatprep.subr.mxu0 %v2996
    %3092 = vmatpush1.msra.mxu0 %v2995
    %3093 = vmatprep.subr.mxu0 %v3002
    %3094 = vmatpush1.msra.mxu0 %v3001
    %3095 = vmatprep.subr.mxu0 %v3008
    %3096 = vmatpush1.msra.mxu0 %v3007
    %3097 = vmatprep.subr.mxu0 %v3014
    %3098 = vmatpush1.msra.mxu0 %v3013
    %3099 = vmatprep.subr.mxu0 %v3020
    %3100 = vmatpush1.msra.mxu0 %v3019
    %3101 = vmatprep.subr.mxu0 %v3026
    %3102 = vmatpush1.msra.mxu0 %v3025
    %3103 = vmatprep.subr.mxu0 %v3032
    %3104 = vmatpush1.msra.mxu0 %v3031
    %3105 = vmatprep.subr.mxu0 %v3038
    %3106 = vmatpush1.msra.mxu0 %v3037
    %3107 = vmatprep.mubr.f32.mxu0 %v2836
    %3108 = vmatmul.mubr.f32.gmra.mrb[0].mxu0 %v2835
    %v3109 = vpop.f32.mrb[0].mxu0
    %v3110 = vadd.f32 0.0, %v3109
    %v3111 = vpop.f32.mrb[0].mxu0
    %v3112 = vadd.f32 0.0, %v3111
    %3113 = vdwg.mxu0
    %3114 = vmatprep.subr.mxu0 %v2854
    %3115 = vmatpush1.msra.mxu0 %v2853
    %3116 = vmatprep.subr.mxu0 %v2860
    %3117 = vmatpush1.msra.mxu0 %v2859
    %3118 = vmatprep.subr.mxu0 %v2866
    %3119 = vmatpush1.msra.mxu0 %v2865
    %3120 = vmatprep.subr.mxu0 %v2872
    %3121 = vmatpush1.msra.mxu0 %v2871
    %3122 = vmatprep.subr.mxu0 %v2878
    %3123 = vmatpush1.msra.mxu0 %v2877
    %3124 = vmatprep.subr.mxu0 %v2884
    %3125 = vmatpush1.msra.mxu0 %v2883
    %3126 = vmatprep.subr.mxu0 %v2890
    %3127 = vmatpush1.msra.mxu0 %v2889
    %3128 = vmatprep.subr.mxu0 %v2896
    %3129 = vmatpush1.msra.mxu0 %v2895
    %3130 = vmatprep.subr.mxu0 %v2902
    %3131 = vmatpush1.msra.mxu0 %v2901
    %3132 = vmatprep.subr.mxu0 %v2908
    %3133 = vmatpush1.msra.mxu0 %v2907
    %3134 = vmatprep.subr.mxu0 %v2914
    %3135 = vmatpush1.msra.mxu0 %v2913
    %3136 = vmatprep.subr.mxu0 %v2920
    %3137 = vmatpush1.msra.mxu0 %v2919
    %3138 = vmatprep.subr.mxu0 %v2926
    %3139 = vmatpush1.msra.mxu0 %v2925
    %3140 = vmatprep.subr.mxu0 %v2932
    %3141 = vmatpush1.msra.mxu0 %v2931
    %3142 = vmatprep.subr.mxu0 %v2938
    %3143 = vmatpush1.msra.mxu0 %v2937
    %3144 = vmatprep.subr.mxu0 %v2944
    %3145 = vmatpush1.msra.mxu0 %v2943
    %3146 = vmatprep.subr.mxu0 %v2950
    %3147 = vmatpush1.msra.mxu0 %v2949
    %3148 = vmatprep.subr.mxu0 %v2956
    %3149 = vmatpush1.msra.mxu0 %v2955
    %3150 = vmatprep.subr.mxu0 %v2962
    %3151 = vmatpush1.msra.mxu0 %v2961
    %3152 = vmatprep.subr.mxu0 %v2968
    %3153 = vmatpush1.msra.mxu0 %v2967
    %3154 = vmatprep.subr.mxu0 %v2974
    %3155 = vmatpush1.msra.mxu0 %v2973
    %3156 = vmatprep.subr.mxu0 %v2980
    %3157 = vmatpush1.msra.mxu0 %v2979
    %3158 = vmatprep.subr.mxu0 %v2986
    %3159 = vmatpush1.msra.mxu0 %v2985
    %3160 = vmatprep.subr.mxu0 %v2992
    %3161 = vmatpush1.msra.mxu0 %v2991
    %3162 = vmatprep.subr.mxu0 %v2998
    %3163 = vmatpush1.msra.mxu0 %v2997
    %3164 = vmatprep.subr.mxu0 %v3004
    %3165 = vmatpush1.msra.mxu0 %v3003
    %3166 = vmatprep.subr.mxu0 %v3010
    %3167 = vmatpush1.msra.mxu0 %v3009
    %3168 = vmatprep.subr.mxu0 %v3016
    %3169 = vmatpush1.msra.mxu0 %v3015
    %3170 = vmatprep.subr.mxu0 %v3022
    %3171 = vmatpush1.msra.mxu0 %v3021
    %3172 = vmatprep.subr.mxu0 %v3028
    %3173 = vmatpush1.msra.mxu0 %v3027
    %3174 = vmatprep.subr.mxu0 %v3034
    %3175 = vmatpush1.msra.mxu0 %v3033
    %3176 = vmatprep.subr.mxu0 %v3040
    %3177 = vmatpush1.msra.mxu0 %v3039
    %3178 = vmatprep.mubr.f32.mxu0 %v2836
    %3179 = vmatmul.mubr.f32.gmra.mrb[0].mxu0 %v2835
    %v3180 = vpop.f32.mrb[0].mxu0
    %v3181 = vadd.f32 0.0, %v3180
    %v3182 = vpop.f32.mrb[0].mxu0
    %v3183 = vadd.f32 0.0, %v3182
    %3184 = vdwg.mxu0
    %3185 = vmatprep.subr.mxu0 %v2856
    %3186 = vmatpush1.msra.mxu0 %v2855
    %3187 = vmatprep.subr.mxu0 %v2862
    %3188 = vmatpush1.msra.mxu0 %v2861
    %3189 = vmatprep.subr.mxu0 %v2868
    %3190 = vmatpush1.msra.mxu0 %v2867
    %3191 = vmatprep.subr.mxu0 %v2874
    %3192 = vmatpush1.msra.mxu0 %v2873
    %3193 = vmatprep.subr.mxu0 %v2880
    %3194 = vmatpush1.msra.mxu0 %v2879
    %3195 = vmatprep.subr.mxu0 %v2886
    %3196 = vmatpush1.msra.mxu0 %v2885
    %3197 = vmatprep.subr.mxu0 %v2892
    %3198 = vmatpush1.msra.mxu0 %v2891
    %3199 = vmatprep.subr.mxu0 %v2898
    %3200 = vmatpush1.msra.mxu0 %v2897
    %3201 = vmatprep.subr.mxu0 %v2904
    %3202 = vmatpush1.msra.mxu0 %v2903
    %3203 = vmatprep.subr.mxu0 %v2910
    %3204 = vmatpush1.msra.mxu0 %v2909
    %3205 = vmatprep.subr.mxu0 %v2916
    %3206 = vmatpush1.msra.mxu0 %v2915
    %3207 = vmatprep.subr.mxu0 %v2922
    %3208 = vmatpush1.msra.mxu0 %v2921
    %3209 = vmatprep.subr.mxu0 %v2928
    %3210 = vmatpush1.msra.mxu0 %v2927
    %3211 = vmatprep.subr.mxu0 %v2934
    %3212 = vmatpush1.msra.mxu0 %v2933
    %3213 = vmatprep.subr.mxu0 %v2940
    %3214 = vmatpush1.msra.mxu0 %v2939
    %3215 = vmatprep.subr.mxu0 %v2946
    %3216 = vmatpush1.msra.mxu0 %v2945
    %3217 = vmatprep.subr.mxu0 %v2952
    %3218 = vmatpush1.msra.mxu0 %v2951
    %3219 = vmatprep.subr.mxu0 %v2958
    %3220 = vmatpush1.msra.mxu0 %v2957
    %3221 = vmatprep.subr.mxu0 %v2964
    %3222 = vmatpush1.msra.mxu0 %v2963
    %3223 = vmatprep.subr.mxu0 %v2970
    %3224 = vmatpush1.msra.mxu0 %v2969
    %3225 = vmatprep.subr.mxu0 %v2976
    %3226 = vmatpush1.msra.mxu0 %v2975
    %3227 = vmatprep.subr.mxu0 %v2982
    %3228 = vmatpush1.msra.mxu0 %v2981
    %3229 = vmatprep.subr.mxu0 %v2988
    %3230 = vmatpush1.msra.mxu0 %v2987
    %3231 = vmatprep.subr.mxu0 %v2994
    %3232 = vmatpush1.msra.mxu0 %v2993
    %3233 = vmatprep.subr.mxu0 %v3000
    %3234 = vmatpush1.msra.mxu0 %v2999
    %3235 = vmatprep.subr.mxu0 %v3006
    %3236 = vmatpush1.msra.mxu0 %v3005
    %3237 = vmatprep.subr.mxu0 %v3012
    %3238 = vmatpush1.msra.mxu0 %v3011
    %3239 = vmatprep.subr.mxu0 %v3018
    %3240 = vmatpush1.msra.mxu0 %v3017
    %3241 = vmatprep.subr.mxu0 %v3024
    %3242 = vmatpush1.msra.mxu0 %v3023
    %3243 = vmatprep.subr.mxu0 %v3030
    %3244 = vmatpush1.msra.mxu0 %v3029
    %3245 = vmatprep.subr.mxu0 %v3036
    %3246 = vmatpush1.msra.mxu0 %v3035
    %3247 = vmatprep.subr.mxu0 %v3042
    %3248 = vmatpush1.msra.mxu0 %v3041
    %3249 = vmatprep.mubr.f32.mxu0 %v2836
    %3250 = vmatmul.mubr.f32.gmra.mrb[0].mxu0 %v2835
    %v3251 = vpop.f32.mrb[0].mxu0
    %v3252 = vadd.f32 0.0, %v3251
    %v3253 = vpop.f32.mrb[0].mxu0
    %v3254 = vadd.f32 0.0, %v3253
    %3255 = vdwg.mxu0
    %v3256 = vadd.f32 %v2845, %v3110
    %v3257 = vadd.f32 %v2846, %v3112
    %v3258 = vxor.u32 %v3256, 2147483648
    %v3259 = vxor.u32 %v3257, 2147483648
    %v3260 = vmul.f32 %v3258, 1.442695
    %v3261 = vpow.pop %v3260
    %v3262 = vmul.f32 %v3259, 1.442695
    %v3263 = vpow.pop %v3262
    %v3264 = vadd.f32 %v3261, 1.0
    %v3265 = vadd.f32 %v3263, 1.0
    %v3266 = vrcp.pop %v3264
    %v3267 = vmul.f32 1.0, %v3266
    %v3268 = vrcp.pop %v3265
    %v3269 = vmul.f32 1.0, %v3268
    %v3270 = vadd.f32 %v2847, %v3181
    %v3271 = vadd.f32 %v2848, %v3183
    %v3272 = vxor.u32 %v3270, 2147483648
    %v3273 = vxor.u32 %v3271, 2147483648
    %v3274 = vmul.f32 %v3272, 1.442695
    %v3275 = vpow.pop %v3274
    %v3276 = vmul.f32 %v3273, 1.442695
    %v3277 = vpow.pop %v3276
    %v3278 = vadd.f32 %v3275, 1.0
    %v3279 = vadd.f32 %v3277, 1.0
    %v3280 = vrcp.pop %v3278
    %v3281 = vmul.f32 1.0, %v3280
    %v3282 = vrcp.pop %v3279
    %v3283 = vmul.f32 1.0, %v3282
    %v3284 = vadd.f32 %v3252, %v518
    %v3285 = vadd.f32 %v3254, %v522
    %v3286 = vmul.f32 %v3267, %v3284
    %v3287 = vmul.f32 %v3269, %v3285
    %v3288 = vadd.f32 %v2849, %v3286
    %v3289 = vadd.f32 %v2850, %v3287
    %v3290 = vtanh.pop %v3288
    %v3291 = vtanh.pop %v3289
    %v3292 = vsub.f32 1.0, %v3281
    %v3293 = vsub.f32 1.0, %v3283
    %v3294 = vmul.f32 %v3292, %v3290
    %v3295 = vmul.f32 %v3293, %v3291
    %v3296 = vmul.f32 %v3281, %v2835
    %v3297 = vmul.f32 %v3283, %v2836
    %v3298 = vadd.f32 %v3294, %v3296
    %v3299 = vadd.f32 %v3295, %v3297
    %s3300 = smul.u32 5, 2
    %s3301 = smul.addr %s3300, 8
    %s3302 = scalar_lea.vmem [#allocation4], %s3301
    %3303 = vst [vmem:[%s3302] sm:$0xff] %v3298
    %3304 = vst [vmem:[%s3302 + $0x8] sm:$0xff] %v3299
    %s3305 = smul.u32 6, 6
    %s3306 = smul.addr %s3305, 8
    %s3307 = scalar_lea.vmem [#allocation3], %s3306
    %v3308 = vld [vmem:[%s3307] sm:$0xff]
    %v3309 = vld [vmem:[%s3307 + $0x8] sm:$0xff]
    %v3310 = vld [vmem:[%s3307 + $0x10] sm:$0xff]
    %v3311 = vld [vmem:[%s3307 + $0x18] sm:$0xff]
    %v3312 = vld [vmem:[%s3307 + $0x20] sm:$0xff]
    %v3313 = vld [vmem:[%s3307 + $0x28] sm:$0xff]
    %v3314 = vld [vmem:[#allocation5] sm:$0xff]
    %v3315 = vld [vmem:[#allocation5 + $0x8] sm:$0xff]
    %v3316 = vld [vmem:[#allocation5 + $0x10] sm:$0xff]
    %v3317 = vld [vmem:[#allocation5 + $0x18] sm:$0xff]
    %v3318 = vld [vmem:[#allocation5 + $0x20] sm:$0xff]
    %v3319 = vld [vmem:[#allocation5 + $0x28] sm:$0xff]
    %v3320 = vld [vmem:[#allocation5 + $0x30] sm:$0xff]
    %v3321 = vld [vmem:[#allocation5 + $0x38] sm:$0xff]
    %v3322 = vld [vmem:[#allocation5 + $0x40] sm:$0xff]
    %v3323 = vld [vmem:[#allocation5 + $0x48] sm:$0xff]
    %v3324 = vld [vmem:[#allocation5 + $0x50] sm:$0xff]
    %v3325 = vld [vmem:[#allocation5 + $0x58] sm:$0xff]
    %v3326 = vld [vmem:[#allocation5 + $0x60] sm:$0xff]
    %v3327 = vld [vmem:[#allocation5 + $0x68] sm:$0xff]
    %v3328 = vld [vmem:[#allocation5 + $0x70] sm:$0xff]
    %v3329 = vld [vmem:[#allocation5 + $0x78] sm:$0xff]
    %v3330 = vld [vmem:[#allocation5 + $0x80] sm:$0xff]
    %v3331 = vld [vmem:[#allocation5 + $0x88] sm:$0xff]
    %v3332 = vld [vmem:[#allocation5 + $0x90] sm:$0xff]
    %v3333 = vld [vmem:[#allocation5 + $0x98] sm:$0xff]
    %v3334 = vld [vmem:[#allocation5 + $0xa0] sm:$0xff]
    %v3335 = vld [vmem:[#allocation5 + $0xa8] sm:$0xff]
    %v3336 = vld [vmem:[#allocation5 + $0xb0] sm:$0xff]
    %v3337 = vld [vmem:[#allocation5 + $0xb8] sm:$0xff]
    %v3338 = vld [vmem:[#allocation5 + $0xc0] sm:$0xff]
    %v3339 = vld [vmem:[#allocation5 + $0xc8] sm:$0xff]
    %v3340 = vld [vmem:[#allocation5 + $0xd0] sm:$0xff]
    %v3341 = vld [vmem:[#allocation5 + $0xd8] sm:$0xff]
    %v3342 = vld [vmem:[#allocation5 + $0xe0] sm:$0xff]
    %v3343 = vld [vmem:[#allocation5 + $0xe8] sm:$0xff]
    %v3344 = vld [vmem:[#allocation5 + $0xf0] sm:$0xff]
    %v3345 = vld [vmem:[#allocation5 + $0xf8] sm:$0xff]
    %v3346 = vld [vmem:[#allocation5 + $0x100] sm:$0xff]
    %v3347 = vld [vmem:[#allocation5 + $0x108] sm:$0xff]
    %v3348 = vld [vmem:[#allocation5 + $0x110] sm:$0xff]
    %v3349 = vld [vmem:[#allocation5 + $0x118] sm:$0xff]
    %v3350 = vld [vmem:[#allocation5 + $0x120] sm:$0xff]
    %v3351 = vld [vmem:[#allocation5 + $0x128] sm:$0xff]
    %v3352 = vld [vmem:[#allocation5 + $0x130] sm:$0xff]
    %v3353 = vld [vmem:[#allocation5 + $0x138] sm:$0xff]
    %v3354 = vld [vmem:[#allocation5 + $0x140] sm:$0xff]
    %v3355 = vld [vmem:[#allocation5 + $0x148] sm:$0xff]
    %v3356 = vld [vmem:[#allocation5 + $0x150] sm:$0xff]
    %v3357 = vld [vmem:[#allocation5 + $0x158] sm:$0xff]
    %v3358 = vld [vmem:[#allocation5 + $0x160] sm:$0xff]
    %v3359 = vld [vmem:[#allocation5 + $0x168] sm:$0xff]
    %v3360 = vld [vmem:[#allocation5 + $0x170] sm:$0xff]
    %v3361 = vld [vmem:[#allocation5 + $0x178] sm:$0xff]
    %v3362 = vld [vmem:[#allocation5 + $0x180] sm:$0xff]
    %v3363 = vld [vmem:[#allocation5 + $0x188] sm:$0xff]
    %v3364 = vld [vmem:[#allocation5 + $0x190] sm:$0xff]
    %v3365 = vld [vmem:[#allocation5 + $0x198] sm:$0xff]
    %v3366 = vld [vmem:[#allocation5 + $0x1a0] sm:$0xff]
    %v3367 = vld [vmem:[#allocation5 + $0x1a8] sm:$0xff]
    %v3368 = vld [vmem:[#allocation5 + $0x1b0] sm:$0xff]
    %v3369 = vld [vmem:[#allocation5 + $0x1b8] sm:$0xff]
    %v3370 = vld [vmem:[#allocation5 + $0x1c0] sm:$0xff]
    %v3371 = vld [vmem:[#allocation5 + $0x1c8] sm:$0xff]
    %v3372 = vld [vmem:[#allocation5 + $0x1d0] sm:$0xff]
    %v3373 = vld [vmem:[#allocation5 + $0x1d8] sm:$0xff]
    %v3374 = vld [vmem:[#allocation5 + $0x1e0] sm:$0xff]
    %v3375 = vld [vmem:[#allocation5 + $0x1e8] sm:$0xff]
    %v3376 = vld [vmem:[#allocation5 + $0x1f0] sm:$0xff]
    %v3377 = vld [vmem:[#allocation5 + $0x1f8] sm:$0xff]
    %v3378 = vld [vmem:[#allocation5 + $0x200] sm:$0xff]
    %v3379 = vld [vmem:[#allocation5 + $0x208] sm:$0xff]
    %v3380 = vld [vmem:[#allocation5 + $0x210] sm:$0xff]
    %v3381 = vld [vmem:[#allocation5 + $0x218] sm:$0xff]
    %v3382 = vld [vmem:[#allocation5 + $0x220] sm:$0xff]
    %v3383 = vld [vmem:[#allocation5 + $0x228] sm:$0xff]
    %v3384 = vld [vmem:[#allocation5 + $0x230] sm:$0xff]
    %v3385 = vld [vmem:[#allocation5 + $0x238] sm:$0xff]
    %v3386 = vld [vmem:[#allocation5 + $0x240] sm:$0xff]
    %v3387 = vld [vmem:[#allocation5 + $0x248] sm:$0xff]
    %v3388 = vld [vmem:[#allocation5 + $0x250] sm:$0xff]
    %v3389 = vld [vmem:[#allocation5 + $0x258] sm:$0xff]
    %v3390 = vld [vmem:[#allocation5 + $0x260] sm:$0xff]
    %v3391 = vld [vmem:[#allocation5 + $0x268] sm:$0xff]
    %v3392 = vld [vmem:[#allocation5 + $0x270] sm:$0xff]
    %v3393 = vld [vmem:[#allocation5 + $0x278] sm:$0xff]
    %v3394 = vld [vmem:[#allocation5 + $0x280] sm:$0xff]
    %v3395 = vld [vmem:[#allocation5 + $0x288] sm:$0xff]
    %v3396 = vld [vmem:[#allocation5 + $0x290] sm:$0xff]
    %v3397 = vld [vmem:[#allocation5 + $0x298] sm:$0xff]
    %v3398 = vld [vmem:[#allocation5 + $0x2a0] sm:$0xff]
    %v3399 = vld [vmem:[#allocation5 + $0x2a8] sm:$0xff]
    %v3400 = vld [vmem:[#allocation5 + $0x2b0] sm:$0xff]
    %v3401 = vld [vmem:[#allocation5 + $0x2b8] sm:$0xff]
    %v3402 = vld [vmem:[#allocation5 + $0x2c0] sm:$0xff]
    %v3403 = vld [vmem:[#allocation5 + $0x2c8] sm:$0xff]
    %v3404 = vld [vmem:[#allocation5 + $0x2d0] sm:$0xff]
    %v3405 = vld [vmem:[#allocation5 + $0x2d8] sm:$0xff]
    %v3406 = vld [vmem:[#allocation5 + $0x2e0] sm:$0xff]
    %v3407 = vld [vmem:[#allocation5 + $0x2e8] sm:$0xff]
    %v3408 = vld [vmem:[#allocation5 + $0x2f0] sm:$0xff]
    %v3409 = vld [vmem:[#allocation5 + $0x2f8] sm:$0xff]
    %v3410 = vld [vmem:[#allocation5 + $0x300] sm:$0xff]
    %v3411 = vld [vmem:[#allocation5 + $0x308] sm:$0xff]
    %v3412 = vld [vmem:[#allocation5 + $0x310] sm:$0xff]
    %v3413 = vld [vmem:[#allocation5 + $0x318] sm:$0xff]
    %v3414 = vld [vmem:[#allocation5 + $0x320] sm:$0xff]
    %v3415 = vld [vmem:[#allocation5 + $0x328] sm:$0xff]
    %v3416 = vld [vmem:[#allocation5 + $0x330] sm:$0xff]
    %v3417 = vld [vmem:[#allocation5 + $0x338] sm:$0xff]
    %v3418 = vld [vmem:[#allocation5 + $0x340] sm:$0xff]
    %v3419 = vld [vmem:[#allocation5 + $0x348] sm:$0xff]
    %v3420 = vld [vmem:[#allocation5 + $0x350] sm:$0xff]
    %v3421 = vld [vmem:[#allocation5 + $0x358] sm:$0xff]
    %v3422 = vld [vmem:[#allocation5 + $0x360] sm:$0xff]
    %v3423 = vld [vmem:[#allocation5 + $0x368] sm:$0xff]
    %v3424 = vld [vmem:[#allocation5 + $0x370] sm:$0xff]
    %v3425 = vld [vmem:[#allocation5 + $0x378] sm:$0xff]
    %v3426 = vld [vmem:[#allocation5 + $0x380] sm:$0xff]
    %v3427 = vld [vmem:[#allocation5 + $0x388] sm:$0xff]
    %v3428 = vld [vmem:[#allocation5 + $0x390] sm:$0xff]
    %v3429 = vld [vmem:[#allocation5 + $0x398] sm:$0xff]
    %v3430 = vld [vmem:[#allocation5 + $0x3a0] sm:$0xff]
    %v3431 = vld [vmem:[#allocation5 + $0x3a8] sm:$0xff]
    %v3432 = vld [vmem:[#allocation5 + $0x3b0] sm:$0xff]
    %v3433 = vld [vmem:[#allocation5 + $0x3b8] sm:$0xff]
    %v3434 = vld [vmem:[#allocation5 + $0x3c0] sm:$0xff]
    %v3435 = vld [vmem:[#allocation5 + $0x3c8] sm:$0xff]
    %v3436 = vld [vmem:[#allocation5 + $0x3d0] sm:$0xff]
    %v3437 = vld [vmem:[#allocation5 + $0x3d8] sm:$0xff]
    %v3438 = vld [vmem:[#allocation5 + $0x3e0] sm:$0xff]
    %v3439 = vld [vmem:[#allocation5 + $0x3e8] sm:$0xff]
    %v3440 = vld [vmem:[#allocation5 + $0x3f0] sm:$0xff]
    %v3441 = vld [vmem:[#allocation5 + $0x3f8] sm:$0xff]
    %v3442 = vld [vmem:[#allocation5 + $0x400] sm:$0xff]
    %v3443 = vld [vmem:[#allocation5 + $0x408] sm:$0xff]
    %v3444 = vld [vmem:[#allocation5 + $0x410] sm:$0xff]
    %v3445 = vld [vmem:[#allocation5 + $0x418] sm:$0xff]
    %v3446 = vld [vmem:[#allocation5 + $0x420] sm:$0xff]
    %v3447 = vld [vmem:[#allocation5 + $0x428] sm:$0xff]
    %v3448 = vld [vmem:[#allocation5 + $0x430] sm:$0xff]
    %v3449 = vld [vmem:[#allocation5 + $0x438] sm:$0xff]
    %v3450 = vld [vmem:[#allocation5 + $0x440] sm:$0xff]
    %v3451 = vld [vmem:[#allocation5 + $0x448] sm:$0xff]
    %v3452 = vld [vmem:[#allocation5 + $0x450] sm:$0xff]
    %v3453 = vld [vmem:[#allocation5 + $0x458] sm:$0xff]
    %v3454 = vld [vmem:[#allocation5 + $0x460] sm:$0xff]
    %v3455 = vld [vmem:[#allocation5 + $0x468] sm:$0xff]
    %v3456 = vld [vmem:[#allocation5 + $0x470] sm:$0xff]
    %v3457 = vld [vmem:[#allocation5 + $0x478] sm:$0xff]
    %v3458 = vld [vmem:[#allocation5 + $0x480] sm:$0xff]
    %v3459 = vld [vmem:[#allocation5 + $0x488] sm:$0xff]
    %v3460 = vld [vmem:[#allocation5 + $0x490] sm:$0xff]
    %v3461 = vld [vmem:[#allocation5 + $0x498] sm:$0xff]
    %v3462 = vld [vmem:[#allocation5 + $0x4a0] sm:$0xff]
    %v3463 = vld [vmem:[#allocation5 + $0x4a8] sm:$0xff]
    %v3464 = vld [vmem:[#allocation5 + $0x4b0] sm:$0xff]
    %v3465 = vld [vmem:[#allocation5 + $0x4b8] sm:$0xff]
    %v3466 = vld [vmem:[#allocation5 + $0x4c0] sm:$0xff]
    %v3467 = vld [vmem:[#allocation5 + $0x4c8] sm:$0xff]
    %v3468 = vld [vmem:[#allocation5 + $0x4d0] sm:$0xff]
    %v3469 = vld [vmem:[#allocation5 + $0x4d8] sm:$0xff]
    %v3470 = vld [vmem:[#allocation5 + $0x4e0] sm:$0xff]
    %v3471 = vld [vmem:[#allocation5 + $0x4e8] sm:$0xff]
    %v3472 = vld [vmem:[#allocation5 + $0x4f0] sm:$0xff]
    %v3473 = vld [vmem:[#allocation5 + $0x4f8] sm:$0xff]
    %v3474 = vld [vmem:[#allocation5 + $0x500] sm:$0xff]
    %v3475 = vld [vmem:[#allocation5 + $0x508] sm:$0xff]
    %v3476 = vld [vmem:[#allocation5 + $0x510] sm:$0xff]
    %v3477 = vld [vmem:[#allocation5 + $0x518] sm:$0xff]
    %v3478 = vld [vmem:[#allocation5 + $0x520] sm:$0xff]
    %v3479 = vld [vmem:[#allocation5 + $0x528] sm:$0xff]
    %v3480 = vld [vmem:[#allocation5 + $0x530] sm:$0xff]
    %v3481 = vld [vmem:[#allocation5 + $0x538] sm:$0xff]
    %v3482 = vld [vmem:[#allocation5 + $0x540] sm:$0xff]
    %v3483 = vld [vmem:[#allocation5 + $0x548] sm:$0xff]
    %v3484 = vld [vmem:[#allocation5 + $0x550] sm:$0xff]
    %v3485 = vld [vmem:[#allocation5 + $0x558] sm:$0xff]
    %v3486 = vld [vmem:[#allocation5 + $0x560] sm:$0xff]
    %v3487 = vld [vmem:[#allocation5 + $0x568] sm:$0xff]
    %v3488 = vld [vmem:[#allocation5 + $0x570] sm:$0xff]
    %v3489 = vld [vmem:[#allocation5 + $0x578] sm:$0xff]
    %v3490 = vld [vmem:[#allocation5 + $0x580] sm:$0xff]
    %v3491 = vld [vmem:[#allocation5 + $0x588] sm:$0xff]
    %v3492 = vld [vmem:[#allocation5 + $0x590] sm:$0xff]
    %v3493 = vld [vmem:[#allocation5 + $0x598] sm:$0xff]
    %v3494 = vld [vmem:[#allocation5 + $0x5a0] sm:$0xff]
    %v3495 = vld [vmem:[#allocation5 + $0x5a8] sm:$0xff]
    %v3496 = vld [vmem:[#allocation5 + $0x5b0] sm:$0xff]
    %v3497 = vld [vmem:[#allocation5 + $0x5b8] sm:$0xff]
    %v3498 = vld [vmem:[#allocation5 + $0x5c0] sm:$0xff]
    %v3499 = vld [vmem:[#allocation5 + $0x5c8] sm:$0xff]
    %v3500 = vld [vmem:[#allocation5 + $0x5d0] sm:$0xff]
    %v3501 = vld [vmem:[#allocation5 + $0x5d8] sm:$0xff]
    %v3502 = vld [vmem:[#allocation5 + $0x5e0] sm:$0xff]
    %v3503 = vld [vmem:[#allocation5 + $0x5e8] sm:$0xff]
    %v3504 = vld [vmem:[#allocation5 + $0x5f0] sm:$0xff]
    %v3505 = vld [vmem:[#allocation5 + $0x5f8] sm:$0xff]
    %3506 = vmatprep.subr.mxu0 %v3315
    %3507 = vmatpush1.msra.mxu0 %v3314
    %3508 = vmatprep.subr.mxu0 %v3321
    %3509 = vmatpush1.msra.mxu0 %v3320
    %3510 = vmatprep.subr.mxu0 %v3327
    %3511 = vmatpush1.msra.mxu0 %v3326
    %3512 = vmatprep.subr.mxu0 %v3333
    %3513 = vmatpush1.msra.mxu0 %v3332
    %3514 = vmatprep.subr.mxu0 %v3339
    %3515 = vmatpush1.msra.mxu0 %v3338
    %3516 = vmatprep.subr.mxu0 %v3345
    %3517 = vmatpush1.msra.mxu0 %v3344
    %3518 = vmatprep.subr.mxu0 %v3351
    %3519 = vmatpush1.msra.mxu0 %v3350
    %3520 = vmatprep.subr.mxu0 %v3357
    %3521 = vmatpush1.msra.mxu0 %v3356
    %3522 = vmatprep.subr.mxu0 %v3363
    %3523 = vmatpush1.msra.mxu0 %v3362
    %3524 = vmatprep.subr.mxu0 %v3369
    %3525 = vmatpush1.msra.mxu0 %v3368
    %3526 = vmatprep.subr.mxu0 %v3375
    %3527 = vmatpush1.msra.mxu0 %v3374
    %3528 = vmatprep.subr.mxu0 %v3381
    %3529 = vmatpush1.msra.mxu0 %v3380
    %3530 = vmatprep.subr.mxu0 %v3387
    %3531 = vmatpush1.msra.mxu0 %v3386
    %3532 = vmatprep.subr.mxu0 %v3393
    %3533 = vmatpush1.msra.mxu0 %v3392
    %3534 = vmatprep.subr.mxu0 %v3399
    %3535 = vmatpush1.msra.mxu0 %v3398
    %3536 = vmatprep.subr.mxu0 %v3405
    %3537 = vmatpush1.msra.mxu0 %v3404
    %3538 = vmatprep.subr.mxu0 %v3411
    %3539 = vmatpush1.msra.mxu0 %v3410
    %3540 = vmatprep.subr.mxu0 %v3417
    %3541 = vmatpush1.msra.mxu0 %v3416
    %3542 = vmatprep.subr.mxu0 %v3423
    %3543 = vmatpush1.msra.mxu0 %v3422
    %3544 = vmatprep.subr.mxu0 %v3429
    %3545 = vmatpush1.msra.mxu0 %v3428
    %3546 = vmatprep.subr.mxu0 %v3435
    %3547 = vmatpush1.msra.mxu0 %v3434
    %3548 = vmatprep.subr.mxu0 %v3441
    %3549 = vmatpush1.msra.mxu0 %v3440
    %3550 = vmatprep.subr.mxu0 %v3447
    %3551 = vmatpush1.msra.mxu0 %v3446
    %3552 = vmatprep.subr.mxu0 %v3453
    %3553 = vmatpush1.msra.mxu0 %v3452
    %3554 = vmatprep.subr.mxu0 %v3459
    %3555 = vmatpush1.msra.mxu0 %v3458
    %3556 = vmatprep.subr.mxu0 %v3465
    %3557 = vmatpush1.msra.mxu0 %v3464
    %3558 = vmatprep.subr.mxu0 %v3471
    %3559 = vmatpush1.msra.mxu0 %v3470
    %3560 = vmatprep.subr.mxu0 %v3477
    %3561 = vmatpush1.msra.mxu0 %v3476
    %3562 = vmatprep.subr.mxu0 %v3483
    %3563 = vmatpush1.msra.mxu0 %v3482
    %3564 = vmatprep.subr.mxu0 %v3489
    %3565 = vmatpush1.msra.mxu0 %v3488
    %3566 = vmatprep.subr.mxu0 %v3495
    %3567 = vmatpush1.msra.mxu0 %v3494
    %3568 = vmatprep.subr.mxu0 %v3501
    %3569 = vmatpush1.msra.mxu0 %v3500
    %3570 = vmatprep.mubr.f32.mxu0 %v3299
    %3571 = vmatmul.mubr.f32.gmra.mrb[0].mxu0 %v3298
    %v3572 = vpop.f32.mrb[0].mxu0
    %v3573 = vadd.f32 0.0, %v3572
    %v3574 = vpop.f32.mrb[0].mxu0
    %v3575 = vadd.f32 0.0, %v3574
    %3576 = vdwg.mxu0
    %3577 = vmatprep.subr.mxu0 %v3317
    %3578 = vmatpush1.msra.mxu0 %v3316
    %3579 = vmatprep.subr.mxu0 %v3323
    %3580 = vmatpush1.msra.mxu0 %v3322
    %3581 = vmatprep.subr.mxu0 %v3329
    %3582 = vmatpush1.msra.mxu0 %v3328
    %3583 = vmatprep.subr.mxu0 %v3335
    %3584 = vmatpush1.msra.mxu0 %v3334
    %3585 = vmatprep.subr.mxu0 %v3341
    %3586 = vmatpush1.msra.mxu0 %v3340
    %3587 = vmatprep.subr.mxu0 %v3347
    %3588 = vmatpush1.msra.mxu0 %v3346
    %3589 = vmatprep.subr.mxu0 %v3353
    %3590 = vmatpush1.msra.mxu0 %v3352
    %3591 = vmatprep.subr.mxu0 %v3359
    %3592 = vmatpush1.msra.mxu0 %v3358
    %3593 = vmatprep.subr.mxu0 %v3365
    %3594 = vmatpush1.msra.mxu0 %v3364
    %3595 = vmatprep.subr.mxu0 %v3371
    %3596 = vmatpush1.msra.mxu0 %v3370
    %3597 = vmatprep.subr.mxu0 %v3377
    %3598 = vmatpush1.msra.mxu0 %v3376
    %3599 = vmatprep.subr.mxu0 %v3383
    %3600 = vmatpush1.msra.mxu0 %v3382
    %3601 = vmatprep.subr.mxu0 %v3389
    %3602 = vmatpush1.msra.mxu0 %v3388
    %3603 = vmatprep.subr.mxu0 %v3395
    %3604 = vmatpush1.msra.mxu0 %v3394
    %3605 = vmatprep.subr.mxu0 %v3401
    %3606 = vmatpush1.msra.mxu0 %v3400
    %3607 = vmatprep.subr.mxu0 %v3407
    %3608 = vmatpush1.msra.mxu0 %v3406
    %3609 = vmatprep.subr.mxu0 %v3413
    %3610 = vmatpush1.msra.mxu0 %v3412
    %3611 = vmatprep.subr.mxu0 %v3419
    %3612 = vmatpush1.msra.mxu0 %v3418
    %3613 = vmatprep.subr.mxu0 %v3425
    %3614 = vmatpush1.msra.mxu0 %v3424
    %3615 = vmatprep.subr.mxu0 %v3431
    %3616 = vmatpush1.msra.mxu0 %v3430
    %3617 = vmatprep.subr.mxu0 %v3437
    %3618 = vmatpush1.msra.mxu0 %v3436
    %3619 = vmatprep.subr.mxu0 %v3443
    %3620 = vmatpush1.msra.mxu0 %v3442
    %3621 = vmatprep.subr.mxu0 %v3449
    %3622 = vmatpush1.msra.mxu0 %v3448
    %3623 = vmatprep.subr.mxu0 %v3455
    %3624 = vmatpush1.msra.mxu0 %v3454
    %3625 = vmatprep.subr.mxu0 %v3461
    %3626 = vmatpush1.msra.mxu0 %v3460
    %3627 = vmatprep.subr.mxu0 %v3467
    %3628 = vmatpush1.msra.mxu0 %v3466
    %3629 = vmatprep.subr.mxu0 %v3473
    %3630 = vmatpush1.msra.mxu0 %v3472
    %3631 = vmatprep.subr.mxu0 %v3479
    %3632 = vmatpush1.msra.mxu0 %v3478
    %3633 = vmatprep.subr.mxu0 %v3485
    %3634 = vmatpush1.msra.mxu0 %v3484
    %3635 = vmatprep.subr.mxu0 %v3491
    %3636 = vmatpush1.msra.mxu0 %v3490
    %3637 = vmatprep.subr.mxu0 %v3497
    %3638 = vmatpush1.msra.mxu0 %v3496
    %3639 = vmatprep.subr.mxu0 %v3503
    %3640 = vmatpush1.msra.mxu0 %v3502
    %3641 = vmatprep.mubr.f32.mxu0 %v3299
    %3642 = vmatmul.mubr.f32.gmra.mrb[0].mxu0 %v3298
    %v3643 = vpop.f32.mrb[0].mxu0
    %v3644 = vadd.f32 0.0, %v3643
    %v3645 = vpop.f32.mrb[0].mxu0
    %v3646 = vadd.f32 0.0, %v3645
    %3647 = vdwg.mxu0
    %3648 = vmatprep.subr.mxu0 %v3319
    %3649 = vmatpush1.msra.mxu0 %v3318
    %3650 = vmatprep.subr.mxu0 %v3325
    %3651 = vmatpush1.msra.mxu0 %v3324
    %3652 = vmatprep.subr.mxu0 %v3331
    %3653 = vmatpush1.msra.mxu0 %v3330
    %3654 = vmatprep.subr.mxu0 %v3337
    %3655 = vmatpush1.msra.mxu0 %v3336
    %3656 = vmatprep.subr.mxu0 %v3343
    %3657 = vmatpush1.msra.mxu0 %v3342
    %3658 = vmatprep.subr.mxu0 %v3349
    %3659 = vmatpush1.msra.mxu0 %v3348
    %3660 = vmatprep.subr.mxu0 %v3355
    %3661 = vmatpush1.msra.mxu0 %v3354
    %3662 = vmatprep.subr.mxu0 %v3361
    %3663 = vmatpush1.msra.mxu0 %v3360
    %3664 = vmatprep.subr.mxu0 %v3367
    %3665 = vmatpush1.msra.mxu0 %v3366
    %3666 = vmatprep.subr.mxu0 %v3373
    %3667 = vmatpush1.msra.mxu0 %v3372
    %3668 = vmatprep.subr.mxu0 %v3379
    %3669 = vmatpush1.msra.mxu0 %v3378
    %3670 = vmatprep.subr.mxu0 %v3385
    %3671 = vmatpush1.msra.mxu0 %v3384
    %3672 = vmatprep.subr.mxu0 %v3391
    %3673 = vmatpush1.msra.mxu0 %v3390
    %3674 = vmatprep.subr.mxu0 %v3397
    %3675 = vmatpush1.msra.mxu0 %v3396
    %3676 = vmatprep.subr.mxu0 %v3403
    %3677 = vmatpush1.msra.mxu0 %v3402
    %3678 = vmatprep.subr.mxu0 %v3409
    %3679 = vmatpush1.msra.mxu0 %v3408
    %3680 = vmatprep.subr.mxu0 %v3415
    %3681 = vmatpush1.msra.mxu0 %v3414
    %3682 = vmatprep.subr.mxu0 %v3421
    %3683 = vmatpush1.msra.mxu0 %v3420
    %3684 = vmatprep.subr.mxu0 %v3427
    %3685 = vmatpush1.msra.mxu0 %v3426
    %3686 = vmatprep.subr.mxu0 %v3433
    %3687 = vmatpush1.msra.mxu0 %v3432
    %3688 = vmatprep.subr.mxu0 %v3439
    %3689 = vmatpush1.msra.mxu0 %v3438
    %3690 = vmatprep.subr.mxu0 %v3445
    %3691 = vmatpush1.msra.mxu0 %v3444
    %3692 = vmatprep.subr.mxu0 %v3451
    %3693 = vmatpush1.msra.mxu0 %v3450
    %3694 = vmatprep.subr.mxu0 %v3457
    %3695 = vmatpush1.msra.mxu0 %v3456
    %3696 = vmatprep.subr.mxu0 %v3463
    %3697 = vmatpush1.msra.mxu0 %v3462
    %3698 = vmatprep.subr.mxu0 %v3469
    %3699 = vmatpush1.msra.mxu0 %v3468
    %3700 = vmatprep.subr.mxu0 %v3475
    %3701 = vmatpush1.msra.mxu0 %v3474
    %3702 = vmatprep.subr.mxu0 %v3481
    %3703 = vmatpush1.msra.mxu0 %v3480
    %3704 = vmatprep.subr.mxu0 %v3487
    %3705 = vmatpush1.msra.mxu0 %v3486
    %3706 = vmatprep.subr.mxu0 %v3493
    %3707 = vmatpush1.msra.mxu0 %v3492
    %3708 = vmatprep.subr.mxu0 %v3499
    %3709 = vmatpush1.msra.mxu0 %v3498
    %3710 = vmatprep.subr.mxu0 %v3505
    %3711 = vmatpush1.msra.mxu0 %v3504
    %3712 = vmatprep.mubr.f32.mxu0 %v3299
    %3713 = vmatmul.mubr.f32.gmra.mrb[0].mxu0 %v3298
    %v3714 = vpop.f32.mrb[0].mxu0
    %v3715 = vadd.f32 0.0, %v3714
    %v3716 = vpop.f32.mrb[0].mxu0
    %v3717 = vadd.f32 0.0, %v3716
    %3718 = vdwg.mxu0
    %v3719 = vadd.f32 %v3308, %v3573
    %v3720 = vadd.f32 %v3309, %v3575
    %v3721 = vxor.u32 %v3719, 2147483648
    %v3722 = vxor.u32 %v3720, 2147483648
    %v3723 = vmul.f32 %v3721, 1.442695
    %v3724 = vpow.pop %v3723
    %v3725 = vmul.f32 %v3722, 1.442695
    %v3726 = vpow.pop %v3725
    %v3727 = vadd.f32 %v3724, 1.0
    %v3728 = vadd.f32 %v3726, 1.0
    %v3729 = vrcp.pop %v3727
    %v3730 = vmul.f32 1.0, %v3729
    %v3731 = vrcp.pop %v3728
    %v3732 = vmul.f32 1.0, %v3731
    %v3733 = vadd.f32 %v3310, %v3644
    %v3734 = vadd.f32 %v3311, %v3646
    %v3735 = vxor.u32 %v3733, 2147483648
    %v3736 = vxor.u32 %v3734, 2147483648
    %v3737 = vmul.f32 %v3735, 1.442695
    %v3738 = vpow.pop %v3737
    %v3739 = vmul.f32 %v3736, 1.442695
    %v3740 = vpow.pop %v3739
    %v3741 = vadd.f32 %v3738, 1.0
    %v3742 = vadd.f32 %v3740, 1.0
    %v3743 = vrcp.pop %v3741
    %v3744 = vmul.f32 1.0, %v3743
    %v3745 = vrcp.pop %v3742
    %v3746 = vmul.f32 1.0, %v3745
    %v3747 = vadd.f32 %v3715, %v518
    %v3748 = vadd.f32 %v3717, %v522
    %v3749 = vmul.f32 %v3730, %v3747
    %v3750 = vmul.f32 %v3732, %v3748
    %v3751 = vadd.f32 %v3312, %v3749
    %v3752 = vadd.f32 %v3313, %v3750
    %v3753 = vtanh.pop %v3751
    %v3754 = vtanh.pop %v3752
    %v3755 = vsub.f32 1.0, %v3744
    %v3756 = vsub.f32 1.0, %v3746
    %v3757 = vmul.f32 %v3755, %v3753
    %v3758 = vmul.f32 %v3756, %v3754
    %v3759 = vmul.f32 %v3744, %v3298
    %v3760 = vmul.f32 %v3746, %v3299
    %v3761 = vadd.f32 %v3757, %v3759
    %v3762 = vadd.f32 %v3758, %v3760
    %s3763 = smul.u32 6, 2
    %s3764 = smul.addr %s3763, 8
    %s3765 = scalar_lea.vmem [#allocation4], %s3764
    %3766 = vst [vmem:[%s3765] sm:$0xff] %v3761
    %3767 = vst [vmem:[%s3765 + $0x8] sm:$0xff] %v3762
    %s3768 = smul.u32 7, 6
    %s3769 = smul.addr %s3768, 8
    %s3770 = scalar_lea.vmem [#allocation3], %s3769
    %v3771 = vld [vmem:[%s3770] sm:$0xff]
    %v3772 = vld [vmem:[%s3770 + $0x8] sm:$0xff]
    %v3773 = vld [vmem:[%s3770 + $0x10] sm:$0xff]
    %v3774 = vld [vmem:[%s3770 + $0x18] sm:$0xff]
    %v3775 = vld [vmem:[%s3770 + $0x20] sm:$0xff]
    %v3776 = vld [vmem:[%s3770 + $0x28] sm:$0xff]
    %v3777 = vld [vmem:[#allocation5] sm:$0xff]
    %v3778 = vld [vmem:[#allocation5 + $0x8] sm:$0xff]
    %v3779 = vld [vmem:[#allocation5 + $0x10] sm:$0xff]
    %v3780 = vld [vmem:[#allocation5 + $0x18] sm:$0xff]
    %v3781 = vld [vmem:[#allocation5 + $0x20] sm:$0xff]
    %v3782 = vld [vmem:[#allocation5 + $0x28] sm:$0xff]
    %v3783 = vld [vmem:[#allocation5 + $0x30] sm:$0xff]
    %v3784 = vld [vmem:[#allocation5 + $0x38] sm:$0xff]
    %v3785 = vld [vmem:[#allocation5 + $0x40] sm:$0xff]
    %v3786 = vld [vmem:[#allocation5 + $0x48] sm:$0xff]
    %v3787 = vld [vmem:[#allocation5 + $0x50] sm:$0xff]
    %v3788 = vld [vmem:[#allocation5 + $0x58] sm:$0xff]
    %v3789 = vld [vmem:[#allocation5 + $0x60] sm:$0xff]
    %v3790 = vld [vmem:[#allocation5 + $0x68] sm:$0xff]
    %v3791 = vld [vmem:[#allocation5 + $0x70] sm:$0xff]
    %v3792 = vld [vmem:[#allocation5 + $0x78] sm:$0xff]
    %v3793 = vld [vmem:[#allocation5 + $0x80] sm:$0xff]
    %v3794 = vld [vmem:[#allocation5 + $0x88] sm:$0xff]
    %v3795 = vld [vmem:[#allocation5 + $0x90] sm:$0xff]
    %v3796 = vld [vmem:[#allocation5 + $0x98] sm:$0xff]
    %v3797 = vld [vmem:[#allocation5 + $0xa0] sm:$0xff]
    %v3798 = vld [vmem:[#allocation5 + $0xa8] sm:$0xff]
    %v3799 = vld [vmem:[#allocation5 + $0xb0] sm:$0xff]
    %v3800 = vld [vmem:[#allocation5 + $0xb8] sm:$0xff]
    %v3801 = vld [vmem:[#allocation5 + $0xc0] sm:$0xff]
    %v3802 = vld [vmem:[#allocation5 + $0xc8] sm:$0xff]
    %v3803 = vld [vmem:[#allocation5 + $0xd0] sm:$0xff]
    %v3804 = vld [vmem:[#allocation5 + $0xd8] sm:$0xff]
    %v3805 = vld [vmem:[#allocation5 + $0xe0] sm:$0xff]
    %v3806 = vld [vmem:[#allocation5 + $0xe8] sm:$0xff]
    %v3807 = vld [vmem:[#allocation5 + $0xf0] sm:$0xff]
    %v3808 = vld [vmem:[#allocation5 + $0xf8] sm:$0xff]
    %v3809 = vld [vmem:[#allocation5 + $0x100] sm:$0xff]
    %v3810 = vld [vmem:[#allocation5 + $0x108] sm:$0xff]
    %v3811 = vld [vmem:[#allocation5 + $0x110] sm:$0xff]
    %v3812 = vld [vmem:[#allocation5 + $0x118] sm:$0xff]
    %v3813 = vld [vmem:[#allocation5 + $0x120] sm:$0xff]
    %v3814 = vld [vmem:[#allocation5 + $0x128] sm:$0xff]
    %v3815 = vld [vmem:[#allocation5 + $0x130] sm:$0xff]
    %v3816 = vld [vmem:[#allocation5 + $0x138] sm:$0xff]
    %v3817 = vld [vmem:[#allocation5 + $0x140] sm:$0xff]
    %v3818 = vld [vmem:[#allocation5 + $0x148] sm:$0xff]
    %v3819 = vld [vmem:[#allocation5 + $0x150] sm:$0xff]
    %v3820 = vld [vmem:[#allocation5 + $0x158] sm:$0xff]
    %v3821 = vld [vmem:[#allocation5 + $0x160] sm:$0xff]
    %v3822 = vld [vmem:[#allocation5 + $0x168] sm:$0xff]
    %v3823 = vld [vmem:[#allocation5 + $0x170] sm:$0xff]
    %v3824 = vld [vmem:[#allocation5 + $0x178] sm:$0xff]
    %v3825 = vld [vmem:[#allocation5 + $0x180] sm:$0xff]
    %v3826 = vld [vmem:[#allocation5 + $0x188] sm:$0xff]
    %v3827 = vld [vmem:[#allocation5 + $0x190] sm:$0xff]
    %v3828 = vld [vmem:[#allocation5 + $0x198] sm:$0xff]
    %v3829 = vld [vmem:[#allocation5 + $0x1a0] sm:$0xff]
    %v3830 = vld [vmem:[#allocation5 + $0x1a8] sm:$0xff]
    %v3831 = vld [vmem:[#allocation5 + $0x1b0] sm:$0xff]
    %v3832 = vld [vmem:[#allocation5 + $0x1b8] sm:$0xff]
    %v3833 = vld [vmem:[#allocation5 + $0x1c0] sm:$0xff]
    %v3834 = vld [vmem:[#allocation5 + $0x1c8] sm:$0xff]
    %v3835 = vld [vmem:[#allocation5 + $0x1d0] sm:$0xff]
    %v3836 = vld [vmem:[#allocation5 + $0x1d8] sm:$0xff]
    %v3837 = vld [vmem:[#allocation5 + $0x1e0] sm:$0xff]
    %v3838 = vld [vmem:[#allocation5 + $0x1e8] sm:$0xff]
    %v3839 = vld [vmem:[#allocation5 + $0x1f0] sm:$0xff]
    %v3840 = vld [vmem:[#allocation5 + $0x1f8] sm:$0xff]
    %v3841 = vld [vmem:[#allocation5 + $0x200] sm:$0xff]
    %v3842 = vld [vmem:[#allocation5 + $0x208] sm:$0xff]
    %v3843 = vld [vmem:[#allocation5 + $0x210] sm:$0xff]
    %v3844 = vld [vmem:[#allocation5 + $0x218] sm:$0xff]
    %v3845 = vld [vmem:[#allocation5 + $0x220] sm:$0xff]
    %v3846 = vld [vmem:[#allocation5 + $0x228] sm:$0xff]
    %v3847 = vld [vmem:[#allocation5 + $0x230] sm:$0xff]
    %v3848 = vld [vmem:[#allocation5 + $0x238] sm:$0xff]
    %v3849 = vld [vmem:[#allocation5 + $0x240] sm:$0xff]
    %v3850 = vld [vmem:[#allocation5 + $0x248] sm:$0xff]
    %v3851 = vld [vmem:[#allocation5 + $0x250] sm:$0xff]
    %v3852 = vld [vmem:[#allocation5 + $0x258] sm:$0xff]
    %v3853 = vld [vmem:[#allocation5 + $0x260] sm:$0xff]
    %v3854 = vld [vmem:[#allocation5 + $0x268] sm:$0xff]
    %v3855 = vld [vmem:[#allocation5 + $0x270] sm:$0xff]
    %v3856 = vld [vmem:[#allocation5 + $0x278] sm:$0xff]
    %v3857 = vld [vmem:[#allocation5 + $0x280] sm:$0xff]
    %v3858 = vld [vmem:[#allocation5 + $0x288] sm:$0xff]
    %v3859 = vld [vmem:[#allocation5 + $0x290] sm:$0xff]
    %v3860 = vld [vmem:[#allocation5 + $0x298] sm:$0xff]
    %v3861 = vld [vmem:[#allocation5 + $0x2a0] sm:$0xff]
    %v3862 = vld [vmem:[#allocation5 + $0x2a8] sm:$0xff]
    %v3863 = vld [vmem:[#allocation5 + $0x2b0] sm:$0xff]
    %v3864 = vld [vmem:[#allocation5 + $0x2b8] sm:$0xff]
    %v3865 = vld [vmem:[#allocation5 + $0x2c0] sm:$0xff]
    %v3866 = vld [vmem:[#allocation5 + $0x2c8] sm:$0xff]
    %v3867 = vld [vmem:[#allocation5 + $0x2d0] sm:$0xff]
    %v3868 = vld [vmem:[#allocation5 + $0x2d8] sm:$0xff]
    %v3869 = vld [vmem:[#allocation5 + $0x2e0] sm:$0xff]
    %v3870 = vld [vmem:[#allocation5 + $0x2e8] sm:$0xff]
    %v3871 = vld [vmem:[#allocation5 + $0x2f0] sm:$0xff]
    %v3872 = vld [vmem:[#allocation5 + $0x2f8] sm:$0xff]
    %v3873 = vld [vmem:[#allocation5 + $0x300] sm:$0xff]
    %v3874 = vld [vmem:[#allocation5 + $0x308] sm:$0xff]
    %v3875 = vld [vmem:[#allocation5 + $0x310] sm:$0xff]
    %v3876 = vld [vmem:[#allocation5 + $0x318] sm:$0xff]
    %v3877 = vld [vmem:[#allocation5 + $0x320] sm:$0xff]
    %v3878 = vld [vmem:[#allocation5 + $0x328] sm:$0xff]
    %v3879 = vld [vmem:[#allocation5 + $0x330] sm:$0xff]
    %v3880 = vld [vmem:[#allocation5 + $0x338] sm:$0xff]
    %v3881 = vld [vmem:[#allocation5 + $0x340] sm:$0xff]
    %v3882 = vld [vmem:[#allocation5 + $0x348] sm:$0xff]
    %v3883 = vld [vmem:[#allocation5 + $0x350] sm:$0xff]
    %v3884 = vld [vmem:[#allocation5 + $0x358] sm:$0xff]
    %v3885 = vld [vmem:[#allocation5 + $0x360] sm:$0xff]
    %v3886 = vld [vmem:[#allocation5 + $0x368] sm:$0xff]
    %v3887 = vld [vmem:[#allocation5 + $0x370] sm:$0xff]
    %v3888 = vld [vmem:[#allocation5 + $0x378] sm:$0xff]
    %v3889 = vld [vmem:[#allocation5 + $0x380] sm:$0xff]
    %v3890 = vld [vmem:[#allocation5 + $0x388] sm:$0xff]
    %v3891 = vld [vmem:[#allocation5 + $0x390] sm:$0xff]
    %v3892 = vld [vmem:[#allocation5 + $0x398] sm:$0xff]
    %v3893 = vld [vmem:[#allocation5 + $0x3a0] sm:$0xff]
    %v3894 = vld [vmem:[#allocation5 + $0x3a8] sm:$0xff]
    %v3895 = vld [vmem:[#allocation5 + $0x3b0] sm:$0xff]
    %v3896 = vld [vmem:[#allocation5 + $0x3b8] sm:$0xff]
    %v3897 = vld [vmem:[#allocation5 + $0x3c0] sm:$0xff]
    %v3898 = vld [vmem:[#allocation5 + $0x3c8] sm:$0xff]
    %v3899 = vld [vmem:[#allocation5 + $0x3d0] sm:$0xff]
    %v3900 = vld [vmem:[#allocation5 + $0x3d8] sm:$0xff]
    %v3901 = vld [vmem:[#allocation5 + $0x3e0] sm:$0xff]
    %v3902 = vld [vmem:[#allocation5 + $0x3e8] sm:$0xff]
    %v3903 = vld [vmem:[#allocation5 + $0x3f0] sm:$0xff]
    %v3904 = vld [vmem:[#allocation5 + $0x3f8] sm:$0xff]
    %v3905 = vld [vmem:[#allocation5 + $0x400] sm:$0xff]
    %v3906 = vld [vmem:[#allocation5 + $0x408] sm:$0xff]
    %v3907 = vld [vmem:[#allocation5 + $0x410] sm:$0xff]
    %v3908 = vld [vmem:[#allocation5 + $0x418] sm:$0xff]
    %v3909 = vld [vmem:[#allocation5 + $0x420] sm:$0xff]
    %v3910 = vld [vmem:[#allocation5 + $0x428] sm:$0xff]
    %v3911 = vld [vmem:[#allocation5 + $0x430] sm:$0xff]
    %v3912 = vld [vmem:[#allocation5 + $0x438] sm:$0xff]
    %v3913 = vld [vmem:[#allocation5 + $0x440] sm:$0xff]
    %v3914 = vld [vmem:[#allocation5 + $0x448] sm:$0xff]
    %v3915 = vld [vmem:[#allocation5 + $0x450] sm:$0xff]
    %v3916 = vld [vmem:[#allocation5 + $0x458] sm:$0xff]
    %v3917 = vld [vmem:[#allocation5 + $0x460] sm:$0xff]
    %v3918 = vld [vmem:[#allocation5 + $0x468] sm:$0xff]
    %v3919 = vld [vmem:[#allocation5 + $0x470] sm:$0xff]
    %v3920 = vld [vmem:[#allocation5 + $0x478] sm:$0xff]
    %v3921 = vld [vmem:[#allocation5 + $0x480] sm:$0xff]
    %v3922 = vld [vmem:[#allocation5 + $0x488] sm:$0xff]
    %v3923 = vld [vmem:[#allocation5 + $0x490] sm:$0xff]
    %v3924 = vld [vmem:[#allocation5 + $0x498] sm:$0xff]
    %v3925 = vld [vmem:[#allocation5 + $0x4a0] sm:$0xff]
    %v3926 = vld [vmem:[#allocation5 + $0x4a8] sm:$0xff]
    %v3927 = vld [vmem:[#allocation5 + $0x4b0] sm:$0xff]
    %v3928 = vld [vmem:[#allocation5 + $0x4b8] sm:$0xff]
    %v3929 = vld [vmem:[#allocation5 + $0x4c0] sm:$0xff]
    %v3930 = vld [vmem:[#allocation5 + $0x4c8] sm:$0xff]
    %v3931 = vld [vmem:[#allocation5 + $0x4d0] sm:$0xff]
    %v3932 = vld [vmem:[#allocation5 + $0x4d8] sm:$0xff]
    %v3933 = vld [vmem:[#allocation5 + $0x4e0] sm:$0xff]
    %v3934 = vld [vmem:[#allocation5 + $0x4e8] sm:$0xff]
    %v3935 = vld [vmem:[#allocation5 + $0x4f0] sm:$0xff]
    %v3936 = vld [vmem:[#allocation5 + $0x4f8] sm:$0xff]
    %v3937 = vld [vmem:[#allocation5 + $0x500] sm:$0xff]
    %v3938 = vld [vmem:[#allocation5 + $0x508] sm:$0xff]
    %v3939 = vld [vmem:[#allocation5 + $0x510] sm:$0xff]
    %v3940 = vld [vmem:[#allocation5 + $0x518] sm:$0xff]
    %v3941 = vld [vmem:[#allocation5 + $0x520] sm:$0xff]
    %v3942 = vld [vmem:[#allocation5 + $0x528] sm:$0xff]
    %v3943 = vld [vmem:[#allocation5 + $0x530] sm:$0xff]
    %v3944 = vld [vmem:[#allocation5 + $0x538] sm:$0xff]
    %v3945 = vld [vmem:[#allocation5 + $0x540] sm:$0xff]
    %v3946 = vld [vmem:[#allocation5 + $0x548] sm:$0xff]
    %v3947 = vld [vmem:[#allocation5 + $0x550] sm:$0xff]
    %v3948 = vld [vmem:[#allocation5 + $0x558] sm:$0xff]
    %v3949 = vld [vmem:[#allocation5 + $0x560] sm:$0xff]
    %v3950 = vld [vmem:[#allocation5 + $0x568] sm:$0xff]
    %v3951 = vld [vmem:[#allocation5 + $0x570] sm:$0xff]
    %v3952 = vld [vmem:[#allocation5 + $0x578] sm:$0xff]
    %v3953 = vld [vmem:[#allocation5 + $0x580] sm:$0xff]
    %v3954 = vld [vmem:[#allocation5 + $0x588] sm:$0xff]
    %v3955 = vld [vmem:[#allocation5 + $0x590] sm:$0xff]
    %v3956 = vld [vmem:[#allocation5 + $0x598] sm:$0xff]
    %v3957 = vld [vmem:[#allocation5 + $0x5a0] sm:$0xff]
    %v3958 = vld [vmem:[#allocation5 + $0x5a8] sm:$0xff]
    %v3959 = vld [vmem:[#allocation5 + $0x5b0] sm:$0xff]
    %v3960 = vld [vmem:[#allocation5 + $0x5b8] sm:$0xff]
    %v3961 = vld [vmem:[#allocation5 + $0x5c0] sm:$0xff]
    %v3962 = vld [vmem:[#allocation5 + $0x5c8] sm:$0xff]
    %v3963 = vld [vmem:[#allocation5 + $0x5d0] sm:$0xff]
    %v3964 = vld [vmem:[#allocation5 + $0x5d8] sm:$0xff]
    %v3965 = vld [vmem:[#allocation5 + $0x5e0] sm:$0xff]
    %v3966 = vld [vmem:[#allocation5 + $0x5e8] sm:$0xff]
    %v3967 = vld [vmem:[#allocation5 + $0x5f0] sm:$0xff]
    %v3968 = vld [vmem:[#allocation5 + $0x5f8] sm:$0xff]
    %3969 = vmatprep.subr.mxu0 %v3778
    %3970 = vmatpush1.msra.mxu0 %v3777
    %3971 = vmatprep.subr.mxu0 %v3784
    %3972 = vmatpush1.msra.mxu0 %v3783
    %3973 = vmatprep.subr.mxu0 %v3790
    %3974 = vmatpush1.msra.mxu0 %v3789
    %3975 = vmatprep.subr.mxu0 %v3796
    %3976 = vmatpush1.msra.mxu0 %v3795
    %3977 = vmatprep.subr.mxu0 %v3802
    %3978 = vmatpush1.msra.mxu0 %v3801
    %3979 = vmatprep.subr.mxu0 %v3808
    %3980 = vmatpush1.msra.mxu0 %v3807
    %3981 = vmatprep.subr.mxu0 %v3814
    %3982 = vmatpush1.msra.mxu0 %v3813
    %3983 = vmatprep.subr.mxu0 %v3820
    %3984 = vmatpush1.msra.mxu0 %v3819
    %3985 = vmatprep.subr.mxu0 %v3826
    %3986 = vmatpush1.msra.mxu0 %v3825
    %3987 = vmatprep.subr.mxu0 %v3832
    %3988 = vmatpush1.msra.mxu0 %v3831
    %3989 = vmatprep.subr.mxu0 %v3838
    %3990 = vmatpush1.msra.mxu0 %v3837
    %3991 = vmatprep.subr.mxu0 %v3844
    %3992 = vmatpush1.msra.mxu0 %v3843
    %3993 = vmatprep.subr.mxu0 %v3850
    %3994 = vmatpush1.msra.mxu0 %v3849
    %3995 = vmatprep.subr.mxu0 %v3856
    %3996 = vmatpush1.msra.mxu0 %v3855
    %3997 = vmatprep.subr.mxu0 %v3862
    %3998 = vmatpush1.msra.mxu0 %v3861
    %3999 = vmatprep.subr.mxu0 %v3868
    %4000 = vmatpush1.msra.mxu0 %v3867
    %4001 = vmatprep.subr.mxu0 %v3874
    %4002 = vmatpush1.msra.mxu0 %v3873
    %4003 = vmatprep.subr.mxu0 %v3880
    %4004 = vmatpush1.msra.mxu0 %v3879
    %4005 = vmatprep.subr.mxu0 %v3886
    %4006 = vmatpush1.msra.mxu0 %v3885
    %4007 = vmatprep.subr.mxu0 %v3892
    %4008 = vmatpush1.msra.mxu0 %v3891
    %4009 = vmatprep.subr.mxu0 %v3898
    %4010 = vmatpush1.msra.mxu0 %v3897
    %4011 = vmatprep.subr.mxu0 %v3904
    %4012 = vmatpush1.msra.mxu0 %v3903
    %4013 = vmatprep.subr.mxu0 %v3910
    %4014 = vmatpush1.msra.mxu0 %v3909
    %4015 = vmatprep.subr.mxu0 %v3916
    %4016 = vmatpush1.msra.mxu0 %v3915
    %4017 = vmatprep.subr.mxu0 %v3922
    %4018 = vmatpush1.msra.mxu0 %v3921
    %4019 = vmatprep.subr.mxu0 %v3928
    %4020 = vmatpush1.msra.mxu0 %v3927
    %4021 = vmatprep.subr.mxu0 %v3934
    %4022 = vmatpush1.msra.mxu0 %v3933
    %4023 = vmatprep.subr.mxu0 %v3940
    %4024 = vmatpush1.msra.mxu0 %v3939
    %4025 = vmatprep.subr.mxu0 %v3946
    %4026 = vmatpush1.msra.mxu0 %v3945
    %4027 = vmatprep.subr.mxu0 %v3952
    %4028 = vmatpush1.msra.mxu0 %v3951
    %4029 = vmatprep.subr.mxu0 %v3958
    %4030 = vmatpush1.msra.mxu0 %v3957
    %4031 = vmatprep.subr.mxu0 %v3964
    %4032 = vmatpush1.msra.mxu0 %v3963
    %4033 = vmatprep.mubr.f32.mxu0 %v3762
    %4034 = vmatmul.mubr.f32.gmra.mrb[0].mxu0 %v3761
    %v4035 = vpop.f32.mrb[0].mxu0
    %v4036 = vadd.f32 0.0, %v4035
    %v4037 = vpop.f32.mrb[0].mxu0
    %v4038 = vadd.f32 0.0, %v4037
    %4039 = vdwg.mxu0
    %4040 = vmatprep.subr.mxu0 %v3780
    %4041 = vmatpush1.msra.mxu0 %v3779
    %4042 = vmatprep.subr.mxu0 %v3786
    %4043 = vmatpush1.msra.mxu0 %v3785
    %4044 = vmatprep.subr.mxu0 %v3792
    %4045 = vmatpush1.msra.mxu0 %v3791
    %4046 = vmatprep.subr.mxu0 %v3798
    %4047 = vmatpush1.msra.mxu0 %v3797
    %4048 = vmatprep.subr.mxu0 %v3804
    %4049 = vmatpush1.msra.mxu0 %v3803
    %4050 = vmatprep.subr.mxu0 %v3810
    %4051 = vmatpush1.msra.mxu0 %v3809
    %4052 = vmatprep.subr.mxu0 %v3816
    %4053 = vmatpush1.msra.mxu0 %v3815
    %4054 = vmatprep.subr.mxu0 %v3822
    %4055 = vmatpush1.msra.mxu0 %v3821
    %4056 = vmatprep.subr.mxu0 %v3828
    %4057 = vmatpush1.msra.mxu0 %v3827
    %4058 = vmatprep.subr.mxu0 %v3834
    %4059 = vmatpush1.msra.mxu0 %v3833
    %4060 = vmatprep.subr.mxu0 %v3840
    %4061 = vmatpush1.msra.mxu0 %v3839
    %4062 = vmatprep.subr.mxu0 %v3846
    %4063 = vmatpush1.msra.mxu0 %v3845
    %4064 = vmatprep.subr.mxu0 %v3852
    %4065 = vmatpush1.msra.mxu0 %v3851
    %4066 = vmatprep.subr.mxu0 %v3858
    %4067 = vmatpush1.msra.mxu0 %v3857
    %4068 = vmatprep.subr.mxu0 %v3864
    %4069 = vmatpush1.msra.mxu0 %v3863
    %4070 = vmatprep.subr.mxu0 %v3870
    %4071 = vmatpush1.msra.mxu0 %v3869
    %4072 = vmatprep.subr.mxu0 %v3876
    %4073 = vmatpush1.msra.mxu0 %v3875
    %4074 = vmatprep.subr.mxu0 %v3882
    %4075 = vmatpush1.msra.mxu0 %v3881
    %4076 = vmatprep.subr.mxu0 %v3888
    %4077 = vmatpush1.msra.mxu0 %v3887
    %4078 = vmatprep.subr.mxu0 %v3894
    %4079 = vmatpush1.msra.mxu0 %v3893
    %4080 = vmatprep.subr.mxu0 %v3900
    %4081 = vmatpush1.msra.mxu0 %v3899
    %4082 = vmatprep.subr.mxu0 %v3906
    %4083 = vmatpush1.msra.mxu0 %v3905
    %4084 = vmatprep.subr.mxu0 %v3912
    %4085 = vmatpush1.msra.mxu0 %v3911
    %4086 = vmatprep.subr.mxu0 %v3918
    %4087 = vmatpush1.msra.mxu0 %v3917
    %4088 = vmatprep.subr.mxu0 %v3924
    %4089 = vmatpush1.msra.mxu0 %v3923
    %4090 = vmatprep.subr.mxu0 %v3930
    %4091 = vmatpush1.msra.mxu0 %v3929
    %4092 = vmatprep.subr.mxu0 %v3936
    %4093 = vmatpush1.msra.mxu0 %v3935
    %4094 = vmatprep.subr.mxu0 %v3942
    %4095 = vmatpush1.msra.mxu0 %v3941
    %4096 = vmatprep.subr.mxu0 %v3948
    %4097 = vmatpush1.msra.mxu0 %v3947
    %4098 = vmatprep.subr.mxu0 %v3954
    %4099 = vmatpush1.msra.mxu0 %v3953
    %4100 = vmatprep.subr.mxu0 %v3960
    %4101 = vmatpush1.msra.mxu0 %v3959
    %4102 = vmatprep.subr.mxu0 %v3966
    %4103 = vmatpush1.msra.mxu0 %v3965
    %4104 = vmatprep.mubr.f32.mxu0 %v3762
    %4105 = vmatmul.mubr.f32.gmra.mrb[0].mxu0 %v3761
    %v4106 = vpop.f32.mrb[0].mxu0
    %v4107 = vadd.f32 0.0, %v4106
    %v4108 = vpop.f32.mrb[0].mxu0
    %v4109 = vadd.f32 0.0, %v4108
    %4110 = vdwg.mxu0
    %4111 = vmatprep.subr.mxu0 %v3782
    %4112 = vmatpush1.msra.mxu0 %v3781
    %4113 = vmatprep.subr.mxu0 %v3788
    %4114 = vmatpush1.msra.mxu0 %v3787
    %4115 = vmatprep.subr.mxu0 %v3794
    %4116 = vmatpush1.msra.mxu0 %v3793
    %4117 = vmatprep.subr.mxu0 %v3800
    %4118 = vmatpush1.msra.mxu0 %v3799
    %4119 = vmatprep.subr.mxu0 %v3806
    %4120 = vmatpush1.msra.mxu0 %v3805
    %4121 = vmatprep.subr.mxu0 %v3812
    %4122 = vmatpush1.msra.mxu0 %v3811
    %4123 = vmatprep.subr.mxu0 %v3818
    %4124 = vmatpush1.msra.mxu0 %v3817
    %4125 = vmatprep.subr.mxu0 %v3824
    %4126 = vmatpush1.msra.mxu0 %v3823
    %4127 = vmatprep.subr.mxu0 %v3830
    %4128 = vmatpush1.msra.mxu0 %v3829
    %4129 = vmatprep.subr.mxu0 %v3836
    %4130 = vmatpush1.msra.mxu0 %v3835
    %4131 = vmatprep.subr.mxu0 %v3842
    %4132 = vmatpush1.msra.mxu0 %v3841
    %4133 = vmatprep.subr.mxu0 %v3848
    %4134 = vmatpush1.msra.mxu0 %v3847
    %4135 = vmatprep.subr.mxu0 %v3854
    %4136 = vmatpush1.msra.mxu0 %v3853
    %4137 = vmatprep.subr.mxu0 %v3860
    %4138 = vmatpush1.msra.mxu0 %v3859
    %4139 = vmatprep.subr.mxu0 %v3866
    %4140 = vmatpush1.msra.mxu0 %v3865
    %4141 = vmatprep.subr.mxu0 %v3872
    %4142 = vmatpush1.msra.mxu0 %v3871
    %4143 = vmatprep.subr.mxu0 %v3878
    %4144 = vmatpush1.msra.mxu0 %v3877
    %4145 = vmatprep.subr.mxu0 %v3884
    %4146 = vmatpush1.msra.mxu0 %v3883
    %4147 = vmatprep.subr.mxu0 %v3890
    %4148 = vmatpush1.msra.mxu0 %v3889
    %4149 = vmatprep.subr.mxu0 %v3896
    %4150 = vmatpush1.msra.mxu0 %v3895
    %4151 = vmatprep.subr.mxu0 %v3902
    %4152 = vmatpush1.msra.mxu0 %v3901
    %4153 = vmatprep.subr.mxu0 %v3908
    %4154 = vmatpush1.msra.mxu0 %v3907
    %4155 = vmatprep.subr.mxu0 %v3914
    %4156 = vmatpush1.msra.mxu0 %v3913
    %4157 = vmatprep.subr.mxu0 %v3920
    %4158 = vmatpush1.msra.mxu0 %v3919
    %4159 = vmatprep.subr.mxu0 %v3926
    %4160 = vmatpush1.msra.mxu0 %v3925
    %4161 = vmatprep.subr.mxu0 %v3932
    %4162 = vmatpush1.msra.mxu0 %v3931
    %4163 = vmatprep.subr.mxu0 %v3938
    %4164 = vmatpush1.msra.mxu0 %v3937
    %4165 = vmatprep.subr.mxu0 %v3944
    %4166 = vmatpush1.msra.mxu0 %v3943
    %4167 = vmatprep.subr.mxu0 %v3950
    %4168 = vmatpush1.msra.mxu0 %v3949
    %4169 = vmatprep.subr.mxu0 %v3956
    %4170 = vmatpush1.msra.mxu0 %v3955
    %4171 = vmatprep.subr.mxu0 %v3962
    %4172 = vmatpush1.msra.mxu0 %v3961
    %4173 = vmatprep.subr.mxu0 %v3968
    %4174 = vmatpush1.msra.mxu0 %v3967
    %4175 = vmatprep.mubr.f32.mxu0 %v3762
    %4176 = vmatmul.mubr.f32.gmra.mrb[0].mxu0 %v3761
    %v4177 = vpop.f32.mrb[0].mxu0
    %v4178 = vadd.f32 0.0, %v4177
    %v4179 = vpop.f32.mrb[0].mxu0
    %v4180 = vadd.f32 0.0, %v4179
    %4181 = vdwg.mxu0
    %v4182 = vadd.f32 %v3771, %v4036
    %v4183 = vadd.f32 %v3772, %v4038
    %v4184 = vxor.u32 %v4182, 2147483648
    %v4185 = vxor.u32 %v4183, 2147483648
    %v4186 = vmul.f32 %v4184, 1.442695
    %v4187 = vpow.pop %v4186
    %v4188 = vmul.f32 %v4185, 1.442695
    %v4189 = vpow.pop %v4188
    %v4190 = vadd.f32 %v4187, 1.0
    %v4191 = vadd.f32 %v4189, 1.0
    %v4192 = vrcp.pop %v4190
    %v4193 = vmul.f32 1.0, %v4192
    %v4194 = vrcp.pop %v4191
    %v4195 = vmul.f32 1.0, %v4194
    %v4196 = vadd.f32 %v3773, %v4107
    %v4197 = vadd.f32 %v3774, %v4109
    %v4198 = vxor.u32 %v4196, 2147483648
    %v4199 = vxor.u32 %v4197, 2147483648
    %v4200 = vmul.f32 %v4198, 1.442695
    %v4201 = vpow.pop %v4200
    %v4202 = vmul.f32 %v4199, 1.442695
    %v4203 = vpow.pop %v4202
    %v4204 = vadd.f32 %v4201, 1.0
    %v4205 = vadd.f32 %v4203, 1.0
    %v4206 = vrcp.pop %v4204
    %v4207 = vmul.f32 1.0, %v4206
    %v4208 = vrcp.pop %v4205
    %v4209 = vmul.f32 1.0, %v4208
    %v4210 = vadd.f32 %v4178, %v518
    %v4211 = vadd.f32 %v4180, %v522
    %v4212 = vmul.f32 %v4193, %v4210
    %v4213 = vmul.f32 %v4195, %v4211
    %v4214 = vadd.f32 %v3775, %v4212
    %v4215 = vadd.f32 %v3776, %v4213
    %v4216 = vtanh.pop %v4214
    %v4217 = vtanh.pop %v4215
    %v4218 = vsub.f32 1.0, %v4207
    %v4219 = vsub.f32 1.0, %v4209
    %v4220 = vmul.f32 %v4218, %v4216
    %v4221 = vmul.f32 %v4219, %v4217
    %v4222 = vmul.f32 %v4207, %v3761
    %v4223 = vmul.f32 %v4209, %v3762
    %v4224 = vadd.f32 %v4220, %v4222
    %v4225 = vadd.f32 %v4221, %v4223
    %s4226 = smul.u32 7, 2
    %s4227 = smul.addr %s4226, 8
    %s4228 = scalar_lea.vmem [#allocation4], %s4227
    %4229 = vst [vmem:[%s4228] sm:$0xff] %v4224
    %4230 = vst [vmem:[%s4228 + $0x8] sm:$0xff] %v4225
    %4231 = vst [vmem:[#allocation2] sm:$0xff] %v4224
    %4232 = vst [vmem:[#allocation2 + $0x8] sm:$0xff] %v4225
    %v4233 = vld [vmem:[#allocation4] sm:$0xff]
    %v4234 = vld [vmem:[#allocation4 + $0x8] sm:$0xff]
    %v4235 = vld [vmem:[#allocation4 + $0x10] sm:$0xff]
    %v4236 = vld [vmem:[#allocation4 + $0x18] sm:$0xff]
    %v4237 = vld [vmem:[#allocation4 + $0x20] sm:$0xff]
    %v4238 = vld [vmem:[#allocation4 + $0x28] sm:$0xff]
    %v4239 = vld [vmem:[#allocation4 + $0x30] sm:$0xff]
    %v4240 = vld [vmem:[#allocation4 + $0x38] sm:$0xff]
    %v4241 = vld [vmem:[#allocation4 + $0x40] sm:$0xff]
    %v4242 = vld [vmem:[#allocation4 + $0x48] sm:$0xff]
    %v4243 = vld [vmem:[#allocation4 + $0x50] sm:$0xff]
    %v4244 = vld [vmem:[#allocation4 + $0x58] sm:$0xff]
    %v4245 = vld [vmem:[#allocation4 + $0x60] sm:$0xff]
    %v4246 = vld [vmem:[#allocation4 + $0x68] sm:$0xff]
    %v4247 = vld [vmem:[#allocation4 + $0x70] sm:$0xff]
    %v4248 = vld [vmem:[#allocation4 + $0x78] sm:$0xff]
    %v4249 = vld [vmem:[%s6] sm:$0xff]
    %v4250 = vld [vmem:[%s6 + $0x8] sm:$0xff]
    %v4251 = vld [vmem:[%s6 + $0x10] sm:$0xff]
    %v4252 = vld [vmem:[%s6 + $0x18] sm:$0xff]
    %v4253 = vld [vmem:[%s6 + $0x20] sm:$0xff]
    %v4254 = vld [vmem:[%s6 + $0x28] sm:$0xff]
    %v4255 = vld [vmem:[%s6 + $0x30] sm:$0xff]
    %v4256 = vld [vmem:[%s6 + $0x38] sm:$0xff]
    %v4257 = vld [vmem:[%s6 + $0x40] sm:$0xff]
    %v4258 = vld [vmem:[%s6 + $0x48] sm:$0xff]
    %v4259 = vld [vmem:[%s6 + $0x50] sm:$0xff]
    %v4260 = vld [vmem:[%s6 + $0x58] sm:$0xff]
    %v4261 = vld [vmem:[%s6 + $0x60] sm:$0xff]
    %v4262 = vld [vmem:[%s6 + $0x68] sm:$0xff]
    %v4263 = vld [vmem:[%s6 + $0x70] sm:$0xff]
    %v4264 = vld [vmem:[%s6 + $0x78] sm:$0xff]
    %v4265 = vld [vmem:[%s6 + $0x80] sm:$0xff]
    %v4266 = vld [vmem:[%s6 + $0x88] sm:$0xff]
    %v4267 = vld [vmem:[%s6 + $0x90] sm:$0xff]
    %v4268 = vld [vmem:[%s6 + $0x98] sm:$0xff]
    %v4269 = vld [vmem:[%s6 + $0xa0] sm:$0xff]
    %v4270 = vld [vmem:[%s6 + $0xa8] sm:$0xff]
    %v4271 = vld [vmem:[%s6 + $0xb0] sm:$0xff]
    %v4272 = vld [vmem:[%s6 + $0xb8] sm:$0xff]
    %v4273 = vld [vmem:[%s6 + $0xc0] sm:$0xff]
    %v4274 = vld [vmem:[%s6 + $0xc8] sm:$0xff]
    %v4275 = vld [vmem:[%s6 + $0xd0] sm:$0xff]
    %v4276 = vld [vmem:[%s6 + $0xd8] sm:$0xff]
    %v4277 = vld [vmem:[%s6 + $0xe0] sm:$0xff]
    %v4278 = vld [vmem:[%s6 + $0xe8] sm:$0xff]
    %v4279 = vld [vmem:[%s6 + $0xf0] sm:$0xff]
    %v4280 = vld [vmem:[%s6 + $0xf8] sm:$0xff]
    %v4281 = vld [vmem:[%s7] sm:$0x1]
    %v4283 = vlaneseq
    %v4284 = vshrl.u32 %v4283, 7
    %v4285 = vsub.s32 0, %v4284
    %v4286 = vrot.slane %v4281, %v4285
    %4288 = vmatprep.subr.mxu0 0.0
    %4289 = vmatpush1.msra.mxu0 %v4249
    %4290 = vmatprep.subr.mxu0 0.0
    %4291 = vmatpush1.msra.mxu0 %v4250
    %4292 = vmatprep.subr.mxu0 0.0
    %4293 = vmatpush1.msra.mxu0 %v4251
    %4294 = vmatprep.subr.mxu0 0.0
    %4295 = vmatpush1.msra.mxu0 %v4252
    %4296 = vmatprep.subr.mxu0 0.0
    %4297 = vmatpush1.msra.mxu0 %v4253
    %4298 = vmatprep.subr.mxu0 0.0
    %4299 = vmatpush1.msra.mxu0 %v4254
    %4300 = vmatprep.subr.mxu0 0.0
    %4301 = vmatpush1.msra.mxu0 %v4255
    %4302 = vmatprep.subr.mxu0 0.0
    %4303 = vmatpush1.msra.mxu0 %v4256
    %4304 = vmatprep.subr.mxu0 0.0
    %4305 = vmatpush1.msra.mxu0 %v4257
    %4306 = vmatprep.subr.mxu0 0.0
    %4307 = vmatpush1.msra.mxu0 %v4258
    %4308 = vmatprep.subr.mxu0 0.0
    %4309 = vmatpush1.msra.mxu0 %v4259
    %4310 = vmatprep.subr.mxu0 0.0
    %4311 = vmatpush1.msra.mxu0 %v4260
    %4312 = vmatprep.subr.mxu0 0.0
    %4313 = vmatpush1.msra.mxu0 %v4261
    %4314 = vmatprep.subr.mxu0 0.0
    %4315 = vmatpush1.msra.mxu0 %v4262
    %4316 = vmatprep.subr.mxu0 0.0
    %4317 = vmatpush1.msra.mxu0 %v4263
    %4318 = vmatprep.subr.mxu0 0.0
    %4319 = vmatpush1.msra.mxu0 %v4264
    %4320 = vmatprep.subr.mxu0 0.0
    %4321 = vmatpush1.msra.mxu0 %v4265
    %4322 = vmatprep.subr.mxu0 0.0
    %4323 = vmatpush1.msra.mxu0 %v4266
    %4324 = vmatprep.subr.mxu0 0.0
    %4325 = vmatpush1.msra.mxu0 %v4267
    %4326 = vmatprep.subr.mxu0 0.0
    %4327 = vmatpush1.msra.mxu0 %v4268
    %4328 = vmatprep.subr.mxu0 0.0
    %4329 = vmatpush1.msra.mxu0 %v4269
    %4330 = vmatprep.subr.mxu0 0.0
    %4331 = vmatpush1.msra.mxu0 %v4270
    %4332 = vmatprep.subr.mxu0 0.0
    %4333 = vmatpush1.msra.mxu0 %v4271
    %4334 = vmatprep.subr.mxu0 0.0
    %4335 = vmatpush1.msra.mxu0 %v4272
    %4336 = vmatprep.subr.mxu0 0.0
    %4337 = vmatpush1.msra.mxu0 %v4273
    %4338 = vmatprep.subr.mxu0 0.0
    %4339 = vmatpush1.msra.mxu0 %v4274
    %4340 = vmatprep.subr.mxu0 0.0
    %4341 = vmatpush1.msra.mxu0 %v4275
    %4342 = vmatprep.subr.mxu0 0.0
    %4343 = vmatpush1.msra.mxu0 %v4276
    %4344 = vmatprep.subr.mxu0 0.0
    %4345 = vmatpush1.msra.mxu0 %v4277
    %4346 = vmatprep.subr.mxu0 0.0
    %4347 = vmatpush1.msra.mxu0 %v4278
    %4348 = vmatprep.subr.mxu0 0.0
    %4349 = vmatpush1.msra.mxu0 %v4279
    %4350 = vmatprep.subr.mxu0 0.0
    %4351 = vmatpush1.msra.mxu0 %v4280
    %4352 = vmatprep.mubr.f32.mxu0 %v4234
    %4353 = vmatmul.mubr.f32.gmra.mrb[0].mxu0 %v4233
    %v4354 = vpop.f32.mrb[0].mxu0
    %v4355 = vadd.f32 %v4286, %v4354
    %v4356 = vpop.f32.mrb[0].mxu0
    %4357 = vmatprep.mubr.f32.mxu0 %v4236
    %4358 = vmatmul.mubr.f32.gmra.mrb[0].mxu0 %v4235
    %v4359 = vpop.f32.mrb[0].mxu0
    %v4360 = vadd.f32 %v4286, %v4359
    %v4361 = vpop.f32.mrb[0].mxu0
    %4362 = vmatprep.mubr.f32.mxu0 %v4238
    %4363 = vmatmul.mubr.f32.gmra.mrb[0].mxu0 %v4237
    %v4364 = vpop.f32.mrb[0].mxu0
    %v4365 = vadd.f32 %v4286, %v4364
    %v4366 = vpop.f32.mrb[0].mxu0
    %4367 = vmatprep.mubr.f32.mxu0 %v4240
    %4368 = vmatmul.mubr.f32.gmra.mrb[0].mxu0 %v4239
    %v4369 = vpop.f32.mrb[0].mxu0
    %v4370 = vadd.f32 %v4286, %v4369
    %v4371 = vpop.f32.mrb[0].mxu0
    %4372 = vmatprep.mubr.f32.mxu0 %v4242
    %4373 = vmatmul.mubr.f32.gmra.mrb[0].mxu0 %v4241
    %v4374 = vpop.f32.mrb[0].mxu0
    %v4375 = vadd.f32 %v4286, %v4374
    %v4376 = vpop.f32.mrb[0].mxu0
    %4377 = vmatprep.mubr.f32.mxu0 %v4244
    %4378 = vmatmul.mubr.f32.gmra.mrb[0].mxu0 %v4243
    %v4379 = vpop.f32.mrb[0].mxu0
    %v4380 = vadd.f32 %v4286, %v4379
    %v4381 = vpop.f32.mrb[0].mxu0
    %4382 = vmatprep.mubr.f32.mxu0 %v4246
    %4383 = vmatmul.mubr.f32.gmra.mrb[0].mxu0 %v4245
    %v4384 = vpop.f32.mrb[0].mxu0
    %v4385 = vadd.f32 %v4286, %v4384
    %v4386 = vpop.f32.mrb[0].mxu0
    %4387 = vmatprep.mubr.f32.mxu0 %v4248
    %4388 = vmatmul.mubr.f32.gmra.mrb[0].mxu0 %v4247
    %v4389 = vpop.f32.mrb[0].mxu0
    %v4390 = vadd.f32 %v4286, %v4389
    %v4391 = vpop.f32.mrb[0].mxu0
    %4392 = vdwg.mxu0
    %v4393 = vld [vmem:[%s1] sm:$0xff]
    %v4394 = vld [vmem:[%s1 + $0x8] sm:$0xff]
    %v4395 = vld [vmem:[%s1 + $0x10] sm:$0xff]
    %v4396 = vld [vmem:[%s1 + $0x18] sm:$0xff]
    %v4397 = vld [vmem:[%s1 + $0x20] sm:$0xff]
    %v4398 = vld [vmem:[%s1 + $0x28] sm:$0xff]
    %v4399 = vld [vmem:[%s1 + $0x30] sm:$0xff]
    %v4400 = vld [vmem:[%s1 + $0x38] sm:$0xff]
    %v4401 = vmax.f32 %v4355, 0.0
    %v4402 = vmax.f32 %v4360, 0.0
    %v4403 = vmax.f32 %v4365, 0.0
    %v4404 = vmax.f32 %v4370, 0.0
    %v4405 = vmax.f32 %v4375, 0.0
    %v4406 = vmax.f32 %v4380, 0.0
    %v4407 = vmax.f32 %v4385, 0.0
    %v4408 = vmax.f32 %v4390, 0.0
    %vm4409 = vcmp.ne.f32.partialorder %v4355, %v4355
    %vm4410 = vcmp.ne.f32.partialorder %v4360, %v4360
    %vm4411 = vcmp.ne.f32.partialorder %v4365, %v4365
    %vm4412 = vcmp.ne.f32.partialorder %v4370, %v4370
    %vm4413 = vcmp.ne.f32.partialorder %v4375, %v4375
    %vm4414 = vcmp.ne.f32.partialorder %v4380, %v4380
    %vm4415 = vcmp.ne.f32.partialorder %v4385, %v4385
    %vm4416 = vcmp.ne.f32.partialorder %v4390, %v4390
    %v4417 = vadd.f32 %v4355, 0.0
    %v4418 = vadd.f32 %v4360, 0.0
    %v4419 = vadd.f32 %v4365, 0.0
    %v4420 = vadd.f32 %v4370, 0.0
    %v4421 = vadd.f32 %v4375, 0.0
    %v4422 = vadd.f32 %v4380, 0.0
    %v4423 = vadd.f32 %v4385, 0.0
    %v4424 = vadd.f32 %v4390, 0.0
    %v4425 = vand.u32 2147483647, %v4355
    %v4426 = vand.u32 2147483647, %v4360
    %v4427 = vand.u32 2147483647, %v4365
    %v4428 = vand.u32 2147483647, %v4370
    %v4429 = vand.u32 2147483647, %v4375
    %v4430 = vand.u32 2147483647, %v4380
    %v4431 = vand.u32 2147483647, %v4385
    %v4432 = vand.u32 2147483647, %v4390
    %v4433 = vsub.f32 0.0, %v4425
    %v4434 = vsub.f32 0.0, %v4426
    %v4435 = vsub.f32 0.0, %v4427
    %v4436 = vsub.f32 0.0, %v4428
    %v4437 = vsub.f32 0.0, %v4429
    %v4438 = vsub.f32 0.0, %v4430
    %v4439 = vsub.f32 0.0, %v4431
    %v4440 = vsub.f32 0.0, %v4432
    %v4441 = vmul.f32 %v4433, 1.442695
    %v4442 = vpow.pop %v4441
    %v4443 = vmul.f32 %v4434, 1.442695
    %v4444 = vpow.pop %v4443
    %v4445 = vmul.f32 %v4435, 1.442695
    %v4446 = vpow.pop %v4445
    %v4447 = vmul.f32 %v4436, 1.442695
    %v4448 = vpow.pop %v4447
    %v4449 = vmul.f32 %v4437, 1.442695
    %v4450 = vpow.pop %v4449
    %v4451 = vmul.f32 %v4438, 1.442695
    %v4452 = vpow.pop %v4451
    %v4453 = vmul.f32 %v4439, 1.442695
    %v4454 = vpow.pop %v4453
    %v4455 = vmul.f32 %v4440, 1.442695
    %v4456 = vpow.pop %v4455
    %v4457 = vadd.f32 %v4442, 1.0
    %v4458 = vlog2.pop %v4457
    %v4459 = vmul.f32 %v4458, 0.6931472
    %v4460 = vmul.f32 -0.5, %v4442
    %v4461 = vadd.f32 %v4460, 1.0
    %v4462 = vmul.f32 %v4461, %v4442
    %v4463 = vand.u32 2147483647, %v4442
    %vm4464 = vcmp.lt.f32.partialorder %v4463, 0.0004427343
    %v4465 = vsel %vm4464, %v4462, %v4459
    %v4466 = vadd.f32 %v4444, 1.0
    %v4467 = vlog2.pop %v4466
    %v4468 = vmul.f32 %v4467, 0.6931472
    %v4469 = vmul.f32 -0.5, %v4444
    %v4470 = vadd.f32 %v4469, 1.0
    %v4471 = vmul.f32 %v4470, %v4444
    %v4472 = vand.u32 2147483647, %v4444
    %vm4473 = vcmp.lt.f32.partialorder %v4472, 0.0004427343
    %v4474 = vsel %vm4473, %v4471, %v4468
    %v4475 = vadd.f32 %v4446, 1.0
    %v4476 = vlog2.pop %v4475
    %v4477 = vmul.f32 %v4476, 0.6931472
    %v4478 = vmul.f32 -0.5, %v4446
    %v4479 = vadd.f32 %v4478, 1.0
    %v4480 = vmul.f32 %v4479, %v4446
    %v4481 = vand.u32 2147483647, %v4446
    %vm4482 = vcmp.lt.f32.partialorder %v4481, 0.0004427343
    %v4483 = vsel %vm4482, %v4480, %v4477
    %v4484 = vadd.f32 %v4448, 1.0
    %v4485 = vlog2.pop %v4484
    %v4486 = vmul.f32 %v4485, 0.6931472
    %v4487 = vmul.f32 -0.5, %v4448
    %v4488 = vadd.f32 %v4487, 1.0
    %v4489 = vmul.f32 %v4488, %v4448
    %v4490 = vand.u32 2147483647, %v4448
    %vm4491 = vcmp.lt.f32.partialorder %v4490, 0.0004427343
    %v4492 = vsel %vm4491, %v4489, %v4486
    %v4493 = vadd.f32 %v4450, 1.0
    %v4494 = vlog2.pop %v4493
    %v4495 = vmul.f32 %v4494, 0.6931472
    %v4496 = vmul.f32 -0.5, %v4450
    %v4497 = vadd.f32 %v4496, 1.0
    %v4498 = vmul.f32 %v4497, %v4450
    %v4499 = vand.u32 2147483647, %v4450
    %vm4500 = vcmp.lt.f32.partialorder %v4499, 0.0004427343
    %v4501 = vsel %vm4500, %v4498, %v4495
    %v4502 = vadd.f32 %v4452, 1.0
    %v4503 = vlog2.pop %v4502
    %v4504 = vmul.f32 %v4503, 0.6931472
    %v4505 = vmul.f32 -0.5, %v4452
    %v4506 = vadd.f32 %v4505, 1.0
    %v4507 = vmul.f32 %v4506, %v4452
    %v4508 = vand.u32 2147483647, %v4452
    %vm4509 = vcmp.lt.f32.partialorder %v4508, 0.0004427343
    %v4510 = vsel %vm4509, %v4507, %v4504
    %v4511 = vadd.f32 %v4454, 1.0
    %v4512 = vlog2.pop %v4511
    %v4513 = vmul.f32 %v4512, 0.6931472
    %v4514 = vmul.f32 -0.5, %v4454
    %v4515 = vadd.f32 %v4514, 1.0
    %v4516 = vmul.f32 %v4515, %v4454
    %v4517 = vand.u32 2147483647, %v4454
    %vm4518 = vcmp.lt.f32.partialorder %v4517, 0.0004427343
    %v4519 = vsel %vm4518, %v4516, %v4513
    %v4520 = vadd.f32 %v4456, 1.0
    %v4521 = vlog2.pop %v4520
    %v4522 = vmul.f32 %v4521, 0.6931472
    %v4523 = vmul.f32 -0.5, %v4456
    %v4524 = vadd.f32 %v4523, 1.0
    %v4525 = vmul.f32 %v4524, %v4456
    %v4526 = vand.u32 2147483647, %v4456
    %vm4527 = vcmp.lt.f32.partialorder %v4526, 0.0004427343
    %v4528 = vsel %vm4527, %v4525, %v4522
    %v4529 = vadd.f32 %v4401, %v4465
    %v4530 = vadd.f32 %v4402, %v4474
    %v4531 = vadd.f32 %v4403, %v4483
    %v4532 = vadd.f32 %v4404, %v4492
    %v4533 = vadd.f32 %v4405, %v4501
    %v4534 = vadd.f32 %v4406, %v4510
    %v4535 = vadd.f32 %v4407, %v4519
    %v4536 = vadd.f32 %v4408, %v4528
    %v4537 = vsel %vm4409, %v4417, %v4529
    %v4538 = vsel %vm4410, %v4418, %v4530
    %v4539 = vsel %vm4411, %v4419, %v4531
    %v4540 = vsel %vm4412, %v4420, %v4532
    %v4541 = vsel %vm4413, %v4421, %v4533
    %v4542 = vsel %vm4414, %v4422, %v4534
    %v4543 = vsel %vm4415, %v4423, %v4535
    %v4544 = vsel %vm4416, %v4424, %v4536
    %v4545 = vlog2.pop %v4537
    %v4546 = vmul.f32 %v4545, 0.6931472
    %v4547 = vlog2.pop %v4538
    %v4548 = vmul.f32 %v4547, 0.6931472
    %v4549 = vlog2.pop %v4539
    %v4550 = vmul.f32 %v4549, 0.6931472
    %v4551 = vlog2.pop %v4540
    %v4552 = vmul.f32 %v4551, 0.6931472
    %v4553 = vlog2.pop %v4541
    %v4554 = vmul.f32 %v4553, 0.6931472
    %v4555 = vlog2.pop %v4542
    %v4556 = vmul.f32 %v4555, 0.6931472
    %v4557 = vlog2.pop %v4543
    %v4558 = vmul.f32 %v4557, 0.6931472
    %v4559 = vlog2.pop %v4544
    %v4560 = vmul.f32 %v4559, 0.6931472
    %v4561 = vsub.f32 %v4393, %v4355
    %v4562 = vsub.f32 %v4394, %v4360
    %v4563 = vsub.f32 %v4395, %v4365
    %v4564 = vsub.f32 %v4396, %v4370
    %v4565 = vsub.f32 %v4397, %v4375
    %v4566 = vsub.f32 %v4398, %v4380
    %v4567 = vsub.f32 %v4399, %v4385
    %v4568 = vsub.f32 %v4400, %v4390
    %v4569 = vmul.f32 %v4561, %v4561
    %v4570 = vmul.f32 %v4562, %v4562
    %v4571 = vmul.f32 %v4563, %v4563
    %v4572 = vmul.f32 %v4564, %v4564
    %v4573 = vmul.f32 %v4565, %v4565
    %v4574 = vmul.f32 %v4566, %v4566
    %v4575 = vmul.f32 %v4567, %v4567
    %v4576 = vmul.f32 %v4568, %v4568
    %v4577 = vrcp.pop %v4537
    %v4578 = vrcp.pop %v4538
    %v4579 = vrcp.pop %v4539
    %v4580 = vrcp.pop %v4540
    %v4581 = vrcp.pop %v4541
    %v4582 = vrcp.pop %v4542
    %v4583 = vrcp.pop %v4543
    %v4584 = vrcp.pop %v4544
    %4593 = vrot.lane.b32.xlu0 %v4577, 122
    %v4594 = vpop.permute.xlu0 %4593
    %4595 = vrot.lane.b32.xlu0 %v4578, 122
    %v4596 = vpop.permute.xlu0 %4595
    %4597 = vrot.lane.b32.xlu0 %v4579, 122
    %v4598 = vpop.permute.xlu0 %4597
    %4599 = vrot.lane.b32.xlu0 %v4580, 122
    %v4600 = vpop.permute.xlu0 %4599
    %4601 = vrot.lane.b32.xlu0 %v4581, 122
    %v4602 = vpop.permute.xlu0 %4601
    %4603 = vrot.lane.b32.xlu0 %v4582, 122
    %v4604 = vpop.permute.xlu0 %4603
    %4605 = vrot.lane.b32.xlu0 %v4583, 122
    %v4606 = vpop.permute.xlu0 %4605
    %4607 = vrot.lane.b32.xlu0 %v4584, 122
    %v4608 = vpop.permute.xlu0 %4607
    %v4617 = vmul.f32 %v4569, %v4594
    %v4618 = vmul.f32 %v4570, %v4596
    %v4619 = vmul.f32 %v4571, %v4598
    %v4620 = vmul.f32 %v4572, %v4600
    %v4621 = vmul.f32 %v4573, %v4602
    %v4622 = vmul.f32 %v4574, %v4604
    %v4623 = vmul.f32 %v4575, %v4606
    %v4624 = vmul.f32 %v4576, %v4608
    %vm4625 = vcmask 48128
    %v4626 = vsel %vm4625, %v4617, 0.0
    %4627 = vadd.xlane.f32.xlu0 %v4626
    %v4628 = vpop.xlane.xlu0 %4627
    %v4629 = vsel %vm4625, %v4618, 0.0
    %4630 = vadd.xlane.f32.xlu0 %v4629
    %v4631 = vpop.xlane.xlu0 %4630
    %v4632 = vsel %vm4625, %v4619, 0.0
    %4633 = vadd.xlane.f32.xlu0 %v4632
    %v4634 = vpop.xlane.xlu0 %4633
    %v4635 = vsel %vm4625, %v4620, 0.0
    %4636 = vadd.xlane.f32.xlu0 %v4635
    %v4637 = vpop.xlane.xlu0 %4636
    %v4638 = vsel %vm4625, %v4621, 0.0
    %4639 = vadd.xlane.f32.xlu0 %v4638
    %v4640 = vpop.xlane.xlu0 %4639
    %v4641 = vsel %vm4625, %v4622, 0.0
    %4642 = vadd.xlane.f32.xlu0 %v4641
    %v4643 = vpop.xlane.xlu0 %4642
    %v4644 = vsel %vm4625, %v4623, 0.0
    %4645 = vadd.xlane.f32.xlu0 %v4644
    %v4646 = vpop.xlane.xlu0 %4645
    %v4647 = vsel %vm4625, %v4624, 0.0
    %4648 = vadd.xlane.f32.xlu0 %v4647
    %v4649 = vpop.xlane.xlu0 %4648
    %4658 = vrot.lane.b32.xlu0 %v4546, 122
    %v4659 = vpop.permute.xlu0 %4658
    %4660 = vrot.lane.b32.xlu0 %v4548, 122
    %v4661 = vpop.permute.xlu0 %4660
    %4662 = vrot.lane.b32.xlu0 %v4550, 122
    %v4663 = vpop.permute.xlu0 %4662
    %4664 = vrot.lane.b32.xlu0 %v4552, 122
    %v4665 = vpop.permute.xlu0 %4664
    %4666 = vrot.lane.b32.xlu0 %v4554, 122
    %v4667 = vpop.permute.xlu0 %4666
    %4668 = vrot.lane.b32.xlu0 %v4556, 122
    %v4669 = vpop.permute.xlu0 %4668
    %4670 = vrot.lane.b32.xlu0 %v4558, 122
    %v4671 = vpop.permute.xlu0 %4670
    %4672 = vrot.lane.b32.xlu0 %v4560, 122
    %v4673 = vpop.permute.xlu0 %4672
    %v4682 = vsel %vm4625, %v4659, 0.0
    %4683 = vadd.xlane.f32.xlu0 %v4682
    %v4684 = vpop.xlane.xlu0 %4683
    %v4685 = vsel %vm4625, %v4661, 0.0
    %4686 = vadd.xlane.f32.xlu0 %v4685
    %v4687 = vpop.xlane.xlu0 %4686
    %v4688 = vsel %vm4625, %v4663, 0.0
    %4689 = vadd.xlane.f32.xlu0 %v4688
    %v4690 = vpop.xlane.xlu0 %4689
    %v4691 = vsel %vm4625, %v4665, 0.0
    %4692 = vadd.xlane.f32.xlu0 %v4691
    %v4693 = vpop.xlane.xlu0 %4692
    %v4694 = vsel %vm4625, %v4667, 0.0
    %4695 = vadd.xlane.f32.xlu0 %v4694
    %v4696 = vpop.xlane.xlu0 %4695
    %v4697 = vsel %vm4625, %v4669, 0.0
    %4698 = vadd.xlane.f32.xlu0 %v4697
    %v4699 = vpop.xlane.xlu0 %4698
    %v4700 = vsel %vm4625, %v4671, 0.0
    %4701 = vadd.xlane.f32.xlu0 %v4700
    %v4702 = vpop.xlane.xlu0 %4701
    %v4703 = vsel %vm4625, %v4673, 0.0
    %4704 = vadd.xlane.f32.xlu0 %v4703
    %v4705 = vpop.xlane.xlu0 %4704
    %v4706 = vadd.f32 %v4628, %v4684
    %v4707 = vadd.f32 %v4631, %v4687
    %v4708 = vadd.f32 %v4634, %v4690
    %v4709 = vadd.f32 %v4637, %v4693
    %v4710 = vadd.f32 %v4640, %v4696
    %v4711 = vadd.f32 %v4643, %v4699
    %v4712 = vadd.f32 %v4646, %v4702
    %v4713 = vadd.f32 %v4649, %v4705
    %v4714 = vadd.f32 %v4706, 11.027263
    %v4715 = vadd.f32 %v4707, 11.027263
    %v4716 = vadd.f32 %v4708, 11.027263
    %v4717 = vadd.f32 %v4709, 11.027263
    %v4718 = vadd.f32 %v4710, 11.027263
    %v4719 = vadd.f32 %v4711, 11.027263
    %v4720 = vadd.f32 %v4712, 11.027263
    %v4721 = vadd.f32 %v4713, 11.027263
    %v4722 = vmul.f32 %v4714, -0.5
    %v4723 = vmul.f32 %v4715, -0.5
    %v4724 = vmul.f32 %v4716, -0.5
    %v4725 = vmul.f32 %v4717, -0.5
    %v4726 = vmul.f32 %v4718, -0.5
    %v4727 = vmul.f32 %v4719, -0.5
    %v4728 = vmul.f32 %v4720, -0.5
    %v4729 = vmul.f32 %v4721, -0.5
    %v4730 = vmul.f32 %v4684, 0.5
    %v4731 = vmul.f32 %v4687, 0.5
    %v4732 = vmul.f32 %v4690, 0.5
    %v4733 = vmul.f32 %v4693, 0.5
    %v4734 = vmul.f32 %v4696, 0.5
    %v4735 = vmul.f32 %v4699, 0.5
    %v4736 = vmul.f32 %v4702, 0.5
    %v4737 = vmul.f32 %v4705, 0.5
    %v4738 = vadd.f32 %v4730, 8.513631
    %v4739 = vadd.f32 %v4731, 8.513631
    %v4740 = vadd.f32 %v4732, 8.513631
    %v4741 = vadd.f32 %v4733, 8.513631
    %v4742 = vadd.f32 %v4734, 8.513631
    %v4743 = vadd.f32 %v4735, 8.513631
    %v4744 = vadd.f32 %v4736, 8.513631
    %v4745 = vadd.f32 %v4737, 8.513631
    %v4754 = vlaneseq
    %v4755 = vand.u32 %v4754, 127
    %v4756 = vlaneseq
    %v4757 = vshrl.u32 %v4756, 7
    %v4758 = vsub.s32 %v4755, %v4757
    %v4759 = vrot.slane %v4722, %v4758
    %v4760 = vlaneseq
    %v4761 = vshrl.u32 %v4760, 7
    %v4762 = vsub.s32 %v4755, %v4761
    %v4763 = vrot.slane %v4723, %v4762
    %v4764 = vlaneseq
    %v4765 = vshrl.u32 %v4764, 7
    %v4766 = vsub.s32 %v4755, %v4765
    %v4767 = vrot.slane %v4724, %v4766
    %v4768 = vlaneseq
    %v4769 = vshrl.u32 %v4768, 7
    %v4770 = vsub.s32 %v4755, %v4769
    %v4771 = vrot.slane %v4725, %v4770
    %v4772 = vlaneseq
    %v4773 = vshrl.u32 %v4772, 7
    %v4774 = vsub.s32 %v4755, %v4773
    %v4775 = vrot.slane %v4726, %v4774
    %v4776 = vlaneseq
    %v4777 = vshrl.u32 %v4776, 7
    %v4778 = vsub.s32 %v4755, %v4777
    %v4779 = vrot.slane %v4727, %v4778
    %v4780 = vlaneseq
    %v4781 = vshrl.u32 %v4780, 7
    %v4782 = vsub.s32 %v4755, %v4781
    %v4783 = vrot.slane %v4728, %v4782
    %v4784 = vlaneseq
    %v4785 = vshrl.u32 %v4784, 7
    %v4786 = vsub.s32 %v4755, %v4785
    %v4787 = vrot.slane %v4729, %v4786
    %vm4788 = vcmask 1041409
    %v4789 = vsel %vm4788, %v4763, %v4759
    %vm4790 = vcmask 1042434
    %v4791 = vsel %vm4790, %v4767, %v4789
    %vm4792 = vcmask 1043459
    %v4793 = vsel %vm4792, %v4771, %v4791
    %vm4794 = vcmask 1044484
    %v4795 = vsel %vm4794, %v4775, %v4793
    %vm4796 = vcmask 1045509
    %v4797 = vsel %vm4796, %v4779, %v4795
    %vm4798 = vcmask 1046534
    %v4799 = vsel %vm4798, %v4783, %v4797
    %vm4800 = vcmask 1047559
    %v4801 = vsel %vm4800, %v4787, %v4799
    %4803 = vxpose.xlu0.b32.start [1/16] %v4801, 128
    %4804 = vxpose.xlu0.b32.cont [2/16] 0.0, 128
    %4805 = vxpose.xlu0.b32.cont [3/16] 0.0, 128
    %4806 = vxpose.xlu0.b32.cont [4/16] 0.0, 128
    %4807 = vxpose.xlu0.b32.cont [5/16] 0.0, 128
    %4808 = vxpose.xlu0.b32.cont [6/16] 0.0, 128
    %4809 = vxpose.xlu0.b32.cont [7/16] 0.0, 128
    %4810 = vxpose.xlu0.b32.cont [8/16] 0.0, 128
    %4811 = vxpose.xlu0.b32.cont [9/16] 0.0, 128
    %4812 = vxpose.xlu0.b32.cont [10/16] 0.0, 128
    %4813 = vxpose.xlu0.b32.cont [11/16] 0.0, 128
    %4814 = vxpose.xlu0.b32.cont [12/16] 0.0, 128
    %4815 = vxpose.xlu0.b32.cont [13/16] 0.0, 128
    %4816 = vxpose.xlu0.b32.cont [14/16] 0.0, 128
    %4817 = vxpose.xlu0.b32.cont [15/16] 0.0, 128
    %4818 = vxpose.xlu0.b32.end [16/16] 0.0, 128
    %v4819 = vpop.trf.xlu0
    %v4820 = vpop.trf.xlu0
    %v4821 = vpop.trf.xlu0
    %v4822 = vpop.trf.xlu0
    %v4823 = vpop.trf.xlu0
    %v4824 = vpop.trf.xlu0
    %v4825 = vpop.trf.xlu0
    %v4826 = vpop.trf.xlu0
    %v4827 = vpop.trf.xlu0
    %v4828 = vpop.trf.xlu0
    %v4829 = vpop.trf.xlu0
    %v4830 = vpop.trf.xlu0
    %v4831 = vpop.trf.xlu0
    %v4832 = vpop.trf.xlu0
    %v4833 = vpop.trf.xlu0
    %v4834 = vpop.trf.xlu0
    %vm4835 = vcmask 64512
    %4836 = vst.msk [vmem:[%s8] sm:$0xff] %vm4835, %v4819
    %4845 = vset.pattern.permute.xlu0 12
    %4846 = vperm.xlu0 %4845, %v4417
    %v4847 = vpop.permute.xlu0 %4846
    %4848 = vset.pattern.permute.xlu0 12
    %4849 = vperm.xlu0 %4848, %v4418
    %v4850 = vpop.permute.xlu0 %4849
    %4851 = vset.pattern.permute.xlu0 12
    %4852 = vperm.xlu0 %4851, %v4419
    %v4853 = vpop.permute.xlu0 %4852
    %4854 = vset.pattern.permute.xlu0 12
    %4855 = vperm.xlu0 %4854, %v4420
    %v4856 = vpop.permute.xlu0 %4855
    %4857 = vset.pattern.permute.xlu0 12
    %4858 = vperm.xlu0 %4857, %v4421
    %v4859 = vpop.permute.xlu0 %4858
    %4860 = vset.pattern.permute.xlu0 12
    %4861 = vperm.xlu0 %4860, %v4422
    %v4862 = vpop.permute.xlu0 %4861
    %4863 = vset.pattern.permute.xlu0 12
    %4864 = vperm.xlu0 %4863, %v4423
    %v4865 = vpop.permute.xlu0 %4864
    %4866 = vset.pattern.permute.xlu0 12
    %4867 = vperm.xlu0 %4866, %v4424
    %v4868 = vpop.permute.xlu0 %4867
    %v4869 = vlaneseq
    %v4870 = vshrl.u32 %v4869, 7
    %v4871 = vsub.s32 %v4755, %v4870
    %v4872 = vrot.slane %v4847, %v4871
    %v4873 = vlaneseq
    %v4874 = vshrl.u32 %v4873, 7
    %v4875 = vsub.s32 %v4755, %v4874
    %v4876 = vrot.slane %v4850, %v4875
    %v4877 = vlaneseq
    %v4878 = vshrl.u32 %v4877, 7
    %v4879 = vsub.s32 %v4755, %v4878
    %v4880 = vrot.slane %v4853, %v4879
    %v4881 = vlaneseq
    %v4882 = vshrl.u32 %v4881, 7
    %v4883 = vsub.s32 %v4755, %v4882
    %v4884 = vrot.slane %v4856, %v4883
    %v4885 = vlaneseq
    %v4886 = vshrl.u32 %v4885, 7
    %v4887 = vsub.s32 %v4755, %v4886
    %v4888 = vrot.slane %v4859, %v4887
    %v4889 = vlaneseq
    %v4890 = vshrl.u32 %v4889, 7
    %v4891 = vsub.s32 %v4755, %v4890
    %v4892 = vrot.slane %v4862, %v4891
    %v4893 = vlaneseq
    %v4894 = vshrl.u32 %v4893, 7
    %v4895 = vsub.s32 %v4755, %v4894
    %v4896 = vrot.slane %v4865, %v4895
    %v4897 = vlaneseq
    %v4898 = vshrl.u32 %v4897, 7
    %v4899 = vsub.s32 %v4755, %v4898
    %v4900 = vrot.slane %v4868, %v4899
    %v4901 = vsel %vm4788, %v4876, %v4872
    %v4902 = vsel %vm4790, %v4880, %v4901
    %v4903 = vsel %vm4792, %v4884, %v4902
    %v4904 = vsel %vm4794, %v4888, %v4903
    %v4905 = vsel %vm4796, %v4892, %v4904
    %v4906 = vsel %vm4798, %v4896, %v4905
    %v4907 = vsel %vm4800, %v4900, %v4906
    %4909 = vxpose.xlu0.b32.start [1/16] %v4907, 128
    %4910 = vxpose.xlu0.b32.cont [2/16] 0.0, 128
    %4911 = vxpose.xlu0.b32.cont [3/16] 0.0, 128
    %4912 = vxpose.xlu0.b32.cont [4/16] 0.0, 128
    %4913 = vxpose.xlu0.b32.cont [5/16] 0.0, 128
    %4914 = vxpose.xlu0.b32.cont [6/16] 0.0, 128
    %4915 = vxpose.xlu0.b32.cont [7/16] 0.0, 128
    %4916 = vxpose.xlu0.b32.cont [8/16] 0.0, 128
    %4917 = vxpose.xlu0.b32.cont [9/16] 0.0, 128
    %4918 = vxpose.xlu0.b32.cont [10/16] 0.0, 128
    %4919 = vxpose.xlu0.b32.cont [11/16] 0.0, 128
    %4920 = vxpose.xlu0.b32.cont [12/16] 0.0, 128
    %4921 = vxpose.xlu0.b32.cont [13/16] 0.0, 128
    %4922 = vxpose.xlu0.b32.cont [14/16] 0.0, 128
    %4923 = vxpose.xlu0.b32.cont [15/16] 0.0, 128
    %4924 = vxpose.xlu0.b32.end [16/16] 0.0, 128
    %v4925 = vpop.trf.xlu0
    %v4926 = vpop.trf.xlu0
    %v4927 = vpop.trf.xlu0
    %v4928 = vpop.trf.xlu0
    %v4929 = vpop.trf.xlu0
    %v4930 = vpop.trf.xlu0
    %v4931 = vpop.trf.xlu0
    %v4932 = vpop.trf.xlu0
    %v4933 = vpop.trf.xlu0
    %v4934 = vpop.trf.xlu0
    %v4935 = vpop.trf.xlu0
    %v4936 = vpop.trf.xlu0
    %v4937 = vpop.trf.xlu0
    %v4938 = vpop.trf.xlu0
    %v4939 = vpop.trf.xlu0
    %v4940 = vpop.trf.xlu0
    %4941 = vst.msk [vmem:[%s8 + $0x8] sm:$0xff] %vm4835, %v4925
    %v4950 = vlaneseq
    %v4951 = vshrl.u32 %v4950, 7
    %v4952 = vsub.s32 %v4755, %v4951
    %v4953 = vrot.slane %v4738, %v4952
    %v4954 = vlaneseq
    %v4955 = vshrl.u32 %v4954, 7
    %v4956 = vsub.s32 %v4755, %v4955
    %v4957 = vrot.slane %v4739, %v4956
    %v4958 = vlaneseq
    %v4959 = vshrl.u32 %v4958, 7
    %v4960 = vsub.s32 %v4755, %v4959
    %v4961 = vrot.slane %v4740, %v4960
    %v4962 = vlaneseq
    %v4963 = vshrl.u32 %v4962, 7
    %v4964 = vsub.s32 %v4755, %v4963
    %v4965 = vrot.slane %v4741, %v4964
    %v4966 = vlaneseq
    %v4967 = vshrl.u32 %v4966, 7
    %v4968 = vsub.s32 %v4755, %v4967
    %v4969 = vrot.slane %v4742, %v4968
    %v4970 = vlaneseq
    %v4971 = vshrl.u32 %v4970, 7
    %v4972 = vsub.s32 %v4755, %v4971
    %v4973 = vrot.slane %v4743, %v4972
    %v4974 = vlaneseq
    %v4975 = vshrl.u32 %v4974, 7
    %v4976 = vsub.s32 %v4755, %v4975
    %v4977 = vrot.slane %v4744, %v4976
    %v4978 = vlaneseq
    %v4979 = vshrl.u32 %v4978, 7
    %v4980 = vsub.s32 %v4755, %v4979
    %v4981 = vrot.slane %v4745, %v4980
    %v4982 = vsel %vm4788, %v4957, %v4953
    %v4983 = vsel %vm4790, %v4961, %v4982
    %v4984 = vsel %vm4792, %v4965, %v4983
    %v4985 = vsel %vm4794, %v4969, %v4984
    %v4986 = vsel %vm4796, %v4973, %v4985
    %v4987 = vsel %vm4798, %v4977, %v4986
    %v4988 = vsel %vm4800, %v4981, %v4987
    %4990 = vxpose.xlu0.b32.start [1/16] %v4988, 128
    %4991 = vxpose.xlu0.b32.cont [2/16] 0.0, 128
    %4992 = vxpose.xlu0.b32.cont [3/16] 0.0, 128
    %4993 = vxpose.xlu0.b32.cont [4/16] 0.0, 128
    %4994 = vxpose.xlu0.b32.cont [5/16] 0.0, 128
    %4995 = vxpose.xlu0.b32.cont [6/16] 0.0, 128
    %4996 = vxpose.xlu0.b32.cont [7/16] 0.0, 128
    %4997 = vxpose.xlu0.b32.cont [8/16] 0.0, 128
    %4998 = vxpose.xlu0.b32.cont [9/16] 0.0, 128
    %4999 = vxpose.xlu0.b32.cont [10/16] 0.0, 128
    %5000 = vxpose.xlu0.b32.cont [11/16] 0.0, 128
    %5001 = vxpose.xlu0.b32.cont [12/16] 0.0, 128
    %5002 = vxpose.xlu0.b32.cont [13/16] 0.0, 128
    %5003 = vxpose.xlu0.b32.cont [14/16] 0.0, 128
    %5004 = vxpose.xlu0.b32.cont [15/16] 0.0, 128
    %5005 = vxpose.xlu0.b32.end [16/16] 0.0, 128
    %v5006 = vpop.trf.xlu0
    %v5007 = vpop.trf.xlu0
    %v5008 = vpop.trf.xlu0
    %v5009 = vpop.trf.xlu0
    %v5010 = vpop.trf.xlu0
    %v5011 = vpop.trf.xlu0
    %v5012 = vpop.trf.xlu0
    %v5013 = vpop.trf.xlu0
    %v5014 = vpop.trf.xlu0
    %v5015 = vpop.trf.xlu0
    %v5016 = vpop.trf.xlu0
    %v5017 = vpop.trf.xlu0
    %v5018 = vpop.trf.xlu0
    %v5019 = vpop.trf.xlu0
    %v5020 = vpop.trf.xlu0
    %v5021 = vpop.trf.xlu0
    %5022 = vst.msk [vmem:[%s8 + $0x10] sm:$0xff] %vm4835, %v5006
    // Predicated region
    $region42: #{tpu_custom_call.1} parent=1 // pred_check
      _
    $region43: #{tpu_custom_call.1} parent=1 // pred_check_branch
      %5024 = sbr.rel (0) target = $region45
    $region44: #{tpu_custom_call.1} parent=1 // pred_region
      _
    $region45: #{tpu_custom_call.1} parent=1 // pred_fallthru
      _
    // Predicated region
    $region46: #{tpu_custom_call.1} parent=1 // pred_check
      _
    $region47: #{tpu_custom_call.1} parent=1 // pred_check_branch
      %5026 = sbr.rel (0) target = $region49
    $region48: #{tpu_custom_call.1} parent=1 // pred_region
      _
    $region49: #{tpu_custom_call.1} parent=1 // pred_fallthru
      _
    %5027 = vsyncpa [#allocation6], 1

</llo_original>
